<compile_context>
chip_gen: v7x
topology: tpu7x:2x2x1
jax: 0.10.0
libtpu: 0.0.40
codegen_flags: <defaults>
</compile_context>

<pallas_src>
import numpy as np

import jax
import jax.numpy as jnp
from jax import lax
from jax.experimental import pallas as pl
from jax.experimental.pallas import tpu as pltpu


MATMUL_DTYPE = jnp.float32  # jnp.bfloat16 is faster on v6e/v7x if tolerance allows.


# ----------------------------------------------------------------------------
# Host-side parameter folding (runs eagerly, NOT inside jit / the kernel).
# ----------------------------------------------------------------------------
def _build_banded_weight(w_hwio, width):
    """Fold the kx / ci contraction of a 3x3 SAME conv into 3 banded matrices.

    w_hwio: (3, 3, CI, CO) BN-folded conv weight (HWIO).
    Returns (3, (width+2)*CI, width*CO) such that for kernel row ky
        out[y, x*CO + co] += sum_j halo[y+ky, j] * BW[ky, j, x*CO + co]
    is exactly that row's contribution to the SAME-padded 3x3 convolution, where
    halo rows are flattened as [pad_pixel, pixel_0 .. pixel_{W-1}, pad_pixel] * CI.
    """
    w_np = np.asarray(w_hwio, np.float32)
    _, _, ci, co = w_np.shape
    bw = np.zeros((3, (width + 2) * ci, width * co), np.float32)
    for ky in range(3):
        for x in range(width):
            for kx in range(3):
                p = x + kx  # halo pixel index (0 == left zero-pad pixel)
                bw[ky, p * ci:(p + 1) * ci, x * co:(x + 1) * co] = w_np[ky, kx]
    return jnp.asarray(bw)


def _build_pool_selectors(h, w, co):
    """Exact 0/1 selection matrices: 2x2 maxpool de-interleave done on the MXU."""
    ho, wo = h // 2, w // 2
    rsel = np.zeros((2 * ho, h), np.float32)
    for i in range(ho):
        rsel[i, 2 * i] = 1.0            # even rows  -> top half
        rsel[ho + i, 2 * i + 1] = 1.0   # odd rows   -> bottom half
    csel = np.zeros((w * co, 2 * wo * co), np.float32)
    for xo in range(wo):
        for c in range(co):
            csel[(2 * xo) * co + c, xo * co + c] = 1.0                  # even pixels
            csel[(2 * xo + 1) * co + c, wo * co + xo * co + c] = 1.0    # odd pixels
    return jnp.asarray(rsel), jnp.asarray(csel)


def _prepare_encoder_inputs(params, height, width):
    """Flatten/fold all conv parameters into MXU-friendly operands + BlockSpecs."""
    num_levels = len(params)
    level_dims = []
    conv_arrays, conv_specs = [], []
    pool_arrays, pool_specs = [], []

    hl, wl = height, width
    ci = params[0][0][0].shape[2]  # input channels of the first conv
    for lvl, ((w1, b1), (w2, b2)) in enumerate(params):
        co = int(w1.shape[-1])
        level_dims.append((hl, wl, ci, co))
        for wgt, bias, cin_conv in ((w1, b1, ci), (w2, b2, co)):
            bw = _build_banded_weight(wgt, wl).astype(MATMUL_DTYPE)
            bt = jnp.tile(jnp.asarray(bias, jnp.float32), wl).reshape(1, wl * co)
            conv_arrays += [bw, bt]
            # NOTE(perf): these blocks are grid-invariant; at these sizes the default
            # pipelining fetches them once, so Buffered(1) is left out for simplicity.
            conv_specs += [pl.BlockSpec(bw.shape, lambda i: (0, 0, 0)),
                           pl.BlockSpec(bt.shape, lambda i: (0, 0))]
        if lvl < num_levels - 1:
            rsel, csel = _build_pool_selectors(hl, wl, co)
            pool_arrays += [rsel, csel]
            pool_specs += [pl.BlockSpec(rsel.shape, lambda i: (0, 0)),
                           pl.BlockSpec(csel.shape, lambda i: (0, 0))]
        ci = co
        hl, wl = hl // 2, wl // 2

    return level_dims, conv_arrays, conv_specs, pool_arrays, pool_specs


# ----------------------------------------------------------------------------
# Fused Pallas kernel: whole encoder for one batch element per grid step.
# ----------------------------------------------------------------------------
def _zero_halo_border(halo_ref, ch):
    """Zero ONLY the 1-pixel border of a flattened (rows, (W+2)*ch) halo buffer."""
    rows, rowlen = halo_ref.shape
    zrow = jnp.zeros((1, rowlen), halo_ref.dtype)
    halo_ref[0:1, :] = zrow
    halo_ref[rows - 1:rows, :] = zrow
    zcol = jnp.zeros((rows - 2, ch), halo_ref.dtype)
    halo_ref[1:rows - 1, 0:ch] = zcol
    halo_ref[1:rows - 1, rowlen - ch:rowlen] = zcol


def _make_encoder_kernel(level_dims):
    nl = len(level_dims)

    def kernel(*refs):
        x_ref = refs[0]
        conv_refs = refs[1:1 + 4 * nl]
        pool_refs = refs[1 + 4 * nl:1 + 4 * nl + 2 * (nl - 1)]
        o_start = 1 + 4 * nl + 2 * (nl - 1)
        out_refs = refs[o_start:o_start + nl]
        halo_refs = refs[o_start + nl:]  # 2 per level: (conv1-input, conv2-input)

        # Border-only zeroing; interiors are fully rewritten before being read, so
        # each grid step is independent (safe for "parallel" batch sharding).
        for lvl in range(nl):
            _, _, ci, co = level_dims[lvl]
            _zero_halo_border(halo_refs[2 * lvl], ci)
            _zero_halo_border(halo_refs[2 * lvl + 1], co)

        def conv3x3_bn_relu(halo_ref, h, bw_ref, bias_ref):
            # halo_ref: (h+2, (w+2)*cin) zero-bordered, lane-dense input.
            # bw_ref:   (3, (w+2)*cin, w*cout) banded BN-folded weight.
            # bias_ref: (1, w*cout) channel-tiled folded bias.
            ncols = bias_ref.shape[1]
            acc = jnp.zeros((h, ncols), jnp.float32)
            for ky in range(3):
                slab = halo_ref[ky:ky + h, :]
                acc = acc + jnp.dot(slab.astype(bw_ref.dtype), bw_ref[ky],
                                    preferred_element_type=jnp.float32)
            return jnp.maximum(acc + bias_ref[...], 0.0)  # (h, w*cout)

        # Seed level-1 conv1 halo with this image (already in the halo's flat layout).
        h0, w0, c0, _ = level_dims[0]
        halo_refs[0][1:h0 + 1, c0:(w0 + 1) * c0] = x_ref[...]

        for lvl in range(nl):
            h, w, ci, co = level_dims[lvl]
            halo_in = halo_refs[2 * lvl]
            halo_mid = halo_refs[2 * lvl + 1]
            bw1, b1, bw2, b2 = conv_refs[4 * lvl:4 * lvl + 4]

            y1 = conv3x3_bn_relu(halo_in, h, bw1, b1)      # (h, w*co)
            halo_mid[1:h + 1, co:(w + 1) * co] = y1        # conv2's halo interior
            y2 = conv3x3_bn_relu(halo_mid, h, bw2, b2)     # (h, w*co)

            out_refs[lvl][...] = y2                        # lane-dense HBM store

            if lvl < nl - 1:
                # 2x2 maxpool: exact 0/1 selection matmuls (MXU) + elementwise max.
                ho, wo = h // 2, w // 2
                rsel = pool_refs[2 * lvl][...]             # (2*ho, h)
                csel = pool_refs[2 * lvl + 1][...]         # (w*co, 2*wo*co)
                rows = jnp.dot(rsel, y2, preferred_element_type=jnp.float32)
                rmax = jnp.maximum(rows[:ho, :], rows[ho:, :])          # pool H
                cols = jnp.dot(rmax, csel, preferred_element_type=jnp.float32)
                pooled = jnp.maximum(cols[:, :wo * co], cols[:, wo * co:])  # pool W
                # Write straight into the next level's conv1 halo interior.
                halo_refs[2 * (lvl + 1)][1:ho + 1, co:(wo + 1) * co] = pooled

    return kernel


# ----------------------------------------------------------------------------
# Wrapper: single pallas_call for the whole encoder.
# ----------------------------------------------------------------------------
def make_encoder_forward(params, batch, height, width, *, nchw_outputs=False):
    """Build the fused Encoder.forward.

    params: list of 6 conv blocks, each ((w1, b1), (w2, b2)) with HWIO weights and
            BN-folded biases.  Returns a jit-able fn x_nchw -> (e1..e6).
    Outputs are NHWC by default (avoids 6 extra HBM transpose passes); set
    nchw_outputs=True for the exact PyTorch layout.
    """
    assert height % 32 == 0 and width % 32 == 0, "5 maxpools need spatial % 32 == 0"
    c_in = int(params[0][0][0].shape[2])

    (level_dims, conv_arrays, conv_specs,
     pool_arrays, pool_specs) = _prepare_encoder_inputs(params, height, width)
    kernel = _make_encoder_kernel(level_dims)

    in_specs = ([pl.BlockSpec((None, height, width * c_in), lambda i: (i, 0, 0))]
                + conv_specs + pool_specs)

    out_shapes, out_specs, scratch = [], [], []
    for hl, wl, ci, co in level_dims:
        out_shapes.append(jax.ShapeDtypeStruct((batch, hl, wl * co), jnp.float32))
        out_specs.append(pl.BlockSpec((None, hl, wl * co), lambda i: (i, 0, 0)))
        scratch.append(pltpu.VMEM((hl + 2, (wl + 2) * ci), jnp.float32))  # conv1 halo
        scratch.append(pltpu.VMEM((hl + 2, (wl + 2) * co), jnp.float32))  # conv2 halo

    call = pl.pallas_call(
        kernel,
        out_shape=tuple(out_shapes),
        grid=(batch,),
        in_specs=in_specs,
        out_specs=tuple(out_specs),
        scratch_shapes=scratch,
        compiler_params=pltpu.CompilerParams(dimension_semantics=("parallel",)),
    )

    def forward(x_nchw):
        x_flat = (jnp.transpose(x_nchw, (0, 2, 3, 1))
                  .reshape(batch, height, width * c_in).astype(jnp.float32))
        outs = call(x_flat, *conv_arrays, *pool_arrays)
        es = tuple(o.reshape(batch, hl, wl, co)
                   for o, (hl, wl, _ci, co) in zip(outs, level_dims))
        if nchw_outputs:
            es = tuple(jnp.transpose(e, (0, 3, 1, 2)) for e in es)
        return es

    return forward


# ----------------------------------------------------------------------------
# Deterministic synthetic parameters (Conv2d 3x3 no-bias + folded eval BatchNorm).
# ----------------------------------------------------------------------------
def make_conv_module_params(key, cin, cout, eps=1e-5):
    kw, kg, kb, km, kv = jax.random.split(key, 5)
    w = 0.1 * jax.random.normal(kw, (3, 3, cin, cout), jnp.float32)   # HWIO
    gamma = 1.0 + 0.1 * jax.random.normal(kg, (cout,), jnp.float32)
    beta = 0.1 * jax.random.normal(kb, (cout,), jnp.float32)
    mean = 0.1 * jax.random.normal(km, (cout,), jnp.float32)
    var = jnp.abs(1.0 + 0.1 * jax.random.normal(kv, (cout,), jnp.float32))
    scale = gamma / jnp.sqrt(var + eps)
    return w * scale, beta - mean * scale   # folded weight, folded bias


# ----------------------------------------------------------------------------
# Plain-JAX reference for validation (NHWC).
# ----------------------------------------------------------------------------
def ref_conv_block(x_nhwc, block_params):
    for wgt, bias in block_params:
        y = lax.conv_general_dilated(
            x_nhwc, wgt, window_strides=(1, 1), padding="SAME",
            dimension_numbers=("NHWC", "HWIO", "NHWC"),
            precision=lax.Precision.HIGHEST)
        x_nhwc = jnp.maximum(y + bias, 0.0)
    return x_nhwc


def ref_pool(x_nhwc):
    return lax.reduce_window(x_nhwc, -jnp.inf, lax.max,
                             (1, 2, 2, 1), (1, 2, 2, 1), "VALID")


if __name__ == "__main__":
    in_channels, base_width = 3, 4
    N, H, W = 2, 32, 32   # 5 maxpools => spatial must be divisible by 32

    key = jax.random.PRNGKey(0)
    kx, kp = jax.random.split(key)
    x = jax.random.normal(kx, (N, in_channels, H, W), jnp.float32)  # NCHW input

    # Channel plan matches Encoder.__init__:
    chan_plan = [
        (in_channels, base_width),
        (base_width, base_width * 2),
        (base_width * 2, base_width * 4),
        (base_width * 4, base_width * 8),
        (base_width * 8, base_width * 8),
        (base_width * 8, base_width * 8),
    ]
    keys = jax.random.split(kp, len(chan_plan) * 2)
    params = []
    for i, (cin, cout) in enumerate(chan_plan):
        p1 = make_conv_module_params(keys[2 * i], cin, cout)
        p2 = make_conv_module_params(keys[2 * i + 1], cout, cout)
        params.append((p1, p2))

    fwd = jax.jit(make_encoder_forward(params, N, H, W))   # NHWC outputs by default
    outs = jax.block_until_ready(fwd(x))

    # Validate against a pure-JAX reference using the same folded parameters.
    cur = jnp.transpose(x, (0, 2, 3, 1))
    refs_out = []
    for i in range(6):
        e = ref_conv_block(cur, params[i])
        refs_out.append(e)
        if i < 5:
            cur = ref_pool(e)

    for idx, (o, r) in enumerate(zip(outs, refs_out)):
        assert o.shape == r.shape, (idx, o.shape, r.shape)
        max_diff = float(jnp.max(jnp.abs(o - r)))
        assert jnp.allclose(o, r, rtol=1e-3, atol=1e-3), (idx, max_diff)

    print("KERNEL_OK")
</pallas_src>

<mosaic_0001>
module attributes {stable_mosaic.version = 11 : i64} {
  func.func @kernel(%arg0: i32, %arg1: memref<1x32x96xf32, #tpu.memory_space<vmem>>, %arg2: memref<3x102x128xf32, #tpu.memory_space<vmem>>, %arg3: memref<1x128xf32, #tpu.memory_space<vmem>>, %arg4: memref<3x136x128xf32, #tpu.memory_space<vmem>>, %arg5: memref<1x128xf32, #tpu.memory_space<vmem>>, %arg6: memref<3x72x128xf32, #tpu.memory_space<vmem>>, %arg7: memref<1x128xf32, #tpu.memory_space<vmem>>, %arg8: memref<3x144x128xf32, #tpu.memory_space<vmem>>, %arg9: memref<1x128xf32, #tpu.memory_space<vmem>>, %arg10: memref<3x80x128xf32, #tpu.memory_space<vmem>>, %arg11: memref<1x128xf32, #tpu.memory_space<vmem>>, %arg12: memref<3x160x128xf32, #tpu.memory_space<vmem>>, %arg13: memref<1x128xf32, #tpu.memory_space<vmem>>, %arg14: memref<3x96x128xf32, #tpu.memory_space<vmem>>, %arg15: memref<1x128xf32, #tpu.memory_space<vmem>>, %arg16: memref<3x192x128xf32, #tpu.memory_space<vmem>>, %arg17: memref<1x128xf32, #tpu.memory_space<vmem>>, %arg18: memref<3x128x64xf32, #tpu.memory_space<vmem>>, %arg19: memref<1x64xf32, #tpu.memory_space<vmem>>, %arg20: memref<3x128x64xf32, #tpu.memory_space<vmem>>, %arg21: memref<1x64xf32, #tpu.memory_space<vmem>>, %arg22: memref<3x96x32xf32, #tpu.memory_space<vmem>>, %arg23: memref<1x32xf32, #tpu.memory_space<vmem>>, %arg24: memref<3x96x32xf32, #tpu.memory_space<vmem>>, %arg25: memref<1x32xf32, #tpu.memory_space<vmem>>, %arg26: memref<32x32xf32, #tpu.memory_space<vmem>>, %arg27: memref<128x128xf32, #tpu.memory_space<vmem>>, %arg28: memref<16x16xf32, #tpu.memory_space<vmem>>, %arg29: memref<128x128xf32, #tpu.memory_space<vmem>>, %arg30: memref<8x8xf32, #tpu.memory_space<vmem>>, %arg31: memref<128x128xf32, #tpu.memory_space<vmem>>, %arg32: memref<4x4xf32, #tpu.memory_space<vmem>>, %arg33: memref<128x128xf32, #tpu.memory_space<vmem>>, %arg34: memref<2x2xf32, #tpu.memory_space<vmem>>, %arg35: memref<64x64xf32, #tpu.memory_space<vmem>>, %arg36: memref<1x32x128xf32, #tpu.memory_space<vmem>>, %arg37: memref<1x16x128xf32, #tpu.memory_space<vmem>>, %arg38: memref<1x8x128xf32, #tpu.memory_space<vmem>>, %arg39: memref<1x4x128xf32, #tpu.memory_space<vmem>>, %arg40: memref<1x2x64xf32, #tpu.memory_space<vmem>>, %arg41: memref<1x1x32xf32, #tpu.memory_space<vmem>>, %arg42: memref<34x102xf32, #tpu.memory_space<vmem>>, %arg43: memref<34x136xf32, #tpu.memory_space<vmem>>, %arg44: memref<18x72xf32, #tpu.memory_space<vmem>>, %arg45: memref<18x144xf32, #tpu.memory_space<vmem>>, %arg46: memref<10x80xf32, #tpu.memory_space<vmem>>, %arg47: memref<10x160xf32, #tpu.memory_space<vmem>>, %arg48: memref<6x96xf32, #tpu.memory_space<vmem>>, %arg49: memref<6x192xf32, #tpu.memory_space<vmem>>, %arg50: memref<4x128xf32, #tpu.memory_space<vmem>>, %arg51: memref<4x128xf32, #tpu.memory_space<vmem>>, %arg52: memref<3x96xf32, #tpu.memory_space<vmem>>, %arg53: memref<3x96xf32, #tpu.memory_space<vmem>>) attributes {dimension_semantics = [#tpu.dimension_semantics<parallel>], iteration_bounds = array<i64: 2>, scalar_prefetch = 0 : i64, scratch_operands = 12 : i64, tpu.core_type = #tpu.core_type<tc>, window_params = [{transform_indices = @transform_0, window_bounds = array<i64: 1, 32, 96>}, {pipeline_mode = #tpu.pipeline_mode<synchronous>, transform_indices = @transform_1, window_bounds = array<i64: 3, 102, 128>}, {pipeline_mode = #tpu.pipeline_mode<synchronous>, transform_indices = @transform_2, window_bounds = array<i64: 1, 128>}, {pipeline_mode = #tpu.pipeline_mode<synchronous>, transform_indices = @transform_3, window_bounds = array<i64: 3, 136, 128>}, {pipeline_mode = #tpu.pipeline_mode<synchronous>, transform_indices = @transform_4, window_bounds = array<i64: 1, 128>}, {pipeline_mode = #tpu.pipeline_mode<synchronous>, transform_indices = @transform_5, window_bounds = array<i64: 3, 72, 128>}, {pipeline_mode = #tpu.pipeline_mode<synchronous>, transform_indices = @transform_6, window_bounds = array<i64: 1, 128>}, {pipeline_mode = #tpu.pipeline_mode<synchronous>, transform_indices = @transform_7, window_bounds = array<i64: 3, 144, 128>}, {pipeline_mode = #tpu.pipeline_mode<synchronous>, transform_indices = @transform_8, window_bounds = array<i64: 1, 128>}, {pipeline_mode = #tpu.pipeline_mode<synchronous>, transform_indices = @transform_9, window_bounds = array<i64: 3, 80, 128>}, {pipeline_mode = #tpu.pipeline_mode<synchronous>, transform_indices = @transform_10, window_bounds = array<i64: 1, 128>}, {pipeline_mode = #tpu.pipeline_mode<synchronous>, transform_indices = @transform_11, window_bounds = array<i64: 3, 160, 128>}, {pipeline_mode = #tpu.pipeline_mode<synchronous>, transform_indices = @transform_12, window_bounds = array<i64: 1, 128>}, {pipeline_mode = #tpu.pipeline_mode<synchronous>, transform_indices = @transform_13, window_bounds = array<i64: 3, 96, 128>}, {pipeline_mode = #tpu.pipeline_mode<synchronous>, transform_indices = @transform_14, window_bounds = array<i64: 1, 128>}, {pipeline_mode = #tpu.pipeline_mode<synchronous>, transform_indices = @transform_15, window_bounds = array<i64: 3, 192, 128>}, {pipeline_mode = #tpu.pipeline_mode<synchronous>, transform_indices = @transform_16, window_bounds = array<i64: 1, 128>}, {pipeline_mode = #tpu.pipeline_mode<synchronous>, transform_indices = @transform_17, window_bounds = array<i64: 3, 128, 64>}, {pipeline_mode = #tpu.pipeline_mode<synchronous>, transform_indices = @transform_18, window_bounds = array<i64: 1, 64>}, {pipeline_mode = #tpu.pipeline_mode<synchronous>, transform_indices = @transform_19, window_bounds = array<i64: 3, 128, 64>}, {pipeline_mode = #tpu.pipeline_mode<synchronous>, transform_indices = @transform_20, window_bounds = array<i64: 1, 64>}, {pipeline_mode = #tpu.pipeline_mode<synchronous>, transform_indices = @transform_21, window_bounds = array<i64: 3, 96, 32>}, {pipeline_mode = #tpu.pipeline_mode<synchronous>, transform_indices = @transform_22, window_bounds = array<i64: 1, 32>}, {pipeline_mode = #tpu.pipeline_mode<synchronous>, transform_indices = @transform_23, window_bounds = array<i64: 3, 96, 32>}, {pipeline_mode = #tpu.pipeline_mode<synchronous>, transform_indices = @transform_24, window_bounds = array<i64: 1, 32>}, {pipeline_mode = #tpu.pipeline_mode<synchronous>, transform_indices = @transform_25, window_bounds = array<i64: 32, 32>}, {pipeline_mode = #tpu.pipeline_mode<synchronous>, transform_indices = @transform_26, window_bounds = array<i64: 128, 128>}, {pipeline_mode = #tpu.pipeline_mode<synchronous>, transform_indices = @transform_27, window_bounds = array<i64: 16, 16>}, {pipeline_mode = #tpu.pipeline_mode<synchronous>, transform_indices = @transform_28, window_bounds = array<i64: 128, 128>}, {pipeline_mode = #tpu.pipeline_mode<synchronous>, transform_indices = @transform_29, window_bounds = array<i64: 8, 8>}, {pipeline_mode = #tpu.pipeline_mode<synchronous>, transform_indices = @transform_30, window_bounds = array<i64: 128, 128>}, {pipeline_mode = #tpu.pipeline_mode<synchronous>, transform_indices = @transform_31, window_bounds = array<i64: 4, 4>}, {pipeline_mode = #tpu.pipeline_mode<synchronous>, transform_indices = @transform_32, window_bounds = array<i64: 128, 128>}, {pipeline_mode = #tpu.pipeline_mode<synchronous>, transform_indices = @transform_33, window_bounds = array<i64: 2, 2>}, {pipeline_mode = #tpu.pipeline_mode<synchronous>, transform_indices = @transform_34, window_bounds = array<i64: 64, 64>}, {transform_indices = @transform_35, window_bounds = array<i64: 1, 32, 128>}, {transform_indices = @transform_36, window_bounds = array<i64: 1, 16, 128>}, {transform_indices = @transform_37, window_bounds = array<i64: 1, 8, 128>}, {transform_indices = @transform_38, window_bounds = array<i64: 1, 4, 128>}, {transform_indices = @transform_39, window_bounds = array<i64: 1, 2, 64>}, {transform_indices = @transform_40, window_bounds = array<i64: 1, 1, 32>}]} {
    %cst = arith.constant 0.000000e+00 : f32
    %0 = vector.broadcast %cst : f32 to vector<1x102xf32>
    %c0 = arith.constant 0 : index
    %c0_0 = arith.constant 0 : index
    %1 = vector.load %arg42[%c0, %c0_0] : memref<34x102xf32, #tpu.memory_space<vmem>>, vector<1x102xf32>
    tpu.vector_store %arg42[%c0, %c0_0], %0 {strides = array<i32>} : memref<34x102xf32, #tpu.memory_space<vmem>>, vector<1x102xf32>,
    %c33 = arith.constant 33 : index
    %c0_1 = arith.constant 0 : index
    %2 = vector.load %arg42[%c33, %c0_1] : memref<34x102xf32, #tpu.memory_space<vmem>>, vector<1x102xf32>
    tpu.vector_store %arg42[%c33, %c0_1], %0 {strides = array<i32>} : memref<34x102xf32, #tpu.memory_space<vmem>>, vector<1x102xf32>,
    %cst_2 = arith.constant 0.000000e+00 : f32
    %3 = vector.broadcast %cst_2 : f32 to vector<32x3xf32>
    %c1 = arith.constant 1 : index
    %c0_3 = arith.constant 0 : index
    %4 = vector.load %arg42[%c1, %c0_3] : memref<34x102xf32, #tpu.memory_space<vmem>>, vector<32x3xf32>
    tpu.vector_store %arg42[%c1, %c0_3], %3 {strides = array<i32>} : memref<34x102xf32, #tpu.memory_space<vmem>>, vector<32x3xf32>,
    %c1_4 = arith.constant 1 : index
    %c99 = arith.constant 99 : index
    %5 = vector.load %arg42[%c1_4, %c99] : memref<34x102xf32, #tpu.memory_space<vmem>>, vector<32x3xf32>
    tpu.vector_store %arg42[%c1_4, %c99], %3 {strides = array<i32>} : memref<34x102xf32, #tpu.memory_space<vmem>>, vector<32x3xf32>,
    %cst_5 = arith.constant 0.000000e+00 : f32
    %6 = vector.broadcast %cst_5 : f32 to vector<1x136xf32>
    %c0_6 = arith.constant 0 : index
    %c0_7 = arith.constant 0 : index
    %7 = vector.load %arg43[%c0_6, %c0_7] : memref<34x136xf32, #tpu.memory_space<vmem>>, vector<1x136xf32>
    tpu.vector_store %arg43[%c0_6, %c0_7], %6 {strides = array<i32>} : memref<34x136xf32, #tpu.memory_space<vmem>>, vector<1x136xf32>,
    %c33_8 = arith.constant 33 : index
    %c0_9 = arith.constant 0 : index
    %8 = vector.load %arg43[%c33_8, %c0_9] : memref<34x136xf32, #tpu.memory_space<vmem>>, vector<1x136xf32>
    tpu.vector_store %arg43[%c33_8, %c0_9], %6 {strides = array<i32>} : memref<34x136xf32, #tpu.memory_space<vmem>>, vector<1x136xf32>,
    %cst_10 = arith.constant 0.000000e+00 : f32
    %9 = vector.broadcast %cst_10 : f32 to vector<32x4xf32>
    %c1_11 = arith.constant 1 : index
    %c0_12 = arith.constant 0 : index
    %10 = vector.load %arg43[%c1_11, %c0_12] : memref<34x136xf32, #tpu.memory_space<vmem>>, vector<32x4xf32>
    tpu.vector_store %arg43[%c1_11, %c0_12], %9 {strides = array<i32>} : memref<34x136xf32, #tpu.memory_space<vmem>>, vector<32x4xf32>,
    %c1_13 = arith.constant 1 : index
    %c132 = arith.constant 132 : index
    %11 = vector.load %arg43[%c1_13, %c132] : memref<34x136xf32, #tpu.memory_space<vmem>>, vector<32x4xf32>
    tpu.vector_store %arg43[%c1_13, %c132], %9 {strides = array<i32>} : memref<34x136xf32, #tpu.memory_space<vmem>>, vector<32x4xf32>,
    %cst_14 = arith.constant 0.000000e+00 : f32
    %12 = vector.broadcast %cst_14 : f32 to vector<1x72xf32>
    %c0_15 = arith.constant 0 : index
    %c0_16 = arith.constant 0 : index
    %13 = vector.load %arg44[%c0_15, %c0_16] : memref<18x72xf32, #tpu.memory_space<vmem>>, vector<1x72xf32>
    tpu.vector_store %arg44[%c0_15, %c0_16], %12 {strides = array<i32>} : memref<18x72xf32, #tpu.memory_space<vmem>>, vector<1x72xf32>,
    %c17 = arith.constant 17 : index
    %c0_17 = arith.constant 0 : index
    %14 = vector.load %arg44[%c17, %c0_17] : memref<18x72xf32, #tpu.memory_space<vmem>>, vector<1x72xf32>
    tpu.vector_store %arg44[%c17, %c0_17], %12 {strides = array<i32>} : memref<18x72xf32, #tpu.memory_space<vmem>>, vector<1x72xf32>,
    %cst_18 = arith.constant 0.000000e+00 : f32
    %15 = vector.broadcast %cst_18 : f32 to vector<16x4xf32>
    %c1_19 = arith.constant 1 : index
    %c0_20 = arith.constant 0 : index
    %16 = vector.load %arg44[%c1_19, %c0_20] : memref<18x72xf32, #tpu.memory_space<vmem>>, vector<16x4xf32>
    tpu.vector_store %arg44[%c1_19, %c0_20], %15 {strides = array<i32>} : memref<18x72xf32, #tpu.memory_space<vmem>>, vector<16x4xf32>,
    %c1_21 = arith.constant 1 : index
    %c68 = arith.constant 68 : index
    %17 = vector.load %arg44[%c1_21, %c68] : memref<18x72xf32, #tpu.memory_space<vmem>>, vector<16x4xf32>
    tpu.vector_store %arg44[%c1_21, %c68], %15 {strides = array<i32>} : memref<18x72xf32, #tpu.memory_space<vmem>>, vector<16x4xf32>,
    %cst_22 = arith.constant 0.000000e+00 : f32
    %18 = vector.broadcast %cst_22 : f32 to vector<1x144xf32>
    %c0_23 = arith.constant 0 : index
    %c0_24 = arith.constant 0 : index
    %19 = vector.load %arg45[%c0_23, %c0_24] : memref<18x144xf32, #tpu.memory_space<vmem>>, vector<1x144xf32>
    tpu.vector_store %arg45[%c0_23, %c0_24], %18 {strides = array<i32>} : memref<18x144xf32, #tpu.memory_space<vmem>>, vector<1x144xf32>,
    %c17_25 = arith.constant 17 : index
    %c0_26 = arith.constant 0 : index
    %20 = vector.load %arg45[%c17_25, %c0_26] : memref<18x144xf32, #tpu.memory_space<vmem>>, vector<1x144xf32>
    tpu.vector_store %arg45[%c17_25, %c0_26], %18 {strides = array<i32>} : memref<18x144xf32, #tpu.memory_space<vmem>>, vector<1x144xf32>,
    %cst_27 = arith.constant 0.000000e+00 : f32
    %21 = vector.broadcast %cst_27 : f32 to vector<16x8xf32>
    %c1_28 = arith.constant 1 : index
    %c0_29 = arith.constant 0 : index
    %22 = vector.load %arg45[%c1_28, %c0_29] : memref<18x144xf32, #tpu.memory_space<vmem>>, vector<16x8xf32>
    tpu.vector_store %arg45[%c1_28, %c0_29], %21 {strides = array<i32>} : memref<18x144xf32, #tpu.memory_space<vmem>>, vector<16x8xf32>,
    %c1_30 = arith.constant 1 : index
    %c136 = arith.constant 136 : index
    %23 = vector.load %arg45[%c1_30, %c136] : memref<18x144xf32, #tpu.memory_space<vmem>>, vector<16x8xf32>
    tpu.vector_store %arg45[%c1_30, %c136], %21 {strides = array<i32>} : memref<18x144xf32, #tpu.memory_space<vmem>>, vector<16x8xf32>,
    %cst_31 = arith.constant 0.000000e+00 : f32
    %24 = vector.broadcast %cst_31 : f32 to vector<1x80xf32>
    %c0_32 = arith.constant 0 : index
    %c0_33 = arith.constant 0 : index
    %25 = vector.load %arg46[%c0_32, %c0_33] : memref<10x80xf32, #tpu.memory_space<vmem>>, vector<1x80xf32>
    tpu.vector_store %arg46[%c0_32, %c0_33], %24 {strides = array<i32>} : memref<10x80xf32, #tpu.memory_space<vmem>>, vector<1x80xf32>,
    %c9 = arith.constant 9 : index
    %c0_34 = arith.constant 0 : index
    %26 = vector.load %arg46[%c9, %c0_34] : memref<10x80xf32, #tpu.memory_space<vmem>>, vector<1x80xf32>
    tpu.vector_store %arg46[%c9, %c0_34], %24 {strides = array<i32>} : memref<10x80xf32, #tpu.memory_space<vmem>>, vector<1x80xf32>,
    %cst_35 = arith.constant 0.000000e+00 : f32
    %27 = vector.broadcast %cst_35 : f32 to vector<8x8xf32>
    %c1_36 = arith.constant 1 : index
    %c0_37 = arith.constant 0 : index
    %28 = vector.load %arg46[%c1_36, %c0_37] : memref<10x80xf32, #tpu.memory_space<vmem>>, vector<8x8xf32>
    tpu.vector_store %arg46[%c1_36, %c0_37], %27 {strides = array<i32>} : memref<10x80xf32, #tpu.memory_space<vmem>>, vector<8x8xf32>,
    %c1_38 = arith.constant 1 : index
    %c72 = arith.constant 72 : index
    %29 = vector.load %arg46[%c1_38, %c72] : memref<10x80xf32, #tpu.memory_space<vmem>>, vector<8x8xf32>
    tpu.vector_store %arg46[%c1_38, %c72], %27 {strides = array<i32>} : memref<10x80xf32, #tpu.memory_space<vmem>>, vector<8x8xf32>,
    %cst_39 = arith.constant 0.000000e+00 : f32
    %30 = vector.broadcast %cst_39 : f32 to vector<1x160xf32>
    %c0_40 = arith.constant 0 : index
    %c0_41 = arith.constant 0 : index
    %31 = vector.load %arg47[%c0_40, %c0_41] : memref<10x160xf32, #tpu.memory_space<vmem>>, vector<1x160xf32>
    tpu.vector_store %arg47[%c0_40, %c0_41], %30 {strides = array<i32>} : memref<10x160xf32, #tpu.memory_space<vmem>>, vector<1x160xf32>,
    %c9_42 = arith.constant 9 : index
    %c0_43 = arith.constant 0 : index
    %32 = vector.load %arg47[%c9_42, %c0_43] : memref<10x160xf32, #tpu.memory_space<vmem>>, vector<1x160xf32>
    tpu.vector_store %arg47[%c9_42, %c0_43], %30 {strides = array<i32>} : memref<10x160xf32, #tpu.memory_space<vmem>>, vector<1x160xf32>,
    %cst_44 = arith.constant 0.000000e+00 : f32
    %33 = vector.broadcast %cst_44 : f32 to vector<8x16xf32>
    %c1_45 = arith.constant 1 : index
    %c0_46 = arith.constant 0 : index
    %34 = vector.load %arg47[%c1_45, %c0_46] : memref<10x160xf32, #tpu.memory_space<vmem>>, vector<8x16xf32>
    tpu.vector_store %arg47[%c1_45, %c0_46], %33 {strides = array<i32>} : memref<10x160xf32, #tpu.memory_space<vmem>>, vector<8x16xf32>,
    %c1_47 = arith.constant 1 : index
    %c144 = arith.constant 144 : index
    %35 = vector.load %arg47[%c1_47, %c144] : memref<10x160xf32, #tpu.memory_space<vmem>>, vector<8x16xf32>
    tpu.vector_store %arg47[%c1_47, %c144], %33 {strides = array<i32>} : memref<10x160xf32, #tpu.memory_space<vmem>>, vector<8x16xf32>,
    %cst_48 = arith.constant 0.000000e+00 : f32
    %36 = vector.broadcast %cst_48 : f32 to vector<1x96xf32>
    %c0_49 = arith.constant 0 : index
    %c0_50 = arith.constant 0 : index
    %37 = vector.load %arg48[%c0_49, %c0_50] : memref<6x96xf32, #tpu.memory_space<vmem>>, vector<1x96xf32>
    tpu.vector_store %arg48[%c0_49, %c0_50], %36 {strides = array<i32>} : memref<6x96xf32, #tpu.memory_space<vmem>>, vector<1x96xf32>,
    %c5 = arith.constant 5 : index
    %c0_51 = arith.constant 0 : index
    %38 = vector.load %arg48[%c5, %c0_51] : memref<6x96xf32, #tpu.memory_space<vmem>>, vector<1x96xf32>
    tpu.vector_store %arg48[%c5, %c0_51], %36 {strides = array<i32>} : memref<6x96xf32, #tpu.memory_space<vmem>>, vector<1x96xf32>,
    %cst_52 = arith.constant 0.000000e+00 : f32
    %39 = vector.broadcast %cst_52 : f32 to vector<4x16xf32>
    %c1_53 = arith.constant 1 : index
    %c0_54 = arith.constant 0 : index
    %40 = vector.load %arg48[%c1_53, %c0_54] : memref<6x96xf32, #tpu.memory_space<vmem>>, vector<4x16xf32>
    tpu.vector_store %arg48[%c1_53, %c0_54], %39 {strides = array<i32>} : memref<6x96xf32, #tpu.memory_space<vmem>>, vector<4x16xf32>,
    %c1_55 = arith.constant 1 : index
    %c80 = arith.constant 80 : index
    %41 = vector.load %arg48[%c1_55, %c80] : memref<6x96xf32, #tpu.memory_space<vmem>>, vector<4x16xf32>
    tpu.vector_store %arg48[%c1_55, %c80], %39 {strides = array<i32>} : memref<6x96xf32, #tpu.memory_space<vmem>>, vector<4x16xf32>,
    %cst_56 = arith.constant 0.000000e+00 : f32
    %42 = vector.broadcast %cst_56 : f32 to vector<1x192xf32>
    %c0_57 = arith.constant 0 : index
    %c0_58 = arith.constant 0 : index
    %43 = vector.load %arg49[%c0_57, %c0_58] : memref<6x192xf32, #tpu.memory_space<vmem>>, vector<1x192xf32>
    tpu.vector_store %arg49[%c0_57, %c0_58], %42 {strides = array<i32>} : memref<6x192xf32, #tpu.memory_space<vmem>>, vector<1x192xf32>,
    %c5_59 = arith.constant 5 : index
    %c0_60 = arith.constant 0 : index
    %44 = vector.load %arg49[%c5_59, %c0_60] : memref<6x192xf32, #tpu.memory_space<vmem>>, vector<1x192xf32>
    tpu.vector_store %arg49[%c5_59, %c0_60], %42 {strides = array<i32>} : memref<6x192xf32, #tpu.memory_space<vmem>>, vector<1x192xf32>,
    %cst_61 = arith.constant 0.000000e+00 : f32
    %45 = vector.broadcast %cst_61 : f32 to vector<4x32xf32>
    %c1_62 = arith.constant 1 : index
    %c0_63 = arith.constant 0 : index
    %46 = vector.load %arg49[%c1_62, %c0_63] : memref<6x192xf32, #tpu.memory_space<vmem>>, vector<4x32xf32>
    tpu.vector_store %arg49[%c1_62, %c0_63], %45 {strides = array<i32>} : memref<6x192xf32, #tpu.memory_space<vmem>>, vector<4x32xf32>,
    %c1_64 = arith.constant 1 : index
    %c160 = arith.constant 160 : index
    %47 = vector.load %arg49[%c1_64, %c160] : memref<6x192xf32, #tpu.memory_space<vmem>>, vector<4x32xf32>
    tpu.vector_store %arg49[%c1_64, %c160], %45 {strides = array<i32>} : memref<6x192xf32, #tpu.memory_space<vmem>>, vector<4x32xf32>,
    %cst_65 = arith.constant 0.000000e+00 : f32
    %48 = vector.broadcast %cst_65 : f32 to vector<1x128xf32>
    %c0_66 = arith.constant 0 : index
    %c0_67 = arith.constant 0 : index
    %49 = vector.load %arg50[%c0_66, %c0_67] : memref<4x128xf32, #tpu.memory_space<vmem>>, vector<1x128xf32>
    tpu.vector_store %arg50[%c0_66, %c0_67], %48 {strides = array<i32>} : memref<4x128xf32, #tpu.memory_space<vmem>>, vector<1x128xf32>,
    %c3 = arith.constant 3 : index
    %c0_68 = arith.constant 0 : index
    %50 = vector.load %arg50[%c3, %c0_68] : memref<4x128xf32, #tpu.memory_space<vmem>>, vector<1x128xf32>
    tpu.vector_store %arg50[%c3, %c0_68], %48 {strides = array<i32>} : memref<4x128xf32, #tpu.memory_space<vmem>>, vector<1x128xf32>,
    %cst_69 = arith.constant 0.000000e+00 : f32
    %51 = vector.broadcast %cst_69 : f32 to vector<2x32xf32>
    %c1_70 = arith.constant 1 : index
    %c0_71 = arith.constant 0 : index
    %52 = vector.load %arg50[%c1_70, %c0_71] : memref<4x128xf32, #tpu.memory_space<vmem>>, vector<2x32xf32>
    tpu.vector_store %arg50[%c1_70, %c0_71], %51 {strides = array<i32>} : memref<4x128xf32, #tpu.memory_space<vmem>>, vector<2x32xf32>,
    %c1_72 = arith.constant 1 : index
    %c96 = arith.constant 96 : index
    %53 = vector.load %arg50[%c1_72, %c96] : memref<4x128xf32, #tpu.memory_space<vmem>>, vector<2x32xf32>
    tpu.vector_store %arg50[%c1_72, %c96], %51 {strides = array<i32>} : memref<4x128xf32, #tpu.memory_space<vmem>>, vector<2x32xf32>,
    %cst_73 = arith.constant 0.000000e+00 : f32
    %54 = vector.broadcast %cst_73 : f32 to vector<1x128xf32>
    %c0_74 = arith.constant 0 : index
    %c0_75 = arith.constant 0 : index
    %55 = vector.load %arg51[%c0_74, %c0_75] : memref<4x128xf32, #tpu.memory_space<vmem>>, vector<1x128xf32>
    tpu.vector_store %arg51[%c0_74, %c0_75], %54 {strides = array<i32>} : memref<4x128xf32, #tpu.memory_space<vmem>>, vector<1x128xf32>,
    %c3_76 = arith.constant 3 : index
    %c0_77 = arith.constant 0 : index
    %56 = vector.load %arg51[%c3_76, %c0_77] : memref<4x128xf32, #tpu.memory_space<vmem>>, vector<1x128xf32>
    tpu.vector_store %arg51[%c3_76, %c0_77], %54 {strides = array<i32>} : memref<4x128xf32, #tpu.memory_space<vmem>>, vector<1x128xf32>,
    %cst_78 = arith.constant 0.000000e+00 : f32
    %57 = vector.broadcast %cst_78 : f32 to vector<2x32xf32>
    %c1_79 = arith.constant 1 : index
    %c0_80 = arith.constant 0 : index
    %58 = vector.load %arg51[%c1_79, %c0_80] : memref<4x128xf32, #tpu.memory_space<vmem>>, vector<2x32xf32>
    tpu.vector_store %arg51[%c1_79, %c0_80], %57 {strides = array<i32>} : memref<4x128xf32, #tpu.memory_space<vmem>>, vector<2x32xf32>,
    %c1_81 = arith.constant 1 : index
    %c96_82 = arith.constant 96 : index
    %59 = vector.load %arg51[%c1_81, %c96_82] : memref<4x128xf32, #tpu.memory_space<vmem>>, vector<2x32xf32>
    tpu.vector_store %arg51[%c1_81, %c96_82], %57 {strides = array<i32>} : memref<4x128xf32, #tpu.memory_space<vmem>>, vector<2x32xf32>,
    %cst_83 = arith.constant 0.000000e+00 : f32
    %60 = vector.broadcast %cst_83 : f32 to vector<1x96xf32>
    %c0_84 = arith.constant 0 : index
    %c0_85 = arith.constant 0 : index
    %61 = vector.load %arg52[%c0_84, %c0_85] : memref<3x96xf32, #tpu.memory_space<vmem>>, vector<1x96xf32>
    tpu.vector_store %arg52[%c0_84, %c0_85], %60 {strides = array<i32>} : memref<3x96xf32, #tpu.memory_space<vmem>>, vector<1x96xf32>,
    %c2 = arith.constant 2 : index
    %c0_86 = arith.constant 0 : index
    %62 = vector.load %arg52[%c2, %c0_86] : memref<3x96xf32, #tpu.memory_space<vmem>>, vector<1x96xf32>
    tpu.vector_store %arg52[%c2, %c0_86], %60 {strides = array<i32>} : memref<3x96xf32, #tpu.memory_space<vmem>>, vector<1x96xf32>,
    %cst_87 = arith.constant 0.000000e+00 : f32
    %63 = vector.broadcast %cst_87 : f32 to vector<1x32xf32>
    %c1_88 = arith.constant 1 : index
    %c0_89 = arith.constant 0 : index
    %64 = vector.load %arg52[%c1_88, %c0_89] : memref<3x96xf32, #tpu.memory_space<vmem>>, vector<1x32xf32>
    tpu.vector_store %arg52[%c1_88, %c0_89], %63 {strides = array<i32>} : memref<3x96xf32, #tpu.memory_space<vmem>>, vector<1x32xf32>,
    %c1_90 = arith.constant 1 : index
    %c64 = arith.constant 64 : index
    %65 = vector.load %arg52[%c1_90, %c64] : memref<3x96xf32, #tpu.memory_space<vmem>>, vector<1x32xf32>
    tpu.vector_store %arg52[%c1_90, %c64], %63 {strides = array<i32>} : memref<3x96xf32, #tpu.memory_space<vmem>>, vector<1x32xf32>,
    %cst_91 = arith.constant 0.000000e+00 : f32
    %66 = vector.broadcast %cst_91 : f32 to vector<1x96xf32>
    %c0_92 = arith.constant 0 : index
    %c0_93 = arith.constant 0 : index
    %67 = vector.load %arg53[%c0_92, %c0_93] : memref<3x96xf32, #tpu.memory_space<vmem>>, vector<1x96xf32>
    tpu.vector_store %arg53[%c0_92, %c0_93], %66 {strides = array<i32>} : memref<3x96xf32, #tpu.memory_space<vmem>>, vector<1x96xf32>,
    %c2_94 = arith.constant 2 : index
    %c0_95 = arith.constant 0 : index
    %68 = vector.load %arg53[%c2_94, %c0_95] : memref<3x96xf32, #tpu.memory_space<vmem>>, vector<1x96xf32>
    tpu.vector_store %arg53[%c2_94, %c0_95], %66 {strides = array<i32>} : memref<3x96xf32, #tpu.memory_space<vmem>>, vector<1x96xf32>,
    %cst_96 = arith.constant 0.000000e+00 : f32
    %69 = vector.broadcast %cst_96 : f32 to vector<1x32xf32>
    %c1_97 = arith.constant 1 : index
    %c0_98 = arith.constant 0 : index
    %70 = vector.load %arg53[%c1_97, %c0_98] : memref<3x96xf32, #tpu.memory_space<vmem>>, vector<1x32xf32>
    tpu.vector_store %arg53[%c1_97, %c0_98], %69 {strides = array<i32>} : memref<3x96xf32, #tpu.memory_space<vmem>>, vector<1x32xf32>,
    %c1_99 = arith.constant 1 : index
    %c64_100 = arith.constant 64 : index
    %71 = vector.load %arg53[%c1_99, %c64_100] : memref<3x96xf32, #tpu.memory_space<vmem>>, vector<1x32xf32>
    tpu.vector_store %arg53[%c1_99, %c64_100], %69 {strides = array<i32>} : memref<3x96xf32, #tpu.memory_space<vmem>>, vector<1x32xf32>,
    %c0_101 = arith.constant 0 : index
    %c0_102 = arith.constant 0 : index
    %c0_103 = arith.constant 0 : index
    %72 = vector.load %arg1[%c0_101, %c0_102, %c0_103] : memref<1x32x96xf32, #tpu.memory_space<vmem>>, vector<1x32x96xf32>
    %73 = vector.shape_cast %72 : vector<1x32x96xf32> to vector<32x96xf32>
    %c1_104 = arith.constant 1 : index
    %c3_105 = arith.constant 3 : index
    %74 = vector.load %arg42[%c1_104, %c3_105] : memref<34x102xf32, #tpu.memory_space<vmem>>, vector<32x96xf32>
    tpu.vector_store %arg42[%c1_104, %c3_105], %73 {strides = array<i32>} : memref<34x102xf32, #tpu.memory_space<vmem>>, vector<32x96xf32>,
    %cst_106 = arith.constant 0.000000e+00 : f32
    %75 = vector.broadcast %cst_106 : f32 to vector<32x128xf32>
    %c0_107 = arith.constant 0 : index
    %c0_108 = arith.constant 0 : index
    %76 = vector.load %arg42[%c0_107, %c0_108] : memref<34x102xf32, #tpu.memory_space<vmem>>, vector<32x102xf32>
    %c0_109 = arith.constant 0 : index
    %c0_110 = arith.constant 0 : index
    %c0_111 = arith.constant 0 : index
    %77 = vector.load %arg2[%c0_109, %c0_110, %c0_111] : memref<3x102x128xf32, #tpu.memory_space<vmem>>, vector<1x102x128xf32>
    %78 = vector.shape_cast %77 : vector<1x102x128xf32> to vector<102x128xf32>
    %cst_112 = arith.constant dense<0.000000e+00> : vector<32x128xf32>
    %79 = tpu.matmul %76, %78, %cst_112 {dimension_numbers = #tpu.dot_dimension_numbers<[1], [0], [0], [1], [0, 0, 1, 1], [], []>} : vector<32x102xf32>, vector<102x128xf32>, vector<32x128xf32> -> vector<32x128xf32>
    %80 = arith.addf %75, %79 : vector<32x128xf32>
    %c1_113 = arith.constant 1 : index
    %c0_114 = arith.constant 0 : index
    %81 = vector.load %arg42[%c1_113, %c0_114] : memref<34x102xf32, #tpu.memory_space<vmem>>, vector<32x102xf32>
    %c1_115 = arith.constant 1 : index
    %c0_116 = arith.constant 0 : index
    %c0_117 = arith.constant 0 : index
    %82 = vector.load %arg2[%c1_115, %c0_116, %c0_117] : memref<3x102x128xf32, #tpu.memory_space<vmem>>, vector<1x102x128xf32>
    %83 = vector.shape_cast %82 : vector<1x102x128xf32> to vector<102x128xf32>
    %cst_118 = arith.constant dense<0.000000e+00> : vector<32x128xf32>
    %84 = tpu.matmul %81, %83, %cst_118 {dimension_numbers = #tpu.dot_dimension_numbers<[1], [0], [0], [1], [0, 0, 1, 1], [], []>} : vector<32x102xf32>, vector<102x128xf32>, vector<32x128xf32> -> vector<32x128xf32>
    %85 = arith.addf %80, %84 : vector<32x128xf32>
    %c2_119 = arith.constant 2 : index
    %c0_120 = arith.constant 0 : index
    %86 = vector.load %arg42[%c2_119, %c0_120] : memref<34x102xf32, #tpu.memory_space<vmem>>, vector<32x102xf32>
    %c2_121 = arith.constant 2 : index
    %c0_122 = arith.constant 0 : index
    %c0_123 = arith.constant 0 : index
    %87 = vector.load %arg2[%c2_121, %c0_122, %c0_123] : memref<3x102x128xf32, #tpu.memory_space<vmem>>, vector<1x102x128xf32>
    %88 = vector.shape_cast %87 : vector<1x102x128xf32> to vector<102x128xf32>
    %cst_124 = arith.constant dense<0.000000e+00> : vector<32x128xf32>
    %89 = tpu.matmul %86, %88, %cst_124 {dimension_numbers = #tpu.dot_dimension_numbers<[1], [0], [0], [1], [0, 0, 1, 1], [], []>} : vector<32x102xf32>, vector<102x128xf32>, vector<32x128xf32> -> vector<32x128xf32>
    %90 = arith.addf %85, %89 : vector<32x128xf32>
    %c0_125 = arith.constant 0 : index
    %c0_126 = arith.constant 0 : index
    %91 = vector.load %arg3[%c0_125, %c0_126] : memref<1x128xf32, #tpu.memory_space<vmem>>, vector<1x128xf32>
    %92 = vector.broadcast %91 : vector<1x128xf32> to vector<32x128xf32>
    %93 = arith.addf %90, %92 : vector<32x128xf32>
    %cst_127 = arith.constant 0.000000e+00 : f32
    %94 = vector.broadcast %cst_127 : f32 to vector<32x128xf32>
    %95 = arith.maximumf %93, %94 : vector<32x128xf32>
    %c1_128 = arith.constant 1 : index
    %c4 = arith.constant 4 : index
    %96 = vector.load %arg43[%c1_128, %c4] : memref<34x136xf32, #tpu.memory_space<vmem>>, vector<32x128xf32>
    tpu.vector_store %arg43[%c1_128, %c4], %95 {strides = array<i32>} : memref<34x136xf32, #tpu.memory_space<vmem>>, vector<32x128xf32>,
    %cst_129 = arith.constant 0.000000e+00 : f32
    %97 = vector.broadcast %cst_129 : f32 to vector<32x128xf32>
    %c0_130 = arith.constant 0 : index
    %c0_131 = arith.constant 0 : index
    %98 = vector.load %arg43[%c0_130, %c0_131] : memref<34x136xf32, #tpu.memory_space<vmem>>, vector<32x136xf32>
    %c0_132 = arith.constant 0 : index
    %c0_133 = arith.constant 0 : index
    %c0_134 = arith.constant 0 : index
    %99 = vector.load %arg4[%c0_132, %c0_133, %c0_134] : memref<3x136x128xf32, #tpu.memory_space<vmem>>, vector<1x136x128xf32>
    %100 = vector.shape_cast %99 : vector<1x136x128xf32> to vector<136x128xf32>
    %cst_135 = arith.constant dense<0.000000e+00> : vector<32x128xf32>
    %101 = tpu.matmul %98, %100, %cst_135 {dimension_numbers = #tpu.dot_dimension_numbers<[1], [0], [0], [1], [0, 0, 1, 1], [], []>} : vector<32x136xf32>, vector<136x128xf32>, vector<32x128xf32> -> vector<32x128xf32>
    %102 = arith.addf %97, %101 : vector<32x128xf32>
    %c1_136 = arith.constant 1 : index
    %c0_137 = arith.constant 0 : index
    %103 = vector.load %arg43[%c1_136, %c0_137] : memref<34x136xf32, #tpu.memory_space<vmem>>, vector<32x136xf32>
    %c1_138 = arith.constant 1 : index
    %c0_139 = arith.constant 0 : index
    %c0_140 = arith.constant 0 : index
    %104 = vector.load %arg4[%c1_138, %c0_139, %c0_140] : memref<3x136x128xf32, #tpu.memory_space<vmem>>, vector<1x136x128xf32>
    %105 = vector.shape_cast %104 : vector<1x136x128xf32> to vector<136x128xf32>
    %cst_141 = arith.constant dense<0.000000e+00> : vector<32x128xf32>
    %106 = tpu.matmul %103, %105, %cst_141 {dimension_numbers = #tpu.dot_dimension_numbers<[1], [0], [0], [1], [0, 0, 1, 1], [], []>} : vector<32x136xf32>, vector<136x128xf32>, vector<32x128xf32> -> vector<32x128xf32>
    %107 = arith.addf %102, %106 : vector<32x128xf32>
    %c2_142 = arith.constant 2 : index
    %c0_143 = arith.constant 0 : index
    %108 = vector.load %arg43[%c2_142, %c0_143] : memref<34x136xf32, #tpu.memory_space<vmem>>, vector<32x136xf32>
    %c2_144 = arith.constant 2 : index
    %c0_145 = arith.constant 0 : index
    %c0_146 = arith.constant 0 : index
    %109 = vector.load %arg4[%c2_144, %c0_145, %c0_146] : memref<3x136x128xf32, #tpu.memory_space<vmem>>, vector<1x136x128xf32>
    %110 = vector.shape_cast %109 : vector<1x136x128xf32> to vector<136x128xf32>
    %cst_147 = arith.constant dense<0.000000e+00> : vector<32x128xf32>
    %111 = tpu.matmul %108, %110, %cst_147 {dimension_numbers = #tpu.dot_dimension_numbers<[1], [0], [0], [1], [0, 0, 1, 1], [], []>} : vector<32x136xf32>, vector<136x128xf32>, vector<32x128xf32> -> vector<32x128xf32>
    %112 = arith.addf %107, %111 : vector<32x128xf32>
    %c0_148 = arith.constant 0 : index
    %c0_149 = arith.constant 0 : index
    %113 = vector.load %arg5[%c0_148, %c0_149] : memref<1x128xf32, #tpu.memory_space<vmem>>, vector<1x128xf32>
    %114 = vector.broadcast %113 : vector<1x128xf32> to vector<32x128xf32>
    %115 = arith.addf %112, %114 : vector<32x128xf32>
    %cst_150 = arith.constant 0.000000e+00 : f32
    %116 = vector.broadcast %cst_150 : f32 to vector<32x128xf32>
    %117 = arith.maximumf %115, %116 : vector<32x128xf32>
    %c0_151 = arith.constant 0 : index
    %c0_152 = arith.constant 0 : index
    %c0_153 = arith.constant 0 : index
    %118 = vector.load %arg36[%c0_151, %c0_152, %c0_153] : memref<1x32x128xf32, #tpu.memory_space<vmem>>, vector<1x32x128xf32>
    %119 = vector.shape_cast %118 : vector<1x32x128xf32> to vector<32x128xf32>
    %120 = vector.shape_cast %117 : vector<32x128xf32> to vector<1x32x128xf32>
    tpu.vector_store %arg36[%c0_151, %c0_152, %c0_153], %120 {strides = array<i32>} : memref<1x32x128xf32, #tpu.memory_space<vmem>>, vector<1x32x128xf32>,
    %c0_154 = arith.constant 0 : index
    %c0_155 = arith.constant 0 : index
    %121 = vector.load %arg26[%c0_154, %c0_155] : memref<32x32xf32, #tpu.memory_space<vmem>>, vector<32x32xf32>
    %c0_156 = arith.constant 0 : index
    %c0_157 = arith.constant 0 : index
    %122 = vector.load %arg27[%c0_156, %c0_157] : memref<128x128xf32, #tpu.memory_space<vmem>>, vector<128x128xf32>
    %cst_158 = arith.constant dense<0.000000e+00> : vector<32x128xf32>
    %123 = tpu.matmul %121, %117, %cst_158 {dimension_numbers = #tpu.dot_dimension_numbers<[1], [0], [0], [1], [0, 0, 1, 1], [], []>} : vector<32x32xf32>, vector<32x128xf32>, vector<32x128xf32> -> vector<32x128xf32>
    %124 = vector.extract_strided_slice %123 {offsets = [0, 0], sizes = [16, 128], strides = [1, 1]} : vector<32x128xf32> to vector<16x128xf32>
    %125 = vector.extract_strided_slice %123 {offsets = [16, 0], sizes = [16, 128], strides = [1, 1]} : vector<32x128xf32> to vector<16x128xf32>
    %126 = arith.maximumf %124, %125 : vector<16x128xf32>
    %cst_159 = arith.constant dense<0.000000e+00> : vector<16x128xf32>
    %127 = tpu.matmul %126, %122, %cst_159 {dimension_numbers = #tpu.dot_dimension_numbers<[1], [0], [0], [1], [0, 0, 1, 1], [], []>} : vector<16x128xf32>, vector<128x128xf32>, vector<16x128xf32> -> vector<16x128xf32>
    %128 = vector.extract_strided_slice %127 {offsets = [0, 0], sizes = [16, 64], strides = [1, 1]} : vector<16x128xf32> to vector<16x64xf32>
    %129 = vector.extract_strided_slice %127 {offsets = [0, 64], sizes = [16, 64], strides = [1, 1]} : vector<16x128xf32> to vector<16x64xf32>
    %130 = arith.maximumf %128, %129 : vector<16x64xf32>
    %c1_160 = arith.constant 1 : index
    %c4_161 = arith.constant 4 : index
    %131 = vector.load %arg44[%c1_160, %c4_161] : memref<18x72xf32, #tpu.memory_space<vmem>>, vector<16x64xf32>
    tpu.vector_store %arg44[%c1_160, %c4_161], %130 {strides = array<i32>} : memref<18x72xf32, #tpu.memory_space<vmem>>, vector<16x64xf32>,
    %cst_162 = arith.constant 0.000000e+00 : f32
    %132 = vector.broadcast %cst_162 : f32 to vector<16x128xf32>
    %c0_163 = arith.constant 0 : index
    %c0_164 = arith.constant 0 : index
    %133 = vector.load %arg44[%c0_163, %c0_164] : memref<18x72xf32, #tpu.memory_space<vmem>>, vector<16x72xf32>
    %c0_165 = arith.constant 0 : index
    %c0_166 = arith.constant 0 : index
    %c0_167 = arith.constant 0 : index
    %134 = vector.load %arg6[%c0_165, %c0_166, %c0_167] : memref<3x72x128xf32, #tpu.memory_space<vmem>>, vector<1x72x128xf32>
    %135 = vector.shape_cast %134 : vector<1x72x128xf32> to vector<72x128xf32>
    %cst_168 = arith.constant dense<0.000000e+00> : vector<16x128xf32>
    %136 = tpu.matmul %133, %135, %cst_168 {dimension_numbers = #tpu.dot_dimension_numbers<[1], [0], [0], [1], [0, 0, 1, 1], [], []>} : vector<16x72xf32>, vector<72x128xf32>, vector<16x128xf32> -> vector<16x128xf32>
    %137 = arith.addf %132, %136 : vector<16x128xf32>
    %c1_169 = arith.constant 1 : index
    %c0_170 = arith.constant 0 : index
    %138 = vector.load %arg44[%c1_169, %c0_170] : memref<18x72xf32, #tpu.memory_space<vmem>>, vector<16x72xf32>
    %c1_171 = arith.constant 1 : index
    %c0_172 = arith.constant 0 : index
    %c0_173 = arith.constant 0 : index
    %139 = vector.load %arg6[%c1_171, %c0_172, %c0_173] : memref<3x72x128xf32, #tpu.memory_space<vmem>>, vector<1x72x128xf32>
    %140 = vector.shape_cast %139 : vector<1x72x128xf32> to vector<72x128xf32>
    %cst_174 = arith.constant dense<0.000000e+00> : vector<16x128xf32>
    %141 = tpu.matmul %138, %140, %cst_174 {dimension_numbers = #tpu.dot_dimension_numbers<[1], [0], [0], [1], [0, 0, 1, 1], [], []>} : vector<16x72xf32>, vector<72x128xf32>, vector<16x128xf32> -> vector<16x128xf32>
    %142 = arith.addf %137, %141 : vector<16x128xf32>
    %c2_175 = arith.constant 2 : index
    %c0_176 = arith.constant 0 : index
    %143 = vector.load %arg44[%c2_175, %c0_176] : memref<18x72xf32, #tpu.memory_space<vmem>>, vector<16x72xf32>
    %c2_177 = arith.constant 2 : index
    %c0_178 = arith.constant 0 : index
    %c0_179 = arith.constant 0 : index
    %144 = vector.load %arg6[%c2_177, %c0_178, %c0_179] : memref<3x72x128xf32, #tpu.memory_space<vmem>>, vector<1x72x128xf32>
    %145 = vector.shape_cast %144 : vector<1x72x128xf32> to vector<72x128xf32>
    %cst_180 = arith.constant dense<0.000000e+00> : vector<16x128xf32>
    %146 = tpu.matmul %143, %145, %cst_180 {dimension_numbers = #tpu.dot_dimension_numbers<[1], [0], [0], [1], [0, 0, 1, 1], [], []>} : vector<16x72xf32>, vector<72x128xf32>, vector<16x128xf32> -> vector<16x128xf32>
    %147 = arith.addf %142, %146 : vector<16x128xf32>
    %c0_181 = arith.constant 0 : index
    %c0_182 = arith.constant 0 : index
    %148 = vector.load %arg7[%c0_181, %c0_182] : memref<1x128xf32, #tpu.memory_space<vmem>>, vector<1x128xf32>
    %149 = vector.broadcast %148 : vector<1x128xf32> to vector<16x128xf32>
    %150 = arith.addf %147, %149 : vector<16x128xf32>
    %cst_183 = arith.constant 0.000000e+00 : f32
    %151 = vector.broadcast %cst_183 : f32 to vector<16x128xf32>
    %152 = arith.maximumf %150, %151 : vector<16x128xf32>
    %c1_184 = arith.constant 1 : index
    %c8 = arith.constant 8 : index
    %153 = vector.load %arg45[%c1_184, %c8] : memref<18x144xf32, #tpu.memory_space<vmem>>, vector<16x128xf32>
    tpu.vector_store %arg45[%c1_184, %c8], %152 {strides = array<i32>} : memref<18x144xf32, #tpu.memory_space<vmem>>, vector<16x128xf32>,
    %cst_185 = arith.constant 0.000000e+00 : f32
    %154 = vector.broadcast %cst_185 : f32 to vector<16x128xf32>
    %c0_186 = arith.constant 0 : index
    %c0_187 = arith.constant 0 : index
    %155 = vector.load %arg45[%c0_186, %c0_187] : memref<18x144xf32, #tpu.memory_space<vmem>>, vector<16x144xf32>
    %c0_188 = arith.constant 0 : index
    %c0_189 = arith.constant 0 : index
    %c0_190 = arith.constant 0 : index
    %156 = vector.load %arg8[%c0_188, %c0_189, %c0_190] : memref<3x144x128xf32, #tpu.memory_space<vmem>>, vector<1x144x128xf32>
    %157 = vector.shape_cast %156 : vector<1x144x128xf32> to vector<144x128xf32>
    %cst_191 = arith.constant dense<0.000000e+00> : vector<16x128xf32>
    %158 = tpu.matmul %155, %157, %cst_191 {dimension_numbers = #tpu.dot_dimension_numbers<[1], [0], [0], [1], [0, 0, 1, 1], [], []>} : vector<16x144xf32>, vector<144x128xf32>, vector<16x128xf32> -> vector<16x128xf32>
    %159 = arith.addf %154, %158 : vector<16x128xf32>
    %c1_192 = arith.constant 1 : index
    %c0_193 = arith.constant 0 : index
    %160 = vector.load %arg45[%c1_192, %c0_193] : memref<18x144xf32, #tpu.memory_space<vmem>>, vector<16x144xf32>
    %c1_194 = arith.constant 1 : index
    %c0_195 = arith.constant 0 : index
    %c0_196 = arith.constant 0 : index
    %161 = vector.load %arg8[%c1_194, %c0_195, %c0_196] : memref<3x144x128xf32, #tpu.memory_space<vmem>>, vector<1x144x128xf32>
    %162 = vector.shape_cast %161 : vector<1x144x128xf32> to vector<144x128xf32>
    %cst_197 = arith.constant dense<0.000000e+00> : vector<16x128xf32>
    %163 = tpu.matmul %160, %162, %cst_197 {dimension_numbers = #tpu.dot_dimension_numbers<[1], [0], [0], [1], [0, 0, 1, 1], [], []>} : vector<16x144xf32>, vector<144x128xf32>, vector<16x128xf32> -> vector<16x128xf32>
    %164 = arith.addf %159, %163 : vector<16x128xf32>
    %c2_198 = arith.constant 2 : index
    %c0_199 = arith.constant 0 : index
    %165 = vector.load %arg45[%c2_198, %c0_199] : memref<18x144xf32, #tpu.memory_space<vmem>>, vector<16x144xf32>
    %c2_200 = arith.constant 2 : index
    %c0_201 = arith.constant 0 : index
    %c0_202 = arith.constant 0 : index
    %166 = vector.load %arg8[%c2_200, %c0_201, %c0_202] : memref<3x144x128xf32, #tpu.memory_space<vmem>>, vector<1x144x128xf32>
    %167 = vector.shape_cast %166 : vector<1x144x128xf32> to vector<144x128xf32>
    %cst_203 = arith.constant dense<0.000000e+00> : vector<16x128xf32>
    %168 = tpu.matmul %165, %167, %cst_203 {dimension_numbers = #tpu.dot_dimension_numbers<[1], [0], [0], [1], [0, 0, 1, 1], [], []>} : vector<16x144xf32>, vector<144x128xf32>, vector<16x128xf32> -> vector<16x128xf32>
    %169 = arith.addf %164, %168 : vector<16x128xf32>
    %c0_204 = arith.constant 0 : index
    %c0_205 = arith.constant 0 : index
    %170 = vector.load %arg9[%c0_204, %c0_205] : memref<1x128xf32, #tpu.memory_space<vmem>>, vector<1x128xf32>
    %171 = vector.broadcast %170 : vector<1x128xf32> to vector<16x128xf32>
    %172 = arith.addf %169, %171 : vector<16x128xf32>
    %cst_206 = arith.constant 0.000000e+00 : f32
    %173 = vector.broadcast %cst_206 : f32 to vector<16x128xf32>
    %174 = arith.maximumf %172, %173 : vector<16x128xf32>
    %c0_207 = arith.constant 0 : index
    %c0_208 = arith.constant 0 : index
    %c0_209 = arith.constant 0 : index
    %175 = vector.load %arg37[%c0_207, %c0_208, %c0_209] : memref<1x16x128xf32, #tpu.memory_space<vmem>>, vector<1x16x128xf32>
    %176 = vector.shape_cast %175 : vector<1x16x128xf32> to vector<16x128xf32>
    %177 = vector.shape_cast %174 : vector<16x128xf32> to vector<1x16x128xf32>
    tpu.vector_store %arg37[%c0_207, %c0_208, %c0_209], %177 {strides = array<i32>} : memref<1x16x128xf32, #tpu.memory_space<vmem>>, vector<1x16x128xf32>,
    %c0_210 = arith.constant 0 : index
    %c0_211 = arith.constant 0 : index
    %178 = vector.load %arg28[%c0_210, %c0_211] : memref<16x16xf32, #tpu.memory_space<vmem>>, vector<16x16xf32>
    %c0_212 = arith.constant 0 : index
    %c0_213 = arith.constant 0 : index
    %179 = vector.load %arg29[%c0_212, %c0_213] : memref<128x128xf32, #tpu.memory_space<vmem>>, vector<128x128xf32>
    %cst_214 = arith.constant dense<0.000000e+00> : vector<16x128xf32>
    %180 = tpu.matmul %178, %174, %cst_214 {dimension_numbers = #tpu.dot_dimension_numbers<[1], [0], [0], [1], [0, 0, 1, 1], [], []>} : vector<16x16xf32>, vector<16x128xf32>, vector<16x128xf32> -> vector<16x128xf32>
    %181 = vector.extract_strided_slice %180 {offsets = [0, 0], sizes = [8, 128], strides = [1, 1]} : vector<16x128xf32> to vector<8x128xf32>
    %182 = vector.extract_strided_slice %180 {offsets = [8, 0], sizes = [8, 128], strides = [1, 1]} : vector<16x128xf32> to vector<8x128xf32>
    %183 = arith.maximumf %181, %182 : vector<8x128xf32>
    %cst_215 = arith.constant dense<0.000000e+00> : vector<8x128xf32>
    %184 = tpu.matmul %183, %179, %cst_215 {dimension_numbers = #tpu.dot_dimension_numbers<[1], [0], [0], [1], [0, 0, 1, 1], [], []>} : vector<8x128xf32>, vector<128x128xf32>, vector<8x128xf32> -> vector<8x128xf32>
    %185 = vector.extract_strided_slice %184 {offsets = [0, 0], sizes = [8, 64], strides = [1, 1]} : vector<8x128xf32> to vector<8x64xf32>
    %186 = vector.extract_strided_slice %184 {offsets = [0, 64], sizes = [8, 64], strides = [1, 1]} : vector<8x128xf32> to vector<8x64xf32>
    %187 = arith.maximumf %185, %186 : vector<8x64xf32>
    %c1_216 = arith.constant 1 : index
    %c8_217 = arith.constant 8 : index
    %188 = vector.load %arg46[%c1_216, %c8_217] : memref<10x80xf32, #tpu.memory_space<vmem>>, vector<8x64xf32>
    tpu.vector_store %arg46[%c1_216, %c8_217], %187 {strides = array<i32>} : memref<10x80xf32, #tpu.memory_space<vmem>>, vector<8x64xf32>,
    %cst_218 = arith.constant 0.000000e+00 : f32
    %189 = vector.broadcast %cst_218 : f32 to vector<8x128xf32>
    %c0_219 = arith.constant 0 : index
    %c0_220 = arith.constant 0 : index
    %190 = vector.load %arg46[%c0_219, %c0_220] : memref<10x80xf32, #tpu.memory_space<vmem>>, vector<8x80xf32>
    %c0_221 = arith.constant 0 : index
    %c0_222 = arith.constant 0 : index
    %c0_223 = arith.constant 0 : index
    %191 = vector.load %arg10[%c0_221, %c0_222, %c0_223] : memref<3x80x128xf32, #tpu.memory_space<vmem>>, vector<1x80x128xf32>
    %192 = vector.shape_cast %191 : vector<1x80x128xf32> to vector<80x128xf32>
    %cst_224 = arith.constant dense<0.000000e+00> : vector<8x128xf32>
    %193 = tpu.matmul %190, %192, %cst_224 {dimension_numbers = #tpu.dot_dimension_numbers<[1], [0], [0], [1], [0, 0, 1, 1], [], []>} : vector<8x80xf32>, vector<80x128xf32>, vector<8x128xf32> -> vector<8x128xf32>
    %194 = arith.addf %189, %193 : vector<8x128xf32>
    %c1_225 = arith.constant 1 : index
    %c0_226 = arith.constant 0 : index
    %195 = vector.load %arg46[%c1_225, %c0_226] : memref<10x80xf32, #tpu.memory_space<vmem>>, vector<8x80xf32>
    %c1_227 = arith.constant 1 : index
    %c0_228 = arith.constant 0 : index
    %c0_229 = arith.constant 0 : index
    %196 = vector.load %arg10[%c1_227, %c0_228, %c0_229] : memref<3x80x128xf32, #tpu.memory_space<vmem>>, vector<1x80x128xf32>
    %197 = vector.shape_cast %196 : vector<1x80x128xf32> to vector<80x128xf32>
    %cst_230 = arith.constant dense<0.000000e+00> : vector<8x128xf32>
    %198 = tpu.matmul %195, %197, %cst_230 {dimension_numbers = #tpu.dot_dimension_numbers<[1], [0], [0], [1], [0, 0, 1, 1], [], []>} : vector<8x80xf32>, vector<80x128xf32>, vector<8x128xf32> -> vector<8x128xf32>
    %199 = arith.addf %194, %198 : vector<8x128xf32>
    %c2_231 = arith.constant 2 : index
    %c0_232 = arith.constant 0 : index
    %200 = vector.load %arg46[%c2_231, %c0_232] : memref<10x80xf32, #tpu.memory_space<vmem>>, vector<8x80xf32>
    %c2_233 = arith.constant 2 : index
    %c0_234 = arith.constant 0 : index
    %c0_235 = arith.constant 0 : index
    %201 = vector.load %arg10[%c2_233, %c0_234, %c0_235] : memref<3x80x128xf32, #tpu.memory_space<vmem>>, vector<1x80x128xf32>
    %202 = vector.shape_cast %201 : vector<1x80x128xf32> to vector<80x128xf32>
    %cst_236 = arith.constant dense<0.000000e+00> : vector<8x128xf32>
    %203 = tpu.matmul %200, %202, %cst_236 {dimension_numbers = #tpu.dot_dimension_numbers<[1], [0], [0], [1], [0, 0, 1, 1], [], []>} : vector<8x80xf32>, vector<80x128xf32>, vector<8x128xf32> -> vector<8x128xf32>
    %204 = arith.addf %199, %203 : vector<8x128xf32>
    %c0_237 = arith.constant 0 : index
    %c0_238 = arith.constant 0 : index
    %205 = vector.load %arg11[%c0_237, %c0_238] : memref<1x128xf32, #tpu.memory_space<vmem>>, vector<1x128xf32>
    %206 = vector.broadcast %205 : vector<1x128xf32> to vector<8x128xf32>
    %207 = arith.addf %204, %206 : vector<8x128xf32>
    %cst_239 = arith.constant 0.000000e+00 : f32
    %208 = vector.broadcast %cst_239 : f32 to vector<8x128xf32>
    %209 = arith.maximumf %207, %208 : vector<8x128xf32>
    %c1_240 = arith.constant 1 : index
    %c16 = arith.constant 16 : index
    %210 = vector.load %arg47[%c1_240, %c16] : memref<10x160xf32, #tpu.memory_space<vmem>>, vector<8x128xf32>
    tpu.vector_store %arg47[%c1_240, %c16], %209 {strides = array<i32>} : memref<10x160xf32, #tpu.memory_space<vmem>>, vector<8x128xf32>,
    %cst_241 = arith.constant 0.000000e+00 : f32
    %211 = vector.broadcast %cst_241 : f32 to vector<8x128xf32>
    %c0_242 = arith.constant 0 : index
    %c0_243 = arith.constant 0 : index
    %212 = vector.load %arg47[%c0_242, %c0_243] : memref<10x160xf32, #tpu.memory_space<vmem>>, vector<8x160xf32>
    %c0_244 = arith.constant 0 : index
    %c0_245 = arith.constant 0 : index
    %c0_246 = arith.constant 0 : index
    %213 = vector.load %arg12[%c0_244, %c0_245, %c0_246] : memref<3x160x128xf32, #tpu.memory_space<vmem>>, vector<1x160x128xf32>
    %214 = vector.shape_cast %213 : vector<1x160x128xf32> to vector<160x128xf32>
    %cst_247 = arith.constant dense<0.000000e+00> : vector<8x128xf32>
    %215 = tpu.matmul %212, %214, %cst_247 {dimension_numbers = #tpu.dot_dimension_numbers<[1], [0], [0], [1], [0, 0, 1, 1], [], []>} : vector<8x160xf32>, vector<160x128xf32>, vector<8x128xf32> -> vector<8x128xf32>
    %216 = arith.addf %211, %215 : vector<8x128xf32>
    %c1_248 = arith.constant 1 : index
    %c0_249 = arith.constant 0 : index
    %217 = vector.load %arg47[%c1_248, %c0_249] : memref<10x160xf32, #tpu.memory_space<vmem>>, vector<8x160xf32>
    %c1_250 = arith.constant 1 : index
    %c0_251 = arith.constant 0 : index
    %c0_252 = arith.constant 0 : index
    %218 = vector.load %arg12[%c1_250, %c0_251, %c0_252] : memref<3x160x128xf32, #tpu.memory_space<vmem>>, vector<1x160x128xf32>
    %219 = vector.shape_cast %218 : vector<1x160x128xf32> to vector<160x128xf32>
    %cst_253 = arith.constant dense<0.000000e+00> : vector<8x128xf32>
    %220 = tpu.matmul %217, %219, %cst_253 {dimension_numbers = #tpu.dot_dimension_numbers<[1], [0], [0], [1], [0, 0, 1, 1], [], []>} : vector<8x160xf32>, vector<160x128xf32>, vector<8x128xf32> -> vector<8x128xf32>
    %221 = arith.addf %216, %220 : vector<8x128xf32>
    %c2_254 = arith.constant 2 : index
    %c0_255 = arith.constant 0 : index
    %222 = vector.load %arg47[%c2_254, %c0_255] : memref<10x160xf32, #tpu.memory_space<vmem>>, vector<8x160xf32>
    %c2_256 = arith.constant 2 : index
    %c0_257 = arith.constant 0 : index
    %c0_258 = arith.constant 0 : index
    %223 = vector.load %arg12[%c2_256, %c0_257, %c0_258] : memref<3x160x128xf32, #tpu.memory_space<vmem>>, vector<1x160x128xf32>
    %224 = vector.shape_cast %223 : vector<1x160x128xf32> to vector<160x128xf32>
    %cst_259 = arith.constant dense<0.000000e+00> : vector<8x128xf32>
    %225 = tpu.matmul %222, %224, %cst_259 {dimension_numbers = #tpu.dot_dimension_numbers<[1], [0], [0], [1], [0, 0, 1, 1], [], []>} : vector<8x160xf32>, vector<160x128xf32>, vector<8x128xf32> -> vector<8x128xf32>
    %226 = arith.addf %221, %225 : vector<8x128xf32>
    %c0_260 = arith.constant 0 : index
    %c0_261 = arith.constant 0 : index
    %227 = vector.load %arg13[%c0_260, %c0_261] : memref<1x128xf32, #tpu.memory_space<vmem>>, vector<1x128xf32>
    %228 = vector.broadcast %227 : vector<1x128xf32> to vector<8x128xf32>
    %229 = arith.addf %226, %228 : vector<8x128xf32>
    %cst_262 = arith.constant 0.000000e+00 : f32
    %230 = vector.broadcast %cst_262 : f32 to vector<8x128xf32>
    %231 = arith.maximumf %229, %230 : vector<8x128xf32>
    %c0_263 = arith.constant 0 : index
    %c0_264 = arith.constant 0 : index
    %c0_265 = arith.constant 0 : index
    %232 = vector.load %arg38[%c0_263, %c0_264, %c0_265] : memref<1x8x128xf32, #tpu.memory_space<vmem>>, vector<1x8x128xf32>
    %233 = vector.shape_cast %232 : vector<1x8x128xf32> to vector<8x128xf32>
    %234 = vector.shape_cast %231 : vector<8x128xf32> to vector<1x8x128xf32>
    tpu.vector_store %arg38[%c0_263, %c0_264, %c0_265], %234 {strides = array<i32>} : memref<1x8x128xf32, #tpu.memory_space<vmem>>, vector<1x8x128xf32>,
    %c0_266 = arith.constant 0 : index
    %c0_267 = arith.constant 0 : index
    %235 = vector.load %arg30[%c0_266, %c0_267] : memref<8x8xf32, #tpu.memory_space<vmem>>, vector<8x8xf32>
    %c0_268 = arith.constant 0 : index
    %c0_269 = arith.constant 0 : index
    %236 = vector.load %arg31[%c0_268, %c0_269] : memref<128x128xf32, #tpu.memory_space<vmem>>, vector<128x128xf32>
    %cst_270 = arith.constant dense<0.000000e+00> : vector<8x128xf32>
    %237 = tpu.matmul %235, %231, %cst_270 {dimension_numbers = #tpu.dot_dimension_numbers<[1], [0], [0], [1], [0, 0, 1, 1], [], []>} : vector<8x8xf32>, vector<8x128xf32>, vector<8x128xf32> -> vector<8x128xf32>
    %238 = vector.extract_strided_slice %237 {offsets = [0, 0], sizes = [4, 128], strides = [1, 1]} : vector<8x128xf32> to vector<4x128xf32>
    %239 = vector.extract_strided_slice %237 {offsets = [4, 0], sizes = [4, 128], strides = [1, 1]} : vector<8x128xf32> to vector<4x128xf32>
    %240 = arith.maximumf %238, %239 : vector<4x128xf32>
    %cst_271 = arith.constant dense<0.000000e+00> : vector<4x128xf32>
    %241 = tpu.matmul %240, %236, %cst_271 {dimension_numbers = #tpu.dot_dimension_numbers<[1], [0], [0], [1], [0, 0, 1, 1], [], []>} : vector<4x128xf32>, vector<128x128xf32>, vector<4x128xf32> -> vector<4x128xf32>
    %242 = vector.extract_strided_slice %241 {offsets = [0, 0], sizes = [4, 64], strides = [1, 1]} : vector<4x128xf32> to vector<4x64xf32>
    %243 = vector.extract_strided_slice %241 {offsets = [0, 64], sizes = [4, 64], strides = [1, 1]} : vector<4x128xf32> to vector<4x64xf32>
    %244 = arith.maximumf %242, %243 : vector<4x64xf32>
    %c1_272 = arith.constant 1 : index
    %c16_273 = arith.constant 16 : index
    %245 = vector.load %arg48[%c1_272, %c16_273] : memref<6x96xf32, #tpu.memory_space<vmem>>, vector<4x64xf32>
    tpu.vector_store %arg48[%c1_272, %c16_273], %244 {strides = array<i32>} : memref<6x96xf32, #tpu.memory_space<vmem>>, vector<4x64xf32>,
    %cst_274 = arith.constant 0.000000e+00 : f32
    %246 = vector.broadcast %cst_274 : f32 to vector<4x128xf32>
    %c0_275 = arith.constant 0 : index
    %c0_276 = arith.constant 0 : index
    %247 = vector.load %arg48[%c0_275, %c0_276] : memref<6x96xf32, #tpu.memory_space<vmem>>, vector<4x96xf32>
    %c0_277 = arith.constant 0 : index
    %c0_278 = arith.constant 0 : index
    %c0_279 = arith.constant 0 : index
    %248 = vector.load %arg14[%c0_277, %c0_278, %c0_279] : memref<3x96x128xf32, #tpu.memory_space<vmem>>, vector<1x96x128xf32>
    %249 = vector.shape_cast %248 : vector<1x96x128xf32> to vector<96x128xf32>
    %cst_280 = arith.constant dense<0.000000e+00> : vector<4x128xf32>
    %250 = tpu.matmul %247, %249, %cst_280 {dimension_numbers = #tpu.dot_dimension_numbers<[1], [0], [0], [1], [0, 0, 1, 1], [], []>} : vector<4x96xf32>, vector<96x128xf32>, vector<4x128xf32> -> vector<4x128xf32>
    %251 = arith.addf %246, %250 : vector<4x128xf32>
    %c1_281 = arith.constant 1 : index
    %c0_282 = arith.constant 0 : index
    %252 = vector.load %arg48[%c1_281, %c0_282] : memref<6x96xf32, #tpu.memory_space<vmem>>, vector<4x96xf32>
    %c1_283 = arith.constant 1 : index
    %c0_284 = arith.constant 0 : index
    %c0_285 = arith.constant 0 : index
    %253 = vector.load %arg14[%c1_283, %c0_284, %c0_285] : memref<3x96x128xf32, #tpu.memory_space<vmem>>, vector<1x96x128xf32>
    %254 = vector.shape_cast %253 : vector<1x96x128xf32> to vector<96x128xf32>
    %cst_286 = arith.constant dense<0.000000e+00> : vector<4x128xf32>
    %255 = tpu.matmul %252, %254, %cst_286 {dimension_numbers = #tpu.dot_dimension_numbers<[1], [0], [0], [1], [0, 0, 1, 1], [], []>} : vector<4x96xf32>, vector<96x128xf32>, vector<4x128xf32> -> vector<4x128xf32>
    %256 = arith.addf %251, %255 : vector<4x128xf32>
    %c2_287 = arith.constant 2 : index
    %c0_288 = arith.constant 0 : index
    %257 = vector.load %arg48[%c2_287, %c0_288] : memref<6x96xf32, #tpu.memory_space<vmem>>, vector<4x96xf32>
    %c2_289 = arith.constant 2 : index
    %c0_290 = arith.constant 0 : index
    %c0_291 = arith.constant 0 : index
    %258 = vector.load %arg14[%c2_289, %c0_290, %c0_291] : memref<3x96x128xf32, #tpu.memory_space<vmem>>, vector<1x96x128xf32>
    %259 = vector.shape_cast %258 : vector<1x96x128xf32> to vector<96x128xf32>
    %cst_292 = arith.constant dense<0.000000e+00> : vector<4x128xf32>
    %260 = tpu.matmul %257, %259, %cst_292 {dimension_numbers = #tpu.dot_dimension_numbers<[1], [0], [0], [1], [0, 0, 1, 1], [], []>} : vector<4x96xf32>, vector<96x128xf32>, vector<4x128xf32> -> vector<4x128xf32>
    %261 = arith.addf %256, %260 : vector<4x128xf32>
    %c0_293 = arith.constant 0 : index
    %c0_294 = arith.constant 0 : index
    %262 = vector.load %arg15[%c0_293, %c0_294] : memref<1x128xf32, #tpu.memory_space<vmem>>, vector<1x128xf32>
    %263 = vector.broadcast %262 : vector<1x128xf32> to vector<4x128xf32>
    %264 = arith.addf %261, %263 : vector<4x128xf32>
    %cst_295 = arith.constant 0.000000e+00 : f32
    %265 = vector.broadcast %cst_295 : f32 to vector<4x128xf32>
    %266 = arith.maximumf %264, %265 : vector<4x128xf32>
    %c1_296 = arith.constant 1 : index
    %c32 = arith.constant 32 : index
    %267 = vector.load %arg49[%c1_296, %c32] : memref<6x192xf32, #tpu.memory_space<vmem>>, vector<4x128xf32>
    tpu.vector_store %arg49[%c1_296, %c32], %266 {strides = array<i32>} : memref<6x192xf32, #tpu.memory_space<vmem>>, vector<4x128xf32>,
    %cst_297 = arith.constant 0.000000e+00 : f32
    %268 = vector.broadcast %cst_297 : f32 to vector<4x128xf32>
    %c0_298 = arith.constant 0 : index
    %c0_299 = arith.constant 0 : index
    %269 = vector.load %arg49[%c0_298, %c0_299] : memref<6x192xf32, #tpu.memory_space<vmem>>, vector<4x192xf32>
    %c0_300 = arith.constant 0 : index
    %c0_301 = arith.constant 0 : index
    %c0_302 = arith.constant 0 : index
    %270 = vector.load %arg16[%c0_300, %c0_301, %c0_302] : memref<3x192x128xf32, #tpu.memory_space<vmem>>, vector<1x192x128xf32>
    %271 = vector.shape_cast %270 : vector<1x192x128xf32> to vector<192x128xf32>
    %cst_303 = arith.constant dense<0.000000e+00> : vector<4x128xf32>
    %272 = tpu.matmul %269, %271, %cst_303 {dimension_numbers = #tpu.dot_dimension_numbers<[1], [0], [0], [1], [0, 0, 1, 1], [], []>} : vector<4x192xf32>, vector<192x128xf32>, vector<4x128xf32> -> vector<4x128xf32>
    %273 = arith.addf %268, %272 : vector<4x128xf32>
    %c1_304 = arith.constant 1 : index
    %c0_305 = arith.constant 0 : index
    %274 = vector.load %arg49[%c1_304, %c0_305] : memref<6x192xf32, #tpu.memory_space<vmem>>, vector<4x192xf32>
    %c1_306 = arith.constant 1 : index
    %c0_307 = arith.constant 0 : index
    %c0_308 = arith.constant 0 : index
    %275 = vector.load %arg16[%c1_306, %c0_307, %c0_308] : memref<3x192x128xf32, #tpu.memory_space<vmem>>, vector<1x192x128xf32>
    %276 = vector.shape_cast %275 : vector<1x192x128xf32> to vector<192x128xf32>
    %cst_309 = arith.constant dense<0.000000e+00> : vector<4x128xf32>
    %277 = tpu.matmul %274, %276, %cst_309 {dimension_numbers = #tpu.dot_dimension_numbers<[1], [0], [0], [1], [0, 0, 1, 1], [], []>} : vector<4x192xf32>, vector<192x128xf32>, vector<4x128xf32> -> vector<4x128xf32>
    %278 = arith.addf %273, %277 : vector<4x128xf32>
    %c2_310 = arith.constant 2 : index
    %c0_311 = arith.constant 0 : index
    %279 = vector.load %arg49[%c2_310, %c0_311] : memref<6x192xf32, #tpu.memory_space<vmem>>, vector<4x192xf32>
    %c2_312 = arith.constant 2 : index
    %c0_313 = arith.constant 0 : index
    %c0_314 = arith.constant 0 : index
    %280 = vector.load %arg16[%c2_312, %c0_313, %c0_314] : memref<3x192x128xf32, #tpu.memory_space<vmem>>, vector<1x192x128xf32>
    %281 = vector.shape_cast %280 : vector<1x192x128xf32> to vector<192x128xf32>
    %cst_315 = arith.constant dense<0.000000e+00> : vector<4x128xf32>
    %282 = tpu.matmul %279, %281, %cst_315 {dimension_numbers = #tpu.dot_dimension_numbers<[1], [0], [0], [1], [0, 0, 1, 1], [], []>} : vector<4x192xf32>, vector<192x128xf32>, vector<4x128xf32> -> vector<4x128xf32>
    %283 = arith.addf %278, %282 : vector<4x128xf32>
    %c0_316 = arith.constant 0 : index
    %c0_317 = arith.constant 0 : index
    %284 = vector.load %arg17[%c0_316, %c0_317] : memref<1x128xf32, #tpu.memory_space<vmem>>, vector<1x128xf32>
    %285 = vector.broadcast %284 : vector<1x128xf32> to vector<4x128xf32>
    %286 = arith.addf %283, %285 : vector<4x128xf32>
    %cst_318 = arith.constant 0.000000e+00 : f32
    %287 = vector.broadcast %cst_318 : f32 to vector<4x128xf32>
    %288 = arith.maximumf %286, %287 : vector<4x128xf32>
    %c0_319 = arith.constant 0 : index
    %c0_320 = arith.constant 0 : index
    %c0_321 = arith.constant 0 : index
    %289 = vector.load %arg39[%c0_319, %c0_320, %c0_321] : memref<1x4x128xf32, #tpu.memory_space<vmem>>, vector<1x4x128xf32>
    %290 = vector.shape_cast %289 : vector<1x4x128xf32> to vector<4x128xf32>
    %291 = vector.shape_cast %288 : vector<4x128xf32> to vector<1x4x128xf32>
    tpu.vector_store %arg39[%c0_319, %c0_320, %c0_321], %291 {strides = array<i32>} : memref<1x4x128xf32, #tpu.memory_space<vmem>>, vector<1x4x128xf32>,
    %c0_322 = arith.constant 0 : index
    %c0_323 = arith.constant 0 : index
    %292 = vector.load %arg32[%c0_322, %c0_323] : memref<4x4xf32, #tpu.memory_space<vmem>>, vector<4x4xf32>
    %c0_324 = arith.constant 0 : index
    %c0_325 = arith.constant 0 : index
    %293 = vector.load %arg33[%c0_324, %c0_325] : memref<128x128xf32, #tpu.memory_space<vmem>>, vector<128x128xf32>
    %cst_326 = arith.constant dense<0.000000e+00> : vector<4x128xf32>
    %294 = tpu.matmul %292, %288, %cst_326 {dimension_numbers = #tpu.dot_dimension_numbers<[1], [0], [0], [1], [0, 0, 1, 1], [], []>} : vector<4x4xf32>, vector<4x128xf32>, vector<4x128xf32> -> vector<4x128xf32>
    %295 = vector.extract_strided_slice %294 {offsets = [0, 0], sizes = [2, 128], strides = [1, 1]} : vector<4x128xf32> to vector<2x128xf32>
    %296 = vector.extract_strided_slice %294 {offsets = [2, 0], sizes = [2, 128], strides = [1, 1]} : vector<4x128xf32> to vector<2x128xf32>
    %297 = arith.maximumf %295, %296 : vector<2x128xf32>
    %cst_327 = arith.constant dense<0.000000e+00> : vector<2x128xf32>
    %298 = tpu.matmul %297, %293, %cst_327 {dimension_numbers = #tpu.dot_dimension_numbers<[1], [0], [0], [1], [0, 0, 1, 1], [], []>} : vector<2x128xf32>, vector<128x128xf32>, vector<2x128xf32> -> vector<2x128xf32>
    %299 = vector.extract_strided_slice %298 {offsets = [0, 0], sizes = [2, 64], strides = [1, 1]} : vector<2x128xf32> to vector<2x64xf32>
    %300 = vector.extract_strided_slice %298 {offsets = [0, 64], sizes = [2, 64], strides = [1, 1]} : vector<2x128xf32> to vector<2x64xf32>
    %301 = arith.maximumf %299, %300 : vector<2x64xf32>
    %c1_328 = arith.constant 1 : index
    %c32_329 = arith.constant 32 : index
    %302 = vector.load %arg50[%c1_328, %c32_329] : memref<4x128xf32, #tpu.memory_space<vmem>>, vector<2x64xf32>
    tpu.vector_store %arg50[%c1_328, %c32_329], %301 {strides = array<i32>} : memref<4x128xf32, #tpu.memory_space<vmem>>, vector<2x64xf32>,
    %cst_330 = arith.constant 0.000000e+00 : f32
    %303 = vector.broadcast %cst_330 : f32 to vector<2x64xf32>
    %c0_331 = arith.constant 0 : index
    %c0_332 = arith.constant 0 : index
    %304 = vector.load %arg50[%c0_331, %c0_332] : memref<4x128xf32, #tpu.memory_space<vmem>>, vector<2x128xf32>
    %c0_333 = arith.constant 0 : index
    %c0_334 = arith.constant 0 : index
    %c0_335 = arith.constant 0 : index
    %305 = vector.load %arg18[%c0_333, %c0_334, %c0_335] : memref<3x128x64xf32, #tpu.memory_space<vmem>>, vector<1x128x64xf32>
    %306 = vector.shape_cast %305 : vector<1x128x64xf32> to vector<128x64xf32>
    %cst_336 = arith.constant dense<0.000000e+00> : vector<2x64xf32>
    %307 = tpu.matmul %304, %306, %cst_336 {dimension_numbers = #tpu.dot_dimension_numbers<[1], [0], [0], [1], [0, 0, 1, 1], [], []>} : vector<2x128xf32>, vector<128x64xf32>, vector<2x64xf32> -> vector<2x64xf32>
    %308 = arith.addf %303, %307 : vector<2x64xf32>
    %c1_337 = arith.constant 1 : index
    %c0_338 = arith.constant 0 : index
    %309 = vector.load %arg50[%c1_337, %c0_338] : memref<4x128xf32, #tpu.memory_space<vmem>>, vector<2x128xf32>
    %c1_339 = arith.constant 1 : index
    %c0_340 = arith.constant 0 : index
    %c0_341 = arith.constant 0 : index
    %310 = vector.load %arg18[%c1_339, %c0_340, %c0_341] : memref<3x128x64xf32, #tpu.memory_space<vmem>>, vector<1x128x64xf32>
    %311 = vector.shape_cast %310 : vector<1x128x64xf32> to vector<128x64xf32>
    %cst_342 = arith.constant dense<0.000000e+00> : vector<2x64xf32>
    %312 = tpu.matmul %309, %311, %cst_342 {dimension_numbers = #tpu.dot_dimension_numbers<[1], [0], [0], [1], [0, 0, 1, 1], [], []>} : vector<2x128xf32>, vector<128x64xf32>, vector<2x64xf32> -> vector<2x64xf32>
    %313 = arith.addf %308, %312 : vector<2x64xf32>
    %c2_343 = arith.constant 2 : index
    %c0_344 = arith.constant 0 : index
    %314 = vector.load %arg50[%c2_343, %c0_344] : memref<4x128xf32, #tpu.memory_space<vmem>>, vector<2x128xf32>
    %c2_345 = arith.constant 2 : index
    %c0_346 = arith.constant 0 : index
    %c0_347 = arith.constant 0 : index
    %315 = vector.load %arg18[%c2_345, %c0_346, %c0_347] : memref<3x128x64xf32, #tpu.memory_space<vmem>>, vector<1x128x64xf32>
    %316 = vector.shape_cast %315 : vector<1x128x64xf32> to vector<128x64xf32>
    %cst_348 = arith.constant dense<0.000000e+00> : vector<2x64xf32>
    %317 = tpu.matmul %314, %316, %cst_348 {dimension_numbers = #tpu.dot_dimension_numbers<[1], [0], [0], [1], [0, 0, 1, 1], [], []>} : vector<2x128xf32>, vector<128x64xf32>, vector<2x64xf32> -> vector<2x64xf32>
    %318 = arith.addf %313, %317 : vector<2x64xf32>
    %c0_349 = arith.constant 0 : index
    %c0_350 = arith.constant 0 : index
    %319 = vector.load %arg19[%c0_349, %c0_350] : memref<1x64xf32, #tpu.memory_space<vmem>>, vector<1x64xf32>
    %320 = vector.broadcast %319 : vector<1x64xf32> to vector<2x64xf32>
    %321 = arith.addf %318, %320 : vector<2x64xf32>
    %cst_351 = arith.constant 0.000000e+00 : f32
    %322 = vector.broadcast %cst_351 : f32 to vector<2x64xf32>
    %323 = arith.maximumf %321, %322 : vector<2x64xf32>
    %c1_352 = arith.constant 1 : index
    %c32_353 = arith.constant 32 : index
    %324 = vector.load %arg51[%c1_352, %c32_353] : memref<4x128xf32, #tpu.memory_space<vmem>>, vector<2x64xf32>
    tpu.vector_store %arg51[%c1_352, %c32_353], %323 {strides = array<i32>} : memref<4x128xf32, #tpu.memory_space<vmem>>, vector<2x64xf32>,
    %cst_354 = arith.constant 0.000000e+00 : f32
    %325 = vector.broadcast %cst_354 : f32 to vector<2x64xf32>
    %c0_355 = arith.constant 0 : index
    %c0_356 = arith.constant 0 : index
    %326 = vector.load %arg51[%c0_355, %c0_356] : memref<4x128xf32, #tpu.memory_space<vmem>>, vector<2x128xf32>
    %c0_357 = arith.constant 0 : index
    %c0_358 = arith.constant 0 : index
    %c0_359 = arith.constant 0 : index
    %327 = vector.load %arg20[%c0_357, %c0_358, %c0_359] : memref<3x128x64xf32, #tpu.memory_space<vmem>>, vector<1x128x64xf32>
    %328 = vector.shape_cast %327 : vector<1x128x64xf32> to vector<128x64xf32>
    %cst_360 = arith.constant dense<0.000000e+00> : vector<2x64xf32>
    %329 = tpu.matmul %326, %328, %cst_360 {dimension_numbers = #tpu.dot_dimension_numbers<[1], [0], [0], [1], [0, 0, 1, 1], [], []>} : vector<2x128xf32>, vector<128x64xf32>, vector<2x64xf32> -> vector<2x64xf32>
    %330 = arith.addf %325, %329 : vector<2x64xf32>
    %c1_361 = arith.constant 1 : index
    %c0_362 = arith.constant 0 : index
    %331 = vector.load %arg51[%c1_361, %c0_362] : memref<4x128xf32, #tpu.memory_space<vmem>>, vector<2x128xf32>
    %c1_363 = arith.constant 1 : index
    %c0_364 = arith.constant 0 : index
    %c0_365 = arith.constant 0 : index
    %332 = vector.load %arg20[%c1_363, %c0_364, %c0_365] : memref<3x128x64xf32, #tpu.memory_space<vmem>>, vector<1x128x64xf32>
    %333 = vector.shape_cast %332 : vector<1x128x64xf32> to vector<128x64xf32>
    %cst_366 = arith.constant dense<0.000000e+00> : vector<2x64xf32>
    %334 = tpu.matmul %331, %333, %cst_366 {dimension_numbers = #tpu.dot_dimension_numbers<[1], [0], [0], [1], [0, 0, 1, 1], [], []>} : vector<2x128xf32>, vector<128x64xf32>, vector<2x64xf32> -> vector<2x64xf32>
    %335 = arith.addf %330, %334 : vector<2x64xf32>
    %c2_367 = arith.constant 2 : index
    %c0_368 = arith.constant 0 : index
    %336 = vector.load %arg51[%c2_367, %c0_368] : memref<4x128xf32, #tpu.memory_space<vmem>>, vector<2x128xf32>
    %c2_369 = arith.constant 2 : index
    %c0_370 = arith.constant 0 : index
    %c0_371 = arith.constant 0 : index
    %337 = vector.load %arg20[%c2_369, %c0_370, %c0_371] : memref<3x128x64xf32, #tpu.memory_space<vmem>>, vector<1x128x64xf32>
    %338 = vector.shape_cast %337 : vector<1x128x64xf32> to vector<128x64xf32>
    %cst_372 = arith.constant dense<0.000000e+00> : vector<2x64xf32>
    %339 = tpu.matmul %336, %338, %cst_372 {dimension_numbers = #tpu.dot_dimension_numbers<[1], [0], [0], [1], [0, 0, 1, 1], [], []>} : vector<2x128xf32>, vector<128x64xf32>, vector<2x64xf32> -> vector<2x64xf32>
    %340 = arith.addf %335, %339 : vector<2x64xf32>
    %c0_373 = arith.constant 0 : index
    %c0_374 = arith.constant 0 : index
    %341 = vector.load %arg21[%c0_373, %c0_374] : memref<1x64xf32, #tpu.memory_space<vmem>>, vector<1x64xf32>
    %342 = vector.broadcast %341 : vector<1x64xf32> to vector<2x64xf32>
    %343 = arith.addf %340, %342 : vector<2x64xf32>
    %cst_375 = arith.constant 0.000000e+00 : f32
    %344 = vector.broadcast %cst_375 : f32 to vector<2x64xf32>
    %345 = arith.maximumf %343, %344 : vector<2x64xf32>
    %c0_376 = arith.constant 0 : index
    %c0_377 = arith.constant 0 : index
    %c0_378 = arith.constant 0 : index
    %346 = vector.load %arg40[%c0_376, %c0_377, %c0_378] : memref<1x2x64xf32, #tpu.memory_space<vmem>>, vector<1x2x64xf32>
    %347 = vector.shape_cast %346 : vector<1x2x64xf32> to vector<2x64xf32>
    %348 = vector.shape_cast %345 : vector<2x64xf32> to vector<1x2x64xf32>
    tpu.vector_store %arg40[%c0_376, %c0_377, %c0_378], %348 {strides = array<i32>} : memref<1x2x64xf32, #tpu.memory_space<vmem>>, vector<1x2x64xf32>,
    %c0_379 = arith.constant 0 : index
    %c0_380 = arith.constant 0 : index
    %349 = vector.load %arg34[%c0_379, %c0_380] : memref<2x2xf32, #tpu.memory_space<vmem>>, vector<2x2xf32>
    %c0_381 = arith.constant 0 : index
    %c0_382 = arith.constant 0 : index
    %350 = vector.load %arg35[%c0_381, %c0_382] : memref<64x64xf32, #tpu.memory_space<vmem>>, vector<64x64xf32>
    %cst_383 = arith.constant dense<0.000000e+00> : vector<2x64xf32>
    %351 = tpu.matmul %349, %345, %cst_383 {dimension_numbers = #tpu.dot_dimension_numbers<[1], [0], [0], [1], [0, 0, 1, 1], [], []>} : vector<2x2xf32>, vector<2x64xf32>, vector<2x64xf32> -> vector<2x64xf32>
    %352 = vector.extract_strided_slice %351 {offsets = [0, 0], sizes = [1, 64], strides = [1, 1]} : vector<2x64xf32> to vector<1x64xf32>
    %353 = vector.extract_strided_slice %351 {offsets = [1, 0], sizes = [1, 64], strides = [1, 1]} : vector<2x64xf32> to vector<1x64xf32>
    %354 = arith.maximumf %352, %353 : vector<1x64xf32>
    %cst_384 = arith.constant dense<0.000000e+00> : vector<1x64xf32>
    %355 = tpu.matmul %354, %350, %cst_384 {dimension_numbers = #tpu.dot_dimension_numbers<[1], [0], [0], [1], [0, 0, 1, 1], [], []>} : vector<1x64xf32>, vector<64x64xf32>, vector<1x64xf32> -> vector<1x64xf32>
    %356 = vector.extract_strided_slice %355 {offsets = [0, 0], sizes = [1, 32], strides = [1, 1]} : vector<1x64xf32> to vector<1x32xf32>
    %357 = vector.extract_strided_slice %355 {offsets = [0, 32], sizes = [1, 32], strides = [1, 1]} : vector<1x64xf32> to vector<1x32xf32>
    %358 = arith.maximumf %356, %357 : vector<1x32xf32>
    %c1_385 = arith.constant 1 : index
    %c32_386 = arith.constant 32 : index
    %359 = vector.load %arg52[%c1_385, %c32_386] : memref<3x96xf32, #tpu.memory_space<vmem>>, vector<1x32xf32>
    tpu.vector_store %arg52[%c1_385, %c32_386], %358 {strides = array<i32>} : memref<3x96xf32, #tpu.memory_space<vmem>>, vector<1x32xf32>,
    %cst_387 = arith.constant 0.000000e+00 : f32
    %360 = vector.broadcast %cst_387 : f32 to vector<1x32xf32>
    %c0_388 = arith.constant 0 : index
    %c0_389 = arith.constant 0 : index
    %361 = vector.load %arg52[%c0_388, %c0_389] : memref<3x96xf32, #tpu.memory_space<vmem>>, vector<1x96xf32>
    %c0_390 = arith.constant 0 : index
    %c0_391 = arith.constant 0 : index
    %c0_392 = arith.constant 0 : index
    %362 = vector.load %arg22[%c0_390, %c0_391, %c0_392] : memref<3x96x32xf32, #tpu.memory_space<vmem>>, vector<1x96x32xf32>
    %363 = vector.shape_cast %362 : vector<1x96x32xf32> to vector<96x32xf32>
    %cst_393 = arith.constant dense<0.000000e+00> : vector<1x32xf32>
    %364 = tpu.matmul %361, %363, %cst_393 {dimension_numbers = #tpu.dot_dimension_numbers<[1], [0], [0], [1], [0, 0, 1, 1], [], []>} : vector<1x96xf32>, vector<96x32xf32>, vector<1x32xf32> -> vector<1x32xf32>
    %365 = arith.addf %360, %364 : vector<1x32xf32>
    %c1_394 = arith.constant 1 : index
    %c0_395 = arith.constant 0 : index
    %366 = vector.load %arg52[%c1_394, %c0_395] : memref<3x96xf32, #tpu.memory_space<vmem>>, vector<1x96xf32>
    %c1_396 = arith.constant 1 : index
    %c0_397 = arith.constant 0 : index
    %c0_398 = arith.constant 0 : index
    %367 = vector.load %arg22[%c1_396, %c0_397, %c0_398] : memref<3x96x32xf32, #tpu.memory_space<vmem>>, vector<1x96x32xf32>
    %368 = vector.shape_cast %367 : vector<1x96x32xf32> to vector<96x32xf32>
    %cst_399 = arith.constant dense<0.000000e+00> : vector<1x32xf32>
    %369 = tpu.matmul %366, %368, %cst_399 {dimension_numbers = #tpu.dot_dimension_numbers<[1], [0], [0], [1], [0, 0, 1, 1], [], []>} : vector<1x96xf32>, vector<96x32xf32>, vector<1x32xf32> -> vector<1x32xf32>
    %370 = arith.addf %365, %369 : vector<1x32xf32>
    %c2_400 = arith.constant 2 : index
    %c0_401 = arith.constant 0 : index
    %371 = vector.load %arg52[%c2_400, %c0_401] : memref<3x96xf32, #tpu.memory_space<vmem>>, vector<1x96xf32>
    %c2_402 = arith.constant 2 : index
    %c0_403 = arith.constant 0 : index
    %c0_404 = arith.constant 0 : index
    %372 = vector.load %arg22[%c2_402, %c0_403, %c0_404] : memref<3x96x32xf32, #tpu.memory_space<vmem>>, vector<1x96x32xf32>
    %373 = vector.shape_cast %372 : vector<1x96x32xf32> to vector<96x32xf32>
    %cst_405 = arith.constant dense<0.000000e+00> : vector<1x32xf32>
    %374 = tpu.matmul %371, %373, %cst_405 {dimension_numbers = #tpu.dot_dimension_numbers<[1], [0], [0], [1], [0, 0, 1, 1], [], []>} : vector<1x96xf32>, vector<96x32xf32>, vector<1x32xf32> -> vector<1x32xf32>
    %375 = arith.addf %370, %374 : vector<1x32xf32>
    %c0_406 = arith.constant 0 : index
    %c0_407 = arith.constant 0 : index
    %376 = vector.load %arg23[%c0_406, %c0_407] : memref<1x32xf32, #tpu.memory_space<vmem>>, vector<1x32xf32>
    %377 = arith.addf %375, %376 : vector<1x32xf32>
    %cst_408 = arith.constant 0.000000e+00 : f32
    %378 = vector.broadcast %cst_408 : f32 to vector<1x32xf32>
    %379 = arith.maximumf %377, %378 : vector<1x32xf32>
    %c1_409 = arith.constant 1 : index
    %c32_410 = arith.constant 32 : index
    %380 = vector.load %arg53[%c1_409, %c32_410] : memref<3x96xf32, #tpu.memory_space<vmem>>, vector<1x32xf32>
    tpu.vector_store %arg53[%c1_409, %c32_410], %379 {strides = array<i32>} : memref<3x96xf32, #tpu.memory_space<vmem>>, vector<1x32xf32>,
    %cst_411 = arith.constant 0.000000e+00 : f32
    %381 = vector.broadcast %cst_411 : f32 to vector<1x32xf32>
    %c0_412 = arith.constant 0 : index
    %c0_413 = arith.constant 0 : index
    %382 = vector.load %arg53[%c0_412, %c0_413] : memref<3x96xf32, #tpu.memory_space<vmem>>, vector<1x96xf32>
    %c0_414 = arith.constant 0 : index
    %c0_415 = arith.constant 0 : index
    %c0_416 = arith.constant 0 : index
    %383 = vector.load %arg24[%c0_414, %c0_415, %c0_416] : memref<3x96x32xf32, #tpu.memory_space<vmem>>, vector<1x96x32xf32>
    %384 = vector.shape_cast %383 : vector<1x96x32xf32> to vector<96x32xf32>
    %cst_417 = arith.constant dense<0.000000e+00> : vector<1x32xf32>
    %385 = tpu.matmul %382, %384, %cst_417 {dimension_numbers = #tpu.dot_dimension_numbers<[1], [0], [0], [1], [0, 0, 1, 1], [], []>} : vector<1x96xf32>, vector<96x32xf32>, vector<1x32xf32> -> vector<1x32xf32>
    %386 = arith.addf %381, %385 : vector<1x32xf32>
    %c1_418 = arith.constant 1 : index
    %c0_419 = arith.constant 0 : index
    %387 = vector.load %arg53[%c1_418, %c0_419] : memref<3x96xf32, #tpu.memory_space<vmem>>, vector<1x96xf32>
    %c1_420 = arith.constant 1 : index
    %c0_421 = arith.constant 0 : index
    %c0_422 = arith.constant 0 : index
    %388 = vector.load %arg24[%c1_420, %c0_421, %c0_422] : memref<3x96x32xf32, #tpu.memory_space<vmem>>, vector<1x96x32xf32>
    %389 = vector.shape_cast %388 : vector<1x96x32xf32> to vector<96x32xf32>
    %cst_423 = arith.constant dense<0.000000e+00> : vector<1x32xf32>
    %390 = tpu.matmul %387, %389, %cst_423 {dimension_numbers = #tpu.dot_dimension_numbers<[1], [0], [0], [1], [0, 0, 1, 1], [], []>} : vector<1x96xf32>, vector<96x32xf32>, vector<1x32xf32> -> vector<1x32xf32>
    %391 = arith.addf %386, %390 : vector<1x32xf32>
    %c2_424 = arith.constant 2 : index
    %c0_425 = arith.constant 0 : index
    %392 = vector.load %arg53[%c2_424, %c0_425] : memref<3x96xf32, #tpu.memory_space<vmem>>, vector<1x96xf32>
    %c2_426 = arith.constant 2 : index
    %c0_427 = arith.constant 0 : index
    %c0_428 = arith.constant 0 : index
    %393 = vector.load %arg24[%c2_426, %c0_427, %c0_428] : memref<3x96x32xf32, #tpu.memory_space<vmem>>, vector<1x96x32xf32>
    %394 = vector.shape_cast %393 : vector<1x96x32xf32> to vector<96x32xf32>
    %cst_429 = arith.constant dense<0.000000e+00> : vector<1x32xf32>
    %395 = tpu.matmul %392, %394, %cst_429 {dimension_numbers = #tpu.dot_dimension_numbers<[1], [0], [0], [1], [0, 0, 1, 1], [], []>} : vector<1x96xf32>, vector<96x32xf32>, vector<1x32xf32> -> vector<1x32xf32>
    %396 = arith.addf %391, %395 : vector<1x32xf32>
    %c0_430 = arith.constant 0 : index
    %c0_431 = arith.constant 0 : index
    %397 = vector.load %arg25[%c0_430, %c0_431] : memref<1x32xf32, #tpu.memory_space<vmem>>, vector<1x32xf32>
    %398 = arith.addf %396, %397 : vector<1x32xf32>
    %cst_432 = arith.constant 0.000000e+00 : f32
    %399 = vector.broadcast %cst_432 : f32 to vector<1x32xf32>
    %400 = arith.maximumf %398, %399 : vector<1x32xf32>
    %c0_433 = arith.constant 0 : index
    %c0_434 = arith.constant 0 : index
    %c0_435 = arith.constant 0 : index
    %401 = vector.load %arg41[%c0_433, %c0_434, %c0_435] : memref<1x1x32xf32, #tpu.memory_space<vmem>>, vector<1x1x32xf32>
    %402 = vector.shape_cast %401 : vector<1x1x32xf32> to vector<1x32xf32>
    %403 = vector.shape_cast %400 : vector<1x32xf32> to vector<1x1x32xf32>
    tpu.vector_store %arg41[%c0_433, %c0_434, %c0_435], %403 {strides = array<i32>} : memref<1x1x32xf32, #tpu.memory_space<vmem>>, vector<1x1x32xf32>,
    return
  }
  func.func @transform_0(%arg0: i32) -> (i32, i32, i32) {
    %c0_i32 = arith.constant 0 : i32
    %c0_i32_0 = arith.constant 0 : i32
    %c0_i32_1 = arith.constant 0 : i32
    return %arg0, %c0_i32, %c0_i32_0 : i32, i32, i32
  }
  func.func @transform_1(%arg0: i32) -> (i32, i32, i32) {
    %c0_i32 = arith.constant 0 : i32
    %c0_i32_0 = arith.constant 0 : i32
    %c0_i32_1 = arith.constant 0 : i32
    %c0_i32_2 = arith.constant 0 : i32
    return %c0_i32, %c0_i32_0, %c0_i32_1 : i32, i32, i32
  }
  func.func @transform_2(%arg0: i32) -> (i32, i32) {
    %c0_i32 = arith.constant 0 : i32
    %c0_i32_0 = arith.constant 0 : i32
    %c0_i32_1 = arith.constant 0 : i32
    return %c0_i32, %c0_i32_0 : i32, i32
  }
  func.func @transform_3(%arg0: i32) -> (i32, i32, i32) {
    %c0_i32 = arith.constant 0 : i32
    %c0_i32_0 = arith.constant 0 : i32
    %c0_i32_1 = arith.constant 0 : i32
    %c0_i32_2 = arith.constant 0 : i32
    return %c0_i32, %c0_i32_0, %c0_i32_1 : i32, i32, i32
  }
  func.func @transform_4(%arg0: i32) -> (i32, i32) {
    %c0_i32 = arith.constant 0 : i32
    %c0_i32_0 = arith.constant 0 : i32
    %c0_i32_1 = arith.constant 0 : i32
    return %c0_i32, %c0_i32_0 : i32, i32
  }
  func.func @transform_5(%arg0: i32) -> (i32, i32, i32) {
    %c0_i32 = arith.constant 0 : i32
    %c0_i32_0 = arith.constant 0 : i32
    %c0_i32_1 = arith.constant 0 : i32
    %c0_i32_2 = arith.constant 0 : i32
    return %c0_i32, %c0_i32_0, %c0_i32_1 : i32, i32, i32
  }
  func.func @transform_6(%arg0: i32) -> (i32, i32) {
    %c0_i32 = arith.constant 0 : i32
    %c0_i32_0 = arith.constant 0 : i32
    %c0_i32_1 = arith.constant 0 : i32
    return %c0_i32, %c0_i32_0 : i32, i32
  }
  func.func @transform_7(%arg0: i32) -> (i32, i32, i32) {
    %c0_i32 = arith.constant 0 : i32
    %c0_i32_0 = arith.constant 0 : i32
    %c0_i32_1 = arith.constant 0 : i32
    %c0_i32_2 = arith.constant 0 : i32
    return %c0_i32, %c0_i32_0, %c0_i32_1 : i32, i32, i32
  }
  func.func @transform_8(%arg0: i32) -> (i32, i32) {
    %c0_i32 = arith.constant 0 : i32
    %c0_i32_0 = arith.constant 0 : i32
    %c0_i32_1 = arith.constant 0 : i32
    return %c0_i32, %c0_i32_0 : i32, i32
  }
  func.func @transform_9(%arg0: i32) -> (i32, i32, i32) {
    %c0_i32 = arith.constant 0 : i32
    %c0_i32_0 = arith.constant 0 : i32
    %c0_i32_1 = arith.constant 0 : i32
    %c0_i32_2 = arith.constant 0 : i32
    return %c0_i32, %c0_i32_0, %c0_i32_1 : i32, i32, i32
  }
  func.func @transform_10(%arg0: i32) -> (i32, i32) {
    %c0_i32 = arith.constant 0 : i32
    %c0_i32_0 = arith.constant 0 : i32
    %c0_i32_1 = arith.constant 0 : i32
    return %c0_i32, %c0_i32_0 : i32, i32
  }
  func.func @transform_11(%arg0: i32) -> (i32, i32, i32) {
    %c0_i32 = arith.constant 0 : i32
    %c0_i32_0 = arith.constant 0 : i32
    %c0_i32_1 = arith.constant 0 : i32
    %c0_i32_2 = arith.constant 0 : i32
    return %c0_i32, %c0_i32_0, %c0_i32_1 : i32, i32, i32
  }
  func.func @transform_12(%arg0: i32) -> (i32, i32) {
    %c0_i32 = arith.constant 0 : i32
    %c0_i32_0 = arith.constant 0 : i32
    %c0_i32_1 = arith.constant 0 : i32
    return %c0_i32, %c0_i32_0 : i32, i32
  }
  func.func @transform_13(%arg0: i32) -> (i32, i32, i32) {
    %c0_i32 = arith.constant 0 : i32
    %c0_i32_0 = arith.constant 0 : i32
    %c0_i32_1 = arith.constant 0 : i32
    %c0_i32_2 = arith.constant 0 : i32
    return %c0_i32, %c0_i32_0, %c0_i32_1 : i32, i32, i32
  }
  func.func @transform_14(%arg0: i32) -> (i32, i32) {
    %c0_i32 = arith.constant 0 : i32
    %c0_i32_0 = arith.constant 0 : i32
    %c0_i32_1 = arith.constant 0 : i32
    return %c0_i32, %c0_i32_0 : i32, i32
  }
  func.func @transform_15(%arg0: i32) -> (i32, i32, i32) {
    %c0_i32 = arith.constant 0 : i32
    %c0_i32_0 = arith.constant 0 : i32
    %c0_i32_1 = arith.constant 0 : i32
    %c0_i32_2 = arith.constant 0 : i32
    return %c0_i32, %c0_i32_0, %c0_i32_1 : i32, i32, i32
  }
  func.func @transform_16(%arg0: i32) -> (i32, i32) {
    %c0_i32 = arith.constant 0 : i32
    %c0_i32_0 = arith.constant 0 : i32
    %c0_i32_1 = arith.constant 0 : i32
    return %c0_i32, %c0_i32_0 : i32, i32
  }
  func.func @transform_17(%arg0: i32) -> (i32, i32, i32) {
    %c0_i32 = arith.constant 0 : i32
    %c0_i32_0 = arith.constant 0 : i32
    %c0_i32_1 = arith.constant 0 : i32
    %c0_i32_2 = arith.constant 0 : i32
    return %c0_i32, %c0_i32_0, %c0_i32_1 : i32, i32, i32
  }
  func.func @transform_18(%arg0: i32) -> (i32, i32) {
    %c0_i32 = arith.constant 0 : i32
    %c0_i32_0 = arith.constant 0 : i32
    %c0_i32_1 = arith.constant 0 : i32
    return %c0_i32, %c0_i32_0 : i32, i32
  }
  func.func @transform_19(%arg0: i32) -> (i32, i32, i32) {
    %c0_i32 = arith.constant 0 : i32
    %c0_i32_0 = arith.constant 0 : i32
    %c0_i32_1 = arith.constant 0 : i32
    %c0_i32_2 = arith.constant 0 : i32
    return %c0_i32, %c0_i32_0, %c0_i32_1 : i32, i32, i32
  }
  func.func @transform_20(%arg0: i32) -> (i32, i32) {
    %c0_i32 = arith.constant 0 : i32
    %c0_i32_0 = arith.constant 0 : i32
    %c0_i32_1 = arith.constant 0 : i32
    return %c0_i32, %c0_i32_0 : i32, i32
  }
  func.func @transform_21(%arg0: i32) -> (i32, i32, i32) {
    %c0_i32 = arith.constant 0 : i32
    %c0_i32_0 = arith.constant 0 : i32
    %c0_i32_1 = arith.constant 0 : i32
    %c0_i32_2 = arith.constant 0 : i32
    return %c0_i32, %c0_i32_0, %c0_i32_1 : i32, i32, i32
  }
  func.func @transform_22(%arg0: i32) -> (i32, i32) {
    %c0_i32 = arith.constant 0 : i32
    %c0_i32_0 = arith.constant 0 : i32
    %c0_i32_1 = arith.constant 0 : i32
    return %c0_i32, %c0_i32_0 : i32, i32
  }
  func.func @transform_23(%arg0: i32) -> (i32, i32, i32) {
    %c0_i32 = arith.constant 0 : i32
    %c0_i32_0 = arith.constant 0 : i32
    %c0_i32_1 = arith.constant 0 : i32
    %c0_i32_2 = arith.constant 0 : i32
    return %c0_i32, %c0_i32_0, %c0_i32_1 : i32, i32, i32
  }
  func.func @transform_24(%arg0: i32) -> (i32, i32) {
    %c0_i32 = arith.constant 0 : i32
    %c0_i32_0 = arith.constant 0 : i32
    %c0_i32_1 = arith.constant 0 : i32
    return %c0_i32, %c0_i32_0 : i32, i32
  }
  func.func @transform_25(%arg0: i32) -> (i32, i32) {
    %c0_i32 = arith.constant 0 : i32
    %c0_i32_0 = arith.constant 0 : i32
    %c0_i32_1 = arith.constant 0 : i32
    return %c0_i32, %c0_i32_0 : i32, i32
  }
  func.func @transform_26(%arg0: i32) -> (i32, i32) {
    %c0_i32 = arith.constant 0 : i32
    %c0_i32_0 = arith.constant 0 : i32
    %c0_i32_1 = arith.constant 0 : i32
    return %c0_i32, %c0_i32_0 : i32, i32
  }
  func.func @transform_27(%arg0: i32) -> (i32, i32) {
    %c0_i32 = arith.constant 0 : i32
    %c0_i32_0 = arith.constant 0 : i32
    %c0_i32_1 = arith.constant 0 : i32
    return %c0_i32, %c0_i32_0 : i32, i32
  }
  func.func @transform_28(%arg0: i32) -> (i32, i32) {
    %c0_i32 = arith.constant 0 : i32
    %c0_i32_0 = arith.constant 0 : i32
    %c0_i32_1 = arith.constant 0 : i32
    return %c0_i32, %c0_i32_0 : i32, i32
  }
  func.func @transform_29(%arg0: i32) -> (i32, i32) {
    %c0_i32 = arith.constant 0 : i32
    %c0_i32_0 = arith.constant 0 : i32
    %c0_i32_1 = arith.constant 0 : i32
    return %c0_i32, %c0_i32_0 : i32, i32
  }
  func.func @transform_30(%arg0: i32) -> (i32, i32) {
    %c0_i32 = arith.constant 0 : i32
    %c0_i32_0 = arith.constant 0 : i32
    %c0_i32_1 = arith.constant 0 : i32
    return %c0_i32, %c0_i32_0 : i32, i32
  }
  func.func @transform_31(%arg0: i32) -> (i32, i32) {
    %c0_i32 = arith.constant 0 : i32
    %c0_i32_0 = arith.constant 0 : i32
    %c0_i32_1 = arith.constant 0 : i32
    return %c0_i32, %c0_i32_0 : i32, i32
  }
  func.func @transform_32(%arg0: i32) -> (i32, i32) {
    %c0_i32 = arith.constant 0 : i32
    %c0_i32_0 = arith.constant 0 : i32
    %c0_i32_1 = arith.constant 0 : i32
    return %c0_i32, %c0_i32_0 : i32, i32
  }
  func.func @transform_33(%arg0: i32) -> (i32, i32) {
    %c0_i32 = arith.constant 0 : i32
    %c0_i32_0 = arith.constant 0 : i32
    %c0_i32_1 = arith.constant 0 : i32
    return %c0_i32, %c0_i32_0 : i32, i32
  }
  func.func @transform_34(%arg0: i32) -> (i32, i32) {
    %c0_i32 = arith.constant 0 : i32
    %c0_i32_0 = arith.constant 0 : i32
    %c0_i32_1 = arith.constant 0 : i32
    return %c0_i32, %c0_i32_0 : i32, i32
  }
  func.func @transform_35(%arg0: i32) -> (i32, i32, i32) {
    %c0_i32 = arith.constant 0 : i32
    %c0_i32_0 = arith.constant 0 : i32
    %c0_i32_1 = arith.constant 0 : i32
    return %arg0, %c0_i32, %c0_i32_0 : i32, i32, i32
  }
  func.func @transform_36(%arg0: i32) -> (i32, i32, i32) {
    %c0_i32 = arith.constant 0 : i32
    %c0_i32_0 = arith.constant 0 : i32
    %c0_i32_1 = arith.constant 0 : i32
    return %arg0, %c0_i32, %c0_i32_0 : i32, i32, i32
  }
  func.func @transform_37(%arg0: i32) -> (i32, i32, i32) {
    %c0_i32 = arith.constant 0 : i32
    %c0_i32_0 = arith.constant 0 : i32
    %c0_i32_1 = arith.constant 0 : i32
    return %arg0, %c0_i32, %c0_i32_0 : i32, i32, i32
  }
  func.func @transform_38(%arg0: i32) -> (i32, i32, i32) {
    %c0_i32 = arith.constant 0 : i32
    %c0_i32_0 = arith.constant 0 : i32
    %c0_i32_1 = arith.constant 0 : i32
    return %arg0, %c0_i32, %c0_i32_0 : i32, i32, i32
  }
  func.func @transform_39(%arg0: i32) -> (i32, i32, i32) {
    %c0_i32 = arith.constant 0 : i32
    %c0_i32_0 = arith.constant 0 : i32
    %c0_i32_1 = arith.constant 0 : i32
    return %arg0, %c0_i32, %c0_i32_0 : i32, i32, i32
  }
  func.func @transform_40(%arg0: i32) -> (i32, i32, i32) {
    %c0_i32 = arith.constant 0 : i32
    %c0_i32_0 = arith.constant 0 : i32
    %c0_i32_1 = arith.constant 0 : i32
    return %arg0, %c0_i32, %c0_i32_0 : i32, i32, i32
  }
}

</mosaic_0001>

<llo_original>
// kernel: forward.1
$region0: #{forward.1}
  #allocation0 [shape = 'u32[]', space=smem, size = 0x4, offset = 0x4, fixed_abs, tag = 'smem constant byte address 0x4 - core index']
  #allocation1 [shape = 'u32[144,128]{1,0:T(1,128)}', space=vmem, size = 0x12000, scoped, tag = 'internal scratch']
  #allocation2 [shape = 'f32[34,102]{1,0:T(8,128)}', space=vmem, size = 0x5000, scoped, tag = 'scratch operand']
  #allocation3 [shape = 'f32[34,136]{1,0:T(8,128)}', space=vmem, size = 0xa000, scoped, tag = 'scratch operand']
  #allocation4 [shape = 'f32[18,72]{1,0:T(8,128)}', space=vmem, size = 0x3000, scoped, tag = 'scratch operand']
  #allocation5 [shape = 'f32[18,144]{1,0:T(8,128)}', space=vmem, size = 0x6000, scoped, tag = 'scratch operand']
  #allocation6 [shape = 'f32[10,80]{1,0:T(8,128)}', space=vmem, size = 0x2000, scoped, tag = 'scratch operand']
  #allocation7 [shape = 'f32[10,160]{1,0:T(8,128)}', space=vmem, size = 0x4000, scoped, tag = 'scratch operand']
  #allocation8 [shape = 'f32[6,96]{1,0:T(8,128)}', space=vmem, size = 0x1000, scoped, tag = 'scratch operand']
  #allocation9 [shape = 'f32[6,192]{1,0:T(8,128)}', space=vmem, size = 0x2000, scoped, tag = 'scratch operand']
  #allocation10 [shape = 'f32[4,128]{1,0:T(4,128)}', space=vmem, size = 0x800, scoped, tag = 'scratch operand']
  #allocation11 [shape = 'f32[4,128]{1,0:T(4,128)}', space=vmem, size = 0x800, scoped, tag = 'scratch operand']
  #allocation12 [shape = 'f32[3,96]{1,0:T(4,128)}', space=vmem, size = 0x800, scoped, tag = 'scratch operand']
  #allocation13 [shape = 'f32[3,96]{1,0:T(4,128)}', space=vmem, size = 0x800, scoped, tag = 'scratch operand']
  %s0 = inlined_call_operand.smem [shape: u32[41], index: -1, kind: input, shape index: {}]
  %s1 = sld [smem:[%s0]]
  %s2 = scalar_lea.smem %s0, 1
  %s3 = sld [smem:[%s2]]
  %s4 = scalar_lea.smem %s0, 2
  %s5 = sld [smem:[%s4]]
  %s6 = scalar_lea.smem %s0, 3
  %s7 = sld [smem:[%s6]]
  %s8 = scalar_lea.smem %s0, 4
  %s9 = sld [smem:[%s8]]
  %s10 = scalar_lea.smem %s0, 5
  %s11 = sld [smem:[%s10]]
  %s12 = scalar_lea.smem %s0, 6
  %s13 = sld [smem:[%s12]]
  %s14 = scalar_lea.smem %s0, 7
  %s15 = sld [smem:[%s14]]
  %s16 = scalar_lea.smem %s0, 8
  %s17 = sld [smem:[%s16]]
  %s18 = scalar_lea.smem %s0, 9
  %s19 = sld [smem:[%s18]]
  %s20 = scalar_lea.smem %s0, 10
  %s21 = sld [smem:[%s20]]
  %s22 = scalar_lea.smem %s0, 11
  %s23 = sld [smem:[%s22]]
  %s24 = scalar_lea.smem %s0, 12
  %s25 = sld [smem:[%s24]]
  %s26 = scalar_lea.smem %s0, 13
  %s27 = sld [smem:[%s26]]
  %s28 = scalar_lea.smem %s0, 14
  %s29 = sld [smem:[%s28]]
  %s30 = scalar_lea.smem %s0, 15
  %s31 = sld [smem:[%s30]]
  %s32 = scalar_lea.smem %s0, 16
  %s33 = sld [smem:[%s32]]
  %s34 = scalar_lea.smem %s0, 17
  %s35 = sld [smem:[%s34]]
  %s36 = scalar_lea.smem %s0, 18
  %s37 = sld [smem:[%s36]]
  %s38 = scalar_lea.smem %s0, 19
  %s39 = sld [smem:[%s38]]
  %s40 = scalar_lea.smem %s0, 20
  %s41 = sld [smem:[%s40]]
  %s42 = scalar_lea.smem %s0, 21
  %s43 = sld [smem:[%s42]]
  %s44 = scalar_lea.smem %s0, 22
  %s45 = sld [smem:[%s44]]
  %s46 = scalar_lea.smem %s0, 23
  %s47 = sld [smem:[%s46]]
  %s48 = scalar_lea.smem %s0, 24
  %s49 = sld [smem:[%s48]]
  %s50 = scalar_lea.smem %s0, 25
  %s51 = sld [smem:[%s50]]
  %s52 = scalar_lea.smem %s0, 26
  %s53 = sld [smem:[%s52]]
  %s54 = scalar_lea.smem %s0, 27
  %s55 = sld [smem:[%s54]]
  %s56 = scalar_lea.smem %s0, 28
  %s57 = sld [smem:[%s56]]
  %s58 = scalar_lea.smem %s0, 29
  %s59 = sld [smem:[%s58]]
  %s60 = scalar_lea.smem %s0, 30
  %s61 = sld [smem:[%s60]]
  %s62 = scalar_lea.smem %s0, 31
  %s63 = sld [smem:[%s62]]
  %s64 = scalar_lea.smem %s0, 32
  %s65 = sld [smem:[%s64]]
  %s66 = scalar_lea.smem %s0, 33
  %s67 = sld [smem:[%s66]]
  %s68 = scalar_lea.smem %s0, 34
  %s69 = sld [smem:[%s68]]
  %s70 = scalar_lea.smem %s0, 35
  %s71 = sld [smem:[%s70]]
  %s72 = scalar_lea.smem %s0, 36
  %s73 = sld [smem:[%s72]]
  %s74 = scalar_lea.smem %s0, 37
  %s75 = sld [smem:[%s74]]
  %s76 = scalar_lea.smem %s0, 38
  %s77 = sld [smem:[%s76]]
  %s78 = scalar_lea.smem %s0, 39
  %s79 = sld [smem:[%s78]]
  %s80 = scalar_lea.smem %s0, 40
  %s81 = sld [smem:[%s80]]
  %82 = xla_tuple %s71, %s73, %s75, %s77, %s79, %s81
  %s83 = sld [smem:[#allocation0]]
  $region309: #{forward.1} parent=0
    _
  %s85 = ssub.s32 1, %s83
  %s86 = scalar_select 0, %s85, %s83
  $region1: #{forward.1} parent=0
    #allocation14 [shape = 'u8[159744]{0}', space=vmem, size = 0x27000, scoped, tag = 'input window, operand 1, single buffered']
    #allocation15 [shape = 's32[2]{0}', space=sflag, size = 0x8, scoped, tag = 'scoped memory for forward.1']
    #allocation16 [shape = 's32[2]{0}', space=sflag, size = 0x8, scoped, tag = 'scoped memory for forward.1']
    #allocation17 [shape = 'u8[208896]{0}', space=vmem, size = 0x33000, scoped, tag = 'input window, operand 3, single buffered']
    #allocation18 [shape = 's32[1]{0}', space=sflag, size = 0x4, scoped, tag = 'scoped memory for forward.1']
    #allocation19 [shape = 'u8[110592]{0}', space=vmem, size = 0x1b000, scoped, tag = 'input window, operand 5, single buffered']
    #allocation20 [shape = 'u8[221184]{0}', space=vmem, size = 0x36000, scoped, tag = 'input window, operand 7, single buffered']
    #allocation21 [shape = 's32[1]{0}', space=sflag, size = 0x4, scoped, tag = 'scoped memory for forward.1']
    #allocation22 [shape = 'u8[122880]{0}', space=vmem, size = 0x1e000, scoped, tag = 'input window, operand 9, single buffered']
    #allocation23 [shape = 'u8[245760]{0}', space=vmem, size = 0x3c000, scoped, tag = 'input window, operand 11, single buffered']
    #allocation24 [shape = 's32[1]{0}', space=sflag, size = 0x4, scoped, tag = 'scoped memory for forward.1']
    #allocation25 [shape = 'u8[147456]{0}', space=vmem, size = 0x24000, scoped, tag = 'input window, operand 13, single buffered']
    #allocation26 [shape = 'u8[512]{0}', space=vmem, size = 0x400, scoped, tag = 'input window, operand 14, single buffered']
    #allocation27 [shape = 's32[1]{0}', space=sflag, size = 0x4, scoped, tag = 'scoped memory for forward.1']
    #allocation28 [shape = 'u8[512]{0}', space=vmem, size = 0x400, scoped, tag = 'input window, operand 16, single buffered']
    #allocation29 [shape = 'u8[196608]{0}', space=vmem, size = 0x30000, scoped, tag = 'input window, operand 17, single buffered']
    #allocation30 [shape = 's32[1]{0}', space=sflag, size = 0x4, scoped, tag = 'scoped memory for forward.1']
    #allocation31 [shape = 'u8[512]{0}', space=vmem, size = 0x400, scoped, tag = 'input window, operand 18, single buffered']
    #allocation32 [shape = 'u8[196608]{0}', space=vmem, size = 0x30000, scoped, tag = 'input window, operand 19, single buffered']
    #allocation33 [shape = 's32[1]{0}', space=sflag, size = 0x4, scoped, tag = 'scoped memory for forward.1']
    #allocation34 [shape = 'u8[512]{0}', space=vmem, size = 0x400, scoped, tag = 'input window, operand 20, single buffered']
    #allocation35 [shape = 'u8[147456]{0}', space=vmem, size = 0x24000, scoped, tag = 'input window, operand 21, single buffered']
    #allocation36 [shape = 's32[1]{0}', space=sflag, size = 0x4, scoped, tag = 'scoped memory for forward.1']
    #allocation37 [shape = 'u8[512]{0}', space=vmem, size = 0x400, scoped, tag = 'input window, operand 22, single buffered']
    #allocation38 [shape = 'u8[147456]{0}', space=vmem, size = 0x24000, scoped, tag = 'input window, operand 23, single buffered']
    #allocation39 [shape = 's32[1]{0}', space=sflag, size = 0x4, scoped, tag = 'scoped memory for forward.1']
    #allocation40 [shape = 'u8[512]{0}', space=vmem, size = 0x400, scoped, tag = 'input window, operand 24, single buffered']
    #allocation41 [shape = 'u8[16384]{0}', space=vmem, size = 0x4000, scoped, tag = 'input window, operand 25, single buffered']
    #allocation42 [shape = 's32[1]{0}', space=sflag, size = 0x4, scoped, tag = 'scoped memory for forward.1']
    #allocation43 [shape = 'u8[65536]{0}', space=vmem, size = 0x10000, scoped, tag = 'input window, operand 28, single buffered']
    #allocation44 [shape = 'u8[4096]{0}', space=vmem, size = 0x1000, scoped, tag = 'input window, operand 29, single buffered']
    #allocation45 [shape = 's32[1]{0}', space=sflag, size = 0x4, scoped, tag = 'scoped memory for forward.1']
    #allocation46 [shape = 'u8[65536]{0}', space=vmem, size = 0x10000, scoped, tag = 'input window, operand 30, single buffered']
    #allocation47 [shape = 'u8[2048]{0}', space=vmem, size = 0x800, scoped, tag = 'input window, operand 31, single buffered']
    #allocation48 [shape = 's32[1]{0}', space=sflag, size = 0x4, scoped, tag = 'scoped memory for forward.1']
    #allocation49 [shape = 'u8[65536]{0}', space=vmem, size = 0x10000, scoped, tag = 'input window, operand 32, single buffered']
    #allocation50 [shape = 'u8[32768]{0}', space=vmem, size = 0x8000, scoped, tag = 'input window, operand 34, single buffered']
    #allocation51 [shape = 's32[1]{0}', space=sflag, size = 0x4, scoped, tag = 'scoped memory for forward.1']
    #allocation52 [shape = 'u8[1024]{0}', space=vmem, size = 0x400, scoped, tag = 'output window, operand 5']
    %87 = vsyncpa [#allocation15], 0
    %88 = vsyncpa [#allocation18], 0
    %89 = vsyncpa [#allocation21], 0
    %90 = vsyncpa [#allocation24], 0
    %91 = vsyncpa [#allocation27], 0
    %92 = vsyncpa [#allocation30], 0
    %93 = vsyncpa [#allocation33], 0
    %94 = vsyncpa [#allocation36], 0
    %95 = vsyncpa [#allocation39], 0
    %96 = vsyncpa [#allocation42], 0
    %97 = vsyncpa [#allocation45], 0
    %98 = vsyncpa [#allocation48], 0
    %99 = vsyncpa [#allocation51], 0
    %100 = vsyncpa [#allocation16], 0
    %s101 = scalar_lea.sflag [#allocation16], 1
    %102 = vsyncpa %s101, 0
    loop: start=0, step=1, limit=4
    $region2: #{forward.1} parent=1 // loop_pre_header
      _
    $region3: #{forward.1} parent=1 // loop_header
      %s104 = sphi 0, %s108
      %p105 = scmp.ge.s32.totalorder %s104, 4
      %s114 = sphi 0, %s116
      %s117 = sphi 0, %s114
      %s118 = sphi 0, %s117
      %s134 = sphi 0, %s118
      %s138 = sphi 0, %s138
      %s140 = sphi 0, %s138
      %s141 = sphi 0, %s140
      %s155 = sphi 0, %s141
      %s159 = sphi 0, %s159
      %s161 = sphi 0, %s159
      %s162 = sphi 0, %s161
      %s176 = sphi 0, %s162
      %s180 = sphi 0, %s180
      %s182 = sphi 0, %s180
      %s183 = sphi 0, %s182
      %s197 = sphi 0, %s183
      %s201 = sphi 0, %s201
      %s203 = sphi 0, %s201
      %s204 = sphi 0, %s203
      %s218 = sphi 0, %s204
      %s222 = sphi 0, %s222
      %s224 = sphi 0, %s222
      %s225 = sphi 0, %s224
      %s239 = sphi 0, %s225
      %s243 = sphi 0, %s243
      %s245 = sphi 0, %s243
      %s246 = sphi 0, %s245
      %s260 = sphi 0, %s246
      %s264 = sphi 0, %s264
      %s266 = sphi 0, %s264
      %s267 = sphi 0, %s266
      %s281 = sphi 0, %s267
      %s285 = sphi 0, %s285
      %s287 = sphi 0, %s285
      %s288 = sphi 0, %s287
      %s302 = sphi 0, %s288
      %s306 = sphi 0, %s306
      %s308 = sphi 0, %s306
      %s309 = sphi 0, %s308
      %s323 = sphi 0, %s309
      %s327 = sphi 0, %s327
      %s329 = sphi 0, %s327
      %s330 = sphi 0, %s329
      %s344 = sphi 0, %s330
      %s348 = sphi 0, %s348
      %s350 = sphi 0, %s348
      %s351 = sphi 0, %s350
      %s365 = sphi 0, %s351
      %s369 = sphi 0, %s369
      %s371 = sphi 0, %s369
      %s372 = sphi 0, %s371
      %s386 = sphi 0, %s372
      %s390 = sphi 0, %s390
      %s392 = sphi 0, %s390
      %s393 = sphi 0, %s392
      %s407 = sphi 0, %s393
      %s411 = sphi 0, %s411
      %s413 = sphi 0, %s411
      %s414 = sphi 0, %s413
      %s428 = sphi 0, %s414
      %s432 = sphi 0, %s432
      %s434 = sphi 0, %s432
      %s435 = sphi 0, %s434
      %s449 = sphi 0, %s435
      %s453 = sphi 0, %s453
      %s455 = sphi 0, %s453
      %s456 = sphi 0, %s455
      %s470 = sphi 0, %s456
      %s474 = sphi 0, %s474
      %s476 = sphi 0, %s474
      %s477 = sphi 0, %s476
      %s491 = sphi 0, %s477
      %s495 = sphi 0, %s495
      %s497 = sphi 0, %s495
      %s498 = sphi 0, %s497
      %s512 = sphi 0, %s498
      %s516 = sphi 0, %s516
      %s518 = sphi 0, %s516
      %s519 = sphi 0, %s518
      %s533 = sphi 0, %s519
      %s537 = sphi 0, %s537
      %s539 = sphi 0, %s537
      %s540 = sphi 0, %s539
      %s554 = sphi 0, %s540
      %s558 = sphi 0, %s558
      %s560 = sphi 0, %s558
      %s561 = sphi 0, %s560
      %s575 = sphi 0, %s561
      %s579 = sphi 0, %s579
      %s581 = sphi 0, %s579
      %s582 = sphi 0, %s581
      %s596 = sphi 0, %s582
      %s600 = sphi 0, %s600
      %s602 = sphi 0, %s600
      %s603 = sphi 0, %s602
      %s617 = sphi 0, %s603
      %s621 = sphi 0, %s621
      %s623 = sphi 0, %s621
      %s624 = sphi 0, %s623
      %s638 = sphi 0, %s624
      %s642 = sphi 0, %s642
      %s644 = sphi 0, %s642
      %s645 = sphi 0, %s644
      %s659 = sphi 0, %s645
      %s663 = sphi 0, %s663
      %s665 = sphi 0, %s663
      %s666 = sphi 0, %s665
      %s680 = sphi 0, %s666
      %s684 = sphi 0, %s684
      %s686 = sphi 0, %s684
      %s687 = sphi 0, %s686
      %s701 = sphi 0, %s687
      %s705 = sphi 0, %s705
      %s707 = sphi 0, %s705
      %s708 = sphi 0, %s707
      %s722 = sphi 0, %s708
      %s726 = sphi 0, %s726
      %s728 = sphi 0, %s726
      %s729 = sphi 0, %s728
      %s743 = sphi 0, %s729
      %s747 = sphi 0, %s747
      %s749 = sphi 0, %s747
      %s750 = sphi 0, %s749
      %s764 = sphi 0, %s750
      %s768 = sphi 0, %s768
      %s770 = sphi 0, %s768
      %s771 = sphi 0, %s770
      %s785 = sphi 0, %s771
      %s789 = sphi 0, %s789
      %s791 = sphi 0, %s789
      %s792 = sphi 0, %s791
      %s806 = sphi 0, %s792
      %s810 = sphi 0, %s810
      %s812 = sphi 0, %s810
      %s813 = sphi 0, %s812
      %s827 = sphi 0, %s813
      %s831 = sphi 0, %s831
      %s833 = sphi 0, %s831
      %s834 = sphi 0, %s833
      %s848 = sphi 0, %s834
      %s854 = sphi 0, %s856
      %s857 = sphi 0, %s854
      %s858 = sphi 0, %s857
      %s874 = sphi 0, %s858
      %s880 = sphi 0, %s882
      %s883 = sphi 0, %s880
      %s884 = sphi 0, %s883
      %s900 = sphi 0, %s884
      %s906 = sphi 0, %s908
      %s909 = sphi 0, %s906
      %s910 = sphi 0, %s909
      %s926 = sphi 0, %s910
      %s932 = sphi 0, %s934
      %s935 = sphi 0, %s932
      %s936 = sphi 0, %s935
      %s952 = sphi 0, %s936
      %s958 = sphi 0, %s960
      %s961 = sphi 0, %s958
      %s962 = sphi 0, %s961
      %s978 = sphi 0, %s962
      %s984 = sphi 0, %s986
      %s987 = sphi 0, %s984
      %s988 = sphi 0, %s987
      %s1004 = sphi 0, %s988
    $region4: #{forward.1} parent=1 // loop_header_branch
      %107 = sbr.rel (%p105) target = $region8
    $region5: #{forward.1} parent=1 // loop_body
      %s109 = ssub.s32 %s104, 1
      %s110 = ssub.s32 %s104, 2
      %s111 = sadd.s32 %s104, 1
      %s112 = ssub.s32 %s104, %s111
      %p113 = scmp.eq.s32.totalorder %s112, 0
      %s115 = sadd.s32 %s114, 1
      %s116 = scalar_select %p113, %s114, %s115
      %p119 = pneg %p113
      %p120 = scmp.eq.s32.totalorder %s104, 1
      %p121 = por %p119, %p120
      %p122 = scmp.ne.s32.totalorder %s114, %s117
      %p123 = scmp.eq.s32.totalorder %s104, 0
      %p124 = por %p122, %p123
      %p125 = scmp.ne.s32.totalorder %s114, %s117
      %p126 = scmp.eq.s32.totalorder %s109, 1
      %p127 = por %p125, %p126
      %p128 = scmp.ne.s32.totalorder %s117, %s118
      %p129 = scmp.eq.s32.totalorder %s109, 0
      %p130 = por %p128, %p129
      %p131 = scmp.ne.s32.totalorder %s117, %s118
      %p132 = scmp.eq.s32.totalorder %s110, 1
      %p133 = por %p131, %p132
      %p135 = scmp.ne.s32.totalorder %s118, %s134
      %p136 = scmp.eq.s32.totalorder %s110, 0
      %p137 = por %p135, %p136
      %s139 = sadd.s32 %s138, 1
      %p142 = scmp.eq.s32.totalorder %s104, 1
      %p143 = scmp.ne.s32.totalorder %s138, %s140
      %p144 = scmp.eq.s32.totalorder %s104, 0
      %p145 = por %p143, %p144
      %p146 = scmp.ne.s32.totalorder %s138, %s140
      %p147 = scmp.eq.s32.totalorder %s109, 1
      %p148 = por %p146, %p147
      %p149 = scmp.ne.s32.totalorder %s140, %s141
      %p150 = scmp.eq.s32.totalorder %s109, 0
      %p151 = por %p149, %p150
      %p152 = scmp.ne.s32.totalorder %s140, %s141
      %p153 = scmp.eq.s32.totalorder %s110, 1
      %p154 = por %p152, %p153
      %p156 = scmp.ne.s32.totalorder %s141, %s155
      %p157 = scmp.eq.s32.totalorder %s110, 0
      %p158 = por %p156, %p157
      %s160 = sadd.s32 %s159, 1
      %p163 = scmp.eq.s32.totalorder %s104, 1
      %p164 = scmp.ne.s32.totalorder %s159, %s161
      %p165 = scmp.eq.s32.totalorder %s104, 0
      %p166 = por %p164, %p165
      %p167 = scmp.ne.s32.totalorder %s159, %s161
      %p168 = scmp.eq.s32.totalorder %s109, 1
      %p169 = por %p167, %p168
      %p170 = scmp.ne.s32.totalorder %s161, %s162
      %p171 = scmp.eq.s32.totalorder %s109, 0
      %p172 = por %p170, %p171
      %p173 = scmp.ne.s32.totalorder %s161, %s162
      %p174 = scmp.eq.s32.totalorder %s110, 1
      %p175 = por %p173, %p174
      %p177 = scmp.ne.s32.totalorder %s162, %s176
      %p178 = scmp.eq.s32.totalorder %s110, 0
      %p179 = por %p177, %p178
      %s181 = sadd.s32 %s180, 1
      %p184 = scmp.eq.s32.totalorder %s104, 1
      %p185 = scmp.ne.s32.totalorder %s180, %s182
      %p186 = scmp.eq.s32.totalorder %s104, 0
      %p187 = por %p185, %p186
      %p188 = scmp.ne.s32.totalorder %s180, %s182
      %p189 = scmp.eq.s32.totalorder %s109, 1
      %p190 = por %p188, %p189
      %p191 = scmp.ne.s32.totalorder %s182, %s183
      %p192 = scmp.eq.s32.totalorder %s109, 0
      %p193 = por %p191, %p192
      %p194 = scmp.ne.s32.totalorder %s182, %s183
      %p195 = scmp.eq.s32.totalorder %s110, 1
      %p196 = por %p194, %p195
      %p198 = scmp.ne.s32.totalorder %s183, %s197
      %p199 = scmp.eq.s32.totalorder %s110, 0
      %p200 = por %p198, %p199
      %s202 = sadd.s32 %s201, 1
      %p205 = scmp.eq.s32.totalorder %s104, 1
      %p206 = scmp.ne.s32.totalorder %s201, %s203
      %p207 = scmp.eq.s32.totalorder %s104, 0
      %p208 = por %p206, %p207
      %p209 = scmp.ne.s32.totalorder %s201, %s203
      %p210 = scmp.eq.s32.totalorder %s109, 1
      %p211 = por %p209, %p210
      %p212 = scmp.ne.s32.totalorder %s203, %s204
      %p213 = scmp.eq.s32.totalorder %s109, 0
      %p214 = por %p212, %p213
      %p215 = scmp.ne.s32.totalorder %s203, %s204
      %p216 = scmp.eq.s32.totalorder %s110, 1
      %p217 = por %p215, %p216
      %p219 = scmp.ne.s32.totalorder %s204, %s218
      %p220 = scmp.eq.s32.totalorder %s110, 0
      %p221 = por %p219, %p220
      %s223 = sadd.s32 %s222, 1
      %p226 = scmp.eq.s32.totalorder %s104, 1
      %p227 = scmp.ne.s32.totalorder %s222, %s224
      %p228 = scmp.eq.s32.totalorder %s104, 0
      %p229 = por %p227, %p228
      %p230 = scmp.ne.s32.totalorder %s222, %s224
      %p231 = scmp.eq.s32.totalorder %s109, 1
      %p232 = por %p230, %p231
      %p233 = scmp.ne.s32.totalorder %s224, %s225
      %p234 = scmp.eq.s32.totalorder %s109, 0
      %p235 = por %p233, %p234
      %p236 = scmp.ne.s32.totalorder %s224, %s225
      %p237 = scmp.eq.s32.totalorder %s110, 1
      %p238 = por %p236, %p237
      %p240 = scmp.ne.s32.totalorder %s225, %s239
      %p241 = scmp.eq.s32.totalorder %s110, 0
      %p242 = por %p240, %p241
      %s244 = sadd.s32 %s243, 1
      %p247 = scmp.eq.s32.totalorder %s104, 1
      %p248 = scmp.ne.s32.totalorder %s243, %s245
      %p249 = scmp.eq.s32.totalorder %s104, 0
      %p250 = por %p248, %p249
      %p251 = scmp.ne.s32.totalorder %s243, %s245
      %p252 = scmp.eq.s32.totalorder %s109, 1
      %p253 = por %p251, %p252
      %p254 = scmp.ne.s32.totalorder %s245, %s246
      %p255 = scmp.eq.s32.totalorder %s109, 0
      %p256 = por %p254, %p255
      %p257 = scmp.ne.s32.totalorder %s245, %s246
      %p258 = scmp.eq.s32.totalorder %s110, 1
      %p259 = por %p257, %p258
      %p261 = scmp.ne.s32.totalorder %s246, %s260
      %p262 = scmp.eq.s32.totalorder %s110, 0
      %p263 = por %p261, %p262
      %s265 = sadd.s32 %s264, 1
      %p268 = scmp.eq.s32.totalorder %s104, 1
      %p269 = scmp.ne.s32.totalorder %s264, %s266
      %p270 = scmp.eq.s32.totalorder %s104, 0
      %p271 = por %p269, %p270
      %p272 = scmp.ne.s32.totalorder %s264, %s266
      %p273 = scmp.eq.s32.totalorder %s109, 1
      %p274 = por %p272, %p273
      %p275 = scmp.ne.s32.totalorder %s266, %s267
      %p276 = scmp.eq.s32.totalorder %s109, 0
      %p277 = por %p275, %p276
      %p278 = scmp.ne.s32.totalorder %s266, %s267
      %p279 = scmp.eq.s32.totalorder %s110, 1
      %p280 = por %p278, %p279
      %p282 = scmp.ne.s32.totalorder %s267, %s281
      %p283 = scmp.eq.s32.totalorder %s110, 0
      %p284 = por %p282, %p283
      %s286 = sadd.s32 %s285, 1
      %p289 = scmp.eq.s32.totalorder %s104, 1
      %p290 = scmp.ne.s32.totalorder %s285, %s287
      %p291 = scmp.eq.s32.totalorder %s104, 0
      %p292 = por %p290, %p291
      %p293 = scmp.ne.s32.totalorder %s285, %s287
      %p294 = scmp.eq.s32.totalorder %s109, 1
      %p295 = por %p293, %p294
      %p296 = scmp.ne.s32.totalorder %s287, %s288
      %p297 = scmp.eq.s32.totalorder %s109, 0
      %p298 = por %p296, %p297
      %p299 = scmp.ne.s32.totalorder %s287, %s288
      %p300 = scmp.eq.s32.totalorder %s110, 1
      %p301 = por %p299, %p300
      %p303 = scmp.ne.s32.totalorder %s288, %s302
      %p304 = scmp.eq.s32.totalorder %s110, 0
      %p305 = por %p303, %p304
      %s307 = sadd.s32 %s306, 1
      %p310 = scmp.eq.s32.totalorder %s104, 1
      %p311 = scmp.ne.s32.totalorder %s306, %s308
      %p312 = scmp.eq.s32.totalorder %s104, 0
      %p313 = por %p311, %p312
      %p314 = scmp.ne.s32.totalorder %s306, %s308
      %p315 = scmp.eq.s32.totalorder %s109, 1
      %p316 = por %p314, %p315
      %p317 = scmp.ne.s32.totalorder %s308, %s309
      %p318 = scmp.eq.s32.totalorder %s109, 0
      %p319 = por %p317, %p318
      %p320 = scmp.ne.s32.totalorder %s308, %s309
      %p321 = scmp.eq.s32.totalorder %s110, 1
      %p322 = por %p320, %p321
      %p324 = scmp.ne.s32.totalorder %s309, %s323
      %p325 = scmp.eq.s32.totalorder %s110, 0
      %p326 = por %p324, %p325
      %s328 = sadd.s32 %s327, 1
      %p331 = scmp.eq.s32.totalorder %s104, 1
      %p332 = scmp.ne.s32.totalorder %s327, %s329
      %p333 = scmp.eq.s32.totalorder %s104, 0
      %p334 = por %p332, %p333
      %p335 = scmp.ne.s32.totalorder %s327, %s329
      %p336 = scmp.eq.s32.totalorder %s109, 1
      %p337 = por %p335, %p336
      %p338 = scmp.ne.s32.totalorder %s329, %s330
      %p339 = scmp.eq.s32.totalorder %s109, 0
      %p340 = por %p338, %p339
      %p341 = scmp.ne.s32.totalorder %s329, %s330
      %p342 = scmp.eq.s32.totalorder %s110, 1
      %p343 = por %p341, %p342
      %p345 = scmp.ne.s32.totalorder %s330, %s344
      %p346 = scmp.eq.s32.totalorder %s110, 0
      %p347 = por %p345, %p346
      %s349 = sadd.s32 %s348, 1
      %p352 = scmp.eq.s32.totalorder %s104, 1
      %p353 = scmp.ne.s32.totalorder %s348, %s350
      %p354 = scmp.eq.s32.totalorder %s104, 0
      %p355 = por %p353, %p354
      %p356 = scmp.ne.s32.totalorder %s348, %s350
      %p357 = scmp.eq.s32.totalorder %s109, 1
      %p358 = por %p356, %p357
      %p359 = scmp.ne.s32.totalorder %s350, %s351
      %p360 = scmp.eq.s32.totalorder %s109, 0
      %p361 = por %p359, %p360
      %p362 = scmp.ne.s32.totalorder %s350, %s351
      %p363 = scmp.eq.s32.totalorder %s110, 1
      %p364 = por %p362, %p363
      %p366 = scmp.ne.s32.totalorder %s351, %s365
      %p367 = scmp.eq.s32.totalorder %s110, 0
      %p368 = por %p366, %p367
      %s370 = sadd.s32 %s369, 1
      %p373 = scmp.eq.s32.totalorder %s104, 1
      %p374 = scmp.ne.s32.totalorder %s369, %s371
      %p375 = scmp.eq.s32.totalorder %s104, 0
      %p376 = por %p374, %p375
      %p377 = scmp.ne.s32.totalorder %s369, %s371
      %p378 = scmp.eq.s32.totalorder %s109, 1
      %p379 = por %p377, %p378
      %p380 = scmp.ne.s32.totalorder %s371, %s372
      %p381 = scmp.eq.s32.totalorder %s109, 0
      %p382 = por %p380, %p381
      %p383 = scmp.ne.s32.totalorder %s371, %s372
      %p384 = scmp.eq.s32.totalorder %s110, 1
      %p385 = por %p383, %p384
      %p387 = scmp.ne.s32.totalorder %s372, %s386
      %p388 = scmp.eq.s32.totalorder %s110, 0
      %p389 = por %p387, %p388
      %s391 = sadd.s32 %s390, 1
      %p394 = scmp.eq.s32.totalorder %s104, 1
      %p395 = scmp.ne.s32.totalorder %s390, %s392
      %p396 = scmp.eq.s32.totalorder %s104, 0
      %p397 = por %p395, %p396
      %p398 = scmp.ne.s32.totalorder %s390, %s392
      %p399 = scmp.eq.s32.totalorder %s109, 1
      %p400 = por %p398, %p399
      %p401 = scmp.ne.s32.totalorder %s392, %s393
      %p402 = scmp.eq.s32.totalorder %s109, 0
      %p403 = por %p401, %p402
      %p404 = scmp.ne.s32.totalorder %s392, %s393
      %p405 = scmp.eq.s32.totalorder %s110, 1
      %p406 = por %p404, %p405
      %p408 = scmp.ne.s32.totalorder %s393, %s407
      %p409 = scmp.eq.s32.totalorder %s110, 0
      %p410 = por %p408, %p409
      %s412 = sadd.s32 %s411, 1
      %p415 = scmp.eq.s32.totalorder %s104, 1
      %p416 = scmp.ne.s32.totalorder %s411, %s413
      %p417 = scmp.eq.s32.totalorder %s104, 0
      %p418 = por %p416, %p417
      %p419 = scmp.ne.s32.totalorder %s411, %s413
      %p420 = scmp.eq.s32.totalorder %s109, 1
      %p421 = por %p419, %p420
      %p422 = scmp.ne.s32.totalorder %s413, %s414
      %p423 = scmp.eq.s32.totalorder %s109, 0
      %p424 = por %p422, %p423
      %p425 = scmp.ne.s32.totalorder %s413, %s414
      %p426 = scmp.eq.s32.totalorder %s110, 1
      %p427 = por %p425, %p426
      %p429 = scmp.ne.s32.totalorder %s414, %s428
      %p430 = scmp.eq.s32.totalorder %s110, 0
      %p431 = por %p429, %p430
      %s433 = sadd.s32 %s432, 1
      %p436 = scmp.eq.s32.totalorder %s104, 1
      %p437 = scmp.ne.s32.totalorder %s432, %s434
      %p438 = scmp.eq.s32.totalorder %s104, 0
      %p439 = por %p437, %p438
      %p440 = scmp.ne.s32.totalorder %s432, %s434
      %p441 = scmp.eq.s32.totalorder %s109, 1
      %p442 = por %p440, %p441
      %p443 = scmp.ne.s32.totalorder %s434, %s435
      %p444 = scmp.eq.s32.totalorder %s109, 0
      %p445 = por %p443, %p444
      %p446 = scmp.ne.s32.totalorder %s434, %s435
      %p447 = scmp.eq.s32.totalorder %s110, 1
      %p448 = por %p446, %p447
      %p450 = scmp.ne.s32.totalorder %s435, %s449
      %p451 = scmp.eq.s32.totalorder %s110, 0
      %p452 = por %p450, %p451
      %s454 = sadd.s32 %s453, 1
      %p457 = scmp.eq.s32.totalorder %s104, 1
      %p458 = scmp.ne.s32.totalorder %s453, %s455
      %p459 = scmp.eq.s32.totalorder %s104, 0
      %p460 = por %p458, %p459
      %p461 = scmp.ne.s32.totalorder %s453, %s455
      %p462 = scmp.eq.s32.totalorder %s109, 1
      %p463 = por %p461, %p462
      %p464 = scmp.ne.s32.totalorder %s455, %s456
      %p465 = scmp.eq.s32.totalorder %s109, 0
      %p466 = por %p464, %p465
      %p467 = scmp.ne.s32.totalorder %s455, %s456
      %p468 = scmp.eq.s32.totalorder %s110, 1
      %p469 = por %p467, %p468
      %p471 = scmp.ne.s32.totalorder %s456, %s470
      %p472 = scmp.eq.s32.totalorder %s110, 0
      %p473 = por %p471, %p472
      %s475 = sadd.s32 %s474, 1
      %p478 = scmp.eq.s32.totalorder %s104, 1
      %p479 = scmp.ne.s32.totalorder %s474, %s476
      %p480 = scmp.eq.s32.totalorder %s104, 0
      %p481 = por %p479, %p480
      %p482 = scmp.ne.s32.totalorder %s474, %s476
      %p483 = scmp.eq.s32.totalorder %s109, 1
      %p484 = por %p482, %p483
      %p485 = scmp.ne.s32.totalorder %s476, %s477
      %p486 = scmp.eq.s32.totalorder %s109, 0
      %p487 = por %p485, %p486
      %p488 = scmp.ne.s32.totalorder %s476, %s477
      %p489 = scmp.eq.s32.totalorder %s110, 1
      %p490 = por %p488, %p489
      %p492 = scmp.ne.s32.totalorder %s477, %s491
      %p493 = scmp.eq.s32.totalorder %s110, 0
      %p494 = por %p492, %p493
      %s496 = sadd.s32 %s495, 1
      %p499 = scmp.eq.s32.totalorder %s104, 1
      %p500 = scmp.ne.s32.totalorder %s495, %s497
      %p501 = scmp.eq.s32.totalorder %s104, 0
      %p502 = por %p500, %p501
      %p503 = scmp.ne.s32.totalorder %s495, %s497
      %p504 = scmp.eq.s32.totalorder %s109, 1
      %p505 = por %p503, %p504
      %p506 = scmp.ne.s32.totalorder %s497, %s498
      %p507 = scmp.eq.s32.totalorder %s109, 0
      %p508 = por %p506, %p507
      %p509 = scmp.ne.s32.totalorder %s497, %s498
      %p510 = scmp.eq.s32.totalorder %s110, 1
      %p511 = por %p509, %p510
      %p513 = scmp.ne.s32.totalorder %s498, %s512
      %p514 = scmp.eq.s32.totalorder %s110, 0
      %p515 = por %p513, %p514
      %s517 = sadd.s32 %s516, 1
      %p520 = scmp.eq.s32.totalorder %s104, 1
      %p521 = scmp.ne.s32.totalorder %s516, %s518
      %p522 = scmp.eq.s32.totalorder %s104, 0
      %p523 = por %p521, %p522
      %p524 = scmp.ne.s32.totalorder %s516, %s518
      %p525 = scmp.eq.s32.totalorder %s109, 1
      %p526 = por %p524, %p525
      %p527 = scmp.ne.s32.totalorder %s518, %s519
      %p528 = scmp.eq.s32.totalorder %s109, 0
      %p529 = por %p527, %p528
      %p530 = scmp.ne.s32.totalorder %s518, %s519
      %p531 = scmp.eq.s32.totalorder %s110, 1
      %p532 = por %p530, %p531
      %p534 = scmp.ne.s32.totalorder %s519, %s533
      %p535 = scmp.eq.s32.totalorder %s110, 0
      %p536 = por %p534, %p535
      %s538 = sadd.s32 %s537, 1
      %p541 = scmp.eq.s32.totalorder %s104, 1
      %p542 = scmp.ne.s32.totalorder %s537, %s539
      %p543 = scmp.eq.s32.totalorder %s104, 0
      %p544 = por %p542, %p543
      %p545 = scmp.ne.s32.totalorder %s537, %s539
      %p546 = scmp.eq.s32.totalorder %s109, 1
      %p547 = por %p545, %p546
      %p548 = scmp.ne.s32.totalorder %s539, %s540
      %p549 = scmp.eq.s32.totalorder %s109, 0
      %p550 = por %p548, %p549
      %p551 = scmp.ne.s32.totalorder %s539, %s540
      %p552 = scmp.eq.s32.totalorder %s110, 1
      %p553 = por %p551, %p552
      %p555 = scmp.ne.s32.totalorder %s540, %s554
      %p556 = scmp.eq.s32.totalorder %s110, 0
      %p557 = por %p555, %p556
      %s559 = sadd.s32 %s558, 1
      %p562 = scmp.eq.s32.totalorder %s104, 1
      %p563 = scmp.ne.s32.totalorder %s558, %s560
      %p564 = scmp.eq.s32.totalorder %s104, 0
      %p565 = por %p563, %p564
      %p566 = scmp.ne.s32.totalorder %s558, %s560
      %p567 = scmp.eq.s32.totalorder %s109, 1
      %p568 = por %p566, %p567
      %p569 = scmp.ne.s32.totalorder %s560, %s561
      %p570 = scmp.eq.s32.totalorder %s109, 0
      %p571 = por %p569, %p570
      %p572 = scmp.ne.s32.totalorder %s560, %s561
      %p573 = scmp.eq.s32.totalorder %s110, 1
      %p574 = por %p572, %p573
      %p576 = scmp.ne.s32.totalorder %s561, %s575
      %p577 = scmp.eq.s32.totalorder %s110, 0
      %p578 = por %p576, %p577
      %s580 = sadd.s32 %s579, 1
      %p583 = scmp.eq.s32.totalorder %s104, 1
      %p584 = scmp.ne.s32.totalorder %s579, %s581
      %p585 = scmp.eq.s32.totalorder %s104, 0
      %p586 = por %p584, %p585
      %p587 = scmp.ne.s32.totalorder %s579, %s581
      %p588 = scmp.eq.s32.totalorder %s109, 1
      %p589 = por %p587, %p588
      %p590 = scmp.ne.s32.totalorder %s581, %s582
      %p591 = scmp.eq.s32.totalorder %s109, 0
      %p592 = por %p590, %p591
      %p593 = scmp.ne.s32.totalorder %s581, %s582
      %p594 = scmp.eq.s32.totalorder %s110, 1
      %p595 = por %p593, %p594
      %p597 = scmp.ne.s32.totalorder %s582, %s596
      %p598 = scmp.eq.s32.totalorder %s110, 0
      %p599 = por %p597, %p598
      %s601 = sadd.s32 %s600, 1
      %p604 = scmp.eq.s32.totalorder %s104, 1
      %p605 = scmp.ne.s32.totalorder %s600, %s602
      %p606 = scmp.eq.s32.totalorder %s104, 0
      %p607 = por %p605, %p606
      %p608 = scmp.ne.s32.totalorder %s600, %s602
      %p609 = scmp.eq.s32.totalorder %s109, 1
      %p610 = por %p608, %p609
      %p611 = scmp.ne.s32.totalorder %s602, %s603
      %p612 = scmp.eq.s32.totalorder %s109, 0
      %p613 = por %p611, %p612
      %p614 = scmp.ne.s32.totalorder %s602, %s603
      %p615 = scmp.eq.s32.totalorder %s110, 1
      %p616 = por %p614, %p615
      %p618 = scmp.ne.s32.totalorder %s603, %s617
      %p619 = scmp.eq.s32.totalorder %s110, 0
      %p620 = por %p618, %p619
      %s622 = sadd.s32 %s621, 1
      %p625 = scmp.eq.s32.totalorder %s104, 1
      %p626 = scmp.ne.s32.totalorder %s621, %s623
      %p627 = scmp.eq.s32.totalorder %s104, 0
      %p628 = por %p626, %p627
      %p629 = scmp.ne.s32.totalorder %s621, %s623
      %p630 = scmp.eq.s32.totalorder %s109, 1
      %p631 = por %p629, %p630
      %p632 = scmp.ne.s32.totalorder %s623, %s624
      %p633 = scmp.eq.s32.totalorder %s109, 0
      %p634 = por %p632, %p633
      %p635 = scmp.ne.s32.totalorder %s623, %s624
      %p636 = scmp.eq.s32.totalorder %s110, 1
      %p637 = por %p635, %p636
      %p639 = scmp.ne.s32.totalorder %s624, %s638
      %p640 = scmp.eq.s32.totalorder %s110, 0
      %p641 = por %p639, %p640
      %s643 = sadd.s32 %s642, 1
      %p646 = scmp.eq.s32.totalorder %s104, 1
      %p647 = scmp.ne.s32.totalorder %s642, %s644
      %p648 = scmp.eq.s32.totalorder %s104, 0
      %p649 = por %p647, %p648
      %p650 = scmp.ne.s32.totalorder %s642, %s644
      %p651 = scmp.eq.s32.totalorder %s109, 1
      %p652 = por %p650, %p651
      %p653 = scmp.ne.s32.totalorder %s644, %s645
      %p654 = scmp.eq.s32.totalorder %s109, 0
      %p655 = por %p653, %p654
      %p656 = scmp.ne.s32.totalorder %s644, %s645
      %p657 = scmp.eq.s32.totalorder %s110, 1
      %p658 = por %p656, %p657
      %p660 = scmp.ne.s32.totalorder %s645, %s659
      %p661 = scmp.eq.s32.totalorder %s110, 0
      %p662 = por %p660, %p661
      %s664 = sadd.s32 %s663, 1
      %p667 = scmp.eq.s32.totalorder %s104, 1
      %p668 = scmp.ne.s32.totalorder %s663, %s665
      %p669 = scmp.eq.s32.totalorder %s104, 0
      %p670 = por %p668, %p669
      %p671 = scmp.ne.s32.totalorder %s663, %s665
      %p672 = scmp.eq.s32.totalorder %s109, 1
      %p673 = por %p671, %p672
      %p674 = scmp.ne.s32.totalorder %s665, %s666
      %p675 = scmp.eq.s32.totalorder %s109, 0
      %p676 = por %p674, %p675
      %p677 = scmp.ne.s32.totalorder %s665, %s666
      %p678 = scmp.eq.s32.totalorder %s110, 1
      %p679 = por %p677, %p678
      %p681 = scmp.ne.s32.totalorder %s666, %s680
      %p682 = scmp.eq.s32.totalorder %s110, 0
      %p683 = por %p681, %p682
      %s685 = sadd.s32 %s684, 1
      %p688 = scmp.eq.s32.totalorder %s104, 1
      %p689 = scmp.ne.s32.totalorder %s684, %s686
      %p690 = scmp.eq.s32.totalorder %s104, 0
      %p691 = por %p689, %p690
      %p692 = scmp.ne.s32.totalorder %s684, %s686
      %p693 = scmp.eq.s32.totalorder %s109, 1
      %p694 = por %p692, %p693
      %p695 = scmp.ne.s32.totalorder %s686, %s687
      %p696 = scmp.eq.s32.totalorder %s109, 0
      %p697 = por %p695, %p696
      %p698 = scmp.ne.s32.totalorder %s686, %s687
      %p699 = scmp.eq.s32.totalorder %s110, 1
      %p700 = por %p698, %p699
      %p702 = scmp.ne.s32.totalorder %s687, %s701
      %p703 = scmp.eq.s32.totalorder %s110, 0
      %p704 = por %p702, %p703
      %s706 = sadd.s32 %s705, 1
      %p709 = scmp.eq.s32.totalorder %s104, 1
      %p710 = scmp.ne.s32.totalorder %s705, %s707
      %p711 = scmp.eq.s32.totalorder %s104, 0
      %p712 = por %p710, %p711
      %p713 = scmp.ne.s32.totalorder %s705, %s707
      %p714 = scmp.eq.s32.totalorder %s109, 1
      %p715 = por %p713, %p714
      %p716 = scmp.ne.s32.totalorder %s707, %s708
      %p717 = scmp.eq.s32.totalorder %s109, 0
      %p718 = por %p716, %p717
      %p719 = scmp.ne.s32.totalorder %s707, %s708
      %p720 = scmp.eq.s32.totalorder %s110, 1
      %p721 = por %p719, %p720
      %p723 = scmp.ne.s32.totalorder %s708, %s722
      %p724 = scmp.eq.s32.totalorder %s110, 0
      %p725 = por %p723, %p724
      %s727 = sadd.s32 %s726, 1
      %p730 = scmp.eq.s32.totalorder %s104, 1
      %p731 = scmp.ne.s32.totalorder %s726, %s728
      %p732 = scmp.eq.s32.totalorder %s104, 0
      %p733 = por %p731, %p732
      %p734 = scmp.ne.s32.totalorder %s726, %s728
      %p735 = scmp.eq.s32.totalorder %s109, 1
      %p736 = por %p734, %p735
      %p737 = scmp.ne.s32.totalorder %s728, %s729
      %p738 = scmp.eq.s32.totalorder %s109, 0
      %p739 = por %p737, %p738
      %p740 = scmp.ne.s32.totalorder %s728, %s729
      %p741 = scmp.eq.s32.totalorder %s110, 1
      %p742 = por %p740, %p741
      %p744 = scmp.ne.s32.totalorder %s729, %s743
      %p745 = scmp.eq.s32.totalorder %s110, 0
      %p746 = por %p744, %p745
      %s748 = sadd.s32 %s747, 1
      %p751 = scmp.eq.s32.totalorder %s104, 1
      %p752 = scmp.ne.s32.totalorder %s747, %s749
      %p753 = scmp.eq.s32.totalorder %s104, 0
      %p754 = por %p752, %p753
      %p755 = scmp.ne.s32.totalorder %s747, %s749
      %p756 = scmp.eq.s32.totalorder %s109, 1
      %p757 = por %p755, %p756
      %p758 = scmp.ne.s32.totalorder %s749, %s750
      %p759 = scmp.eq.s32.totalorder %s109, 0
      %p760 = por %p758, %p759
      %p761 = scmp.ne.s32.totalorder %s749, %s750
      %p762 = scmp.eq.s32.totalorder %s110, 1
      %p763 = por %p761, %p762
      %p765 = scmp.ne.s32.totalorder %s750, %s764
      %p766 = scmp.eq.s32.totalorder %s110, 0
      %p767 = por %p765, %p766
      %s769 = sadd.s32 %s768, 1
      %p772 = scmp.eq.s32.totalorder %s104, 1
      %p773 = scmp.ne.s32.totalorder %s768, %s770
      %p774 = scmp.eq.s32.totalorder %s104, 0
      %p775 = por %p773, %p774
      %p776 = scmp.ne.s32.totalorder %s768, %s770
      %p777 = scmp.eq.s32.totalorder %s109, 1
      %p778 = por %p776, %p777
      %p779 = scmp.ne.s32.totalorder %s770, %s771
      %p780 = scmp.eq.s32.totalorder %s109, 0
      %p781 = por %p779, %p780
      %p782 = scmp.ne.s32.totalorder %s770, %s771
      %p783 = scmp.eq.s32.totalorder %s110, 1
      %p784 = por %p782, %p783
      %p786 = scmp.ne.s32.totalorder %s771, %s785
      %p787 = scmp.eq.s32.totalorder %s110, 0
      %p788 = por %p786, %p787
      %s790 = sadd.s32 %s789, 1
      %p793 = scmp.eq.s32.totalorder %s104, 1
      %p794 = scmp.ne.s32.totalorder %s789, %s791
      %p795 = scmp.eq.s32.totalorder %s104, 0
      %p796 = por %p794, %p795
      %p797 = scmp.ne.s32.totalorder %s789, %s791
      %p798 = scmp.eq.s32.totalorder %s109, 1
      %p799 = por %p797, %p798
      %p800 = scmp.ne.s32.totalorder %s791, %s792
      %p801 = scmp.eq.s32.totalorder %s109, 0
      %p802 = por %p800, %p801
      %p803 = scmp.ne.s32.totalorder %s791, %s792
      %p804 = scmp.eq.s32.totalorder %s110, 1
      %p805 = por %p803, %p804
      %p807 = scmp.ne.s32.totalorder %s792, %s806
      %p808 = scmp.eq.s32.totalorder %s110, 0
      %p809 = por %p807, %p808
      %s811 = sadd.s32 %s810, 1
      %p814 = scmp.eq.s32.totalorder %s104, 1
      %p815 = scmp.ne.s32.totalorder %s810, %s812
      %p816 = scmp.eq.s32.totalorder %s104, 0
      %p817 = por %p815, %p816
      %p818 = scmp.ne.s32.totalorder %s810, %s812
      %p819 = scmp.eq.s32.totalorder %s109, 1
      %p820 = por %p818, %p819
      %p821 = scmp.ne.s32.totalorder %s812, %s813
      %p822 = scmp.eq.s32.totalorder %s109, 0
      %p823 = por %p821, %p822
      %p824 = scmp.ne.s32.totalorder %s812, %s813
      %p825 = scmp.eq.s32.totalorder %s110, 1
      %p826 = por %p824, %p825
      %p828 = scmp.ne.s32.totalorder %s813, %s827
      %p829 = scmp.eq.s32.totalorder %s110, 0
      %p830 = por %p828, %p829
      %s832 = sadd.s32 %s831, 1
      %p835 = scmp.eq.s32.totalorder %s104, 1
      %p836 = scmp.ne.s32.totalorder %s831, %s833
      %p837 = scmp.eq.s32.totalorder %s104, 0
      %p838 = por %p836, %p837
      %p839 = scmp.ne.s32.totalorder %s831, %s833
      %p840 = scmp.eq.s32.totalorder %s109, 1
      %p841 = por %p839, %p840
      %p842 = scmp.ne.s32.totalorder %s833, %s834
      %p843 = scmp.eq.s32.totalorder %s109, 0
      %p844 = por %p842, %p843
      %p845 = scmp.ne.s32.totalorder %s833, %s834
      %p846 = scmp.eq.s32.totalorder %s110, 1
      %p847 = por %p845, %p846
      %p849 = scmp.ne.s32.totalorder %s834, %s848
      %p850 = scmp.eq.s32.totalorder %s110, 0
      %p851 = por %p849, %p850
      %s852 = ssub.s32 %s104, %s111
      %p853 = scmp.eq.s32.totalorder %s852, 0
      %s855 = sadd.s32 %s854, 1
      %s856 = scalar_select %p853, %s854, %s855
      %p859 = pneg %p853
      %p860 = scmp.eq.s32.totalorder %s104, 1
      %p861 = por %p859, %p860
      %p862 = scmp.ne.s32.totalorder %s854, %s857
      %p863 = scmp.eq.s32.totalorder %s104, 0
      %p864 = por %p862, %p863
      %p865 = scmp.ne.s32.totalorder %s854, %s857
      %p866 = scmp.eq.s32.totalorder %s109, 1
      %p867 = por %p865, %p866
      %p868 = scmp.ne.s32.totalorder %s857, %s858
      %p869 = scmp.eq.s32.totalorder %s109, 0
      %p870 = por %p868, %p869
      %p871 = scmp.ne.s32.totalorder %s857, %s858
      %p872 = scmp.eq.s32.totalorder %s110, 1
      %p873 = por %p871, %p872
      %p875 = scmp.ne.s32.totalorder %s858, %s874
      %p876 = scmp.eq.s32.totalorder %s110, 0
      %p877 = por %p875, %p876
      %s878 = ssub.s32 %s104, %s111
      %p879 = scmp.eq.s32.totalorder %s878, 0
      %s881 = sadd.s32 %s880, 1
      %s882 = scalar_select %p879, %s880, %s881
      %p885 = pneg %p879
      %p886 = scmp.eq.s32.totalorder %s104, 1
      %p887 = por %p885, %p886
      %p888 = scmp.ne.s32.totalorder %s880, %s883
      %p889 = scmp.eq.s32.totalorder %s104, 0
      %p890 = por %p888, %p889
      %p891 = scmp.ne.s32.totalorder %s880, %s883
      %p892 = scmp.eq.s32.totalorder %s109, 1
      %p893 = por %p891, %p892
      %p894 = scmp.ne.s32.totalorder %s883, %s884
      %p895 = scmp.eq.s32.totalorder %s109, 0
      %p896 = por %p894, %p895
      %p897 = scmp.ne.s32.totalorder %s883, %s884
      %p898 = scmp.eq.s32.totalorder %s110, 1
      %p899 = por %p897, %p898
      %p901 = scmp.ne.s32.totalorder %s884, %s900
      %p902 = scmp.eq.s32.totalorder %s110, 0
      %p903 = por %p901, %p902
      %s904 = ssub.s32 %s104, %s111
      %p905 = scmp.eq.s32.totalorder %s904, 0
      %s907 = sadd.s32 %s906, 1
      %s908 = scalar_select %p905, %s906, %s907
      %p911 = pneg %p905
      %p912 = scmp.eq.s32.totalorder %s104, 1
      %p913 = por %p911, %p912
      %p914 = scmp.ne.s32.totalorder %s906, %s909
      %p915 = scmp.eq.s32.totalorder %s104, 0
      %p916 = por %p914, %p915
      %p917 = scmp.ne.s32.totalorder %s906, %s909
      %p918 = scmp.eq.s32.totalorder %s109, 1
      %p919 = por %p917, %p918
      %p920 = scmp.ne.s32.totalorder %s909, %s910
      %p921 = scmp.eq.s32.totalorder %s109, 0
      %p922 = por %p920, %p921
      %p923 = scmp.ne.s32.totalorder %s909, %s910
      %p924 = scmp.eq.s32.totalorder %s110, 1
      %p925 = por %p923, %p924
      %p927 = scmp.ne.s32.totalorder %s910, %s926
      %p928 = scmp.eq.s32.totalorder %s110, 0
      %p929 = por %p927, %p928
      %s930 = ssub.s32 %s104, %s111
      %p931 = scmp.eq.s32.totalorder %s930, 0
      %s933 = sadd.s32 %s932, 1
      %s934 = scalar_select %p931, %s932, %s933
      %p937 = pneg %p931
      %p938 = scmp.eq.s32.totalorder %s104, 1
      %p939 = por %p937, %p938
      %p940 = scmp.ne.s32.totalorder %s932, %s935
      %p941 = scmp.eq.s32.totalorder %s104, 0
      %p942 = por %p940, %p941
      %p943 = scmp.ne.s32.totalorder %s932, %s935
      %p944 = scmp.eq.s32.totalorder %s109, 1
      %p945 = por %p943, %p944
      %p946 = scmp.ne.s32.totalorder %s935, %s936
      %p947 = scmp.eq.s32.totalorder %s109, 0
      %p948 = por %p946, %p947
      %p949 = scmp.ne.s32.totalorder %s935, %s936
      %p950 = scmp.eq.s32.totalorder %s110, 1
      %p951 = por %p949, %p950
      %p953 = scmp.ne.s32.totalorder %s936, %s952
      %p954 = scmp.eq.s32.totalorder %s110, 0
      %p955 = por %p953, %p954
      %s956 = ssub.s32 %s104, %s111
      %p957 = scmp.eq.s32.totalorder %s956, 0
      %s959 = sadd.s32 %s958, 1
      %s960 = scalar_select %p957, %s958, %s959
      %p963 = pneg %p957
      %p964 = scmp.eq.s32.totalorder %s104, 1
      %p965 = por %p963, %p964
      %p966 = scmp.ne.s32.totalorder %s958, %s961
      %p967 = scmp.eq.s32.totalorder %s104, 0
      %p968 = por %p966, %p967
      %p969 = scmp.ne.s32.totalorder %s958, %s961
      %p970 = scmp.eq.s32.totalorder %s109, 1
      %p971 = por %p969, %p970
      %p972 = scmp.ne.s32.totalorder %s961, %s962
      %p973 = scmp.eq.s32.totalorder %s109, 0
      %p974 = por %p972, %p973
      %p975 = scmp.ne.s32.totalorder %s961, %s962
      %p976 = scmp.eq.s32.totalorder %s110, 1
      %p977 = por %p975, %p976
      %p979 = scmp.ne.s32.totalorder %s962, %s978
      %p980 = scmp.eq.s32.totalorder %s110, 0
      %p981 = por %p979, %p980
      %s982 = ssub.s32 %s104, %s111
      %p983 = scmp.eq.s32.totalorder %s982, 0
      %s985 = sadd.s32 %s984, 1
      %s986 = scalar_select %p983, %s984, %s985
      %p989 = pneg %p983
      %p990 = scmp.eq.s32.totalorder %s104, 1
      %p991 = por %p989, %p990
      %p992 = scmp.ne.s32.totalorder %s984, %s987
      %p993 = scmp.eq.s32.totalorder %s104, 0
      %p994 = por %p992, %p993
      %p995 = scmp.ne.s32.totalorder %s984, %s987
      %p996 = scmp.eq.s32.totalorder %s109, 1
      %p997 = por %p995, %p996
      %p998 = scmp.ne.s32.totalorder %s987, %s988
      %p999 = scmp.eq.s32.totalorder %s109, 0
      %p1000 = por %p998, %p999
      %p1001 = scmp.ne.s32.totalorder %s987, %s988
      %p1002 = scmp.eq.s32.totalorder %s110, 1
      %p1003 = por %p1001, %p1002
      %p1005 = scmp.ne.s32.totalorder %s988, %s1004
      %p1006 = scmp.eq.s32.totalorder %s110, 0
      %p1007 = por %p1005, %p1006
      %p1008 = scmp.le.s32.totalorder 1, %s104
      %p1009 = scmp.lt.s32.totalorder %s104, 3
      %p1010 = pnand %p1008, %p1009
      %p1011 = pneg %p1010
      // Predicated region
      $region9: #{forward.1} parent=5 // pred_check
        _
      $region10: #{forward.1} parent=5 // pred_check_branch
        %1013 = sbr.rel (%p1010) target = $region12
      $region11: #{forward.1} parent=5 // pred_region
        %s1014 = ssub.s32 %s104, 1
        // Predicated region
        $region13: #{forward.1} parent=11 // pred_check
          %p1015 = pneg %p151
        $region14: #{forward.1} parent=11 // pred_check_branch
          %1017 = sbr.rel (%p1015) target = $region16
        $region15: #{forward.1} parent=11 // pred_region
          %s1019 = ssub.s32 4992, 4992
          %1020 = vsyncadd [#allocation15], %s1019
          %s1021 = sshll.u32 [#allocation14], 4
          %s1022 = int_to_ptr.vmem [resolvable:$true] %s1021
          %1027 = dma.hbm_to_vmem [thread:$0]  %s3, 4992, %s1022, [#allocation15], 128, 128, 8
        $region16: #{forward.1} parent=11 // pred_fallthru
          _
        // Predicated region
        $region17: #{forward.1} parent=11 // pred_check
          %p1028 = pneg %p172
        $region18: #{forward.1} parent=11 // pred_check_branch
          %1030 = sbr.rel (%p1028) target = $region20
        $region19: #{forward.1} parent=11 // pred_region
          _
        $region20: #{forward.1} parent=11 // pred_fallthru
          _
        // Predicated region
        $region21: #{forward.1} parent=11 // pred_check
          %p1031 = pneg %p193
        $region22: #{forward.1} parent=11 // pred_check_branch
          %1033 = sbr.rel (%p1031) target = $region24
        $region23: #{forward.1} parent=11 // pred_region
          %s1035 = ssub.s32 6528, 6528
          %1036 = vsyncadd [#allocation18], %s1035
          %s1037 = sshll.u32 [#allocation17], 4
          %s1038 = int_to_ptr.vmem [resolvable:$true] %s1037
          %1043 = dma.hbm_to_vmem [thread:$0]  %s7, 6528, %s1038, [#allocation18], 128, 128, 8
        $region24: #{forward.1} parent=11 // pred_fallthru
          _
        // Predicated region
        $region25: #{forward.1} parent=11 // pred_check
          %p1044 = pneg %p214
        $region26: #{forward.1} parent=11 // pred_check_branch
          %1046 = sbr.rel (%p1044) target = $region28
        $region27: #{forward.1} parent=11 // pred_region
          _
        $region28: #{forward.1} parent=11 // pred_fallthru
          _
        // Predicated region
        $region29: #{forward.1} parent=11 // pred_check
          %p1047 = pneg %p235
        $region30: #{forward.1} parent=11 // pred_check_branch
          %1049 = sbr.rel (%p1047) target = $region32
        $region31: #{forward.1} parent=11 // pred_region
          %s1051 = ssub.s32 3456, 3456
          %1052 = vsyncadd [#allocation18], %s1051
          %s1053 = sshll.u32 [#allocation19], 4
          %s1054 = int_to_ptr.vmem [resolvable:$true] %s1053
          %1059 = dma.hbm_to_vmem [thread:$0]  %s11, 3456, %s1054, [#allocation18], 128, 128, 8
        $region32: #{forward.1} parent=11 // pred_fallthru
          _
        // Predicated region
        $region33: #{forward.1} parent=11 // pred_check
          %p1060 = pneg %p256
        $region34: #{forward.1} parent=11 // pred_check_branch
          %1062 = sbr.rel (%p1060) target = $region36
        $region35: #{forward.1} parent=11 // pred_region
          _
        $region36: #{forward.1} parent=11 // pred_fallthru
          _
        // Predicated region
        $region37: #{forward.1} parent=11 // pred_check
          %p1063 = pneg %p277
        $region38: #{forward.1} parent=11 // pred_check_branch
          %1065 = sbr.rel (%p1063) target = $region40
        $region39: #{forward.1} parent=11 // pred_region
          %s1067 = ssub.s32 6912, 6912
          %1068 = vsyncadd [#allocation21], %s1067
          %s1069 = sshll.u32 [#allocation20], 4
          %s1070 = int_to_ptr.vmem [resolvable:$true] %s1069
          %1075 = dma.hbm_to_vmem [thread:$0]  %s15, 6912, %s1070, [#allocation21], 128, 128, 8
        $region40: #{forward.1} parent=11 // pred_fallthru
          _
        // Predicated region
        $region41: #{forward.1} parent=11 // pred_check
          %p1076 = pneg %p298
        $region42: #{forward.1} parent=11 // pred_check_branch
          %1078 = sbr.rel (%p1076) target = $region44
        $region43: #{forward.1} parent=11 // pred_region
          _
        $region44: #{forward.1} parent=11 // pred_fallthru
          _
        // Predicated region
        $region45: #{forward.1} parent=11 // pred_check
          %p1079 = pneg %p319
        $region46: #{forward.1} parent=11 // pred_check_branch
          %1081 = sbr.rel (%p1079) target = $region48
        $region47: #{forward.1} parent=11 // pred_region
          %s1083 = ssub.s32 3840, 3840
          %1084 = vsyncadd [#allocation21], %s1083
          %s1085 = sshll.u32 [#allocation22], 4
          %s1086 = int_to_ptr.vmem [resolvable:$true] %s1085
          %1091 = dma.hbm_to_vmem [thread:$0]  %s19, 3840, %s1086, [#allocation21], 128, 128, 8
        $region48: #{forward.1} parent=11 // pred_fallthru
          _
        // Predicated region
        $region49: #{forward.1} parent=11 // pred_check
          %p1092 = pneg %p340
        $region50: #{forward.1} parent=11 // pred_check_branch
          %1094 = sbr.rel (%p1092) target = $region52
        $region51: #{forward.1} parent=11 // pred_region
          _
        $region52: #{forward.1} parent=11 // pred_fallthru
          _
        // Predicated region
        $region53: #{forward.1} parent=11 // pred_check
          %p1095 = pneg %p361
        $region54: #{forward.1} parent=11 // pred_check_branch
          %1097 = sbr.rel (%p1095) target = $region56
        $region55: #{forward.1} parent=11 // pred_region
          %s1099 = ssub.s32 7680, 7680
          %1100 = vsyncadd [#allocation24], %s1099
          %s1101 = sshll.u32 [#allocation23], 4
          %s1102 = int_to_ptr.vmem [resolvable:$true] %s1101
          %1107 = dma.hbm_to_vmem [thread:$0]  %s23, 7680, %s1102, [#allocation24], 128, 128, 8
        $region56: #{forward.1} parent=11 // pred_fallthru
          _
        // Predicated region
        $region57: #{forward.1} parent=11 // pred_check
          %p1108 = pneg %p382
        $region58: #{forward.1} parent=11 // pred_check_branch
          %1110 = sbr.rel (%p1108) target = $region60
        $region59: #{forward.1} parent=11 // pred_region
          _
        $region60: #{forward.1} parent=11 // pred_fallthru
          _
        // Predicated region
        $region61: #{forward.1} parent=11 // pred_check
          %p1111 = pneg %p403
        $region62: #{forward.1} parent=11 // pred_check_branch
          %1113 = sbr.rel (%p1111) target = $region64
        $region63: #{forward.1} parent=11 // pred_region
          %s1115 = ssub.s32 4608, 4608
          %1116 = vsyncadd [#allocation24], %s1115
          %s1117 = sshll.u32 [#allocation25], 4
          %s1118 = int_to_ptr.vmem [resolvable:$true] %s1117
          %1123 = dma.hbm_to_vmem [thread:$0]  %s27, 4608, %s1118, [#allocation24], 128, 128, 8
        $region64: #{forward.1} parent=11 // pred_fallthru
          _
        // Predicated region
        $region65: #{forward.1} parent=11 // pred_check
          %p1124 = pneg %p424
        $region66: #{forward.1} parent=11 // pred_check_branch
          %1126 = sbr.rel (%p1124) target = $region68
        $region67: #{forward.1} parent=11 // pred_region
          %s1128 = ssub.s32 16, 16
          %1129 = vsyncadd [#allocation27], %s1128
          %s1131 = sshll.u32 [#allocation26], 4
          %s1132 = int_to_ptr.vmem [resolvable:$true] %s1131
          %1134 = dma.hbm_to_vmem [thread:$0]  %s29, 16, %s1132, [#allocation27]
        $region68: #{forward.1} parent=11 // pred_fallthru
          _
        // Predicated region
        $region69: #{forward.1} parent=11 // pred_check
          %p1135 = pneg %p445
        $region70: #{forward.1} parent=11 // pred_check_branch
          %1137 = sbr.rel (%p1135) target = $region72
        $region71: #{forward.1} parent=11 // pred_region
          _
        $region72: #{forward.1} parent=11 // pred_fallthru
          _
        // Predicated region
        $region73: #{forward.1} parent=11 // pred_check
          %p1138 = pneg %p466
        $region74: #{forward.1} parent=11 // pred_check_branch
          %1140 = sbr.rel (%p1138) target = $region76
        $region75: #{forward.1} parent=11 // pred_region
          %s1142 = ssub.s32 16, 16
          %1143 = vsyncadd [#allocation27], %s1142
          %s1145 = sshll.u32 [#allocation28], 4
          %s1146 = int_to_ptr.vmem [resolvable:$true] %s1145
          %1148 = dma.hbm_to_vmem [thread:$0]  %s33, 16, %s1146, [#allocation27]
        $region76: #{forward.1} parent=11 // pred_fallthru
          _
        // Predicated region
        $region77: #{forward.1} parent=11 // pred_check
          %p1149 = pneg %p487
        $region78: #{forward.1} parent=11 // pred_check_branch
          %1151 = sbr.rel (%p1149) target = $region80
        $region79: #{forward.1} parent=11 // pred_region
          %s1153 = ssub.s32 6144, 6144
          %1154 = vsyncadd [#allocation30], %s1153
          %s1155 = sshll.u32 [#allocation29], 4
          %s1156 = int_to_ptr.vmem [resolvable:$true] %s1155
          %1161 = dma.hbm_to_vmem [thread:$0]  %s35, 6144, %s1156, [#allocation30], 128, 128, 8
        $region80: #{forward.1} parent=11 // pred_fallthru
          _
        // Predicated region
        $region81: #{forward.1} parent=11 // pred_check
          %p1162 = pneg %p508
        $region82: #{forward.1} parent=11 // pred_check_branch
          %1164 = sbr.rel (%p1162) target = $region84
        $region83: #{forward.1} parent=11 // pred_region
          %s1166 = ssub.s32 16, 16
          %1167 = vsyncadd [#allocation30], %s1166
          %s1169 = sshll.u32 [#allocation31], 4
          %s1170 = int_to_ptr.vmem [resolvable:$true] %s1169
          %1172 = dma.hbm_to_vmem [thread:$0]  %s37, 16, %s1170, [#allocation30]
        $region84: #{forward.1} parent=11 // pred_fallthru
          _
        // Predicated region
        $region85: #{forward.1} parent=11 // pred_check
          %p1173 = pneg %p529
        $region86: #{forward.1} parent=11 // pred_check_branch
          %1175 = sbr.rel (%p1173) target = $region88
        $region87: #{forward.1} parent=11 // pred_region
          %s1177 = ssub.s32 6144, 6144
          %1178 = vsyncadd [#allocation33], %s1177
          %s1179 = sshll.u32 [#allocation32], 4
          %s1180 = int_to_ptr.vmem [resolvable:$true] %s1179
          %1185 = dma.hbm_to_vmem [thread:$0]  %s39, 6144, %s1180, [#allocation33], 128, 128, 8
        $region88: #{forward.1} parent=11 // pred_fallthru
          _
        // Predicated region
        $region89: #{forward.1} parent=11 // pred_check
          %p1186 = pneg %p550
        $region90: #{forward.1} parent=11 // pred_check_branch
          %1188 = sbr.rel (%p1186) target = $region92
        $region91: #{forward.1} parent=11 // pred_region
          %s1190 = ssub.s32 16, 16
          %1191 = vsyncadd [#allocation33], %s1190
          %s1193 = sshll.u32 [#allocation34], 4
          %s1194 = int_to_ptr.vmem [resolvable:$true] %s1193
          %1196 = dma.hbm_to_vmem [thread:$0]  %s41, 16, %s1194, [#allocation33]
        $region92: #{forward.1} parent=11 // pred_fallthru
          _
        // Predicated region
        $region93: #{forward.1} parent=11 // pred_check
          %p1197 = pneg %p571
        $region94: #{forward.1} parent=11 // pred_check_branch
          %1199 = sbr.rel (%p1197) target = $region96
        $region95: #{forward.1} parent=11 // pred_region
          %s1201 = ssub.s32 4608, 4608
          %1202 = vsyncadd [#allocation36], %s1201
          %s1203 = sshll.u32 [#allocation35], 4
          %s1204 = int_to_ptr.vmem [resolvable:$true] %s1203
          %1209 = dma.hbm_to_vmem [thread:$0]  %s43, 4608, %s1204, [#allocation36], 128, 128, 8
        $region96: #{forward.1} parent=11 // pred_fallthru
          _
        // Predicated region
        $region97: #{forward.1} parent=11 // pred_check
          %p1210 = pneg %p592
        $region98: #{forward.1} parent=11 // pred_check_branch
          %1212 = sbr.rel (%p1210) target = $region100
        $region99: #{forward.1} parent=11 // pred_region
          %s1214 = ssub.s32 16, 16
          %1215 = vsyncadd [#allocation36], %s1214
          %s1217 = sshll.u32 [#allocation37], 4
          %s1218 = int_to_ptr.vmem [resolvable:$true] %s1217
          %1220 = dma.hbm_to_vmem [thread:$0]  %s45, 16, %s1218, [#allocation36]
        $region100: #{forward.1} parent=11 // pred_fallthru
          _
        // Predicated region
        $region101: #{forward.1} parent=11 // pred_check
          %p1221 = pneg %p613
        $region102: #{forward.1} parent=11 // pred_check_branch
          %1223 = sbr.rel (%p1221) target = $region104
        $region103: #{forward.1} parent=11 // pred_region
          %s1225 = ssub.s32 4608, 4608
          %1226 = vsyncadd [#allocation39], %s1225
          %s1227 = sshll.u32 [#allocation38], 4
          %s1228 = int_to_ptr.vmem [resolvable:$true] %s1227
          %1233 = dma.hbm_to_vmem [thread:$0]  %s47, 4608, %s1228, [#allocation39], 128, 128, 8
        $region104: #{forward.1} parent=11 // pred_fallthru
          _
        // Predicated region
        $region105: #{forward.1} parent=11 // pred_check
          %p1234 = pneg %p634
        $region106: #{forward.1} parent=11 // pred_check_branch
          %1236 = sbr.rel (%p1234) target = $region108
        $region107: #{forward.1} parent=11 // pred_region
          %s1238 = ssub.s32 16, 16
          %1239 = vsyncadd [#allocation39], %s1238
          %s1241 = sshll.u32 [#allocation40], 4
          %s1242 = int_to_ptr.vmem [resolvable:$true] %s1241
          %1244 = dma.hbm_to_vmem [thread:$0]  %s49, 16, %s1242, [#allocation39]
        $region108: #{forward.1} parent=11 // pred_fallthru
          _
        // Predicated region
        $region109: #{forward.1} parent=11 // pred_check
          %p1245 = pneg %p655
        $region110: #{forward.1} parent=11 // pred_check_branch
          %1247 = sbr.rel (%p1245) target = $region112
        $region111: #{forward.1} parent=11 // pred_region
          %s1249 = ssub.s32 512, 512
          %1250 = vsyncadd [#allocation42], %s1249
          %s1251 = sshll.u32 [#allocation41], 4
          %s1252 = int_to_ptr.vmem [resolvable:$true] %s1251
          %1257 = dma.hbm_to_vmem [thread:$0]  %s51, 512, %s1252, [#allocation42], 128, 128, 8
        $region112: #{forward.1} parent=11 // pred_fallthru
          _
        // Predicated region
        $region113: #{forward.1} parent=11 // pred_check
          %p1258 = pneg %p676
        $region114: #{forward.1} parent=11 // pred_check_branch
          %1260 = sbr.rel (%p1258) target = $region116
        $region115: #{forward.1} parent=11 // pred_region
          _
        $region116: #{forward.1} parent=11 // pred_fallthru
          _
        // Predicated region
        $region117: #{forward.1} parent=11 // pred_check
          %p1261 = pneg %p697
        $region118: #{forward.1} parent=11 // pred_check_branch
          %1263 = sbr.rel (%p1261) target = $region120
        $region119: #{forward.1} parent=11 // pred_region
          _
        $region120: #{forward.1} parent=11 // pred_fallthru
          _
        // Predicated region
        $region121: #{forward.1} parent=11 // pred_check
          %p1264 = pneg %p718
        $region122: #{forward.1} parent=11 // pred_check_branch
          %1266 = sbr.rel (%p1264) target = $region124
        $region123: #{forward.1} parent=11 // pred_region
          %s1268 = ssub.s32 2048, 2048
          %1269 = vsyncadd [#allocation42], %s1268
          %s1270 = sshll.u32 [#allocation43], 4
          %s1271 = int_to_ptr.vmem [resolvable:$true] %s1270
          %1276 = dma.hbm_to_vmem [thread:$0]  %s57, 2048, %s1271, [#allocation42], 128, 128, 8
        $region124: #{forward.1} parent=11 // pred_fallthru
          _
        // Predicated region
        $region125: #{forward.1} parent=11 // pred_check
          %p1277 = pneg %p739
        $region126: #{forward.1} parent=11 // pred_check_branch
          %1279 = sbr.rel (%p1277) target = $region128
        $region127: #{forward.1} parent=11 // pred_region
          %s1281 = ssub.s32 128, 128
          %1282 = vsyncadd [#allocation45], %s1281
          %s1284 = sshll.u32 [#allocation44], 4
          %s1285 = int_to_ptr.vmem [resolvable:$true] %s1284
          %1287 = dma.hbm_to_vmem [thread:$0]  %s59, 128, %s1285, [#allocation45]
        $region128: #{forward.1} parent=11 // pred_fallthru
          _
        // Predicated region
        $region129: #{forward.1} parent=11 // pred_check
          %p1288 = pneg %p760
        $region130: #{forward.1} parent=11 // pred_check_branch
          %1290 = sbr.rel (%p1288) target = $region132
        $region131: #{forward.1} parent=11 // pred_region
          %s1292 = ssub.s32 2048, 2048
          %1293 = vsyncadd [#allocation45], %s1292
          %s1294 = sshll.u32 [#allocation46], 4
          %s1295 = int_to_ptr.vmem [resolvable:$true] %s1294
          %1300 = dma.hbm_to_vmem [thread:$0]  %s61, 2048, %s1295, [#allocation45], 128, 128, 8
        $region132: #{forward.1} parent=11 // pred_fallthru
          _
        // Predicated region
        $region133: #{forward.1} parent=11 // pred_check
          %p1301 = pneg %p781
        $region134: #{forward.1} parent=11 // pred_check_branch
          %1303 = sbr.rel (%p1301) target = $region136
        $region135: #{forward.1} parent=11 // pred_region
          %s1305 = ssub.s32 64, 64
          %1306 = vsyncadd [#allocation48], %s1305
          %s1308 = sshll.u32 [#allocation47], 4
          %s1309 = int_to_ptr.vmem [resolvable:$true] %s1308
          %1311 = dma.hbm_to_vmem [thread:$0]  %s63, 64, %s1309, [#allocation48]
        $region136: #{forward.1} parent=11 // pred_fallthru
          _
        // Predicated region
        $region137: #{forward.1} parent=11 // pred_check
          %p1312 = pneg %p802
        $region138: #{forward.1} parent=11 // pred_check_branch
          %1314 = sbr.rel (%p1312) target = $region140
        $region139: #{forward.1} parent=11 // pred_region
          %s1316 = ssub.s32 2048, 2048
          %1317 = vsyncadd [#allocation48], %s1316
          %s1318 = sshll.u32 [#allocation49], 4
          %s1319 = int_to_ptr.vmem [resolvable:$true] %s1318
          %1324 = dma.hbm_to_vmem [thread:$0]  %s65, 2048, %s1319, [#allocation48], 128, 128, 8
        $region140: #{forward.1} parent=11 // pred_fallthru
          _
        // Predicated region
        $region141: #{forward.1} parent=11 // pred_check
          %p1325 = pneg %p823
        $region142: #{forward.1} parent=11 // pred_check_branch
          %1327 = sbr.rel (%p1325) target = $region144
        $region143: #{forward.1} parent=11 // pred_region
          _
        $region144: #{forward.1} parent=11 // pred_fallthru
          _
        // Predicated region
        $region145: #{forward.1} parent=11 // pred_check
          %p1328 = pneg %p844
        $region146: #{forward.1} parent=11 // pred_check_branch
          %1330 = sbr.rel (%p1328) target = $region148
        $region147: #{forward.1} parent=11 // pred_region
          %s1332 = ssub.s32 1024, 1024
          %1333 = vsyncadd [#allocation51], %s1332
          %s1334 = sshll.u32 [#allocation50], 4
          %s1335 = int_to_ptr.vmem [resolvable:$true] %s1334
          %1340 = dma.hbm_to_vmem [thread:$0]  %s69, 1024, %s1335, [#allocation51], 128, 128, 8
        $region148: #{forward.1} parent=11 // pred_fallthru
          _
      $region12: #{forward.1} parent=5 // pred_fallthru
        _
      %p1341 = scmp.lt.s32.totalorder %s104, 2
      // Predicated region
      $region149: #{forward.1} parent=5 // pred_check
        %p1342 = pneg %p1341
      $region150: #{forward.1} parent=5 // pred_check_branch
        %1344 = sbr.rel (%p1342) target = $region152
      $region151: #{forward.1} parent=5 // pred_region
        // Predicated region
        $region153: #{forward.1} parent=151 // pred_check
          %p1345 = pneg %p124
        $region154: #{forward.1} parent=151 // pred_check_branch
          %1347 = sbr.rel (%p1345) target = $region156
        $region155: #{forward.1} parent=151 // pred_region
          %p1348 = scmp.lt.s32.totalorder %s104, 1
          %s1349 = scalar_select %p1348, %s104, 1
          %s1350 = smul.addr %s1349, 4
          %s1351 = smul.addr %s1350, 8
          %s1352 = scalar_lea.vmem %s1, %s1351
        $region156: #{forward.1} parent=151 // pred_fallthru
          _
      $region152: #{forward.1} parent=5 // pred_fallthru
        _
      %p1353 = scmp.le.s32.totalorder 1, %s104
      %p1354 = scmp.lt.s32.totalorder %s104, 3
      %p1355 = pnand %p1353, %p1354
      %p1356 = pneg %p1355
      // Predicated region
      $region157: #{forward.1} parent=5 // pred_check
        _
      $region158: #{forward.1} parent=5 // pred_check_branch
        %1358 = sbr.rel (%p1355) target = $region160
      $region159: #{forward.1} parent=5 // pred_region
        %s1359 = ssub.s32 %s104, 1
        // Predicated region
        $region161: #{forward.1} parent=159 // pred_check
          %p1360 = pneg %p151
        $region162: #{forward.1} parent=159 // pred_check_branch
          %1362 = sbr.rel (%p1360) target = $region164
        $region163: #{forward.1} parent=159 // pred_region
          %1363 = dma.done [#allocation15], 4992
        $region164: #{forward.1} parent=159 // pred_fallthru
          _
        // Predicated region
        $region165: #{forward.1} parent=159 // pred_check
          %p1364 = pneg %p193
        $region166: #{forward.1} parent=159 // pred_check_branch
          %1366 = sbr.rel (%p1364) target = $region168
        $region167: #{forward.1} parent=159 // pred_region
          %1367 = dma.done [#allocation18], 6528
        $region168: #{forward.1} parent=159 // pred_fallthru
          _
        // Predicated region
        $region169: #{forward.1} parent=159 // pred_check
          %p1368 = pneg %p235
        $region170: #{forward.1} parent=159 // pred_check_branch
          %1370 = sbr.rel (%p1368) target = $region172
        $region171: #{forward.1} parent=159 // pred_region
          %1371 = dma.done [#allocation18], 3456
        $region172: #{forward.1} parent=159 // pred_fallthru
          _
        // Predicated region
        $region173: #{forward.1} parent=159 // pred_check
          %p1372 = pneg %p277
        $region174: #{forward.1} parent=159 // pred_check_branch
          %1374 = sbr.rel (%p1372) target = $region176
        $region175: #{forward.1} parent=159 // pred_region
          %1375 = dma.done [#allocation21], 6912
        $region176: #{forward.1} parent=159 // pred_fallthru
          _
        // Predicated region
        $region177: #{forward.1} parent=159 // pred_check
          %p1376 = pneg %p319
        $region178: #{forward.1} parent=159 // pred_check_branch
          %1378 = sbr.rel (%p1376) target = $region180
        $region179: #{forward.1} parent=159 // pred_region
          %1379 = dma.done [#allocation21], 3840
        $region180: #{forward.1} parent=159 // pred_fallthru
          _
        // Predicated region
        $region181: #{forward.1} parent=159 // pred_check
          %p1380 = pneg %p361
        $region182: #{forward.1} parent=159 // pred_check_branch
          %1382 = sbr.rel (%p1380) target = $region184
        $region183: #{forward.1} parent=159 // pred_region
          %1383 = dma.done [#allocation24], 7680
        $region184: #{forward.1} parent=159 // pred_fallthru
          _
        // Predicated region
        $region185: #{forward.1} parent=159 // pred_check
          %p1384 = pneg %p403
        $region186: #{forward.1} parent=159 // pred_check_branch
          %1386 = sbr.rel (%p1384) target = $region188
        $region187: #{forward.1} parent=159 // pred_region
          %1387 = dma.done [#allocation24], 4608
        $region188: #{forward.1} parent=159 // pred_fallthru
          _
        // Predicated region
        $region189: #{forward.1} parent=159 // pred_check
          %p1388 = pneg %p424
        $region190: #{forward.1} parent=159 // pred_check_branch
          %1390 = sbr.rel (%p1388) target = $region192
        $region191: #{forward.1} parent=159 // pred_region
          %1391 = dma.done [#allocation27], 16
        $region192: #{forward.1} parent=159 // pred_fallthru
          _
        // Predicated region
        $region193: #{forward.1} parent=159 // pred_check
          %p1392 = pneg %p466
        $region194: #{forward.1} parent=159 // pred_check_branch
          %1394 = sbr.rel (%p1392) target = $region196
        $region195: #{forward.1} parent=159 // pred_region
          %1395 = dma.done [#allocation27], 16
        $region196: #{forward.1} parent=159 // pred_fallthru
          _
        // Predicated region
        $region197: #{forward.1} parent=159 // pred_check
          %p1396 = pneg %p487
        $region198: #{forward.1} parent=159 // pred_check_branch
          %1398 = sbr.rel (%p1396) target = $region200
        $region199: #{forward.1} parent=159 // pred_region
          %1399 = dma.done [#allocation30], 6144
        $region200: #{forward.1} parent=159 // pred_fallthru
          _
        // Predicated region
        $region201: #{forward.1} parent=159 // pred_check
          %p1400 = pneg %p508
        $region202: #{forward.1} parent=159 // pred_check_branch
          %1402 = sbr.rel (%p1400) target = $region204
        $region203: #{forward.1} parent=159 // pred_region
          %1403 = dma.done [#allocation30], 16
        $region204: #{forward.1} parent=159 // pred_fallthru
          _
        // Predicated region
        $region205: #{forward.1} parent=159 // pred_check
          %p1404 = pneg %p529
        $region206: #{forward.1} parent=159 // pred_check_branch
          %1406 = sbr.rel (%p1404) target = $region208
        $region207: #{forward.1} parent=159 // pred_region
          %1407 = dma.done [#allocation33], 6144
        $region208: #{forward.1} parent=159 // pred_fallthru
          _
        // Predicated region
        $region209: #{forward.1} parent=159 // pred_check
          %p1408 = pneg %p550
        $region210: #{forward.1} parent=159 // pred_check_branch
          %1410 = sbr.rel (%p1408) target = $region212
        $region211: #{forward.1} parent=159 // pred_region
          %1411 = dma.done [#allocation33], 16
        $region212: #{forward.1} parent=159 // pred_fallthru
          _
        // Predicated region
        $region213: #{forward.1} parent=159 // pred_check
          %p1412 = pneg %p571
        $region214: #{forward.1} parent=159 // pred_check_branch
          %1414 = sbr.rel (%p1412) target = $region216
        $region215: #{forward.1} parent=159 // pred_region
          %1415 = dma.done [#allocation36], 4608
        $region216: #{forward.1} parent=159 // pred_fallthru
          _
        // Predicated region
        $region217: #{forward.1} parent=159 // pred_check
          %p1416 = pneg %p592
        $region218: #{forward.1} parent=159 // pred_check_branch
          %1418 = sbr.rel (%p1416) target = $region220
        $region219: #{forward.1} parent=159 // pred_region
          %1419 = dma.done [#allocation36], 16
        $region220: #{forward.1} parent=159 // pred_fallthru
          _
        // Predicated region
        $region221: #{forward.1} parent=159 // pred_check
          %p1420 = pneg %p613
        $region222: #{forward.1} parent=159 // pred_check_branch
          %1422 = sbr.rel (%p1420) target = $region224
        $region223: #{forward.1} parent=159 // pred_region
          %1423 = dma.done [#allocation39], 4608
        $region224: #{forward.1} parent=159 // pred_fallthru
          _
        // Predicated region
        $region225: #{forward.1} parent=159 // pred_check
          %p1424 = pneg %p634
        $region226: #{forward.1} parent=159 // pred_check_branch
          %1426 = sbr.rel (%p1424) target = $region228
        $region227: #{forward.1} parent=159 // pred_region
          %1427 = dma.done [#allocation39], 16
        $region228: #{forward.1} parent=159 // pred_fallthru
          _
        // Predicated region
        $region229: #{forward.1} parent=159 // pred_check
          %p1428 = pneg %p655
        $region230: #{forward.1} parent=159 // pred_check_branch
          %1430 = sbr.rel (%p1428) target = $region232
        $region231: #{forward.1} parent=159 // pred_region
          %1431 = dma.done [#allocation42], 512
        $region232: #{forward.1} parent=159 // pred_fallthru
          _
        // Predicated region
        $region233: #{forward.1} parent=159 // pred_check
          %p1432 = pneg %p718
        $region234: #{forward.1} parent=159 // pred_check_branch
          %1434 = sbr.rel (%p1432) target = $region236
        $region235: #{forward.1} parent=159 // pred_region
          %1435 = dma.done [#allocation42], 2048
        $region236: #{forward.1} parent=159 // pred_fallthru
          _
        // Predicated region
        $region237: #{forward.1} parent=159 // pred_check
          %p1436 = pneg %p739
        $region238: #{forward.1} parent=159 // pred_check_branch
          %1438 = sbr.rel (%p1436) target = $region240
        $region239: #{forward.1} parent=159 // pred_region
          %1439 = dma.done [#allocation45], 128
        $region240: #{forward.1} parent=159 // pred_fallthru
          _
        // Predicated region
        $region241: #{forward.1} parent=159 // pred_check
          %p1440 = pneg %p760
        $region242: #{forward.1} parent=159 // pred_check_branch
          %1442 = sbr.rel (%p1440) target = $region244
        $region243: #{forward.1} parent=159 // pred_region
          %1443 = dma.done [#allocation45], 2048
        $region244: #{forward.1} parent=159 // pred_fallthru
          _
        // Predicated region
        $region245: #{forward.1} parent=159 // pred_check
          %p1444 = pneg %p781
        $region246: #{forward.1} parent=159 // pred_check_branch
          %1446 = sbr.rel (%p1444) target = $region248
        $region247: #{forward.1} parent=159 // pred_region
          %1447 = dma.done [#allocation48], 64
        $region248: #{forward.1} parent=159 // pred_fallthru
          _
        // Predicated region
        $region249: #{forward.1} parent=159 // pred_check
          %p1448 = pneg %p802
        $region250: #{forward.1} parent=159 // pred_check_branch
          %1450 = sbr.rel (%p1448) target = $region252
        $region251: #{forward.1} parent=159 // pred_region
          %1451 = dma.done [#allocation48], 2048
        $region252: #{forward.1} parent=159 // pred_fallthru
          _
        // Predicated region
        $region253: #{forward.1} parent=159 // pred_check
          %p1452 = pneg %p844
        $region254: #{forward.1} parent=159 // pred_check_branch
          %1454 = sbr.rel (%p1452) target = $region256
        $region255: #{forward.1} parent=159 // pred_region
          %1455 = dma.done [#allocation51], 1024
        $region256: #{forward.1} parent=159 // pred_fallthru
          _
        %p1456 = scmp.lt.s32.totalorder %s109, 1
        %s1457 = scalar_select %p1456, %s109, 1
        %s1458 = smul.addr %s1457, 4
        %s1459 = smul.addr %s1458, 8
        %s1460 = scalar_lea.vmem %s1, %s1459
        %p1461 = pneg %p130
        %p1462 = pneg %p127
        %p1463 = pneg %p151
        %p1464 = pneg %p148
        %p1465 = pneg %p172
        %p1466 = pneg %p169
        %p1467 = pneg %p193
        %p1468 = pneg %p190
        %p1469 = pneg %p214
        %p1470 = pneg %p211
        %p1471 = pneg %p235
        %p1472 = pneg %p232
        %p1473 = pneg %p256
        %p1474 = pneg %p253
        %p1475 = pneg %p277
        %p1476 = pneg %p274
        %p1477 = pneg %p298
        %p1478 = pneg %p295
        %p1479 = pneg %p319
        %p1480 = pneg %p316
        %p1481 = pneg %p340
        %p1482 = pneg %p337
        %p1483 = pneg %p361
        %p1484 = pneg %p358
        %p1485 = pneg %p382
        %p1486 = pneg %p379
        %p1487 = pneg %p403
        %p1488 = pneg %p400
        %p1489 = pneg %p424
        %p1490 = pneg %p421
        %p1491 = pneg %p445
        %p1492 = pneg %p442
        %p1493 = pneg %p466
        %p1494 = pneg %p463
        %p1495 = pneg %p487
        %p1496 = pneg %p484
        %p1497 = pneg %p508
        %p1498 = pneg %p505
        %p1499 = pneg %p529
        %p1500 = pneg %p526
        %p1501 = pneg %p550
        %p1502 = pneg %p547
        %p1503 = pneg %p571
        %p1504 = pneg %p568
        %p1505 = pneg %p592
        %p1506 = pneg %p589
        %p1507 = pneg %p613
        %p1508 = pneg %p610
        %p1509 = pneg %p634
        %p1510 = pneg %p631
        %p1511 = pneg %p655
        %p1512 = pneg %p652
        %p1513 = pneg %p676
        %p1514 = pneg %p673
        %p1515 = pneg %p697
        %p1516 = pneg %p694
        %p1517 = pneg %p718
        %p1518 = pneg %p715
        %p1519 = pneg %p739
        %p1520 = pneg %p736
        %p1521 = pneg %p760
        %p1522 = pneg %p757
        %p1523 = pneg %p781
        %p1524 = pneg %p778
        %p1525 = pneg %p802
        %p1526 = pneg %p799
        %p1527 = pneg %p823
        %p1528 = pneg %p820
        %p1529 = pneg %p844
        %p1530 = pneg %p841
        %p1531 = pneg %p870
        %p1532 = pneg %p867
        %p1533 = scmp.lt.s32.totalorder %s109, 1
        %s1534 = scalar_select %p1533, %s109, 1
        %s1535 = smul.addr %s1534, 4
        %s1536 = smul.addr %s1535, 8
        %s1537 = scalar_lea.vmem %s71, %s1536
        %p1538 = pneg %p896
        %p1539 = pneg %p893
        %p1540 = scmp.lt.s32.totalorder %s109, 1
        %s1541 = scalar_select %p1540, %s109, 1
        %s1542 = smul.addr %s1541, 2
        %s1543 = smul.addr %s1542, 8
        %s1544 = scalar_lea.vmem %s73, %s1543
        %p1545 = pneg %p922
        %p1546 = pneg %p919
        %p1547 = scmp.lt.s32.totalorder %s109, 1
        %s1548 = scalar_select %p1547, %s109, 1
        %s1549 = smul.addr %s1548, 8
        %s1550 = scalar_lea.vmem %s75, %s1549
        %p1551 = pneg %p948
        %p1552 = pneg %p945
        %p1553 = scmp.lt.s32.totalorder %s109, 1
        %s1554 = scalar_select %p1553, %s109, 1
        %s1555 = smul.addr %s1554, 4
        %s1556 = scalar_lea.vmem %s77, %s1555
        %p1557 = pneg %p974
        %p1558 = pneg %p971
        %p1559 = scmp.lt.s32.totalorder %s109, 1
        %s1560 = scalar_select %p1559, %s109, 1
        %s1561 = smul.addr %s1560, 2
        %s1562 = scalar_lea.vmem %s79, %s1561
        %p1563 = pneg %p1000
        %p1564 = pneg %p997
        %s1565 = sand.u32 %s987, 1
        %s1566 = scalar_lea.sflag [#allocation16], %s1565
        %s1567 = sand.u32 %s987, 1
        %s1568 = scalar_lea.vmem [#allocation52], %s1567
        %p1569 = scmp.lt.s32.totalorder %s109, 1
        %s1570 = scalar_select %p1569, %s109, 1
        %s1571 = smul.addr %s1570, 4
        %s1572 = smul.addr %s1571, 8
        %s1573 = scalar_lea.vmem %s1, %s1572
        %p1574 = scmp.lt.s32.totalorder %s109, 1
        %s1575 = scalar_select %p1574, %s109, 1
        %s1576 = smul.addr %s1575, 4
        %s1577 = smul.addr %s1576, 8
        %s1578 = scalar_lea.vmem %s71, %s1577
        %p1579 = scmp.lt.s32.totalorder %s109, 1
        %s1580 = scalar_select %p1579, %s109, 1
        %s1581 = smul.addr %s1580, 2
        %s1582 = smul.addr %s1581, 8
        %s1583 = scalar_lea.vmem %s73, %s1582
        %p1584 = scmp.lt.s32.totalorder %s109, 1
        %s1585 = scalar_select %p1584, %s109, 1
        %s1586 = smul.addr %s1585, 8
        %s1587 = scalar_lea.vmem %s75, %s1586
        %p1588 = scmp.lt.s32.totalorder %s109, 1
        %s1589 = scalar_select %p1588, %s109, 1
        %s1590 = smul.addr %s1589, 4
        %s1591 = scalar_lea.vmem %s77, %s1590
        %p1592 = scmp.lt.s32.totalorder %s109, 1
        %s1593 = scalar_select %p1592, %s109, 1
        %s1594 = smul.addr %s1593, 2
        %s1595 = scalar_lea.vmem %s79, %s1594
        %vm1596 = vcmask 827392
        %1597 = vst.msk [vmem:[#allocation2] sm:$0x1] %vm1596, 0.0
        %1598 = vst.msk [vmem:[#allocation2 + $0x21] sm:$0x1] %vm1596, 0.0
        %vm1599 = vcmask 23552
        %1600 = vst.msk [vmem:[#allocation2 + $0x1] sm:$0xff] %vm1599, 0.0
        %1601 = vst.msk [vmem:[#allocation2 + $0x9] sm:$0xff] %vm1599, 0.0
        %1602 = vst.msk [vmem:[#allocation2 + $0x11] sm:$0xff] %vm1599, 0.0
        %1603 = vst.msk [vmem:[#allocation2 + $0x19] sm:$0xff] %vm1599, 0.0
        %vm1604 = vcmask 835352
        %1605 = vst.msk [vmem:[#allocation2 + $0x1] sm:$0xff] %vm1604, 0.0
        %1606 = vst.msk [vmem:[#allocation2 + $0x9] sm:$0xff] %vm1604, 0.0
        %1607 = vst.msk [vmem:[#allocation2 + $0x11] sm:$0xff] %vm1604, 0.0
        %1608 = vst.msk [vmem:[#allocation2 + $0x19] sm:$0xff] %vm1604, 0.0
        %v1609 = vlaneseq
        %vm1610 = vcmp.ge.s32.totalorder %v1609, 0
        %vm1611 = vcmp.lt.s32.totalorder %v1609, 136
        %vm1612 = vmand %vm1610, %vm1611
        %1613 = vst.msk [vmem:[#allocation3] ss:$8 sm:$0x3] %vm1612, 0.0
        %1614 = vst.msk [vmem:[#allocation3] ss:$8 sm:$0x0] %vm1612, 0.0
        %s1615 = scalar_lea.vmem [#allocation3], 65
        %1616 = vst.msk [vmem:[%s1615] ss:$8 sm:$0x3] %vm1612, 0.0
        %1617 = vst.msk [vmem:[%s1615] ss:$8 sm:$0x0] %vm1612, 0.0
        %vm1618 = vcmask 31745
        %1619 = vst.msk [vmem:[#allocation3] sm:$0xfe] %vm1618, 0.0
        %vm1620 = vcmask 31744
        %1621 = vst.msk [vmem:[#allocation3 + $0x10] sm:$0xff] %vm1620, 0.0
        %1622 = vst.msk [vmem:[#allocation3 + $0x20] sm:$0xff] %vm1620, 0.0
        %1623 = vst.msk [vmem:[#allocation3 + $0x30] sm:$0xff] %vm1620, 0.0
        %vm1624 = vcmask 24576
        %1625 = vst.msk [vmem:[#allocation3 + $0x40] sm:$0x1] %vm1624, 0.0
        %vm1626 = vcmask 64545
        %1627 = vst.msk [vmem:[#allocation3 + $0x8] sm:$0xfe] %vm1626, 0.0
        %vm1628 = vcmask 64544
        %1629 = vst.msk [vmem:[#allocation3 + $0x18] sm:$0xff] %vm1628, 0.0
        %1630 = vst.msk [vmem:[#allocation3 + $0x28] sm:$0xff] %vm1628, 0.0
        %1631 = vst.msk [vmem:[#allocation3 + $0x38] sm:$0xff] %vm1628, 0.0
        %vm1632 = vcmask 57376
        %1633 = vst.msk [vmem:[#allocation3 + $0x48] sm:$0x1] %vm1632, 0.0
        %vm1634 = vcmask 581632
        %1635 = vst.msk [vmem:[#allocation4] sm:$0x1] %vm1634, 0.0
        %1636 = vst.msk [vmem:[#allocation4 + $0x11] sm:$0x1] %vm1634, 0.0
        %1637 = vst.msk [vmem:[#allocation4 + $0x1] sm:$0xff] %vm1620, 0.0
        %1638 = vst.msk [vmem:[#allocation4 + $0x9] sm:$0xff] %vm1620, 0.0
        %vm1639 = vcmask 589344
        %1640 = vst.msk [vmem:[#allocation4 + $0x1] sm:$0xff] %vm1639, 0.0
        %1641 = vst.msk [vmem:[#allocation4 + $0x9] sm:$0xff] %vm1639, 0.0
        %vm1642 = vcmp.lt.s32.totalorder %v1609, 144
        %vm1643 = vmand %vm1610, %vm1642
        %1644 = vst.msk [vmem:[#allocation5] ss:$8 sm:$0x3] %vm1643, 0.0
        %1645 = vst.msk [vmem:[#allocation5] ss:$8 sm:$0x0] %vm1643, 0.0
        %s1646 = scalar_lea.vmem [#allocation5], 33
        %1647 = vst.msk [vmem:[%s1646] ss:$8 sm:$0x3] %vm1643, 0.0
        %1648 = vst.msk [vmem:[%s1646] ss:$8 sm:$0x0] %vm1643, 0.0
        %vm1649 = vcmask 64513
        %1650 = vst.msk [vmem:[#allocation5] sm:$0xfe] %vm1649, 0.0
        %vm1651 = vcmask 64512
        %1652 = vst.msk [vmem:[#allocation5 + $0x10] sm:$0xff] %vm1651, 0.0
        %vm1653 = vcmask 57344
        %1654 = vst.msk [vmem:[#allocation5 + $0x20] sm:$0x1] %vm1653, 0.0
        %vm1655 = vcmask 130113
        %1656 = vst.msk [vmem:[#allocation5 + $0x8] sm:$0xfe] %vm1655, 0.0
        %vm1657 = vcmask 130112
        %1658 = vst.msk [vmem:[#allocation5 + $0x18] sm:$0xff] %vm1657, 0.0
        %vm1659 = vcmask 122944
        %1660 = vst.msk [vmem:[#allocation5 + $0x28] sm:$0x1] %vm1659, 0.0
        %vm1661 = vcmask 647168
        %1662 = vst.msk [vmem:[#allocation6] sm:$0x1] %vm1661, 0.0
        %1663 = vst.msk [vmem:[#allocation6 + $0x9] sm:$0x1] %vm1661, 0.0
        %1664 = vst.msk [vmem:[#allocation6 + $0x1] sm:$0xff] %vm1651, 0.0
        %vm1665 = vcmask 654912
        %1666 = vst.msk [vmem:[#allocation6 + $0x1] sm:$0xff] %vm1665, 0.0
        %vm1667 = vcmp.lt.s32.totalorder %v1609, 160
        %vm1668 = vmand %vm1610, %vm1667
        %1669 = vst.msk [vmem:[#allocation7] ss:$8 sm:$0x3] %vm1668, 0.0
        %1670 = vst.msk [vmem:[#allocation7] ss:$8 sm:$0x0] %vm1668, 0.0
        %s1671 = scalar_lea.vmem [#allocation7], 17
        %1672 = vst.msk [vmem:[%s1671] ss:$8 sm:$0x3] %vm1668, 0.0
        %1673 = vst.msk [vmem:[%s1671] ss:$8 sm:$0x0] %vm1668, 0.0
        %vm1674 = vcmask 130049
        %1675 = vst.msk [vmem:[#allocation7] sm:$0xfe] %vm1674, 0.0
        %vm1676 = vcmask 122880
        %1677 = vst.msk [vmem:[#allocation7 + $0x10] sm:$0x1] %vm1676, 0.0
        %vm1678 = vcmask 261249
        %1679 = vst.msk [vmem:[#allocation7 + $0x8] sm:$0xfe] %vm1678, 0.0
        %vm1680 = vcmask 254080
        %1681 = vst.msk [vmem:[#allocation7 + $0x18] sm:$0x1] %vm1680, 0.0
        %vm1682 = vcmask 778240
        %1683 = vst.msk [vmem:[#allocation8] sm:$0x1] %vm1682, 0.0
        %1684 = vst.msk [vmem:[#allocation8 + $0x5] sm:$0x1] %vm1682, 0.0
        %vm1685 = vcmask 125952
        %1686 = vst.msk [vmem:[#allocation8 + $0x1] sm:$0xf] %vm1685, 0.0
        %vm1687 = vcmask 781952
        %1688 = vst.msk [vmem:[#allocation8 + $0x1] sm:$0xf] %vm1687, 0.0
        %vm1689 = vcmp.lt.s32.totalorder %v1609, 192
        %vm1690 = vmand %vm1610, %vm1689
        %1691 = vst.msk [vmem:[#allocation9] ss:$8 sm:$0x3] %vm1690, 0.0
        %1692 = vst.msk [vmem:[#allocation9] ss:$8 sm:$0x0] %vm1690, 0.0
        %s1693 = scalar_lea.vmem [#allocation9], 5
        %1694 = vst.msk [vmem:[%s1693] ss:$8 sm:$0x3] %vm1690, 0.0
        %1695 = vst.msk [vmem:[%s1693] ss:$8 sm:$0x0] %vm1690, 0.0
        %vm1696 = vcmask 258049
        %1697 = vst.msk [vmem:[#allocation9] sm:$0x1e] %vm1696, 0.0
        %vm1698 = vcmask 520449
        %1699 = vst.msk [vmem:[#allocation9 + $0x8] sm:$0x1e] %vm1698, 0.0
        %1700 = vst [vmem:[#allocation10] sm:$0x1] 0.0
        %1701 = vst [vmem:[#allocation10 + $0x3] sm:$0x1] 0.0
        %vm1702 = vcmask 254976
        %1703 = vst.msk [vmem:[#allocation10 + $0x1] sm:$0x3] %vm1702, 0.0
        %vm1704 = vcmask 1042176
        %1705 = vst.msk [vmem:[#allocation10 + $0x1] sm:$0x3] %vm1704, 0.0
        %1706 = vst [vmem:[#allocation11] sm:$0x1] 0.0
        %1707 = vst [vmem:[#allocation11 + $0x3] sm:$0x1] 0.0
        %1708 = vst.msk [vmem:[#allocation11 + $0x1] sm:$0x3] %vm1702, 0.0
        %1709 = vst.msk [vmem:[#allocation11 + $0x1] sm:$0x3] %vm1704, 0.0
        %1710 = vst.msk [vmem:[#allocation12] sm:$0x1] %vm1682, 0.0
        %1711 = vst.msk [vmem:[#allocation12 + $0x2] sm:$0x1] %vm1682, 0.0
        %vm1712 = vcmask 253952
        %1713 = vst.msk [vmem:[#allocation12 + $0x1] sm:$0x1] %vm1712, 0.0
        %vm1714 = vcmask 778752
        %1715 = vst.msk [vmem:[#allocation12 + $0x1] sm:$0x1] %vm1714, 0.0
        %1716 = vst.msk [vmem:[#allocation13] sm:$0x1] %vm1682, 0.0
        %1717 = vst.msk [vmem:[#allocation13 + $0x2] sm:$0x1] %vm1682, 0.0
        %1718 = vst.msk [vmem:[#allocation13 + $0x1] sm:$0x1] %vm1712, 0.0
        %1719 = vst.msk [vmem:[#allocation13 + $0x1] sm:$0x1] %vm1714, 0.0
        %v1720 = vld [vmem:[%s1573] sm:$0xff]
        %v1721 = vld [vmem:[%s1573 + $0x8] sm:$0xff]
        %v1722 = vld [vmem:[%s1573 + $0x10] sm:$0xff]
        %v1723 = vld [vmem:[%s1573 + $0x18] sm:$0xff]
        %1728 = vrot.lane.b32.xlu0 %v1720, 3
        %v1729 = vpop.permute.xlu0 %1728
        %1730 = vrot.lane.b32.xlu0 %v1721, 3
        %v1731 = vpop.permute.xlu0 %1730
        %1732 = vrot.lane.b32.xlu0 %v1722, 3
        %v1733 = vpop.permute.xlu0 %1732
        %1734 = vrot.lane.b32.xlu0 %v1723, 3
        %v1735 = vpop.permute.xlu0 %1734
        %vm1740 = vcmask 810008
        %1741 = vst.msk [vmem:[#allocation2 + $0x1] sm:$0xff] %vm1740, %v1729
        %1742 = vst.msk [vmem:[#allocation2 + $0x9] sm:$0xff] %vm1740, %v1731
        %1743 = vst.msk [vmem:[#allocation2 + $0x11] sm:$0xff] %vm1740, %v1733
        %1744 = vst.msk [vmem:[#allocation2 + $0x19] sm:$0xff] %vm1740, %v1735
        %v1745 = vld [vmem:[#allocation2] sm:$0xff]
        %v1746 = vld [vmem:[#allocation2 + $0x8] sm:$0xff]
        %v1747 = vld [vmem:[#allocation2 + $0x10] sm:$0xff]
        %v1748 = vld [vmem:[#allocation2 + $0x18] sm:$0xff]
        %v1749 = vld [vmem:[#allocation14] sm:$0xff]
        %v1750 = vld [vmem:[#allocation14 + $0x8] sm:$0xff]
        %v1751 = vld [vmem:[#allocation14 + $0x10] sm:$0xff]
        %v1752 = vld [vmem:[#allocation14 + $0x18] sm:$0xff]
        %v1753 = vld [vmem:[#allocation14 + $0x20] sm:$0xff]
        %v1754 = vld [vmem:[#allocation14 + $0x28] sm:$0xff]
        %v1755 = vld [vmem:[#allocation14 + $0x30] sm:$0xff]
        %v1756 = vld [vmem:[#allocation14 + $0x38] sm:$0xff]
        %v1757 = vld [vmem:[#allocation14 + $0x40] sm:$0xff]
        %v1758 = vld [vmem:[#allocation14 + $0x48] sm:$0xff]
        %v1759 = vld [vmem:[#allocation14 + $0x50] sm:$0xff]
        %v1760 = vld [vmem:[#allocation14 + $0x58] sm:$0xff]
        %v1761 = vld [vmem:[#allocation14 + $0x60] sm:$0x3f]
        %v1762 = vld [vmem:[#allocation2 + $0x1] sm:$0xff]
        %v1763 = vld [vmem:[#allocation2 + $0x9] sm:$0xff]
        %v1764 = vld [vmem:[#allocation2 + $0x11] sm:$0xff]
        %v1765 = vld [vmem:[#allocation2 + $0x19] sm:$0xff]
        %s1766 = scalar_lea.vmem [#allocation14], 104
        %v1767 = vld [vmem:[%s1766] sm:$0xff]
        %v1768 = vld [vmem:[%s1766 + $0x8] sm:$0xff]
        %v1769 = vld [vmem:[%s1766 + $0x10] sm:$0xff]
        %v1770 = vld [vmem:[%s1766 + $0x18] sm:$0xff]
        %v1771 = vld [vmem:[%s1766 + $0x20] sm:$0xff]
        %v1772 = vld [vmem:[%s1766 + $0x28] sm:$0xff]
        %v1773 = vld [vmem:[%s1766 + $0x30] sm:$0xff]
        %v1774 = vld [vmem:[%s1766 + $0x38] sm:$0xff]
        %v1775 = vld [vmem:[%s1766 + $0x40] sm:$0xff]
        %v1776 = vld [vmem:[%s1766 + $0x48] sm:$0xff]
        %v1777 = vld [vmem:[%s1766 + $0x50] sm:$0xff]
        %v1778 = vld [vmem:[%s1766 + $0x58] sm:$0xff]
        %v1779 = vld [vmem:[%s1766 + $0x60] sm:$0x3f]
        %vm1780 = vcmask 834560
        %v1782 = vsel %vm1780, %v1762, 0
        %v1785 = vsel %vm1780, %v1763, 0
        %v1788 = vsel %vm1780, %v1764, 0
        %v1791 = vsel %vm1780, %v1765, 0
        %vm1793 = vcmask 1045504
        %v1795 = vsel %vm1793, %v1779, 0
        %1797 = vmatprep.subr.mxu0 0.0
        %1798 = vmatpush1.msra.mxu0 %v1767
        %1799 = vmatprep.subr.mxu0 0.0
        %1800 = vmatpush1.msra.mxu0 %v1768
        %1801 = vmatprep.subr.mxu0 0.0
        %1802 = vmatpush1.msra.mxu0 %v1769
        %1803 = vmatprep.subr.mxu0 0.0
        %1804 = vmatpush1.msra.mxu0 %v1770
        %1805 = vmatprep.subr.mxu0 0.0
        %1806 = vmatpush1.msra.mxu0 %v1771
        %1807 = vmatprep.subr.mxu0 0.0
        %1808 = vmatpush1.msra.mxu0 %v1772
        %1809 = vmatprep.subr.mxu0 0.0
        %1810 = vmatpush1.msra.mxu0 %v1773
        %1811 = vmatprep.subr.mxu0 0.0
        %1812 = vmatpush1.msra.mxu0 %v1774
        %1813 = vmatprep.subr.mxu0 0.0
        %1814 = vmatpush1.msra.mxu0 %v1775
        %1815 = vmatprep.subr.mxu0 0.0
        %1816 = vmatpush1.msra.mxu0 %v1776
        %1817 = vmatprep.subr.mxu0 0.0
        %1818 = vmatpush1.msra.mxu0 %v1777
        %1819 = vmatprep.subr.mxu0 0.0
        %1820 = vmatpush1.msra.mxu0 %v1778
        %1821 = vmatprep.subr.mxu0 0.0
        %1822 = vmatpush1.msra.mxu0 %v1795
        %1823 = vmatprep.subr.mxu0 0.0
        %1824 = vmatpush1.msra.mxu0 0.0
        %1825 = vmatprep.subr.mxu0 0.0
        %1826 = vmatpush1.msra.mxu0 0.0
        %1827 = vmatprep.subr.mxu0 0.0
        %1828 = vmatpush1.msra.mxu0 0.0
        %1829 = vmatprep.subr.mxu0 0.0
        %1830 = vmatpush1.msra.mxu0 0.0
        %1831 = vmatprep.subr.mxu0 0.0
        %1832 = vmatpush1.msra.mxu0 0.0
        %1833 = vmatprep.subr.mxu0 0.0
        %1834 = vmatpush1.msra.mxu0 0.0
        %1835 = vmatprep.subr.mxu0 0.0
        %1836 = vmatpush1.msra.mxu0 0.0
        %1837 = vmatprep.subr.mxu0 0.0
        %1838 = vmatpush1.msra.mxu0 0.0
        %1839 = vmatprep.subr.mxu0 0.0
        %1840 = vmatpush1.msra.mxu0 0.0
        %1841 = vmatprep.subr.mxu0 0.0
        %1842 = vmatpush1.msra.mxu0 0.0
        %1843 = vmatprep.subr.mxu0 0.0
        %1844 = vmatpush1.msra.mxu0 0.0
        %1845 = vmatprep.subr.mxu0 0.0
        %1846 = vmatpush1.msra.mxu0 0.0
        %1847 = vmatprep.subr.mxu0 0.0
        %1848 = vmatpush1.msra.mxu0 0.0
        %1849 = vmatprep.subr.mxu0 0.0
        %1850 = vmatpush1.msra.mxu0 0.0
        %1851 = vmatprep.subr.mxu0 0.0
        %1852 = vmatpush1.msra.mxu0 0.0
        %1853 = vmatprep.subr.mxu0 0.0
        %1854 = vmatpush1.msra.mxu0 0.0
        %1855 = vmatprep.subr.mxu0 0.0
        %1856 = vmatpush1.msra.mxu0 0.0
        %1857 = vmatprep.subr.mxu0 0.0
        %1858 = vmatpush1.msra.mxu0 0.0
        %1859 = vmatprep.subr.mxu0 0.0
        %1860 = vmatpush1.msra.mxu0 0.0
        %1861 = vmatprep.mubr.f32.mxu0 0.0
        %1862 = vmatmul.mubr.f32.gmra.mrb[0].mxu0 %v1782
        %v1863 = vpop.f32.mrb[0].mxu0
        %v1864 = vadd.f32 0.0, %v1863
        %v1865 = vpop.f32.mrb[0].mxu0
        %1866 = vmatprep.mubr.f32.mxu0 0.0
        %1867 = vmatmul.mubr.f32.gmra.mrb[0].mxu0 %v1785
        %v1868 = vpop.f32.mrb[0].mxu0
        %v1869 = vadd.f32 0.0, %v1868
        %v1870 = vpop.f32.mrb[0].mxu0
        %1871 = vmatprep.mubr.f32.mxu0 0.0
        %1872 = vmatmul.mubr.f32.gmra.mrb[0].mxu0 %v1788
        %v1873 = vpop.f32.mrb[0].mxu0
        %v1874 = vadd.f32 0.0, %v1873
        %v1875 = vpop.f32.mrb[0].mxu0
        %1876 = vmatprep.mubr.f32.mxu0 0.0
        %1877 = vmatmul.mubr.f32.gmra.mrb[0].mxu0 %v1791
        %v1878 = vpop.f32.mrb[0].mxu0
        %v1879 = vadd.f32 0.0, %v1878
        %v1880 = vpop.f32.mrb[0].mxu0
        %1881 = vdwg.mxu0
        %v1883 = vsel %vm1780, %v1745, 0
        %v1886 = vsel %vm1780, %v1746, 0
        %v1889 = vsel %vm1780, %v1747, 0
        %v1892 = vsel %vm1780, %v1748, 0
        %v1895 = vsel %vm1793, %v1761, 0
        %1897 = vmatprep.subr.mxu0 0.0
        %1898 = vmatpush1.msra.mxu0 %v1749
        %1899 = vmatprep.subr.mxu0 0.0
        %1900 = vmatpush1.msra.mxu0 %v1750
        %1901 = vmatprep.subr.mxu0 0.0
        %1902 = vmatpush1.msra.mxu0 %v1751
        %1903 = vmatprep.subr.mxu0 0.0
        %1904 = vmatpush1.msra.mxu0 %v1752
        %1905 = vmatprep.subr.mxu0 0.0
        %1906 = vmatpush1.msra.mxu0 %v1753
        %1907 = vmatprep.subr.mxu0 0.0
        %1908 = vmatpush1.msra.mxu0 %v1754
        %1909 = vmatprep.subr.mxu0 0.0
        %1910 = vmatpush1.msra.mxu0 %v1755
        %1911 = vmatprep.subr.mxu0 0.0
        %1912 = vmatpush1.msra.mxu0 %v1756
        %1913 = vmatprep.subr.mxu0 0.0
        %1914 = vmatpush1.msra.mxu0 %v1757
        %1915 = vmatprep.subr.mxu0 0.0
        %1916 = vmatpush1.msra.mxu0 %v1758
        %1917 = vmatprep.subr.mxu0 0.0
        %1918 = vmatpush1.msra.mxu0 %v1759
        %1919 = vmatprep.subr.mxu0 0.0
        %1920 = vmatpush1.msra.mxu0 %v1760
        %1921 = vmatprep.subr.mxu0 0.0
        %1922 = vmatpush1.msra.mxu0 %v1895
        %1923 = vmatprep.subr.mxu0 0.0
        %1924 = vmatpush1.msra.mxu0 0.0
        %1925 = vmatprep.subr.mxu0 0.0
        %1926 = vmatpush1.msra.mxu0 0.0
        %1927 = vmatprep.subr.mxu0 0.0
        %1928 = vmatpush1.msra.mxu0 0.0
        %1929 = vmatprep.subr.mxu0 0.0
        %1930 = vmatpush1.msra.mxu0 0.0
        %1931 = vmatprep.subr.mxu0 0.0
        %1932 = vmatpush1.msra.mxu0 0.0
        %1933 = vmatprep.subr.mxu0 0.0
        %1934 = vmatpush1.msra.mxu0 0.0
        %1935 = vmatprep.subr.mxu0 0.0
        %1936 = vmatpush1.msra.mxu0 0.0
        %1937 = vmatprep.subr.mxu0 0.0
        %1938 = vmatpush1.msra.mxu0 0.0
        %1939 = vmatprep.subr.mxu0 0.0
        %1940 = vmatpush1.msra.mxu0 0.0
        %1941 = vmatprep.subr.mxu0 0.0
        %1942 = vmatpush1.msra.mxu0 0.0
        %1943 = vmatprep.subr.mxu0 0.0
        %1944 = vmatpush1.msra.mxu0 0.0
        %1945 = vmatprep.subr.mxu0 0.0
        %1946 = vmatpush1.msra.mxu0 0.0
        %1947 = vmatprep.subr.mxu0 0.0
        %1948 = vmatpush1.msra.mxu0 0.0
        %1949 = vmatprep.subr.mxu0 0.0
        %1950 = vmatpush1.msra.mxu0 0.0
        %1951 = vmatprep.subr.mxu0 0.0
        %1952 = vmatpush1.msra.mxu0 0.0
        %1953 = vmatprep.subr.mxu0 0.0
        %1954 = vmatpush1.msra.mxu0 0.0
        %1955 = vmatprep.subr.mxu0 0.0
        %1956 = vmatpush1.msra.mxu0 0.0
        %1957 = vmatprep.subr.mxu0 0.0
        %1958 = vmatpush1.msra.mxu0 0.0
        %1959 = vmatprep.subr.mxu0 0.0
        %1960 = vmatpush1.msra.mxu0 0.0
        %1961 = vmatprep.mubr.f32.mxu0 0.0
        %1962 = vmatmul.mubr.f32.gmra.mrb[0].mxu0 %v1883
        %v1963 = vpop.f32.mrb[0].mxu0
        %v1964 = vadd.f32 %v1864, %v1963
        %v1965 = vpop.f32.mrb[0].mxu0
        %1966 = vmatprep.mubr.f32.mxu0 0.0
        %1967 = vmatmul.mubr.f32.gmra.mrb[0].mxu0 %v1886
        %v1968 = vpop.f32.mrb[0].mxu0
        %v1969 = vadd.f32 %v1869, %v1968
        %v1970 = vpop.f32.mrb[0].mxu0
        %1971 = vmatprep.mubr.f32.mxu0 0.0
        %1972 = vmatmul.mubr.f32.gmra.mrb[0].mxu0 %v1889
        %v1973 = vpop.f32.mrb[0].mxu0
        %v1974 = vadd.f32 %v1874, %v1973
        %v1975 = vpop.f32.mrb[0].mxu0
        %1976 = vmatprep.mubr.f32.mxu0 0.0
        %1977 = vmatmul.mubr.f32.gmra.mrb[0].mxu0 %v1892
        %v1978 = vpop.f32.mrb[0].mxu0
        %v1979 = vadd.f32 %v1879, %v1978
        %v1980 = vpop.f32.mrb[0].mxu0
        %1981 = vdwg.mxu0
        %v1982 = vld [vmem:[#allocation2 + $0x2] sm:$0xff]
        %v1983 = vld [vmem:[#allocation2 + $0xa] sm:$0xff]
        %v1984 = vld [vmem:[#allocation2 + $0x12] sm:$0xff]
        %v1985 = vld [vmem:[#allocation2 + $0x1a] sm:$0xff]
        %s1986 = scalar_lea.vmem [#allocation14], 208
        %v1987 = vld [vmem:[%s1986] sm:$0xff]
        %v1988 = vld [vmem:[%s1986 + $0x8] sm:$0xff]
        %v1989 = vld [vmem:[%s1986 + $0x10] sm:$0xff]
        %v1990 = vld [vmem:[%s1986 + $0x18] sm:$0xff]
        %v1991 = vld [vmem:[%s1986 + $0x20] sm:$0xff]
        %v1992 = vld [vmem:[%s1986 + $0x28] sm:$0xff]
        %v1993 = vld [vmem:[%s1986 + $0x30] sm:$0xff]
        %v1994 = vld [vmem:[%s1986 + $0x38] sm:$0xff]
        %v1995 = vld [vmem:[%s1986 + $0x40] sm:$0xff]
        %v1996 = vld [vmem:[%s1986 + $0x48] sm:$0xff]
        %v1997 = vld [vmem:[%s1986 + $0x50] sm:$0xff]
        %v1998 = vld [vmem:[%s1986 + $0x58] sm:$0xff]
        %v1999 = vld [vmem:[%s1986 + $0x60] sm:$0x3f]
        %v2001 = vsel %vm1780, %v1982, 0
        %v2004 = vsel %vm1780, %v1983, 0
        %v2007 = vsel %vm1780, %v1984, 0
        %v2010 = vsel %vm1780, %v1985, 0
        %v2013 = vsel %vm1793, %v1999, 0
        %2015 = vmatprep.subr.mxu0 0.0
        %2016 = vmatpush1.msra.mxu0 %v1987
        %2017 = vmatprep.subr.mxu0 0.0
        %2018 = vmatpush1.msra.mxu0 %v1988
        %2019 = vmatprep.subr.mxu0 0.0
        %2020 = vmatpush1.msra.mxu0 %v1989
        %2021 = vmatprep.subr.mxu0 0.0
        %2022 = vmatpush1.msra.mxu0 %v1990
        %2023 = vmatprep.subr.mxu0 0.0
        %2024 = vmatpush1.msra.mxu0 %v1991
        %2025 = vmatprep.subr.mxu0 0.0
        %2026 = vmatpush1.msra.mxu0 %v1992
        %2027 = vmatprep.subr.mxu0 0.0
        %2028 = vmatpush1.msra.mxu0 %v1993
        %2029 = vmatprep.subr.mxu0 0.0
        %2030 = vmatpush1.msra.mxu0 %v1994
        %2031 = vmatprep.subr.mxu0 0.0
        %2032 = vmatpush1.msra.mxu0 %v1995
        %2033 = vmatprep.subr.mxu0 0.0
        %2034 = vmatpush1.msra.mxu0 %v1996
        %2035 = vmatprep.subr.mxu0 0.0
        %2036 = vmatpush1.msra.mxu0 %v1997
        %2037 = vmatprep.subr.mxu0 0.0
        %2038 = vmatpush1.msra.mxu0 %v1998
        %2039 = vmatprep.subr.mxu0 0.0
        %2040 = vmatpush1.msra.mxu0 %v2013
        %2041 = vmatprep.subr.mxu0 0.0
        %2042 = vmatpush1.msra.mxu0 0.0
        %2043 = vmatprep.subr.mxu0 0.0
        %2044 = vmatpush1.msra.mxu0 0.0
        %2045 = vmatprep.subr.mxu0 0.0
        %2046 = vmatpush1.msra.mxu0 0.0
        %2047 = vmatprep.subr.mxu0 0.0
        %2048 = vmatpush1.msra.mxu0 0.0
        %2049 = vmatprep.subr.mxu0 0.0
        %2050 = vmatpush1.msra.mxu0 0.0
        %2051 = vmatprep.subr.mxu0 0.0
        %2052 = vmatpush1.msra.mxu0 0.0
        %2053 = vmatprep.subr.mxu0 0.0
        %2054 = vmatpush1.msra.mxu0 0.0
        %2055 = vmatprep.subr.mxu0 0.0
        %2056 = vmatpush1.msra.mxu0 0.0
        %2057 = vmatprep.subr.mxu0 0.0
        %2058 = vmatpush1.msra.mxu0 0.0
        %2059 = vmatprep.subr.mxu0 0.0
        %2060 = vmatpush1.msra.mxu0 0.0
        %2061 = vmatprep.subr.mxu0 0.0
        %2062 = vmatpush1.msra.mxu0 0.0
        %2063 = vmatprep.subr.mxu0 0.0
        %2064 = vmatpush1.msra.mxu0 0.0
        %2065 = vmatprep.subr.mxu0 0.0
        %2066 = vmatpush1.msra.mxu0 0.0
        %2067 = vmatprep.subr.mxu0 0.0
        %2068 = vmatpush1.msra.mxu0 0.0
        %2069 = vmatprep.subr.mxu0 0.0
        %2070 = vmatpush1.msra.mxu0 0.0
        %2071 = vmatprep.subr.mxu0 0.0
        %2072 = vmatpush1.msra.mxu0 0.0
        %2073 = vmatprep.subr.mxu0 0.0
        %2074 = vmatpush1.msra.mxu0 0.0
        %2075 = vmatprep.subr.mxu0 0.0
        %2076 = vmatpush1.msra.mxu0 0.0
        %2077 = vmatprep.subr.mxu0 0.0
        %2078 = vmatpush1.msra.mxu0 0.0
        %2079 = vmatprep.mubr.f32.mxu0 0.0
        %2080 = vmatmul.mubr.f32.gmra.mrb[0].mxu0 %v2001
        %v2081 = vpop.f32.mrb[0].mxu0
        %v2082 = vadd.f32 0.0, %v2081
        %v2083 = vpop.f32.mrb[0].mxu0
        %2084 = vmatprep.mubr.f32.mxu0 0.0
        %2085 = vmatmul.mubr.f32.gmra.mrb[0].mxu0 %v2004
        %v2086 = vpop.f32.mrb[0].mxu0
        %v2087 = vadd.f32 0.0, %v2086
        %v2088 = vpop.f32.mrb[0].mxu0
        %2089 = vmatprep.mubr.f32.mxu0 0.0
        %2090 = vmatmul.mubr.f32.gmra.mrb[0].mxu0 %v2007
        %v2091 = vpop.f32.mrb[0].mxu0
        %v2092 = vadd.f32 0.0, %v2091
        %v2093 = vpop.f32.mrb[0].mxu0
        %2094 = vmatprep.mubr.f32.mxu0 0.0
        %2095 = vmatmul.mubr.f32.gmra.mrb[0].mxu0 %v2010
        %v2096 = vpop.f32.mrb[0].mxu0
        %v2097 = vadd.f32 0.0, %v2096
        %v2098 = vpop.f32.mrb[0].mxu0
        %2099 = vdwg.mxu0
        %v2100 = vadd.f32 %v1964, %v2082
        %v2101 = vadd.f32 %v1969, %v2087
        %v2102 = vadd.f32 %v1974, %v2092
        %v2103 = vadd.f32 %v1979, %v2097
        %v2104 = vld [vmem:[%s5] sm:$0x1]
        %v2106 = vlaneseq
        %v2107 = vshrl.u32 %v2106, 7
        %v2108 = vsub.s32 0, %v2107
        %v2109 = vrot.slane %v2104, %v2108
        %v2111 = vadd.f32 %v2100, %v2109
        %v2112 = vadd.f32 %v2101, %v2109
        %v2113 = vadd.f32 %v2102, %v2109
        %v2114 = vadd.f32 %v2103, %v2109
        %v2115 = vmax.f32 %v2111, 0.0
        %v2116 = vmax.f32 %v2112, 0.0
        %v2117 = vmax.f32 %v2113, 0.0
        %v2118 = vmax.f32 %v2114, 0.0
        %vm2123 = vcmask 1040384
        %v2124 = vrot.slane %v2115, 7
        %v2125 = vrot.slane %v2116, 7
        %v2126 = vsel %vm2123, %v2124, %v2125
        %v2127 = vrot.slane %v2117, 7
        %v2128 = vsel %vm2123, %v2125, %v2127
        %v2129 = vrot.slane %v2118, 7
        %v2130 = vsel %vm2123, %v2127, %v2129
        %2131 = vrot.lane.b32.xlu0 %v2124, 4
        %v2132 = vpop.permute.xlu0 %2131
        %2133 = vrot.lane.b32.xlu0 %v2126, 4
        %v2134 = vpop.permute.xlu0 %2133
        %2135 = vrot.lane.b32.xlu0 %v2128, 4
        %v2136 = vpop.permute.xlu0 %2135
        %2137 = vrot.lane.b32.xlu0 %v2130, 4
        %v2138 = vpop.permute.xlu0 %2137
        %2139 = vrot.lane.b32.xlu0 %v2129, 4
        %v2140 = vpop.permute.xlu0 %2139
        %vm2146 = vcmask 1047585
        %2147 = vst.msk [vmem:[#allocation3] sm:$0xfe] %vm2146, %v2132
        %2148 = vst.msk [vmem:[#allocation3 + $0x8] sm:$0xfe] %vm1618, %v2132
        %vm2149 = vcmask 1047584
        %2150 = vst.msk [vmem:[#allocation3 + $0x10] sm:$0xff] %vm2149, %v2134
        %2151 = vst.msk [vmem:[#allocation3 + $0x18] sm:$0xff] %vm1620, %v2134
        %2152 = vst.msk [vmem:[#allocation3 + $0x20] sm:$0xff] %vm2149, %v2136
        %2153 = vst.msk [vmem:[#allocation3 + $0x28] sm:$0xff] %vm1620, %v2136
        %2154 = vst.msk [vmem:[#allocation3 + $0x30] sm:$0xff] %vm2149, %v2138
        %2155 = vst.msk [vmem:[#allocation3 + $0x38] sm:$0xff] %vm1620, %v2138
        %vm2156 = vcmask 1040416
        %2157 = vst.msk [vmem:[#allocation3 + $0x40] sm:$0x1] %vm2156, %v2140
        %2158 = vst.msk [vmem:[#allocation3 + $0x48] sm:$0x1] %vm1624, %v2140
        %v2159 = vld [vmem:[#allocation3] sm:$0xff]
        %v2160 = vld [vmem:[#allocation3 + $0x8] sm:$0xff]
        %v2161 = vld [vmem:[#allocation3 + $0x10] sm:$0xff]
        %v2162 = vld [vmem:[#allocation3 + $0x18] sm:$0xff]
        %v2163 = vld [vmem:[#allocation3 + $0x20] sm:$0xff]
        %v2164 = vld [vmem:[#allocation3 + $0x28] sm:$0xff]
        %v2165 = vld [vmem:[#allocation3 + $0x30] sm:$0xff]
        %v2166 = vld [vmem:[#allocation3 + $0x38] sm:$0xff]
        %v2167 = vld [vmem:[#allocation17] sm:$0xff]
        %v2168 = vld [vmem:[#allocation17 + $0x8] sm:$0xff]
        %v2169 = vld [vmem:[#allocation17 + $0x10] sm:$0xff]
        %v2170 = vld [vmem:[#allocation17 + $0x18] sm:$0xff]
        %v2171 = vld [vmem:[#allocation17 + $0x20] sm:$0xff]
        %v2172 = vld [vmem:[#allocation17 + $0x28] sm:$0xff]
        %v2173 = vld [vmem:[#allocation17 + $0x30] sm:$0xff]
        %v2174 = vld [vmem:[#allocation17 + $0x38] sm:$0xff]
        %v2175 = vld [vmem:[#allocation17 + $0x40] sm:$0xff]
        %v2176 = vld [vmem:[#allocation17 + $0x48] sm:$0xff]
        %v2177 = vld [vmem:[#allocation17 + $0x50] sm:$0xff]
        %v2178 = vld [vmem:[#allocation17 + $0x58] sm:$0xff]
        %v2179 = vld [vmem:[#allocation17 + $0x60] sm:$0xff]
        %v2180 = vld [vmem:[#allocation17 + $0x68] sm:$0xff]
        %v2181 = vld [vmem:[#allocation17 + $0x70] sm:$0xff]
        %v2182 = vld [vmem:[#allocation17 + $0x78] sm:$0xff]
        %v2183 = vld [vmem:[#allocation17 + $0x80] sm:$0xff]
        %v2184 = vld [vmem:[#allocation3] sm:$0xfe]
        %v2185 = vld [vmem:[#allocation3 + $0x8] sm:$0xfe]
        %v2186 = vld [vmem:[#allocation3 + $0x40] sm:$0x1]
        %v2187 = vld [vmem:[#allocation3 + $0x48] sm:$0x1]
        %s2188 = scalar_lea.vmem [#allocation17], 136
        %v2189 = vld [vmem:[%s2188] sm:$0xff]
        %v2190 = vld [vmem:[%s2188 + $0x8] sm:$0xff]
        %v2191 = vld [vmem:[%s2188 + $0x10] sm:$0xff]
        %v2192 = vld [vmem:[%s2188 + $0x18] sm:$0xff]
        %v2193 = vld [vmem:[%s2188 + $0x20] sm:$0xff]
        %v2194 = vld [vmem:[%s2188 + $0x28] sm:$0xff]
        %v2195 = vld [vmem:[%s2188 + $0x30] sm:$0xff]
        %v2196 = vld [vmem:[%s2188 + $0x38] sm:$0xff]
        %v2197 = vld [vmem:[%s2188 + $0x40] sm:$0xff]
        %v2198 = vld [vmem:[%s2188 + $0x48] sm:$0xff]
        %v2199 = vld [vmem:[%s2188 + $0x50] sm:$0xff]
        %v2200 = vld [vmem:[%s2188 + $0x58] sm:$0xff]
        %v2201 = vld [vmem:[%s2188 + $0x60] sm:$0xff]
        %v2202 = vld [vmem:[%s2188 + $0x68] sm:$0xff]
        %v2203 = vld [vmem:[%s2188 + $0x70] sm:$0xff]
        %v2204 = vld [vmem:[%s2188 + $0x78] sm:$0xff]
        %v2205 = vld [vmem:[%s2188 + $0x80] sm:$0xff]
        %vm2216 = vcmask 1046528
        %v2217 = vrot.slane %v2184, 1
        %v2218 = vrot.slane %v2161, 1
        %v2219 = vsel %vm2216, %v2217, %v2218
        %v2220 = vrot.slane %v2185, 1
        %v2221 = vrot.slane %v2162, 1
        %v2222 = vsel %vm2216, %v2220, %v2221
        %v2223 = vrot.slane %v2163, 1
        %v2224 = vsel %vm2216, %v2218, %v2223
        %v2225 = vrot.slane %v2164, 1
        %v2226 = vsel %vm2216, %v2221, %v2225
        %v2227 = vrot.slane %v2165, 1
        %v2228 = vsel %vm2216, %v2223, %v2227
        %v2229 = vrot.slane %v2166, 1
        %v2230 = vsel %vm2216, %v2225, %v2229
        %v2231 = vrot.slane %v2186, 1
        %v2232 = vsel %vm2216, %v2227, %v2231
        %v2233 = vrot.slane %v2187, 1
        %v2234 = vsel %vm2216, %v2229, %v2233
        %v2239 = vsel %vm1651, %v2222, 0
        %v2241 = vsel %vm1651, %v2226, 0
        %v2243 = vsel %vm1651, %v2230, 0
        %v2245 = vsel %vm1651, %v2234, 0
        %2247 = vmatprep.subr.mxu0 0.0
        %2248 = vmatpush1.msra.mxu0 %v2189
        %2249 = vmatprep.subr.mxu0 0.0
        %2250 = vmatpush1.msra.mxu0 %v2190
        %2251 = vmatprep.subr.mxu0 0.0
        %2252 = vmatpush1.msra.mxu0 %v2191
        %2253 = vmatprep.subr.mxu0 0.0
        %2254 = vmatpush1.msra.mxu0 %v2192
        %2255 = vmatprep.subr.mxu0 0.0
        %2256 = vmatpush1.msra.mxu0 %v2193
        %2257 = vmatprep.subr.mxu0 0.0
        %2258 = vmatpush1.msra.mxu0 %v2194
        %2259 = vmatprep.subr.mxu0 0.0
        %2260 = vmatpush1.msra.mxu0 %v2195
        %2261 = vmatprep.subr.mxu0 0.0
        %2262 = vmatpush1.msra.mxu0 %v2196
        %2263 = vmatprep.subr.mxu0 0.0
        %2264 = vmatpush1.msra.mxu0 %v2197
        %2265 = vmatprep.subr.mxu0 0.0
        %2266 = vmatpush1.msra.mxu0 %v2198
        %2267 = vmatprep.subr.mxu0 0.0
        %2268 = vmatpush1.msra.mxu0 %v2199
        %2269 = vmatprep.subr.mxu0 0.0
        %2270 = vmatpush1.msra.mxu0 %v2200
        %2271 = vmatprep.subr.mxu0 0.0
        %2272 = vmatpush1.msra.mxu0 %v2201
        %2273 = vmatprep.subr.mxu0 0.0
        %2274 = vmatpush1.msra.mxu0 %v2202
        %2275 = vmatprep.subr.mxu0 0.0
        %2276 = vmatpush1.msra.mxu0 %v2203
        %2277 = vmatprep.subr.mxu0 0.0
        %2278 = vmatpush1.msra.mxu0 %v2204
        %2279 = vmatprep.subr.mxu0 0.0
        %2280 = vmatpush1.msra.mxu0 %v2205
        %2281 = vmatprep.subr.mxu0 0.0
        %2282 = vmatpush1.msra.mxu0 0.0
        %2283 = vmatprep.subr.mxu0 0.0
        %2284 = vmatpush1.msra.mxu0 0.0
        %2285 = vmatprep.subr.mxu0 0.0
        %2286 = vmatpush1.msra.mxu0 0.0
        %2287 = vmatprep.subr.mxu0 0.0
        %2288 = vmatpush1.msra.mxu0 0.0
        %2289 = vmatprep.subr.mxu0 0.0
        %2290 = vmatpush1.msra.mxu0 0.0
        %2291 = vmatprep.subr.mxu0 0.0
        %2292 = vmatpush1.msra.mxu0 0.0
        %2293 = vmatprep.subr.mxu0 0.0
        %2294 = vmatpush1.msra.mxu0 0.0
        %2295 = vmatprep.subr.mxu0 0.0
        %2296 = vmatpush1.msra.mxu0 0.0
        %2297 = vmatprep.subr.mxu0 0.0
        %2298 = vmatpush1.msra.mxu0 0.0
        %2299 = vmatprep.subr.mxu0 0.0
        %2300 = vmatpush1.msra.mxu0 0.0
        %2301 = vmatprep.subr.mxu0 0.0
        %2302 = vmatpush1.msra.mxu0 0.0
        %2303 = vmatprep.subr.mxu0 0.0
        %2304 = vmatpush1.msra.mxu0 0.0
        %2305 = vmatprep.subr.mxu0 0.0
        %2306 = vmatpush1.msra.mxu0 0.0
        %2307 = vmatprep.subr.mxu0 0.0
        %2308 = vmatpush1.msra.mxu0 0.0
        %2309 = vmatprep.subr.mxu0 0.0
        %2310 = vmatpush1.msra.mxu0 0.0
        %2311 = vmatprep.mubr.f32.mxu0 %v2239
        %2312 = vmatmul.mubr.f32.gmra.mrb[0].mxu0 %v2219
        %v2313 = vpop.f32.mrb[0].mxu0
        %v2314 = vadd.f32 0.0, %v2313
        %v2315 = vpop.f32.mrb[0].mxu0
        %2316 = vmatprep.mubr.f32.mxu0 %v2241
        %2317 = vmatmul.mubr.f32.gmra.mrb[0].mxu0 %v2224
        %v2318 = vpop.f32.mrb[0].mxu0
        %v2319 = vadd.f32 0.0, %v2318
        %v2320 = vpop.f32.mrb[0].mxu0
        %2321 = vmatprep.mubr.f32.mxu0 %v2243
        %2322 = vmatmul.mubr.f32.gmra.mrb[0].mxu0 %v2228
        %v2323 = vpop.f32.mrb[0].mxu0
        %v2324 = vadd.f32 0.0, %v2323
        %v2325 = vpop.f32.mrb[0].mxu0
        %2326 = vmatprep.mubr.f32.mxu0 %v2245
        %2327 = vmatmul.mubr.f32.gmra.mrb[0].mxu0 %v2232
        %v2328 = vpop.f32.mrb[0].mxu0
        %v2329 = vadd.f32 0.0, %v2328
        %v2330 = vpop.f32.mrb[0].mxu0
        %2331 = vdwg.mxu0
        %v2333 = vsel %vm1651, %v2160, 0
        %v2335 = vsel %vm1651, %v2162, 0
        %v2337 = vsel %vm1651, %v2164, 0
        %v2339 = vsel %vm1651, %v2166, 0
        %2341 = vmatprep.subr.mxu0 0.0
        %2342 = vmatpush1.msra.mxu0 %v2167
        %2343 = vmatprep.subr.mxu0 0.0
        %2344 = vmatpush1.msra.mxu0 %v2168
        %2345 = vmatprep.subr.mxu0 0.0
        %2346 = vmatpush1.msra.mxu0 %v2169
        %2347 = vmatprep.subr.mxu0 0.0
        %2348 = vmatpush1.msra.mxu0 %v2170
        %2349 = vmatprep.subr.mxu0 0.0
        %2350 = vmatpush1.msra.mxu0 %v2171
        %2351 = vmatprep.subr.mxu0 0.0
        %2352 = vmatpush1.msra.mxu0 %v2172
        %2353 = vmatprep.subr.mxu0 0.0
        %2354 = vmatpush1.msra.mxu0 %v2173
        %2355 = vmatprep.subr.mxu0 0.0
        %2356 = vmatpush1.msra.mxu0 %v2174
        %2357 = vmatprep.subr.mxu0 0.0
        %2358 = vmatpush1.msra.mxu0 %v2175
        %2359 = vmatprep.subr.mxu0 0.0
        %2360 = vmatpush1.msra.mxu0 %v2176
        %2361 = vmatprep.subr.mxu0 0.0
        %2362 = vmatpush1.msra.mxu0 %v2177
        %2363 = vmatprep.subr.mxu0 0.0
        %2364 = vmatpush1.msra.mxu0 %v2178
        %2365 = vmatprep.subr.mxu0 0.0
        %2366 = vmatpush1.msra.mxu0 %v2179
        %2367 = vmatprep.subr.mxu0 0.0
        %2368 = vmatpush1.msra.mxu0 %v2180
        %2369 = vmatprep.subr.mxu0 0.0
        %2370 = vmatpush1.msra.mxu0 %v2181
        %2371 = vmatprep.subr.mxu0 0.0
        %2372 = vmatpush1.msra.mxu0 %v2182
        %2373 = vmatprep.subr.mxu0 0.0
        %2374 = vmatpush1.msra.mxu0 %v2183
        %2375 = vmatprep.subr.mxu0 0.0
        %2376 = vmatpush1.msra.mxu0 0.0
        %2377 = vmatprep.subr.mxu0 0.0
        %2378 = vmatpush1.msra.mxu0 0.0
        %2379 = vmatprep.subr.mxu0 0.0
        %2380 = vmatpush1.msra.mxu0 0.0
        %2381 = vmatprep.subr.mxu0 0.0
        %2382 = vmatpush1.msra.mxu0 0.0
        %2383 = vmatprep.subr.mxu0 0.0
        %2384 = vmatpush1.msra.mxu0 0.0
        %2385 = vmatprep.subr.mxu0 0.0
        %2386 = vmatpush1.msra.mxu0 0.0
        %2387 = vmatprep.subr.mxu0 0.0
        %2388 = vmatpush1.msra.mxu0 0.0
        %2389 = vmatprep.subr.mxu0 0.0
        %2390 = vmatpush1.msra.mxu0 0.0
        %2391 = vmatprep.subr.mxu0 0.0
        %2392 = vmatpush1.msra.mxu0 0.0
        %2393 = vmatprep.subr.mxu0 0.0
        %2394 = vmatpush1.msra.mxu0 0.0
        %2395 = vmatprep.subr.mxu0 0.0
        %2396 = vmatpush1.msra.mxu0 0.0
        %2397 = vmatprep.subr.mxu0 0.0
        %2398 = vmatpush1.msra.mxu0 0.0
        %2399 = vmatprep.subr.mxu0 0.0
        %2400 = vmatpush1.msra.mxu0 0.0
        %2401 = vmatprep.subr.mxu0 0.0
        %2402 = vmatpush1.msra.mxu0 0.0
        %2403 = vmatprep.subr.mxu0 0.0
        %2404 = vmatpush1.msra.mxu0 0.0
        %2405 = vmatprep.mubr.f32.mxu0 %v2333
        %2406 = vmatmul.mubr.f32.gmra.mrb[0].mxu0 %v2159
        %v2407 = vpop.f32.mrb[0].mxu0
        %v2408 = vadd.f32 %v2314, %v2407
        %v2409 = vpop.f32.mrb[0].mxu0
        %2410 = vmatprep.mubr.f32.mxu0 %v2335
        %2411 = vmatmul.mubr.f32.gmra.mrb[0].mxu0 %v2161
        %v2412 = vpop.f32.mrb[0].mxu0
        %v2413 = vadd.f32 %v2319, %v2412
        %v2414 = vpop.f32.mrb[0].mxu0
        %2415 = vmatprep.mubr.f32.mxu0 %v2337
        %2416 = vmatmul.mubr.f32.gmra.mrb[0].mxu0 %v2163
        %v2417 = vpop.f32.mrb[0].mxu0
        %v2418 = vadd.f32 %v2324, %v2417
        %v2419 = vpop.f32.mrb[0].mxu0
        %2420 = vmatprep.mubr.f32.mxu0 %v2339
        %2421 = vmatmul.mubr.f32.gmra.mrb[0].mxu0 %v2165
        %v2422 = vpop.f32.mrb[0].mxu0
        %v2423 = vadd.f32 %v2329, %v2422
        %v2424 = vpop.f32.mrb[0].mxu0
        %2425 = vdwg.mxu0
        %v2426 = vld [vmem:[#allocation3] sm:$0xfc]
        %v2427 = vld [vmem:[#allocation3 + $0x8] sm:$0xfc]
        %v2428 = vld [vmem:[#allocation3 + $0x40] sm:$0x3]
        %v2429 = vld [vmem:[#allocation3 + $0x48] sm:$0x3]
        %s2430 = scalar_lea.vmem [#allocation17], 272
        %v2431 = vld [vmem:[%s2430] sm:$0xff]
        %v2432 = vld [vmem:[%s2430 + $0x8] sm:$0xff]
        %v2433 = vld [vmem:[%s2430 + $0x10] sm:$0xff]
        %v2434 = vld [vmem:[%s2430 + $0x18] sm:$0xff]
        %v2435 = vld [vmem:[%s2430 + $0x20] sm:$0xff]
        %v2436 = vld [vmem:[%s2430 + $0x28] sm:$0xff]
        %v2437 = vld [vmem:[%s2430 + $0x30] sm:$0xff]
        %v2438 = vld [vmem:[%s2430 + $0x38] sm:$0xff]
        %v2439 = vld [vmem:[%s2430 + $0x40] sm:$0xff]
        %v2440 = vld [vmem:[%s2430 + $0x48] sm:$0xff]
        %v2441 = vld [vmem:[%s2430 + $0x50] sm:$0xff]
        %v2442 = vld [vmem:[%s2430 + $0x58] sm:$0xff]
        %v2443 = vld [vmem:[%s2430 + $0x60] sm:$0xff]
        %v2444 = vld [vmem:[%s2430 + $0x68] sm:$0xff]
        %v2445 = vld [vmem:[%s2430 + $0x70] sm:$0xff]
        %v2446 = vld [vmem:[%s2430 + $0x78] sm:$0xff]
        %v2447 = vld [vmem:[%s2430 + $0x80] sm:$0xff]
        %v2452 = vrot.slane %v2426, 2
        %v2453 = vrot.slane %v2161, 2
        %v2454 = vsel %vm1793, %v2452, %v2453
        %v2455 = vrot.slane %v2427, 2
        %v2456 = vrot.slane %v2162, 2
        %v2457 = vsel %vm1793, %v2455, %v2456
        %v2458 = vrot.slane %v2163, 2
        %v2459 = vsel %vm1793, %v2453, %v2458
        %v2460 = vrot.slane %v2164, 2
        %v2461 = vsel %vm1793, %v2456, %v2460
        %v2462 = vrot.slane %v2165, 2
        %v2463 = vsel %vm1793, %v2458, %v2462
        %v2464 = vrot.slane %v2166, 2
        %v2465 = vsel %vm1793, %v2460, %v2464
        %v2466 = vrot.slane %v2428, 2
        %v2467 = vsel %vm1793, %v2462, %v2466
        %v2468 = vrot.slane %v2429, 2
        %v2469 = vsel %vm1793, %v2464, %v2468
        %v2474 = vsel %vm1651, %v2457, 0
        %v2476 = vsel %vm1651, %v2461, 0
        %v2478 = vsel %vm1651, %v2465, 0
        %v2480 = vsel %vm1651, %v2469, 0
        %2482 = vmatprep.subr.mxu0 0.0
        %2483 = vmatpush1.msra.mxu0 %v2431
        %2484 = vmatprep.subr.mxu0 0.0
        %2485 = vmatpush1.msra.mxu0 %v2432
        %2486 = vmatprep.subr.mxu0 0.0
        %2487 = vmatpush1.msra.mxu0 %v2433
        %2488 = vmatprep.subr.mxu0 0.0
        %2489 = vmatpush1.msra.mxu0 %v2434
        %2490 = vmatprep.subr.mxu0 0.0
        %2491 = vmatpush1.msra.mxu0 %v2435
        %2492 = vmatprep.subr.mxu0 0.0
        %2493 = vmatpush1.msra.mxu0 %v2436
        %2494 = vmatprep.subr.mxu0 0.0
        %2495 = vmatpush1.msra.mxu0 %v2437
        %2496 = vmatprep.subr.mxu0 0.0
        %2497 = vmatpush1.msra.mxu0 %v2438
        %2498 = vmatprep.subr.mxu0 0.0
        %2499 = vmatpush1.msra.mxu0 %v2439
        %2500 = vmatprep.subr.mxu0 0.0
        %2501 = vmatpush1.msra.mxu0 %v2440
        %2502 = vmatprep.subr.mxu0 0.0
        %2503 = vmatpush1.msra.mxu0 %v2441
        %2504 = vmatprep.subr.mxu0 0.0
        %2505 = vmatpush1.msra.mxu0 %v2442
        %2506 = vmatprep.subr.mxu0 0.0
        %2507 = vmatpush1.msra.mxu0 %v2443
        %2508 = vmatprep.subr.mxu0 0.0
        %2509 = vmatpush1.msra.mxu0 %v2444
        %2510 = vmatprep.subr.mxu0 0.0
        %2511 = vmatpush1.msra.mxu0 %v2445
        %2512 = vmatprep.subr.mxu0 0.0
        %2513 = vmatpush1.msra.mxu0 %v2446
        %2514 = vmatprep.subr.mxu0 0.0
        %2515 = vmatpush1.msra.mxu0 %v2447
        %2516 = vmatprep.subr.mxu0 0.0
        %2517 = vmatpush1.msra.mxu0 0.0
        %2518 = vmatprep.subr.mxu0 0.0
        %2519 = vmatpush1.msra.mxu0 0.0
        %2520 = vmatprep.subr.mxu0 0.0
        %2521 = vmatpush1.msra.mxu0 0.0
        %2522 = vmatprep.subr.mxu0 0.0
        %2523 = vmatpush1.msra.mxu0 0.0
        %2524 = vmatprep.subr.mxu0 0.0
        %2525 = vmatpush1.msra.mxu0 0.0
        %2526 = vmatprep.subr.mxu0 0.0
        %2527 = vmatpush1.msra.mxu0 0.0
        %2528 = vmatprep.subr.mxu0 0.0
        %2529 = vmatpush1.msra.mxu0 0.0
        %2530 = vmatprep.subr.mxu0 0.0
        %2531 = vmatpush1.msra.mxu0 0.0
        %2532 = vmatprep.subr.mxu0 0.0
        %2533 = vmatpush1.msra.mxu0 0.0
        %2534 = vmatprep.subr.mxu0 0.0
        %2535 = vmatpush1.msra.mxu0 0.0
        %2536 = vmatprep.subr.mxu0 0.0
        %2537 = vmatpush1.msra.mxu0 0.0
        %2538 = vmatprep.subr.mxu0 0.0
        %2539 = vmatpush1.msra.mxu0 0.0
        %2540 = vmatprep.subr.mxu0 0.0
        %2541 = vmatpush1.msra.mxu0 0.0
        %2542 = vmatprep.subr.mxu0 0.0
        %2543 = vmatpush1.msra.mxu0 0.0
        %2544 = vmatprep.subr.mxu0 0.0
        %2545 = vmatpush1.msra.mxu0 0.0
        %2546 = vmatprep.mubr.f32.mxu0 %v2474
        %2547 = vmatmul.mubr.f32.gmra.mrb[0].mxu0 %v2454
        %v2548 = vpop.f32.mrb[0].mxu0
        %v2549 = vadd.f32 0.0, %v2548
        %v2550 = vpop.f32.mrb[0].mxu0
        %2551 = vmatprep.mubr.f32.mxu0 %v2476
        %2552 = vmatmul.mubr.f32.gmra.mrb[0].mxu0 %v2459
        %v2553 = vpop.f32.mrb[0].mxu0
        %v2554 = vadd.f32 0.0, %v2553
        %v2555 = vpop.f32.mrb[0].mxu0
        %2556 = vmatprep.mubr.f32.mxu0 %v2478
        %2557 = vmatmul.mubr.f32.gmra.mrb[0].mxu0 %v2463
        %v2558 = vpop.f32.mrb[0].mxu0
        %v2559 = vadd.f32 0.0, %v2558
        %v2560 = vpop.f32.mrb[0].mxu0
        %2561 = vmatprep.mubr.f32.mxu0 %v2480
        %2562 = vmatmul.mubr.f32.gmra.mrb[0].mxu0 %v2467
        %v2563 = vpop.f32.mrb[0].mxu0
        %v2564 = vadd.f32 0.0, %v2563
        %v2565 = vpop.f32.mrb[0].mxu0
        %2566 = vdwg.mxu0
        %v2567 = vadd.f32 %v2408, %v2549
        %v2568 = vadd.f32 %v2413, %v2554
        %v2569 = vadd.f32 %v2418, %v2559
        %v2570 = vadd.f32 %v2423, %v2564
        %v2571 = vld [vmem:[%s9] sm:$0x1]
        %v2573 = vlaneseq
        %v2574 = vshrl.u32 %v2573, 7
        %v2575 = vsub.s32 0, %v2574
        %v2576 = vrot.slane %v2571, %v2575
        %v2578 = vadd.f32 %v2567, %v2576
        %v2579 = vadd.f32 %v2568, %v2576
        %v2580 = vadd.f32 %v2569, %v2576
        %v2581 = vadd.f32 %v2570, %v2576
        %v2582 = vmax.f32 %v2578, 0.0
        %v2583 = vmax.f32 %v2579, 0.0
        %v2584 = vmax.f32 %v2580, 0.0
        %v2585 = vmax.f32 %v2581, 0.0
        %2586 = vst [vmem:[%s1578] sm:$0xff] %v2582
        %2587 = vst [vmem:[%s1578 + $0x8] sm:$0xff] %v2583
        %2588 = vst [vmem:[%s1578 + $0x10] sm:$0xff] %v2584
        %2589 = vst [vmem:[%s1578 + $0x18] sm:$0xff] %v2585
        %v2590 = vld [vmem:[#allocation41] sm:$0xff]
        %v2591 = vld [vmem:[#allocation41 + $0x8] sm:$0xff]
        %v2592 = vld [vmem:[#allocation41 + $0x10] sm:$0xff]
        %v2593 = vld [vmem:[#allocation41 + $0x18] sm:$0xff]
        %v2594 = vld [vmem:[%s53] sm:$0xff]
        %v2595 = vld [vmem:[%s53 + $0x8] sm:$0xff]
        %v2596 = vld [vmem:[%s53 + $0x10] sm:$0xff]
        %v2597 = vld [vmem:[%s53 + $0x18] sm:$0xff]
        %v2598 = vld [vmem:[%s53 + $0x20] sm:$0xff]
        %v2599 = vld [vmem:[%s53 + $0x28] sm:$0xff]
        %v2600 = vld [vmem:[%s53 + $0x30] sm:$0xff]
        %v2601 = vld [vmem:[%s53 + $0x38] sm:$0xff]
        %v2602 = vld [vmem:[%s53 + $0x40] sm:$0xff]
        %v2603 = vld [vmem:[%s53 + $0x48] sm:$0xff]
        %v2604 = vld [vmem:[%s53 + $0x50] sm:$0xff]
        %v2605 = vld [vmem:[%s53 + $0x58] sm:$0xff]
        %v2606 = vld [vmem:[%s53 + $0x60] sm:$0xff]
        %v2607 = vld [vmem:[%s53 + $0x68] sm:$0xff]
        %v2608 = vld [vmem:[%s53 + $0x70] sm:$0xff]
        %v2609 = vld [vmem:[%s53 + $0x78] sm:$0xff]
        %vm2610 = vcmask 261120
        %v2612 = vsel %vm2610, %v2590, 0
        %v2615 = vsel %vm2610, %v2591, 0
        %v2618 = vsel %vm2610, %v2592, 0
        %v2621 = vsel %vm2610, %v2593, 0
        %2623 = vmatprep.subr.mxu0 0.0
        %2624 = vmatpush1.msra.mxu0 %v2582
        %2625 = vmatprep.subr.mxu0 0.0
        %2626 = vmatpush1.msra.mxu0 %v2583
        %2627 = vmatprep.subr.mxu0 0.0
        %2628 = vmatpush1.msra.mxu0 %v2584
        %2629 = vmatprep.subr.mxu0 0.0
        %2630 = vmatpush1.msra.mxu0 %v2585
        %2631 = vmatprep.subr.mxu0 0.0
        %2632 = vmatpush1.msra.mxu0 0.0
        %2633 = vmatprep.subr.mxu0 0.0
        %2634 = vmatpush1.msra.mxu0 0.0
        %2635 = vmatprep.subr.mxu0 0.0
        %2636 = vmatpush1.msra.mxu0 0.0
        %2637 = vmatprep.subr.mxu0 0.0
        %2638 = vmatpush1.msra.mxu0 0.0
        %2639 = vmatprep.subr.mxu0 0.0
        %2640 = vmatpush1.msra.mxu0 0.0
        %2641 = vmatprep.subr.mxu0 0.0
        %2642 = vmatpush1.msra.mxu0 0.0
        %2643 = vmatprep.subr.mxu0 0.0
        %2644 = vmatpush1.msra.mxu0 0.0
        %2645 = vmatprep.subr.mxu0 0.0
        %2646 = vmatpush1.msra.mxu0 0.0
        %2647 = vmatprep.subr.mxu0 0.0
        %2648 = vmatpush1.msra.mxu0 0.0
        %2649 = vmatprep.subr.mxu0 0.0
        %2650 = vmatpush1.msra.mxu0 0.0
        %2651 = vmatprep.subr.mxu0 0.0
        %2652 = vmatpush1.msra.mxu0 0.0
        %2653 = vmatprep.subr.mxu0 0.0
        %2654 = vmatpush1.msra.mxu0 0.0
        %2655 = vmatprep.subr.mxu0 0.0
        %2656 = vmatpush1.msra.mxu0 0.0
        %2657 = vmatprep.subr.mxu0 0.0
        %2658 = vmatpush1.msra.mxu0 0.0
        %2659 = vmatprep.subr.mxu0 0.0
        %2660 = vmatpush1.msra.mxu0 0.0
        %2661 = vmatprep.subr.mxu0 0.0
        %2662 = vmatpush1.msra.mxu0 0.0
        %2663 = vmatprep.subr.mxu0 0.0
        %2664 = vmatpush1.msra.mxu0 0.0
        %2665 = vmatprep.subr.mxu0 0.0
        %2666 = vmatpush1.msra.mxu0 0.0
        %2667 = vmatprep.subr.mxu0 0.0
        %2668 = vmatpush1.msra.mxu0 0.0
        %2669 = vmatprep.subr.mxu0 0.0
        %2670 = vmatpush1.msra.mxu0 0.0
        %2671 = vmatprep.subr.mxu0 0.0
        %2672 = vmatpush1.msra.mxu0 0.0
        %2673 = vmatprep.subr.mxu0 0.0
        %2674 = vmatpush1.msra.mxu0 0.0
        %2675 = vmatprep.subr.mxu0 0.0
        %2676 = vmatpush1.msra.mxu0 0.0
        %2677 = vmatprep.subr.mxu0 0.0
        %2678 = vmatpush1.msra.mxu0 0.0
        %2679 = vmatprep.subr.mxu0 0.0
        %2680 = vmatpush1.msra.mxu0 0.0
        %2681 = vmatprep.subr.mxu0 0.0
        %2682 = vmatpush1.msra.mxu0 0.0
        %2683 = vmatprep.subr.mxu0 0.0
        %2684 = vmatpush1.msra.mxu0 0.0
        %2685 = vmatprep.subr.mxu0 0.0
        %2686 = vmatpush1.msra.mxu0 0.0
        %2687 = vmatprep.mubr.f32.mxu0 0.0
        %2688 = vmatmul.mubr.f32.gmra.mrb[0].mxu0 %v2612
        %v2689 = vpop.f32.mrb[0].mxu0
        %v2690 = vadd.f32 0.0, %v2689
        %v2691 = vpop.f32.mrb[0].mxu0
        %2692 = vmatprep.mubr.f32.mxu0 0.0
        %2693 = vmatmul.mubr.f32.gmra.mrb[0].mxu0 %v2615
        %v2694 = vpop.f32.mrb[0].mxu0
        %v2695 = vadd.f32 0.0, %v2694
        %v2696 = vpop.f32.mrb[0].mxu0
        %2697 = vmatprep.mubr.f32.mxu0 0.0
        %2698 = vmatmul.mubr.f32.gmra.mrb[0].mxu0 %v2618
        %v2699 = vpop.f32.mrb[0].mxu0
        %v2700 = vadd.f32 0.0, %v2699
        %v2701 = vpop.f32.mrb[0].mxu0
        %2702 = vmatprep.mubr.f32.mxu0 0.0
        %2703 = vmatmul.mubr.f32.gmra.mrb[0].mxu0 %v2621
        %v2704 = vpop.f32.mrb[0].mxu0
        %v2705 = vadd.f32 0.0, %v2704
        %v2706 = vpop.f32.mrb[0].mxu0
        %2707 = vdwg.mxu0
        %v2708 = vmax.f32 %v2690, %v2700
        %v2709 = vmax.f32 %v2695, %v2705
        %2710 = vmatprep.subr.mxu0 0.0
        %2711 = vmatpush1.msra.mxu0 %v2594
        %2712 = vmatprep.subr.mxu0 0.0
        %2713 = vmatpush1.msra.mxu0 %v2595
        %2714 = vmatprep.subr.mxu0 0.0
        %2715 = vmatpush1.msra.mxu0 %v2596
        %2716 = vmatprep.subr.mxu0 0.0
        %2717 = vmatpush1.msra.mxu0 %v2597
        %2718 = vmatprep.subr.mxu0 0.0
        %2719 = vmatpush1.msra.mxu0 %v2598
        %2720 = vmatprep.subr.mxu0 0.0
        %2721 = vmatpush1.msra.mxu0 %v2599
        %2722 = vmatprep.subr.mxu0 0.0
        %2723 = vmatpush1.msra.mxu0 %v2600
        %2724 = vmatprep.subr.mxu0 0.0
        %2725 = vmatpush1.msra.mxu0 %v2601
        %2726 = vmatprep.subr.mxu0 0.0
        %2727 = vmatpush1.msra.mxu0 %v2602
        %2728 = vmatprep.subr.mxu0 0.0
        %2729 = vmatpush1.msra.mxu0 %v2603
        %2730 = vmatprep.subr.mxu0 0.0
        %2731 = vmatpush1.msra.mxu0 %v2604
        %2732 = vmatprep.subr.mxu0 0.0
        %2733 = vmatpush1.msra.mxu0 %v2605
        %2734 = vmatprep.subr.mxu0 0.0
        %2735 = vmatpush1.msra.mxu0 %v2606
        %2736 = vmatprep.subr.mxu0 0.0
        %2737 = vmatpush1.msra.mxu0 %v2607
        %2738 = vmatprep.subr.mxu0 0.0
        %2739 = vmatpush1.msra.mxu0 %v2608
        %2740 = vmatprep.subr.mxu0 0.0
        %2741 = vmatpush1.msra.mxu0 %v2609
        %2742 = vmatprep.subr.mxu0 0.0
        %2743 = vmatpush1.msra.mxu0 0.0
        %2744 = vmatprep.subr.mxu0 0.0
        %2745 = vmatpush1.msra.mxu0 0.0
        %2746 = vmatprep.subr.mxu0 0.0
        %2747 = vmatpush1.msra.mxu0 0.0
        %2748 = vmatprep.subr.mxu0 0.0
        %2749 = vmatpush1.msra.mxu0 0.0
        %2750 = vmatprep.subr.mxu0 0.0
        %2751 = vmatpush1.msra.mxu0 0.0
        %2752 = vmatprep.subr.mxu0 0.0
        %2753 = vmatpush1.msra.mxu0 0.0
        %2754 = vmatprep.subr.mxu0 0.0
        %2755 = vmatpush1.msra.mxu0 0.0
        %2756 = vmatprep.subr.mxu0 0.0
        %2757 = vmatpush1.msra.mxu0 0.0
        %2758 = vmatprep.subr.mxu0 0.0
        %2759 = vmatpush1.msra.mxu0 0.0
        %2760 = vmatprep.subr.mxu0 0.0
        %2761 = vmatpush1.msra.mxu0 0.0
        %2762 = vmatprep.subr.mxu0 0.0
        %2763 = vmatpush1.msra.mxu0 0.0
        %2764 = vmatprep.subr.mxu0 0.0
        %2765 = vmatpush1.msra.mxu0 0.0
        %2766 = vmatprep.subr.mxu0 0.0
        %2767 = vmatpush1.msra.mxu0 0.0
        %2768 = vmatprep.subr.mxu0 0.0
        %2769 = vmatpush1.msra.mxu0 0.0
        %2770 = vmatprep.subr.mxu0 0.0
        %2771 = vmatpush1.msra.mxu0 0.0
        %2772 = vmatprep.subr.mxu0 0.0
        %2773 = vmatpush1.msra.mxu0 0.0
        %2774 = vmatprep.mubr.f32.mxu0 0.0
        %2775 = vmatmul.mubr.f32.gmra.mrb[0].mxu0 %v2708
        %v2776 = vpop.f32.mrb[0].mxu0
        %v2777 = vadd.f32 0.0, %v2776
        %v2778 = vpop.f32.mrb[0].mxu0
        %2779 = vmatprep.mubr.f32.mxu0 0.0
        %2780 = vmatmul.mubr.f32.gmra.mrb[0].mxu0 %v2709
        %v2781 = vpop.f32.mrb[0].mxu0
        %v2782 = vadd.f32 0.0, %v2781
        %v2783 = vpop.f32.mrb[0].mxu0
        %2784 = vdwg.mxu0
        %2787 = vrot.lane.b32.xlu0 %v2777, 64
        %v2788 = vpop.permute.xlu0 %2787
        %2789 = vrot.lane.b32.xlu0 %v2782, 64
        %v2790 = vpop.permute.xlu0 %2789
        %v2793 = vmax.f32 %v2777, %v2788
        %v2794 = vmax.f32 %v2782, %v2790
        %2797 = vrot.lane.b32.xlu0 %v2793, 4
        %v2798 = vpop.permute.xlu0 %2797
        %2799 = vrot.lane.b32.xlu0 %v2794, 4
        %v2800 = vpop.permute.xlu0 %2799
        %vm2803 = vcmask 556064
        %2804 = vst.msk [vmem:[#allocation4 + $0x1] sm:$0xff] %vm2803, %v2798
        %2805 = vst.msk [vmem:[#allocation4 + $0x9] sm:$0xff] %vm2803, %v2800
        %v2806 = vld [vmem:[#allocation4] sm:$0xff]
        %v2807 = vld [vmem:[#allocation4 + $0x8] sm:$0xff]
        %v2808 = vld [vmem:[#allocation19] sm:$0xff]
        %v2809 = vld [vmem:[#allocation19 + $0x8] sm:$0xff]
        %v2810 = vld [vmem:[#allocation19 + $0x10] sm:$0xff]
        %v2811 = vld [vmem:[#allocation19 + $0x18] sm:$0xff]
        %v2812 = vld [vmem:[#allocation19 + $0x20] sm:$0xff]
        %v2813 = vld [vmem:[#allocation19 + $0x28] sm:$0xff]
        %v2814 = vld [vmem:[#allocation19 + $0x30] sm:$0xff]
        %v2815 = vld [vmem:[#allocation19 + $0x38] sm:$0xff]
        %v2816 = vld [vmem:[#allocation19 + $0x40] sm:$0xff]
        %v2817 = vld [vmem:[#allocation4 + $0x1] sm:$0xff]
        %v2818 = vld [vmem:[#allocation4 + $0x9] sm:$0xff]
        %s2819 = scalar_lea.vmem [#allocation19], 72
        %v2820 = vld [vmem:[%s2819] sm:$0xff]
        %v2821 = vld [vmem:[%s2819 + $0x8] sm:$0xff]
        %v2822 = vld [vmem:[%s2819 + $0x10] sm:$0xff]
        %v2823 = vld [vmem:[%s2819 + $0x18] sm:$0xff]
        %v2824 = vld [vmem:[%s2819 + $0x20] sm:$0xff]
        %v2825 = vld [vmem:[%s2819 + $0x28] sm:$0xff]
        %v2826 = vld [vmem:[%s2819 + $0x30] sm:$0xff]
        %v2827 = vld [vmem:[%s2819 + $0x38] sm:$0xff]
        %v2828 = vld [vmem:[%s2819 + $0x40] sm:$0xff]
        %vm2829 = vcmask 588800
        %v2831 = vsel %vm2829, %v2817, 0
        %v2834 = vsel %vm2829, %v2818, 0
        %2836 = vmatprep.subr.mxu0 0.0
        %2837 = vmatpush1.msra.mxu0 %v2820
        %2838 = vmatprep.subr.mxu0 0.0
        %2839 = vmatpush1.msra.mxu0 %v2821
        %2840 = vmatprep.subr.mxu0 0.0
        %2841 = vmatpush1.msra.mxu0 %v2822
        %2842 = vmatprep.subr.mxu0 0.0
        %2843 = vmatpush1.msra.mxu0 %v2823
        %2844 = vmatprep.subr.mxu0 0.0
        %2845 = vmatpush1.msra.mxu0 %v2824
        %2846 = vmatprep.subr.mxu0 0.0
        %2847 = vmatpush1.msra.mxu0 %v2825
        %2848 = vmatprep.subr.mxu0 0.0
        %2849 = vmatpush1.msra.mxu0 %v2826
        %2850 = vmatprep.subr.mxu0 0.0
        %2851 = vmatpush1.msra.mxu0 %v2827
        %2852 = vmatprep.subr.mxu0 0.0
        %2853 = vmatpush1.msra.mxu0 %v2828
        %2854 = vmatprep.subr.mxu0 0.0
        %2855 = vmatpush1.msra.mxu0 0.0
        %2856 = vmatprep.subr.mxu0 0.0
        %2857 = vmatpush1.msra.mxu0 0.0
        %2858 = vmatprep.subr.mxu0 0.0
        %2859 = vmatpush1.msra.mxu0 0.0
        %2860 = vmatprep.subr.mxu0 0.0
        %2861 = vmatpush1.msra.mxu0 0.0
        %2862 = vmatprep.subr.mxu0 0.0
        %2863 = vmatpush1.msra.mxu0 0.0
        %2864 = vmatprep.subr.mxu0 0.0
        %2865 = vmatpush1.msra.mxu0 0.0
        %2866 = vmatprep.subr.mxu0 0.0
        %2867 = vmatpush1.msra.mxu0 0.0
        %2868 = vmatprep.subr.mxu0 0.0
        %2869 = vmatpush1.msra.mxu0 0.0
        %2870 = vmatprep.subr.mxu0 0.0
        %2871 = vmatpush1.msra.mxu0 0.0
        %2872 = vmatprep.subr.mxu0 0.0
        %2873 = vmatpush1.msra.mxu0 0.0
        %2874 = vmatprep.subr.mxu0 0.0
        %2875 = vmatpush1.msra.mxu0 0.0
        %2876 = vmatprep.subr.mxu0 0.0
        %2877 = vmatpush1.msra.mxu0 0.0
        %2878 = vmatprep.subr.mxu0 0.0
        %2879 = vmatpush1.msra.mxu0 0.0
        %2880 = vmatprep.subr.mxu0 0.0
        %2881 = vmatpush1.msra.mxu0 0.0
        %2882 = vmatprep.subr.mxu0 0.0
        %2883 = vmatpush1.msra.mxu0 0.0
        %2884 = vmatprep.subr.mxu0 0.0
        %2885 = vmatpush1.msra.mxu0 0.0
        %2886 = vmatprep.subr.mxu0 0.0
        %2887 = vmatpush1.msra.mxu0 0.0
        %2888 = vmatprep.subr.mxu0 0.0
        %2889 = vmatpush1.msra.mxu0 0.0
        %2890 = vmatprep.subr.mxu0 0.0
        %2891 = vmatpush1.msra.mxu0 0.0
        %2892 = vmatprep.subr.mxu0 0.0
        %2893 = vmatpush1.msra.mxu0 0.0
        %2894 = vmatprep.subr.mxu0 0.0
        %2895 = vmatpush1.msra.mxu0 0.0
        %2896 = vmatprep.subr.mxu0 0.0
        %2897 = vmatpush1.msra.mxu0 0.0
        %2898 = vmatprep.subr.mxu0 0.0
        %2899 = vmatpush1.msra.mxu0 0.0
        %2900 = vmatprep.mubr.f32.mxu0 0.0
        %2901 = vmatmul.mubr.f32.gmra.mrb[0].mxu0 %v2831
        %v2902 = vpop.f32.mrb[0].mxu0
        %v2903 = vadd.f32 0.0, %v2902
        %v2904 = vpop.f32.mrb[0].mxu0
        %2905 = vmatprep.mubr.f32.mxu0 0.0
        %2906 = vmatmul.mubr.f32.gmra.mrb[0].mxu0 %v2834
        %v2907 = vpop.f32.mrb[0].mxu0
        %v2908 = vadd.f32 0.0, %v2907
        %v2909 = vpop.f32.mrb[0].mxu0
        %2910 = vdwg.mxu0
        %v2912 = vsel %vm2829, %v2806, 0
        %v2915 = vsel %vm2829, %v2807, 0
        %2917 = vmatprep.subr.mxu0 0.0
        %2918 = vmatpush1.msra.mxu0 %v2808
        %2919 = vmatprep.subr.mxu0 0.0
        %2920 = vmatpush1.msra.mxu0 %v2809
        %2921 = vmatprep.subr.mxu0 0.0
        %2922 = vmatpush1.msra.mxu0 %v2810
        %2923 = vmatprep.subr.mxu0 0.0
        %2924 = vmatpush1.msra.mxu0 %v2811
        %2925 = vmatprep.subr.mxu0 0.0
        %2926 = vmatpush1.msra.mxu0 %v2812
        %2927 = vmatprep.subr.mxu0 0.0
        %2928 = vmatpush1.msra.mxu0 %v2813
        %2929 = vmatprep.subr.mxu0 0.0
        %2930 = vmatpush1.msra.mxu0 %v2814
        %2931 = vmatprep.subr.mxu0 0.0
        %2932 = vmatpush1.msra.mxu0 %v2815
        %2933 = vmatprep.subr.mxu0 0.0
        %2934 = vmatpush1.msra.mxu0 %v2816
        %2935 = vmatprep.subr.mxu0 0.0
        %2936 = vmatpush1.msra.mxu0 0.0
        %2937 = vmatprep.subr.mxu0 0.0
        %2938 = vmatpush1.msra.mxu0 0.0
        %2939 = vmatprep.subr.mxu0 0.0
        %2940 = vmatpush1.msra.mxu0 0.0
        %2941 = vmatprep.subr.mxu0 0.0
        %2942 = vmatpush1.msra.mxu0 0.0
        %2943 = vmatprep.subr.mxu0 0.0
        %2944 = vmatpush1.msra.mxu0 0.0
        %2945 = vmatprep.subr.mxu0 0.0
        %2946 = vmatpush1.msra.mxu0 0.0
        %2947 = vmatprep.subr.mxu0 0.0
        %2948 = vmatpush1.msra.mxu0 0.0
        %2949 = vmatprep.subr.mxu0 0.0
        %2950 = vmatpush1.msra.mxu0 0.0
        %2951 = vmatprep.subr.mxu0 0.0
        %2952 = vmatpush1.msra.mxu0 0.0
        %2953 = vmatprep.subr.mxu0 0.0
        %2954 = vmatpush1.msra.mxu0 0.0
        %2955 = vmatprep.subr.mxu0 0.0
        %2956 = vmatpush1.msra.mxu0 0.0
        %2957 = vmatprep.subr.mxu0 0.0
        %2958 = vmatpush1.msra.mxu0 0.0
        %2959 = vmatprep.subr.mxu0 0.0
        %2960 = vmatpush1.msra.mxu0 0.0
        %2961 = vmatprep.subr.mxu0 0.0
        %2962 = vmatpush1.msra.mxu0 0.0
        %2963 = vmatprep.subr.mxu0 0.0
        %2964 = vmatpush1.msra.mxu0 0.0
        %2965 = vmatprep.subr.mxu0 0.0
        %2966 = vmatpush1.msra.mxu0 0.0
        %2967 = vmatprep.subr.mxu0 0.0
        %2968 = vmatpush1.msra.mxu0 0.0
        %2969 = vmatprep.subr.mxu0 0.0
        %2970 = vmatpush1.msra.mxu0 0.0
        %2971 = vmatprep.subr.mxu0 0.0
        %2972 = vmatpush1.msra.mxu0 0.0
        %2973 = vmatprep.subr.mxu0 0.0
        %2974 = vmatpush1.msra.mxu0 0.0
        %2975 = vmatprep.subr.mxu0 0.0
        %2976 = vmatpush1.msra.mxu0 0.0
        %2977 = vmatprep.subr.mxu0 0.0
        %2978 = vmatpush1.msra.mxu0 0.0
        %2979 = vmatprep.subr.mxu0 0.0
        %2980 = vmatpush1.msra.mxu0 0.0
        %2981 = vmatprep.mubr.f32.mxu0 0.0
        %2982 = vmatmul.mubr.f32.gmra.mrb[0].mxu0 %v2912
        %v2983 = vpop.f32.mrb[0].mxu0
        %v2984 = vadd.f32 %v2903, %v2983
        %v2985 = vpop.f32.mrb[0].mxu0
        %2986 = vmatprep.mubr.f32.mxu0 0.0
        %2987 = vmatmul.mubr.f32.gmra.mrb[0].mxu0 %v2915
        %v2988 = vpop.f32.mrb[0].mxu0
        %v2989 = vadd.f32 %v2908, %v2988
        %v2990 = vpop.f32.mrb[0].mxu0
        %2991 = vdwg.mxu0
        %v2992 = vld [vmem:[#allocation4 + $0x2] sm:$0xff]
        %v2993 = vld [vmem:[#allocation4 + $0xa] sm:$0xff]
        %s2994 = scalar_lea.vmem [#allocation19], 144
        %v2995 = vld [vmem:[%s2994] sm:$0xff]
        %v2996 = vld [vmem:[%s2994 + $0x8] sm:$0xff]
        %v2997 = vld [vmem:[%s2994 + $0x10] sm:$0xff]
        %v2998 = vld [vmem:[%s2994 + $0x18] sm:$0xff]
        %v2999 = vld [vmem:[%s2994 + $0x20] sm:$0xff]
        %v3000 = vld [vmem:[%s2994 + $0x28] sm:$0xff]
        %v3001 = vld [vmem:[%s2994 + $0x30] sm:$0xff]
        %v3002 = vld [vmem:[%s2994 + $0x38] sm:$0xff]
        %v3003 = vld [vmem:[%s2994 + $0x40] sm:$0xff]
        %v3005 = vsel %vm2829, %v2992, 0
        %v3008 = vsel %vm2829, %v2993, 0
        %3010 = vmatprep.subr.mxu0 0.0
        %3011 = vmatpush1.msra.mxu0 %v2995
        %3012 = vmatprep.subr.mxu0 0.0
        %3013 = vmatpush1.msra.mxu0 %v2996
        %3014 = vmatprep.subr.mxu0 0.0
        %3015 = vmatpush1.msra.mxu0 %v2997
        %3016 = vmatprep.subr.mxu0 0.0
        %3017 = vmatpush1.msra.mxu0 %v2998
        %3018 = vmatprep.subr.mxu0 0.0
        %3019 = vmatpush1.msra.mxu0 %v2999
        %3020 = vmatprep.subr.mxu0 0.0
        %3021 = vmatpush1.msra.mxu0 %v3000
        %3022 = vmatprep.subr.mxu0 0.0
        %3023 = vmatpush1.msra.mxu0 %v3001
        %3024 = vmatprep.subr.mxu0 0.0
        %3025 = vmatpush1.msra.mxu0 %v3002
        %3026 = vmatprep.subr.mxu0 0.0
        %3027 = vmatpush1.msra.mxu0 %v3003
        %3028 = vmatprep.subr.mxu0 0.0
        %3029 = vmatpush1.msra.mxu0 0.0
        %3030 = vmatprep.subr.mxu0 0.0
        %3031 = vmatpush1.msra.mxu0 0.0
        %3032 = vmatprep.subr.mxu0 0.0
        %3033 = vmatpush1.msra.mxu0 0.0
        %3034 = vmatprep.subr.mxu0 0.0
        %3035 = vmatpush1.msra.mxu0 0.0
        %3036 = vmatprep.subr.mxu0 0.0
        %3037 = vmatpush1.msra.mxu0 0.0
        %3038 = vmatprep.subr.mxu0 0.0
        %3039 = vmatpush1.msra.mxu0 0.0
        %3040 = vmatprep.subr.mxu0 0.0
        %3041 = vmatpush1.msra.mxu0 0.0
        %3042 = vmatprep.subr.mxu0 0.0
        %3043 = vmatpush1.msra.mxu0 0.0
        %3044 = vmatprep.subr.mxu0 0.0
        %3045 = vmatpush1.msra.mxu0 0.0
        %3046 = vmatprep.subr.mxu0 0.0
        %3047 = vmatpush1.msra.mxu0 0.0
        %3048 = vmatprep.subr.mxu0 0.0
        %3049 = vmatpush1.msra.mxu0 0.0
        %3050 = vmatprep.subr.mxu0 0.0
        %3051 = vmatpush1.msra.mxu0 0.0
        %3052 = vmatprep.subr.mxu0 0.0
        %3053 = vmatpush1.msra.mxu0 0.0
        %3054 = vmatprep.subr.mxu0 0.0
        %3055 = vmatpush1.msra.mxu0 0.0
        %3056 = vmatprep.subr.mxu0 0.0
        %3057 = vmatpush1.msra.mxu0 0.0
        %3058 = vmatprep.subr.mxu0 0.0
        %3059 = vmatpush1.msra.mxu0 0.0
        %3060 = vmatprep.subr.mxu0 0.0
        %3061 = vmatpush1.msra.mxu0 0.0
        %3062 = vmatprep.subr.mxu0 0.0
        %3063 = vmatpush1.msra.mxu0 0.0
        %3064 = vmatprep.subr.mxu0 0.0
        %3065 = vmatpush1.msra.mxu0 0.0
        %3066 = vmatprep.subr.mxu0 0.0
        %3067 = vmatpush1.msra.mxu0 0.0
        %3068 = vmatprep.subr.mxu0 0.0
        %3069 = vmatpush1.msra.mxu0 0.0
        %3070 = vmatprep.subr.mxu0 0.0
        %3071 = vmatpush1.msra.mxu0 0.0
        %3072 = vmatprep.subr.mxu0 0.0
        %3073 = vmatpush1.msra.mxu0 0.0
        %3074 = vmatprep.mubr.f32.mxu0 0.0
        %3075 = vmatmul.mubr.f32.gmra.mrb[0].mxu0 %v3005
        %v3076 = vpop.f32.mrb[0].mxu0
        %v3077 = vadd.f32 0.0, %v3076
        %v3078 = vpop.f32.mrb[0].mxu0
        %3079 = vmatprep.mubr.f32.mxu0 0.0
        %3080 = vmatmul.mubr.f32.gmra.mrb[0].mxu0 %v3008
        %v3081 = vpop.f32.mrb[0].mxu0
        %v3082 = vadd.f32 0.0, %v3081
        %v3083 = vpop.f32.mrb[0].mxu0
        %3084 = vdwg.mxu0
        %v3085 = vadd.f32 %v2984, %v3077
        %v3086 = vadd.f32 %v2989, %v3082
        %v3087 = vld [vmem:[%s13] sm:$0x1]
        %v3089 = vlaneseq
        %v3090 = vshrl.u32 %v3089, 7
        %v3091 = vsub.s32 0, %v3090
        %v3092 = vrot.slane %v3087, %v3091
        %v3094 = vadd.f32 %v3085, %v3092
        %v3095 = vadd.f32 %v3086, %v3092
        %v3096 = vmax.f32 %v3094, 0.0
        %v3097 = vmax.f32 %v3095, 0.0
        %v3100 = vrot.slane %v3096, 7
        %v3101 = vrot.slane %v3097, 7
        %v3102 = vsel %vm2123, %v3100, %v3101
        %3103 = vrot.lane.b32.xlu0 %v3100, 8
        %v3104 = vpop.permute.xlu0 %3103
        %3105 = vrot.lane.b32.xlu0 %v3102, 8
        %v3106 = vpop.permute.xlu0 %3105
        %3107 = vrot.lane.b32.xlu0 %v3101, 8
        %v3108 = vpop.permute.xlu0 %3107
        %vm3112 = vcmask 1047617
        %3113 = vst.msk [vmem:[#allocation5] sm:$0xfe] %vm3112, %v3104
        %3114 = vst.msk [vmem:[#allocation5 + $0x8] sm:$0xfe] %vm1649, %v3104
        %vm3115 = vcmask 1047616
        %3116 = vst.msk [vmem:[#allocation5 + $0x10] sm:$0xff] %vm3115, %v3106
        %3117 = vst.msk [vmem:[#allocation5 + $0x18] sm:$0xff] %vm1651, %v3106
        %vm3118 = vcmask 1040448
        %3119 = vst.msk [vmem:[#allocation5 + $0x20] sm:$0x1] %vm3118, %v3108
        %3120 = vst.msk [vmem:[#allocation5 + $0x28] sm:$0x1] %vm1653, %v3108
        %v3121 = vld [vmem:[#allocation5] sm:$0xff]
        %v3122 = vld [vmem:[#allocation5 + $0x8] sm:$0xff]
        %v3123 = vld [vmem:[#allocation5 + $0x10] sm:$0xff]
        %v3124 = vld [vmem:[#allocation5 + $0x18] sm:$0xff]
        %v3125 = vld [vmem:[#allocation20] sm:$0xff]
        %v3126 = vld [vmem:[#allocation20 + $0x8] sm:$0xff]
        %v3127 = vld [vmem:[#allocation20 + $0x10] sm:$0xff]
        %v3128 = vld [vmem:[#allocation20 + $0x18] sm:$0xff]
        %v3129 = vld [vmem:[#allocation20 + $0x20] sm:$0xff]
        %v3130 = vld [vmem:[#allocation20 + $0x28] sm:$0xff]
        %v3131 = vld [vmem:[#allocation20 + $0x30] sm:$0xff]
        %v3132 = vld [vmem:[#allocation20 + $0x38] sm:$0xff]
        %v3133 = vld [vmem:[#allocation20 + $0x40] sm:$0xff]
        %v3134 = vld [vmem:[#allocation20 + $0x48] sm:$0xff]
        %v3135 = vld [vmem:[#allocation20 + $0x50] sm:$0xff]
        %v3136 = vld [vmem:[#allocation20 + $0x58] sm:$0xff]
        %v3137 = vld [vmem:[#allocation20 + $0x60] sm:$0xff]
        %v3138 = vld [vmem:[#allocation20 + $0x68] sm:$0xff]
        %v3139 = vld [vmem:[#allocation20 + $0x70] sm:$0xff]
        %v3140 = vld [vmem:[#allocation20 + $0x78] sm:$0xff]
        %v3141 = vld [vmem:[#allocation20 + $0x80] sm:$0xff]
        %v3142 = vld [vmem:[#allocation20 + $0x88] sm:$0xff]
        %v3143 = vld [vmem:[#allocation5] sm:$0xfe]
        %v3144 = vld [vmem:[#allocation5 + $0x8] sm:$0xfe]
        %v3145 = vld [vmem:[#allocation5 + $0x20] sm:$0x1]
        %v3146 = vld [vmem:[#allocation5 + $0x28] sm:$0x1]
        %s3147 = scalar_lea.vmem [#allocation20], 144
        %v3148 = vld [vmem:[%s3147] sm:$0xff]
        %v3149 = vld [vmem:[%s3147 + $0x8] sm:$0xff]
        %v3150 = vld [vmem:[%s3147 + $0x10] sm:$0xff]
        %v3151 = vld [vmem:[%s3147 + $0x18] sm:$0xff]
        %v3152 = vld [vmem:[%s3147 + $0x20] sm:$0xff]
        %v3153 = vld [vmem:[%s3147 + $0x28] sm:$0xff]
        %v3154 = vld [vmem:[%s3147 + $0x30] sm:$0xff]
        %v3155 = vld [vmem:[%s3147 + $0x38] sm:$0xff]
        %v3156 = vld [vmem:[%s3147 + $0x40] sm:$0xff]
        %v3157 = vld [vmem:[%s3147 + $0x48] sm:$0xff]
        %v3158 = vld [vmem:[%s3147 + $0x50] sm:$0xff]
        %v3159 = vld [vmem:[%s3147 + $0x58] sm:$0xff]
        %v3160 = vld [vmem:[%s3147 + $0x60] sm:$0xff]
        %v3161 = vld [vmem:[%s3147 + $0x68] sm:$0xff]
        %v3162 = vld [vmem:[%s3147 + $0x70] sm:$0xff]
        %v3163 = vld [vmem:[%s3147 + $0x78] sm:$0xff]
        %v3164 = vld [vmem:[%s3147 + $0x80] sm:$0xff]
        %v3165 = vld [vmem:[%s3147 + $0x88] sm:$0xff]
        %v3172 = vrot.slane %v3143, 1
        %v3173 = vrot.slane %v3123, 1
        %v3174 = vsel %vm2216, %v3172, %v3173
        %v3175 = vrot.slane %v3144, 1
        %v3176 = vrot.slane %v3124, 1
        %v3177 = vsel %vm2216, %v3175, %v3176
        %v3178 = vrot.slane %v3145, 1
        %v3179 = vsel %vm2216, %v3173, %v3178
        %v3180 = vrot.slane %v3146, 1
        %v3181 = vsel %vm2216, %v3176, %v3180
        %vm3184 = vcmask 130048
        %v3185 = vsel %vm3184, %v3177, 0
        %v3187 = vsel %vm3184, %v3181, 0
        %3189 = vmatprep.subr.mxu0 0.0
        %3190 = vmatpush1.msra.mxu0 %v3148
        %3191 = vmatprep.subr.mxu0 0.0
        %3192 = vmatpush1.msra.mxu0 %v3149
        %3193 = vmatprep.subr.mxu0 0.0
        %3194 = vmatpush1.msra.mxu0 %v3150
        %3195 = vmatprep.subr.mxu0 0.0
        %3196 = vmatpush1.msra.mxu0 %v3151
        %3197 = vmatprep.subr.mxu0 0.0
        %3198 = vmatpush1.msra.mxu0 %v3152
        %3199 = vmatprep.subr.mxu0 0.0
        %3200 = vmatpush1.msra.mxu0 %v3153
        %3201 = vmatprep.subr.mxu0 0.0
        %3202 = vmatpush1.msra.mxu0 %v3154
        %3203 = vmatprep.subr.mxu0 0.0
        %3204 = vmatpush1.msra.mxu0 %v3155
        %3205 = vmatprep.subr.mxu0 0.0
        %3206 = vmatpush1.msra.mxu0 %v3156
        %3207 = vmatprep.subr.mxu0 0.0
        %3208 = vmatpush1.msra.mxu0 %v3157
        %3209 = vmatprep.subr.mxu0 0.0
        %3210 = vmatpush1.msra.mxu0 %v3158
        %3211 = vmatprep.subr.mxu0 0.0
        %3212 = vmatpush1.msra.mxu0 %v3159
        %3213 = vmatprep.subr.mxu0 0.0
        %3214 = vmatpush1.msra.mxu0 %v3160
        %3215 = vmatprep.subr.mxu0 0.0
        %3216 = vmatpush1.msra.mxu0 %v3161
        %3217 = vmatprep.subr.mxu0 0.0
        %3218 = vmatpush1.msra.mxu0 %v3162
        %3219 = vmatprep.subr.mxu0 0.0
        %3220 = vmatpush1.msra.mxu0 %v3163
        %3221 = vmatprep.subr.mxu0 0.0
        %3222 = vmatpush1.msra.mxu0 %v3164
        %3223 = vmatprep.subr.mxu0 0.0
        %3224 = vmatpush1.msra.mxu0 %v3165
        %3225 = vmatprep.subr.mxu0 0.0
        %3226 = vmatpush1.msra.mxu0 0.0
        %3227 = vmatprep.subr.mxu0 0.0
        %3228 = vmatpush1.msra.mxu0 0.0
        %3229 = vmatprep.subr.mxu0 0.0
        %3230 = vmatpush1.msra.mxu0 0.0
        %3231 = vmatprep.subr.mxu0 0.0
        %3232 = vmatpush1.msra.mxu0 0.0
        %3233 = vmatprep.subr.mxu0 0.0
        %3234 = vmatpush1.msra.mxu0 0.0
        %3235 = vmatprep.subr.mxu0 0.0
        %3236 = vmatpush1.msra.mxu0 0.0
        %3237 = vmatprep.subr.mxu0 0.0
        %3238 = vmatpush1.msra.mxu0 0.0
        %3239 = vmatprep.subr.mxu0 0.0
        %3240 = vmatpush1.msra.mxu0 0.0
        %3241 = vmatprep.subr.mxu0 0.0
        %3242 = vmatpush1.msra.mxu0 0.0
        %3243 = vmatprep.subr.mxu0 0.0
        %3244 = vmatpush1.msra.mxu0 0.0
        %3245 = vmatprep.subr.mxu0 0.0
        %3246 = vmatpush1.msra.mxu0 0.0
        %3247 = vmatprep.subr.mxu0 0.0
        %3248 = vmatpush1.msra.mxu0 0.0
        %3249 = vmatprep.subr.mxu0 0.0
        %3250 = vmatpush1.msra.mxu0 0.0
        %3251 = vmatprep.subr.mxu0 0.0
        %3252 = vmatpush1.msra.mxu0 0.0
        %3253 = vmatprep.mubr.f32.mxu0 %v3185
        %3254 = vmatmul.mubr.f32.gmra.mrb[0].mxu0 %v3174
        %v3255 = vpop.f32.mrb[0].mxu0
        %v3256 = vadd.f32 0.0, %v3255
        %v3257 = vpop.f32.mrb[0].mxu0
        %3258 = vmatprep.mubr.f32.mxu0 %v3187
        %3259 = vmatmul.mubr.f32.gmra.mrb[0].mxu0 %v3179
        %v3260 = vpop.f32.mrb[0].mxu0
        %v3261 = vadd.f32 0.0, %v3260
        %v3262 = vpop.f32.mrb[0].mxu0
        %3263 = vdwg.mxu0
        %v3265 = vsel %vm3184, %v3122, 0
        %v3267 = vsel %vm3184, %v3124, 0
        %3269 = vmatprep.subr.mxu0 0.0
        %3270 = vmatpush1.msra.mxu0 %v3125
        %3271 = vmatprep.subr.mxu0 0.0
        %3272 = vmatpush1.msra.mxu0 %v3126
        %3273 = vmatprep.subr.mxu0 0.0
        %3274 = vmatpush1.msra.mxu0 %v3127
        %3275 = vmatprep.subr.mxu0 0.0
        %3276 = vmatpush1.msra.mxu0 %v3128
        %3277 = vmatprep.subr.mxu0 0.0
        %3278 = vmatpush1.msra.mxu0 %v3129
        %3279 = vmatprep.subr.mxu0 0.0
        %3280 = vmatpush1.msra.mxu0 %v3130
        %3281 = vmatprep.subr.mxu0 0.0
        %3282 = vmatpush1.msra.mxu0 %v3131
        %3283 = vmatprep.subr.mxu0 0.0
        %3284 = vmatpush1.msra.mxu0 %v3132
        %3285 = vmatprep.subr.mxu0 0.0
        %3286 = vmatpush1.msra.mxu0 %v3133
        %3287 = vmatprep.subr.mxu0 0.0
        %3288 = vmatpush1.msra.mxu0 %v3134
        %3289 = vmatprep.subr.mxu0 0.0
        %3290 = vmatpush1.msra.mxu0 %v3135
        %3291 = vmatprep.subr.mxu0 0.0
        %3292 = vmatpush1.msra.mxu0 %v3136
        %3293 = vmatprep.subr.mxu0 0.0
        %3294 = vmatpush1.msra.mxu0 %v3137
        %3295 = vmatprep.subr.mxu0 0.0
        %3296 = vmatpush1.msra.mxu0 %v3138
        %3297 = vmatprep.subr.mxu0 0.0
        %3298 = vmatpush1.msra.mxu0 %v3139
        %3299 = vmatprep.subr.mxu0 0.0
        %3300 = vmatpush1.msra.mxu0 %v3140
        %3301 = vmatprep.subr.mxu0 0.0
        %3302 = vmatpush1.msra.mxu0 %v3141
        %3303 = vmatprep.subr.mxu0 0.0
        %3304 = vmatpush1.msra.mxu0 %v3142
        %3305 = vmatprep.subr.mxu0 0.0
        %3306 = vmatpush1.msra.mxu0 0.0
        %3307 = vmatprep.subr.mxu0 0.0
        %3308 = vmatpush1.msra.mxu0 0.0
        %3309 = vmatprep.subr.mxu0 0.0
        %3310 = vmatpush1.msra.mxu0 0.0
        %3311 = vmatprep.subr.mxu0 0.0
        %3312 = vmatpush1.msra.mxu0 0.0
        %3313 = vmatprep.subr.mxu0 0.0
        %3314 = vmatpush1.msra.mxu0 0.0
        %3315 = vmatprep.subr.mxu0 0.0
        %3316 = vmatpush1.msra.mxu0 0.0
        %3317 = vmatprep.subr.mxu0 0.0
        %3318 = vmatpush1.msra.mxu0 0.0
        %3319 = vmatprep.subr.mxu0 0.0
        %3320 = vmatpush1.msra.mxu0 0.0
        %3321 = vmatprep.subr.mxu0 0.0
        %3322 = vmatpush1.msra.mxu0 0.0
        %3323 = vmatprep.subr.mxu0 0.0
        %3324 = vmatpush1.msra.mxu0 0.0
        %3325 = vmatprep.subr.mxu0 0.0
        %3326 = vmatpush1.msra.mxu0 0.0
        %3327 = vmatprep.subr.mxu0 0.0
        %3328 = vmatpush1.msra.mxu0 0.0
        %3329 = vmatprep.subr.mxu0 0.0
        %3330 = vmatpush1.msra.mxu0 0.0
        %3331 = vmatprep.subr.mxu0 0.0
        %3332 = vmatpush1.msra.mxu0 0.0
        %3333 = vmatprep.mubr.f32.mxu0 %v3265
        %3334 = vmatmul.mubr.f32.gmra.mrb[0].mxu0 %v3121
        %v3335 = vpop.f32.mrb[0].mxu0
        %v3336 = vadd.f32 %v3256, %v3335
        %v3337 = vpop.f32.mrb[0].mxu0
        %3338 = vmatprep.mubr.f32.mxu0 %v3267
        %3339 = vmatmul.mubr.f32.gmra.mrb[0].mxu0 %v3123
        %v3340 = vpop.f32.mrb[0].mxu0
        %v3341 = vadd.f32 %v3261, %v3340
        %v3342 = vpop.f32.mrb[0].mxu0
        %3343 = vdwg.mxu0
        %v3344 = vld [vmem:[#allocation5] sm:$0xfc]
        %v3345 = vld [vmem:[#allocation5 + $0x8] sm:$0xfc]
        %v3346 = vld [vmem:[#allocation5 + $0x20] sm:$0x3]
        %v3347 = vld [vmem:[#allocation5 + $0x28] sm:$0x3]
        %s3348 = scalar_lea.vmem [#allocation20], 288
        %v3349 = vld [vmem:[%s3348] sm:$0xff]
        %v3350 = vld [vmem:[%s3348 + $0x8] sm:$0xff]
        %v3351 = vld [vmem:[%s3348 + $0x10] sm:$0xff]
        %v3352 = vld [vmem:[%s3348 + $0x18] sm:$0xff]
        %v3353 = vld [vmem:[%s3348 + $0x20] sm:$0xff]
        %v3354 = vld [vmem:[%s3348 + $0x28] sm:$0xff]
        %v3355 = vld [vmem:[%s3348 + $0x30] sm:$0xff]
        %v3356 = vld [vmem:[%s3348 + $0x38] sm:$0xff]
        %v3357 = vld [vmem:[%s3348 + $0x40] sm:$0xff]
        %v3358 = vld [vmem:[%s3348 + $0x48] sm:$0xff]
        %v3359 = vld [vmem:[%s3348 + $0x50] sm:$0xff]
        %v3360 = vld [vmem:[%s3348 + $0x58] sm:$0xff]
        %v3361 = vld [vmem:[%s3348 + $0x60] sm:$0xff]
        %v3362 = vld [vmem:[%s3348 + $0x68] sm:$0xff]
        %v3363 = vld [vmem:[%s3348 + $0x70] sm:$0xff]
        %v3364 = vld [vmem:[%s3348 + $0x78] sm:$0xff]
        %v3365 = vld [vmem:[%s3348 + $0x80] sm:$0xff]
        %v3366 = vld [vmem:[%s3348 + $0x88] sm:$0xff]
        %v3371 = vrot.slane %v3344, 2
        %v3372 = vrot.slane %v3123, 2
        %v3373 = vsel %vm1793, %v3371, %v3372
        %v3374 = vrot.slane %v3345, 2
        %v3375 = vrot.slane %v3124, 2
        %v3376 = vsel %vm1793, %v3374, %v3375
        %v3377 = vrot.slane %v3346, 2
        %v3378 = vsel %vm1793, %v3372, %v3377
        %v3379 = vrot.slane %v3347, 2
        %v3380 = vsel %vm1793, %v3375, %v3379
        %v3383 = vsel %vm3184, %v3376, 0
        %v3385 = vsel %vm3184, %v3380, 0
        %3387 = vmatprep.subr.mxu0 0.0
        %3388 = vmatpush1.msra.mxu0 %v3349
        %3389 = vmatprep.subr.mxu0 0.0
        %3390 = vmatpush1.msra.mxu0 %v3350
        %3391 = vmatprep.subr.mxu0 0.0
        %3392 = vmatpush1.msra.mxu0 %v3351
        %3393 = vmatprep.subr.mxu0 0.0
        %3394 = vmatpush1.msra.mxu0 %v3352
        %3395 = vmatprep.subr.mxu0 0.0
        %3396 = vmatpush1.msra.mxu0 %v3353
        %3397 = vmatprep.subr.mxu0 0.0
        %3398 = vmatpush1.msra.mxu0 %v3354
        %3399 = vmatprep.subr.mxu0 0.0
        %3400 = vmatpush1.msra.mxu0 %v3355
        %3401 = vmatprep.subr.mxu0 0.0
        %3402 = vmatpush1.msra.mxu0 %v3356
        %3403 = vmatprep.subr.mxu0 0.0
        %3404 = vmatpush1.msra.mxu0 %v3357
        %3405 = vmatprep.subr.mxu0 0.0
        %3406 = vmatpush1.msra.mxu0 %v3358
        %3407 = vmatprep.subr.mxu0 0.0
        %3408 = vmatpush1.msra.mxu0 %v3359
        %3409 = vmatprep.subr.mxu0 0.0
        %3410 = vmatpush1.msra.mxu0 %v3360
        %3411 = vmatprep.subr.mxu0 0.0
        %3412 = vmatpush1.msra.mxu0 %v3361
        %3413 = vmatprep.subr.mxu0 0.0
        %3414 = vmatpush1.msra.mxu0 %v3362
        %3415 = vmatprep.subr.mxu0 0.0
        %3416 = vmatpush1.msra.mxu0 %v3363
        %3417 = vmatprep.subr.mxu0 0.0
        %3418 = vmatpush1.msra.mxu0 %v3364
        %3419 = vmatprep.subr.mxu0 0.0
        %3420 = vmatpush1.msra.mxu0 %v3365
        %3421 = vmatprep.subr.mxu0 0.0
        %3422 = vmatpush1.msra.mxu0 %v3366
        %3423 = vmatprep.subr.mxu0 0.0
        %3424 = vmatpush1.msra.mxu0 0.0
        %3425 = vmatprep.subr.mxu0 0.0
        %3426 = vmatpush1.msra.mxu0 0.0
        %3427 = vmatprep.subr.mxu0 0.0
        %3428 = vmatpush1.msra.mxu0 0.0
        %3429 = vmatprep.subr.mxu0 0.0
        %3430 = vmatpush1.msra.mxu0 0.0
        %3431 = vmatprep.subr.mxu0 0.0
        %3432 = vmatpush1.msra.mxu0 0.0
        %3433 = vmatprep.subr.mxu0 0.0
        %3434 = vmatpush1.msra.mxu0 0.0
        %3435 = vmatprep.subr.mxu0 0.0
        %3436 = vmatpush1.msra.mxu0 0.0
        %3437 = vmatprep.subr.mxu0 0.0
        %3438 = vmatpush1.msra.mxu0 0.0
        %3439 = vmatprep.subr.mxu0 0.0
        %3440 = vmatpush1.msra.mxu0 0.0
        %3441 = vmatprep.subr.mxu0 0.0
        %3442 = vmatpush1.msra.mxu0 0.0
        %3443 = vmatprep.subr.mxu0 0.0
        %3444 = vmatpush1.msra.mxu0 0.0
        %3445 = vmatprep.subr.mxu0 0.0
        %3446 = vmatpush1.msra.mxu0 0.0
        %3447 = vmatprep.subr.mxu0 0.0
        %3448 = vmatpush1.msra.mxu0 0.0
        %3449 = vmatprep.subr.mxu0 0.0
        %3450 = vmatpush1.msra.mxu0 0.0
        %3451 = vmatprep.mubr.f32.mxu0 %v3383
        %3452 = vmatmul.mubr.f32.gmra.mrb[0].mxu0 %v3373
        %v3453 = vpop.f32.mrb[0].mxu0
        %v3454 = vadd.f32 0.0, %v3453
        %v3455 = vpop.f32.mrb[0].mxu0
        %3456 = vmatprep.mubr.f32.mxu0 %v3385
        %3457 = vmatmul.mubr.f32.gmra.mrb[0].mxu0 %v3378
        %v3458 = vpop.f32.mrb[0].mxu0
        %v3459 = vadd.f32 0.0, %v3458
        %v3460 = vpop.f32.mrb[0].mxu0
        %3461 = vdwg.mxu0
        %v3462 = vadd.f32 %v3336, %v3454
        %v3463 = vadd.f32 %v3341, %v3459
        %v3464 = vld [vmem:[%s17] sm:$0x1]
        %v3466 = vlaneseq
        %v3467 = vshrl.u32 %v3466, 7
        %v3468 = vsub.s32 0, %v3467
        %v3469 = vrot.slane %v3464, %v3468
        %v3471 = vadd.f32 %v3462, %v3469
        %v3472 = vadd.f32 %v3463, %v3469
        %v3473 = vmax.f32 %v3471, 0.0
        %v3474 = vmax.f32 %v3472, 0.0
        %3475 = vst [vmem:[%s1583] sm:$0xff] %v3473
        %3476 = vst [vmem:[%s1583 + $0x8] sm:$0xff] %v3474
        %v3477 = vld [vmem:[%s55] sm:$0xff]
        %v3478 = vld [vmem:[%s55 + $0x8] sm:$0xff]
        %v3479 = vld [vmem:[#allocation43] sm:$0xff]
        %v3480 = vld [vmem:[#allocation43 + $0x8] sm:$0xff]
        %v3481 = vld [vmem:[#allocation43 + $0x10] sm:$0xff]
        %v3482 = vld [vmem:[#allocation43 + $0x18] sm:$0xff]
        %v3483 = vld [vmem:[#allocation43 + $0x20] sm:$0xff]
        %v3484 = vld [vmem:[#allocation43 + $0x28] sm:$0xff]
        %v3485 = vld [vmem:[#allocation43 + $0x30] sm:$0xff]
        %v3486 = vld [vmem:[#allocation43 + $0x38] sm:$0xff]
        %v3487 = vld [vmem:[#allocation43 + $0x40] sm:$0xff]
        %v3488 = vld [vmem:[#allocation43 + $0x48] sm:$0xff]
        %v3489 = vld [vmem:[#allocation43 + $0x50] sm:$0xff]
        %v3490 = vld [vmem:[#allocation43 + $0x58] sm:$0xff]
        %v3491 = vld [vmem:[#allocation43 + $0x60] sm:$0xff]
        %v3492 = vld [vmem:[#allocation43 + $0x68] sm:$0xff]
        %v3493 = vld [vmem:[#allocation43 + $0x70] sm:$0xff]
        %v3494 = vld [vmem:[#allocation43 + $0x78] sm:$0xff]
        %v3496 = vsel %vm3184, %v3477, 0
        %v3499 = vsel %vm3184, %v3478, 0
        %3501 = vmatprep.subr.mxu0 0.0
        %3502 = vmatpush1.msra.mxu0 %v3473
        %3503 = vmatprep.subr.mxu0 0.0
        %3504 = vmatpush1.msra.mxu0 %v3474
        %3505 = vmatprep.subr.mxu0 0.0
        %3506 = vmatpush1.msra.mxu0 0.0
        %3507 = vmatprep.subr.mxu0 0.0
        %3508 = vmatpush1.msra.mxu0 0.0
        %3509 = vmatprep.subr.mxu0 0.0
        %3510 = vmatpush1.msra.mxu0 0.0
        %3511 = vmatprep.subr.mxu0 0.0
        %3512 = vmatpush1.msra.mxu0 0.0
        %3513 = vmatprep.subr.mxu0 0.0
        %3514 = vmatpush1.msra.mxu0 0.0
        %3515 = vmatprep.subr.mxu0 0.0
        %3516 = vmatpush1.msra.mxu0 0.0
        %3517 = vmatprep.subr.mxu0 0.0
        %3518 = vmatpush1.msra.mxu0 0.0
        %3519 = vmatprep.subr.mxu0 0.0
        %3520 = vmatpush1.msra.mxu0 0.0
        %3521 = vmatprep.subr.mxu0 0.0
        %3522 = vmatpush1.msra.mxu0 0.0
        %3523 = vmatprep.subr.mxu0 0.0
        %3524 = vmatpush1.msra.mxu0 0.0
        %3525 = vmatprep.subr.mxu0 0.0
        %3526 = vmatpush1.msra.mxu0 0.0
        %3527 = vmatprep.subr.mxu0 0.0
        %3528 = vmatpush1.msra.mxu0 0.0
        %3529 = vmatprep.subr.mxu0 0.0
        %3530 = vmatpush1.msra.mxu0 0.0
        %3531 = vmatprep.subr.mxu0 0.0
        %3532 = vmatpush1.msra.mxu0 0.0
        %3533 = vmatprep.subr.mxu0 0.0
        %3534 = vmatpush1.msra.mxu0 0.0
        %3535 = vmatprep.subr.mxu0 0.0
        %3536 = vmatpush1.msra.mxu0 0.0
        %3537 = vmatprep.subr.mxu0 0.0
        %3538 = vmatpush1.msra.mxu0 0.0
        %3539 = vmatprep.subr.mxu0 0.0
        %3540 = vmatpush1.msra.mxu0 0.0
        %3541 = vmatprep.subr.mxu0 0.0
        %3542 = vmatpush1.msra.mxu0 0.0
        %3543 = vmatprep.subr.mxu0 0.0
        %3544 = vmatpush1.msra.mxu0 0.0
        %3545 = vmatprep.subr.mxu0 0.0
        %3546 = vmatpush1.msra.mxu0 0.0
        %3547 = vmatprep.subr.mxu0 0.0
        %3548 = vmatpush1.msra.mxu0 0.0
        %3549 = vmatprep.subr.mxu0 0.0
        %3550 = vmatpush1.msra.mxu0 0.0
        %3551 = vmatprep.subr.mxu0 0.0
        %3552 = vmatpush1.msra.mxu0 0.0
        %3553 = vmatprep.subr.mxu0 0.0
        %3554 = vmatpush1.msra.mxu0 0.0
        %3555 = vmatprep.subr.mxu0 0.0
        %3556 = vmatpush1.msra.mxu0 0.0
        %3557 = vmatprep.subr.mxu0 0.0
        %3558 = vmatpush1.msra.mxu0 0.0
        %3559 = vmatprep.subr.mxu0 0.0
        %3560 = vmatpush1.msra.mxu0 0.0
        %3561 = vmatprep.subr.mxu0 0.0
        %3562 = vmatpush1.msra.mxu0 0.0
        %3563 = vmatprep.subr.mxu0 0.0
        %3564 = vmatpush1.msra.mxu0 0.0
        %3565 = vmatprep.mubr.f32.mxu0 0.0
        %3566 = vmatmul.mubr.f32.gmra.mrb[0].mxu0 %v3496
        %v3567 = vpop.f32.mrb[0].mxu0
        %v3568 = vadd.f32 0.0, %v3567
        %v3569 = vpop.f32.mrb[0].mxu0
        %3570 = vmatprep.mubr.f32.mxu0 0.0
        %3571 = vmatmul.mubr.f32.gmra.mrb[0].mxu0 %v3499
        %v3572 = vpop.f32.mrb[0].mxu0
        %v3573 = vadd.f32 0.0, %v3572
        %v3574 = vpop.f32.mrb[0].mxu0
        %3575 = vdwg.mxu0
        %v3576 = vmax.f32 %v3568, %v3573
        %3577 = vmatprep.subr.mxu0 0.0
        %3578 = vmatpush1.msra.mxu0 %v3479
        %3579 = vmatprep.subr.mxu0 0.0
        %3580 = vmatpush1.msra.mxu0 %v3480
        %3581 = vmatprep.subr.mxu0 0.0
        %3582 = vmatpush1.msra.mxu0 %v3481
        %3583 = vmatprep.subr.mxu0 0.0
        %3584 = vmatpush1.msra.mxu0 %v3482
        %3585 = vmatprep.subr.mxu0 0.0
        %3586 = vmatpush1.msra.mxu0 %v3483
        %3587 = vmatprep.subr.mxu0 0.0
        %3588 = vmatpush1.msra.mxu0 %v3484
        %3589 = vmatprep.subr.mxu0 0.0
        %3590 = vmatpush1.msra.mxu0 %v3485
        %3591 = vmatprep.subr.mxu0 0.0
        %3592 = vmatpush1.msra.mxu0 %v3486
        %3593 = vmatprep.subr.mxu0 0.0
        %3594 = vmatpush1.msra.mxu0 %v3487
        %3595 = vmatprep.subr.mxu0 0.0
        %3596 = vmatpush1.msra.mxu0 %v3488
        %3597 = vmatprep.subr.mxu0 0.0
        %3598 = vmatpush1.msra.mxu0 %v3489
        %3599 = vmatprep.subr.mxu0 0.0
        %3600 = vmatpush1.msra.mxu0 %v3490
        %3601 = vmatprep.subr.mxu0 0.0
        %3602 = vmatpush1.msra.mxu0 %v3491
        %3603 = vmatprep.subr.mxu0 0.0
        %3604 = vmatpush1.msra.mxu0 %v3492
        %3605 = vmatprep.subr.mxu0 0.0
        %3606 = vmatpush1.msra.mxu0 %v3493
        %3607 = vmatprep.subr.mxu0 0.0
        %3608 = vmatpush1.msra.mxu0 %v3494
        %3609 = vmatprep.subr.mxu0 0.0
        %3610 = vmatpush1.msra.mxu0 0.0
        %3611 = vmatprep.subr.mxu0 0.0
        %3612 = vmatpush1.msra.mxu0 0.0
        %3613 = vmatprep.subr.mxu0 0.0
        %3614 = vmatpush1.msra.mxu0 0.0
        %3615 = vmatprep.subr.mxu0 0.0
        %3616 = vmatpush1.msra.mxu0 0.0
        %3617 = vmatprep.subr.mxu0 0.0
        %3618 = vmatpush1.msra.mxu0 0.0
        %3619 = vmatprep.subr.mxu0 0.0
        %3620 = vmatpush1.msra.mxu0 0.0
        %3621 = vmatprep.subr.mxu0 0.0
        %3622 = vmatpush1.msra.mxu0 0.0
        %3623 = vmatprep.subr.mxu0 0.0
        %3624 = vmatpush1.msra.mxu0 0.0
        %3625 = vmatprep.subr.mxu0 0.0
        %3626 = vmatpush1.msra.mxu0 0.0
        %3627 = vmatprep.subr.mxu0 0.0
        %3628 = vmatpush1.msra.mxu0 0.0
        %3629 = vmatprep.subr.mxu0 0.0
        %3630 = vmatpush1.msra.mxu0 0.0
        %3631 = vmatprep.subr.mxu0 0.0
        %3632 = vmatpush1.msra.mxu0 0.0
        %3633 = vmatprep.subr.mxu0 0.0
        %3634 = vmatpush1.msra.mxu0 0.0
        %3635 = vmatprep.subr.mxu0 0.0
        %3636 = vmatpush1.msra.mxu0 0.0
        %3637 = vmatprep.subr.mxu0 0.0
        %3638 = vmatpush1.msra.mxu0 0.0
        %3639 = vmatprep.subr.mxu0 0.0
        %3640 = vmatpush1.msra.mxu0 0.0
        %3641 = vmatprep.mubr.f32.mxu0 0.0
        %3642 = vmatmul.mubr.f32.gmra.mrb[0].mxu0 %v3576
        %v3643 = vpop.f32.mrb[0].mxu0
        %v3644 = vadd.f32 0.0, %v3643
        %v3645 = vpop.f32.mrb[0].mxu0
        %3646 = vdwg.mxu0
        %3648 = vrot.lane.b32.xlu0 %v3644, 64
        %v3649 = vpop.permute.xlu0 %3648
        %v3651 = vmax.f32 %v3644, %v3649
        %3653 = vrot.lane.b32.xlu0 %v3651, 8
        %v3654 = vpop.permute.xlu0 %3653
        %vm3656 = vcmask 588864
        %3657 = vst.msk [vmem:[#allocation6 + $0x1] sm:$0xff] %vm3656, %v3654
        %v3658 = vld [vmem:[#allocation6] sm:$0xff]
        %v3659 = vld [vmem:[#allocation22] sm:$0xff]
        %v3660 = vld [vmem:[#allocation22 + $0x8] sm:$0xff]
        %v3661 = vld [vmem:[#allocation22 + $0x10] sm:$0xff]
        %v3662 = vld [vmem:[#allocation22 + $0x18] sm:$0xff]
        %v3663 = vld [vmem:[#allocation22 + $0x20] sm:$0xff]
        %v3664 = vld [vmem:[#allocation22 + $0x28] sm:$0xff]
        %v3665 = vld [vmem:[#allocation22 + $0x30] sm:$0xff]
        %v3666 = vld [vmem:[#allocation22 + $0x38] sm:$0xff]
        %v3667 = vld [vmem:[#allocation22 + $0x40] sm:$0xff]
        %v3668 = vld [vmem:[#allocation22 + $0x48] sm:$0xff]
        %v3669 = vld [vmem:[#allocation6 + $0x1] sm:$0xff]
        %s3670 = scalar_lea.vmem [#allocation22], 80
        %v3671 = vld [vmem:[%s3670] sm:$0xff]
        %v3672 = vld [vmem:[%s3670 + $0x8] sm:$0xff]
        %v3673 = vld [vmem:[%s3670 + $0x10] sm:$0xff]
        %v3674 = vld [vmem:[%s3670 + $0x18] sm:$0xff]
        %v3675 = vld [vmem:[%s3670 + $0x20] sm:$0xff]
        %v3676 = vld [vmem:[%s3670 + $0x28] sm:$0xff]
        %v3677 = vld [vmem:[%s3670 + $0x30] sm:$0xff]
        %v3678 = vld [vmem:[%s3670 + $0x38] sm:$0xff]
        %v3679 = vld [vmem:[%s3670 + $0x40] sm:$0xff]
        %v3680 = vld [vmem:[%s3670 + $0x48] sm:$0xff]
        %vm3681 = vcmask 654336
        %v3683 = vsel %vm3681, %v3669, 0
        %3685 = vmatprep.subr.mxu0 0.0
        %3686 = vmatpush1.msra.mxu0 %v3671
        %3687 = vmatprep.subr.mxu0 0.0
        %3688 = vmatpush1.msra.mxu0 %v3672
        %3689 = vmatprep.subr.mxu0 0.0
        %3690 = vmatpush1.msra.mxu0 %v3673
        %3691 = vmatprep.subr.mxu0 0.0
        %3692 = vmatpush1.msra.mxu0 %v3674
        %3693 = vmatprep.subr.mxu0 0.0
        %3694 = vmatpush1.msra.mxu0 %v3675
        %3695 = vmatprep.subr.mxu0 0.0
        %3696 = vmatpush1.msra.mxu0 %v3676
        %3697 = vmatprep.subr.mxu0 0.0
        %3698 = vmatpush1.msra.mxu0 %v3677
        %3699 = vmatprep.subr.mxu0 0.0
        %3700 = vmatpush1.msra.mxu0 %v3678
        %3701 = vmatprep.subr.mxu0 0.0
        %3702 = vmatpush1.msra.mxu0 %v3679
        %3703 = vmatprep.subr.mxu0 0.0
        %3704 = vmatpush1.msra.mxu0 %v3680
        %3705 = vmatprep.subr.mxu0 0.0
        %3706 = vmatpush1.msra.mxu0 0.0
        %3707 = vmatprep.subr.mxu0 0.0
        %3708 = vmatpush1.msra.mxu0 0.0
        %3709 = vmatprep.subr.mxu0 0.0
        %3710 = vmatpush1.msra.mxu0 0.0
        %3711 = vmatprep.subr.mxu0 0.0
        %3712 = vmatpush1.msra.mxu0 0.0
        %3713 = vmatprep.subr.mxu0 0.0
        %3714 = vmatpush1.msra.mxu0 0.0
        %3715 = vmatprep.subr.mxu0 0.0
        %3716 = vmatpush1.msra.mxu0 0.0
        %3717 = vmatprep.subr.mxu0 0.0
        %3718 = vmatpush1.msra.mxu0 0.0
        %3719 = vmatprep.subr.mxu0 0.0
        %3720 = vmatpush1.msra.mxu0 0.0
        %3721 = vmatprep.subr.mxu0 0.0
        %3722 = vmatpush1.msra.mxu0 0.0
        %3723 = vmatprep.subr.mxu0 0.0
        %3724 = vmatpush1.msra.mxu0 0.0
        %3725 = vmatprep.subr.mxu0 0.0
        %3726 = vmatpush1.msra.mxu0 0.0
        %3727 = vmatprep.subr.mxu0 0.0
        %3728 = vmatpush1.msra.mxu0 0.0
        %3729 = vmatprep.subr.mxu0 0.0
        %3730 = vmatpush1.msra.mxu0 0.0
        %3731 = vmatprep.subr.mxu0 0.0
        %3732 = vmatpush1.msra.mxu0 0.0
        %3733 = vmatprep.subr.mxu0 0.0
        %3734 = vmatpush1.msra.mxu0 0.0
        %3735 = vmatprep.subr.mxu0 0.0
        %3736 = vmatpush1.msra.mxu0 0.0
        %3737 = vmatprep.subr.mxu0 0.0
        %3738 = vmatpush1.msra.mxu0 0.0
        %3739 = vmatprep.subr.mxu0 0.0
        %3740 = vmatpush1.msra.mxu0 0.0
        %3741 = vmatprep.subr.mxu0 0.0
        %3742 = vmatpush1.msra.mxu0 0.0
        %3743 = vmatprep.subr.mxu0 0.0
        %3744 = vmatpush1.msra.mxu0 0.0
        %3745 = vmatprep.subr.mxu0 0.0
        %3746 = vmatpush1.msra.mxu0 0.0
        %3747 = vmatprep.subr.mxu0 0.0
        %3748 = vmatpush1.msra.mxu0 0.0
        %3749 = vmatprep.mubr.f32.mxu0 0.0
        %3750 = vmatmul.mubr.f32.gmra.mrb[0].mxu0 %v3683
        %v3751 = vpop.f32.mrb[0].mxu0
        %v3752 = vadd.f32 0.0, %v3751
        %v3753 = vpop.f32.mrb[0].mxu0
        %3754 = vdwg.mxu0
        %v3756 = vsel %vm3681, %v3658, 0
        %3758 = vmatprep.subr.mxu0 0.0
        %3759 = vmatpush1.msra.mxu0 %v3659
        %3760 = vmatprep.subr.mxu0 0.0
        %3761 = vmatpush1.msra.mxu0 %v3660
        %3762 = vmatprep.subr.mxu0 0.0
        %3763 = vmatpush1.msra.mxu0 %v3661
        %3764 = vmatprep.subr.mxu0 0.0
        %3765 = vmatpush1.msra.mxu0 %v3662
        %3766 = vmatprep.subr.mxu0 0.0
        %3767 = vmatpush1.msra.mxu0 %v3663
        %3768 = vmatprep.subr.mxu0 0.0
        %3769 = vmatpush1.msra.mxu0 %v3664
        %3770 = vmatprep.subr.mxu0 0.0
        %3771 = vmatpush1.msra.mxu0 %v3665
        %3772 = vmatprep.subr.mxu0 0.0
        %3773 = vmatpush1.msra.mxu0 %v3666
        %3774 = vmatprep.subr.mxu0 0.0
        %3775 = vmatpush1.msra.mxu0 %v3667
        %3776 = vmatprep.subr.mxu0 0.0
        %3777 = vmatpush1.msra.mxu0 %v3668
        %3778 = vmatprep.subr.mxu0 0.0
        %3779 = vmatpush1.msra.mxu0 0.0
        %3780 = vmatprep.subr.mxu0 0.0
        %3781 = vmatpush1.msra.mxu0 0.0
        %3782 = vmatprep.subr.mxu0 0.0
        %3783 = vmatpush1.msra.mxu0 0.0
        %3784 = vmatprep.subr.mxu0 0.0
        %3785 = vmatpush1.msra.mxu0 0.0
        %3786 = vmatprep.subr.mxu0 0.0
        %3787 = vmatpush1.msra.mxu0 0.0
        %3788 = vmatprep.subr.mxu0 0.0
        %3789 = vmatpush1.msra.mxu0 0.0
        %3790 = vmatprep.subr.mxu0 0.0
        %3791 = vmatpush1.msra.mxu0 0.0
        %3792 = vmatprep.subr.mxu0 0.0
        %3793 = vmatpush1.msra.mxu0 0.0
        %3794 = vmatprep.subr.mxu0 0.0
        %3795 = vmatpush1.msra.mxu0 0.0
        %3796 = vmatprep.subr.mxu0 0.0
        %3797 = vmatpush1.msra.mxu0 0.0
        %3798 = vmatprep.subr.mxu0 0.0
        %3799 = vmatpush1.msra.mxu0 0.0
        %3800 = vmatprep.subr.mxu0 0.0
        %3801 = vmatpush1.msra.mxu0 0.0
        %3802 = vmatprep.subr.mxu0 0.0
        %3803 = vmatpush1.msra.mxu0 0.0
        %3804 = vmatprep.subr.mxu0 0.0
        %3805 = vmatpush1.msra.mxu0 0.0
        %3806 = vmatprep.subr.mxu0 0.0
        %3807 = vmatpush1.msra.mxu0 0.0
        %3808 = vmatprep.subr.mxu0 0.0
        %3809 = vmatpush1.msra.mxu0 0.0
        %3810 = vmatprep.subr.mxu0 0.0
        %3811 = vmatpush1.msra.mxu0 0.0
        %3812 = vmatprep.subr.mxu0 0.0
        %3813 = vmatpush1.msra.mxu0 0.0
        %3814 = vmatprep.subr.mxu0 0.0
        %3815 = vmatpush1.msra.mxu0 0.0
        %3816 = vmatprep.subr.mxu0 0.0
        %3817 = vmatpush1.msra.mxu0 0.0
        %3818 = vmatprep.subr.mxu0 0.0
        %3819 = vmatpush1.msra.mxu0 0.0
        %3820 = vmatprep.subr.mxu0 0.0
        %3821 = vmatpush1.msra.mxu0 0.0
        %3822 = vmatprep.mubr.f32.mxu0 0.0
        %3823 = vmatmul.mubr.f32.gmra.mrb[0].mxu0 %v3756
        %v3824 = vpop.f32.mrb[0].mxu0
        %v3825 = vadd.f32 %v3752, %v3824
        %v3826 = vpop.f32.mrb[0].mxu0
        %3827 = vdwg.mxu0
        %v3828 = vld [vmem:[#allocation6 + $0x2] sm:$0xff]
        %s3829 = scalar_lea.vmem [#allocation22], 160
        %v3830 = vld [vmem:[%s3829] sm:$0xff]
        %v3831 = vld [vmem:[%s3829 + $0x8] sm:$0xff]
        %v3832 = vld [vmem:[%s3829 + $0x10] sm:$0xff]
        %v3833 = vld [vmem:[%s3829 + $0x18] sm:$0xff]
        %v3834 = vld [vmem:[%s3829 + $0x20] sm:$0xff]
        %v3835 = vld [vmem:[%s3829 + $0x28] sm:$0xff]
        %v3836 = vld [vmem:[%s3829 + $0x30] sm:$0xff]
        %v3837 = vld [vmem:[%s3829 + $0x38] sm:$0xff]
        %v3838 = vld [vmem:[%s3829 + $0x40] sm:$0xff]
        %v3839 = vld [vmem:[%s3829 + $0x48] sm:$0xff]
        %v3841 = vsel %vm3681, %v3828, 0
        %3843 = vmatprep.subr.mxu0 0.0
        %3844 = vmatpush1.msra.mxu0 %v3830
        %3845 = vmatprep.subr.mxu0 0.0
        %3846 = vmatpush1.msra.mxu0 %v3831
        %3847 = vmatprep.subr.mxu0 0.0
        %3848 = vmatpush1.msra.mxu0 %v3832
        %3849 = vmatprep.subr.mxu0 0.0
        %3850 = vmatpush1.msra.mxu0 %v3833
        %3851 = vmatprep.subr.mxu0 0.0
        %3852 = vmatpush1.msra.mxu0 %v3834
        %3853 = vmatprep.subr.mxu0 0.0
        %3854 = vmatpush1.msra.mxu0 %v3835
        %3855 = vmatprep.subr.mxu0 0.0
        %3856 = vmatpush1.msra.mxu0 %v3836
        %3857 = vmatprep.subr.mxu0 0.0
        %3858 = vmatpush1.msra.mxu0 %v3837
        %3859 = vmatprep.subr.mxu0 0.0
        %3860 = vmatpush1.msra.mxu0 %v3838
        %3861 = vmatprep.subr.mxu0 0.0
        %3862 = vmatpush1.msra.mxu0 %v3839
        %3863 = vmatprep.subr.mxu0 0.0
        %3864 = vmatpush1.msra.mxu0 0.0
        %3865 = vmatprep.subr.mxu0 0.0
        %3866 = vmatpush1.msra.mxu0 0.0
        %3867 = vmatprep.subr.mxu0 0.0
        %3868 = vmatpush1.msra.mxu0 0.0
        %3869 = vmatprep.subr.mxu0 0.0
        %3870 = vmatpush1.msra.mxu0 0.0
        %3871 = vmatprep.subr.mxu0 0.0
        %3872 = vmatpush1.msra.mxu0 0.0
        %3873 = vmatprep.subr.mxu0 0.0
        %3874 = vmatpush1.msra.mxu0 0.0
        %3875 = vmatprep.subr.mxu0 0.0
        %3876 = vmatpush1.msra.mxu0 0.0
        %3877 = vmatprep.subr.mxu0 0.0
        %3878 = vmatpush1.msra.mxu0 0.0
        %3879 = vmatprep.subr.mxu0 0.0
        %3880 = vmatpush1.msra.mxu0 0.0
        %3881 = vmatprep.subr.mxu0 0.0
        %3882 = vmatpush1.msra.mxu0 0.0
        %3883 = vmatprep.subr.mxu0 0.0
        %3884 = vmatpush1.msra.mxu0 0.0
        %3885 = vmatprep.subr.mxu0 0.0
        %3886 = vmatpush1.msra.mxu0 0.0
        %3887 = vmatprep.subr.mxu0 0.0
        %3888 = vmatpush1.msra.mxu0 0.0
        %3889 = vmatprep.subr.mxu0 0.0
        %3890 = vmatpush1.msra.mxu0 0.0
        %3891 = vmatprep.subr.mxu0 0.0
        %3892 = vmatpush1.msra.mxu0 0.0
        %3893 = vmatprep.subr.mxu0 0.0
        %3894 = vmatpush1.msra.mxu0 0.0
        %3895 = vmatprep.subr.mxu0 0.0
        %3896 = vmatpush1.msra.mxu0 0.0
        %3897 = vmatprep.subr.mxu0 0.0
        %3898 = vmatpush1.msra.mxu0 0.0
        %3899 = vmatprep.subr.mxu0 0.0
        %3900 = vmatpush1.msra.mxu0 0.0
        %3901 = vmatprep.subr.mxu0 0.0
        %3902 = vmatpush1.msra.mxu0 0.0
        %3903 = vmatprep.subr.mxu0 0.0
        %3904 = vmatpush1.msra.mxu0 0.0
        %3905 = vmatprep.subr.mxu0 0.0
        %3906 = vmatpush1.msra.mxu0 0.0
        %3907 = vmatprep.mubr.f32.mxu0 0.0
        %3908 = vmatmul.mubr.f32.gmra.mrb[0].mxu0 %v3841
        %v3909 = vpop.f32.mrb[0].mxu0
        %v3910 = vadd.f32 0.0, %v3909
        %v3911 = vpop.f32.mrb[0].mxu0
        %3912 = vdwg.mxu0
        %v3913 = vadd.f32 %v3825, %v3910
        %v3914 = vld [vmem:[%s21] sm:$0x1]
        %v3916 = vlaneseq
        %v3917 = vshrl.u32 %v3916, 7
        %v3918 = vsub.s32 0, %v3917
        %v3919 = vrot.slane %v3914, %v3918
        %v3921 = vadd.f32 %v3913, %v3919
        %v3922 = vmax.f32 %v3921, 0.0
        %v3924 = vrot.slane %v3922, 7
        %3925 = vrot.lane.b32.xlu0 %v3924, 16
        %v3926 = vpop.permute.xlu0 %3925
        %vm3928 = vcmask 1047681
        %3929 = vst.msk [vmem:[#allocation7] sm:$0xfe] %vm3928, %v3926
        %3930 = vst.msk [vmem:[#allocation7 + $0x8] sm:$0xfe] %vm1674, %v3926
        %vm3931 = vcmask 1040512
        %3932 = vst.msk [vmem:[#allocation7 + $0x10] sm:$0x1] %vm3931, %v3926
        %3933 = vst.msk [vmem:[#allocation7 + $0x18] sm:$0x1] %vm1676, %v3926
        %v3934 = vld [vmem:[#allocation7] sm:$0xff]
        %v3935 = vld [vmem:[#allocation7 + $0x8] sm:$0xff]
        %v3936 = vld [vmem:[#allocation23] sm:$0xff]
        %v3937 = vld [vmem:[#allocation23 + $0x8] sm:$0xff]
        %v3938 = vld [vmem:[#allocation23 + $0x10] sm:$0xff]
        %v3939 = vld [vmem:[#allocation23 + $0x18] sm:$0xff]
        %v3940 = vld [vmem:[#allocation23 + $0x20] sm:$0xff]
        %v3941 = vld [vmem:[#allocation23 + $0x28] sm:$0xff]
        %v3942 = vld [vmem:[#allocation23 + $0x30] sm:$0xff]
        %v3943 = vld [vmem:[#allocation23 + $0x38] sm:$0xff]
        %v3944 = vld [vmem:[#allocation23 + $0x40] sm:$0xff]
        %v3945 = vld [vmem:[#allocation23 + $0x48] sm:$0xff]
        %v3946 = vld [vmem:[#allocation23 + $0x50] sm:$0xff]
        %v3947 = vld [vmem:[#allocation23 + $0x58] sm:$0xff]
        %v3948 = vld [vmem:[#allocation23 + $0x60] sm:$0xff]
        %v3949 = vld [vmem:[#allocation23 + $0x68] sm:$0xff]
        %v3950 = vld [vmem:[#allocation23 + $0x70] sm:$0xff]
        %v3951 = vld [vmem:[#allocation23 + $0x78] sm:$0xff]
        %v3952 = vld [vmem:[#allocation23 + $0x80] sm:$0xff]
        %v3953 = vld [vmem:[#allocation23 + $0x88] sm:$0xff]
        %v3954 = vld [vmem:[#allocation23 + $0x90] sm:$0xff]
        %v3955 = vld [vmem:[#allocation23 + $0x98] sm:$0xff]
        %v3956 = vld [vmem:[#allocation7] sm:$0xfe]
        %v3957 = vld [vmem:[#allocation7 + $0x8] sm:$0xfe]
        %v3958 = vld [vmem:[#allocation7 + $0x10] sm:$0x1]
        %v3959 = vld [vmem:[#allocation7 + $0x18] sm:$0x1]
        %s3960 = scalar_lea.vmem [#allocation23], 160
        %v3961 = vld [vmem:[%s3960] sm:$0xff]
        %v3962 = vld [vmem:[%s3960 + $0x8] sm:$0xff]
        %v3963 = vld [vmem:[%s3960 + $0x10] sm:$0xff]
        %v3964 = vld [vmem:[%s3960 + $0x18] sm:$0xff]
        %v3965 = vld [vmem:[%s3960 + $0x20] sm:$0xff]
        %v3966 = vld [vmem:[%s3960 + $0x28] sm:$0xff]
        %v3967 = vld [vmem:[%s3960 + $0x30] sm:$0xff]
        %v3968 = vld [vmem:[%s3960 + $0x38] sm:$0xff]
        %v3969 = vld [vmem:[%s3960 + $0x40] sm:$0xff]
        %v3970 = vld [vmem:[%s3960 + $0x48] sm:$0xff]
        %v3971 = vld [vmem:[%s3960 + $0x50] sm:$0xff]
        %v3972 = vld [vmem:[%s3960 + $0x58] sm:$0xff]
        %v3973 = vld [vmem:[%s3960 + $0x60] sm:$0xff]
        %v3974 = vld [vmem:[%s3960 + $0x68] sm:$0xff]
        %v3975 = vld [vmem:[%s3960 + $0x70] sm:$0xff]
        %v3976 = vld [vmem:[%s3960 + $0x78] sm:$0xff]
        %v3977 = vld [vmem:[%s3960 + $0x80] sm:$0xff]
        %v3978 = vld [vmem:[%s3960 + $0x88] sm:$0xff]
        %v3979 = vld [vmem:[%s3960 + $0x90] sm:$0xff]
        %v3980 = vld [vmem:[%s3960 + $0x98] sm:$0xff]
        %v3985 = vrot.slane %v3956, 1
        %v3986 = vrot.slane %v3958, 1
        %v3987 = vsel %vm2216, %v3985, %v3986
        %v3988 = vrot.slane %v3957, 1
        %v3989 = vrot.slane %v3959, 1
        %v3990 = vsel %vm2216, %v3988, %v3989
        %v3992 = vsel %vm2610, %v3990, 0
        %3994 = vmatprep.subr.mxu0 0.0
        %3995 = vmatpush1.msra.mxu0 %v3961
        %3996 = vmatprep.subr.mxu0 0.0
        %3997 = vmatpush1.msra.mxu0 %v3962
        %3998 = vmatprep.subr.mxu0 0.0
        %3999 = vmatpush1.msra.mxu0 %v3963
        %4000 = vmatprep.subr.mxu0 0.0
        %4001 = vmatpush1.msra.mxu0 %v3964
        %4002 = vmatprep.subr.mxu0 0.0
        %4003 = vmatpush1.msra.mxu0 %v3965
        %4004 = vmatprep.subr.mxu0 0.0
        %4005 = vmatpush1.msra.mxu0 %v3966
        %4006 = vmatprep.subr.mxu0 0.0
        %4007 = vmatpush1.msra.mxu0 %v3967
        %4008 = vmatprep.subr.mxu0 0.0
        %4009 = vmatpush1.msra.mxu0 %v3968
        %4010 = vmatprep.subr.mxu0 0.0
        %4011 = vmatpush1.msra.mxu0 %v3969
        %4012 = vmatprep.subr.mxu0 0.0
        %4013 = vmatpush1.msra.mxu0 %v3970
        %4014 = vmatprep.subr.mxu0 0.0
        %4015 = vmatpush1.msra.mxu0 %v3971
        %4016 = vmatprep.subr.mxu0 0.0
        %4017 = vmatpush1.msra.mxu0 %v3972
        %4018 = vmatprep.subr.mxu0 0.0
        %4019 = vmatpush1.msra.mxu0 %v3973
        %4020 = vmatprep.subr.mxu0 0.0
        %4021 = vmatpush1.msra.mxu0 %v3974
        %4022 = vmatprep.subr.mxu0 0.0
        %4023 = vmatpush1.msra.mxu0 %v3975
        %4024 = vmatprep.subr.mxu0 0.0
        %4025 = vmatpush1.msra.mxu0 %v3976
        %4026 = vmatprep.subr.mxu0 0.0
        %4027 = vmatpush1.msra.mxu0 %v3977
        %4028 = vmatprep.subr.mxu0 0.0
        %4029 = vmatpush1.msra.mxu0 %v3978
        %4030 = vmatprep.subr.mxu0 0.0
        %4031 = vmatpush1.msra.mxu0 %v3979
        %4032 = vmatprep.subr.mxu0 0.0
        %4033 = vmatpush1.msra.mxu0 %v3980
        %4034 = vmatprep.subr.mxu0 0.0
        %4035 = vmatpush1.msra.mxu0 0.0
        %4036 = vmatprep.subr.mxu0 0.0
        %4037 = vmatpush1.msra.mxu0 0.0
        %4038 = vmatprep.subr.mxu0 0.0
        %4039 = vmatpush1.msra.mxu0 0.0
        %4040 = vmatprep.subr.mxu0 0.0
        %4041 = vmatpush1.msra.mxu0 0.0
        %4042 = vmatprep.subr.mxu0 0.0
        %4043 = vmatpush1.msra.mxu0 0.0
        %4044 = vmatprep.subr.mxu0 0.0
        %4045 = vmatpush1.msra.mxu0 0.0
        %4046 = vmatprep.subr.mxu0 0.0
        %4047 = vmatpush1.msra.mxu0 0.0
        %4048 = vmatprep.subr.mxu0 0.0
        %4049 = vmatpush1.msra.mxu0 0.0
        %4050 = vmatprep.subr.mxu0 0.0
        %4051 = vmatpush1.msra.mxu0 0.0
        %4052 = vmatprep.subr.mxu0 0.0
        %4053 = vmatpush1.msra.mxu0 0.0
        %4054 = vmatprep.subr.mxu0 0.0
        %4055 = vmatpush1.msra.mxu0 0.0
        %4056 = vmatprep.subr.mxu0 0.0
        %4057 = vmatpush1.msra.mxu0 0.0
        %4058 = vmatprep.mubr.f32.mxu0 %v3992
        %4059 = vmatmul.mubr.f32.gmra.mrb[0].mxu0 %v3987
        %v4060 = vpop.f32.mrb[0].mxu0
        %v4061 = vadd.f32 0.0, %v4060
        %v4062 = vpop.f32.mrb[0].mxu0
        %4063 = vdwg.mxu0
        %v4065 = vsel %vm2610, %v3935, 0
        %4067 = vmatprep.subr.mxu0 0.0
        %4068 = vmatpush1.msra.mxu0 %v3936
        %4069 = vmatprep.subr.mxu0 0.0
        %4070 = vmatpush1.msra.mxu0 %v3937
        %4071 = vmatprep.subr.mxu0 0.0
        %4072 = vmatpush1.msra.mxu0 %v3938
        %4073 = vmatprep.subr.mxu0 0.0
        %4074 = vmatpush1.msra.mxu0 %v3939
        %4075 = vmatprep.subr.mxu0 0.0
        %4076 = vmatpush1.msra.mxu0 %v3940
        %4077 = vmatprep.subr.mxu0 0.0
        %4078 = vmatpush1.msra.mxu0 %v3941
        %4079 = vmatprep.subr.mxu0 0.0
        %4080 = vmatpush1.msra.mxu0 %v3942
        %4081 = vmatprep.subr.mxu0 0.0
        %4082 = vmatpush1.msra.mxu0 %v3943
        %4083 = vmatprep.subr.mxu0 0.0
        %4084 = vmatpush1.msra.mxu0 %v3944
        %4085 = vmatprep.subr.mxu0 0.0
        %4086 = vmatpush1.msra.mxu0 %v3945
        %4087 = vmatprep.subr.mxu0 0.0
        %4088 = vmatpush1.msra.mxu0 %v3946
        %4089 = vmatprep.subr.mxu0 0.0
        %4090 = vmatpush1.msra.mxu0 %v3947
        %4091 = vmatprep.subr.mxu0 0.0
        %4092 = vmatpush1.msra.mxu0 %v3948
        %4093 = vmatprep.subr.mxu0 0.0
        %4094 = vmatpush1.msra.mxu0 %v3949
        %4095 = vmatprep.subr.mxu0 0.0
        %4096 = vmatpush1.msra.mxu0 %v3950
        %4097 = vmatprep.subr.mxu0 0.0
        %4098 = vmatpush1.msra.mxu0 %v3951
        %4099 = vmatprep.subr.mxu0 0.0
        %4100 = vmatpush1.msra.mxu0 %v3952
        %4101 = vmatprep.subr.mxu0 0.0
        %4102 = vmatpush1.msra.mxu0 %v3953
        %4103 = vmatprep.subr.mxu0 0.0
        %4104 = vmatpush1.msra.mxu0 %v3954
        %4105 = vmatprep.subr.mxu0 0.0
        %4106 = vmatpush1.msra.mxu0 %v3955
        %4107 = vmatprep.subr.mxu0 0.0
        %4108 = vmatpush1.msra.mxu0 0.0
        %4109 = vmatprep.subr.mxu0 0.0
        %4110 = vmatpush1.msra.mxu0 0.0
        %4111 = vmatprep.subr.mxu0 0.0
        %4112 = vmatpush1.msra.mxu0 0.0
        %4113 = vmatprep.subr.mxu0 0.0
        %4114 = vmatpush1.msra.mxu0 0.0
        %4115 = vmatprep.subr.mxu0 0.0
        %4116 = vmatpush1.msra.mxu0 0.0
        %4117 = vmatprep.subr.mxu0 0.0
        %4118 = vmatpush1.msra.mxu0 0.0
        %4119 = vmatprep.subr.mxu0 0.0
        %4120 = vmatpush1.msra.mxu0 0.0
        %4121 = vmatprep.subr.mxu0 0.0
        %4122 = vmatpush1.msra.mxu0 0.0
        %4123 = vmatprep.subr.mxu0 0.0
        %4124 = vmatpush1.msra.mxu0 0.0
        %4125 = vmatprep.subr.mxu0 0.0
        %4126 = vmatpush1.msra.mxu0 0.0
        %4127 = vmatprep.subr.mxu0 0.0
        %4128 = vmatpush1.msra.mxu0 0.0
        %4129 = vmatprep.subr.mxu0 0.0
        %4130 = vmatpush1.msra.mxu0 0.0
        %4131 = vmatprep.mubr.f32.mxu0 %v4065
        %4132 = vmatmul.mubr.f32.gmra.mrb[0].mxu0 %v3934
        %v4133 = vpop.f32.mrb[0].mxu0
        %v4134 = vadd.f32 %v4061, %v4133
        %v4135 = vpop.f32.mrb[0].mxu0
        %4136 = vdwg.mxu0
        %v4137 = vld [vmem:[#allocation7] sm:$0xfc]
        %v4138 = vld [vmem:[#allocation7 + $0x8] sm:$0xfc]
        %v4139 = vld [vmem:[#allocation7 + $0x10] sm:$0x3]
        %v4140 = vld [vmem:[#allocation7 + $0x18] sm:$0x3]
        %s4141 = scalar_lea.vmem [#allocation23], 320
        %v4142 = vld [vmem:[%s4141] sm:$0xff]
        %v4143 = vld [vmem:[%s4141 + $0x8] sm:$0xff]
        %v4144 = vld [vmem:[%s4141 + $0x10] sm:$0xff]
        %v4145 = vld [vmem:[%s4141 + $0x18] sm:$0xff]
        %v4146 = vld [vmem:[%s4141 + $0x20] sm:$0xff]
        %v4147 = vld [vmem:[%s4141 + $0x28] sm:$0xff]
        %v4148 = vld [vmem:[%s4141 + $0x30] sm:$0xff]
        %v4149 = vld [vmem:[%s4141 + $0x38] sm:$0xff]
        %v4150 = vld [vmem:[%s4141 + $0x40] sm:$0xff]
        %v4151 = vld [vmem:[%s4141 + $0x48] sm:$0xff]
        %v4152 = vld [vmem:[%s4141 + $0x50] sm:$0xff]
        %v4153 = vld [vmem:[%s4141 + $0x58] sm:$0xff]
        %v4154 = vld [vmem:[%s4141 + $0x60] sm:$0xff]
        %v4155 = vld [vmem:[%s4141 + $0x68] sm:$0xff]
        %v4156 = vld [vmem:[%s4141 + $0x70] sm:$0xff]
        %v4157 = vld [vmem:[%s4141 + $0x78] sm:$0xff]
        %v4158 = vld [vmem:[%s4141 + $0x80] sm:$0xff]
        %v4159 = vld [vmem:[%s4141 + $0x88] sm:$0xff]
        %v4160 = vld [vmem:[%s4141 + $0x90] sm:$0xff]
        %v4161 = vld [vmem:[%s4141 + $0x98] sm:$0xff]
        %v4166 = vrot.slane %v4137, 2
        %v4167 = vrot.slane %v4139, 2
        %v4168 = vsel %vm1793, %v4166, %v4167
        %v4169 = vrot.slane %v4138, 2
        %v4170 = vrot.slane %v4140, 2
        %v4171 = vsel %vm1793, %v4169, %v4170
        %v4173 = vsel %vm2610, %v4171, 0
        %4175 = vmatprep.subr.mxu0 0.0
        %4176 = vmatpush1.msra.mxu0 %v4142
        %4177 = vmatprep.subr.mxu0 0.0
        %4178 = vmatpush1.msra.mxu0 %v4143
        %4179 = vmatprep.subr.mxu0 0.0
        %4180 = vmatpush1.msra.mxu0 %v4144
        %4181 = vmatprep.subr.mxu0 0.0
        %4182 = vmatpush1.msra.mxu0 %v4145
        %4183 = vmatprep.subr.mxu0 0.0
        %4184 = vmatpush1.msra.mxu0 %v4146
        %4185 = vmatprep.subr.mxu0 0.0
        %4186 = vmatpush1.msra.mxu0 %v4147
        %4187 = vmatprep.subr.mxu0 0.0
        %4188 = vmatpush1.msra.mxu0 %v4148
        %4189 = vmatprep.subr.mxu0 0.0
        %4190 = vmatpush1.msra.mxu0 %v4149
        %4191 = vmatprep.subr.mxu0 0.0
        %4192 = vmatpush1.msra.mxu0 %v4150
        %4193 = vmatprep.subr.mxu0 0.0
        %4194 = vmatpush1.msra.mxu0 %v4151
        %4195 = vmatprep.subr.mxu0 0.0
        %4196 = vmatpush1.msra.mxu0 %v4152
        %4197 = vmatprep.subr.mxu0 0.0
        %4198 = vmatpush1.msra.mxu0 %v4153
        %4199 = vmatprep.subr.mxu0 0.0
        %4200 = vmatpush1.msra.mxu0 %v4154
        %4201 = vmatprep.subr.mxu0 0.0
        %4202 = vmatpush1.msra.mxu0 %v4155
        %4203 = vmatprep.subr.mxu0 0.0
        %4204 = vmatpush1.msra.mxu0 %v4156
        %4205 = vmatprep.subr.mxu0 0.0
        %4206 = vmatpush1.msra.mxu0 %v4157
        %4207 = vmatprep.subr.mxu0 0.0
        %4208 = vmatpush1.msra.mxu0 %v4158
        %4209 = vmatprep.subr.mxu0 0.0
        %4210 = vmatpush1.msra.mxu0 %v4159
        %4211 = vmatprep.subr.mxu0 0.0
        %4212 = vmatpush1.msra.mxu0 %v4160
        %4213 = vmatprep.subr.mxu0 0.0
        %4214 = vmatpush1.msra.mxu0 %v4161
        %4215 = vmatprep.subr.mxu0 0.0
        %4216 = vmatpush1.msra.mxu0 0.0
        %4217 = vmatprep.subr.mxu0 0.0
        %4218 = vmatpush1.msra.mxu0 0.0
        %4219 = vmatprep.subr.mxu0 0.0
        %4220 = vmatpush1.msra.mxu0 0.0
        %4221 = vmatprep.subr.mxu0 0.0
        %4222 = vmatpush1.msra.mxu0 0.0
        %4223 = vmatprep.subr.mxu0 0.0
        %4224 = vmatpush1.msra.mxu0 0.0
        %4225 = vmatprep.subr.mxu0 0.0
        %4226 = vmatpush1.msra.mxu0 0.0
        %4227 = vmatprep.subr.mxu0 0.0
        %4228 = vmatpush1.msra.mxu0 0.0
        %4229 = vmatprep.subr.mxu0 0.0
        %4230 = vmatpush1.msra.mxu0 0.0
        %4231 = vmatprep.subr.mxu0 0.0
        %4232 = vmatpush1.msra.mxu0 0.0
        %4233 = vmatprep.subr.mxu0 0.0
        %4234 = vmatpush1.msra.mxu0 0.0
        %4235 = vmatprep.subr.mxu0 0.0
        %4236 = vmatpush1.msra.mxu0 0.0
        %4237 = vmatprep.subr.mxu0 0.0
        %4238 = vmatpush1.msra.mxu0 0.0
        %4239 = vmatprep.mubr.f32.mxu0 %v4173
        %4240 = vmatmul.mubr.f32.gmra.mrb[0].mxu0 %v4168
        %v4241 = vpop.f32.mrb[0].mxu0
        %v4242 = vadd.f32 0.0, %v4241
        %v4243 = vpop.f32.mrb[0].mxu0
        %4244 = vdwg.mxu0
        %v4245 = vadd.f32 %v4134, %v4242
        %v4246 = vld [vmem:[%s25] sm:$0x1]
        %v4248 = vlaneseq
        %v4249 = vshrl.u32 %v4248, 7
        %v4250 = vsub.s32 0, %v4249
        %v4251 = vrot.slane %v4246, %v4250
        %v4253 = vadd.f32 %v4245, %v4251
        %v4254 = vmax.f32 %v4253, 0.0
        %4255 = vst [vmem:[%s1587] sm:$0xff] %v4254
        %v4256 = vld [vmem:[#allocation44] sm:$0xff]
        %v4257 = vld [vmem:[#allocation46] sm:$0xff]
        %v4258 = vld [vmem:[#allocation46 + $0x8] sm:$0xff]
        %v4259 = vld [vmem:[#allocation46 + $0x10] sm:$0xff]
        %v4260 = vld [vmem:[#allocation46 + $0x18] sm:$0xff]
        %v4261 = vld [vmem:[#allocation46 + $0x20] sm:$0xff]
        %v4262 = vld [vmem:[#allocation46 + $0x28] sm:$0xff]
        %v4263 = vld [vmem:[#allocation46 + $0x30] sm:$0xff]
        %v4264 = vld [vmem:[#allocation46 + $0x38] sm:$0xff]
        %v4265 = vld [vmem:[#allocation46 + $0x40] sm:$0xff]
        %v4266 = vld [vmem:[#allocation46 + $0x48] sm:$0xff]
        %v4267 = vld [vmem:[#allocation46 + $0x50] sm:$0xff]
        %v4268 = vld [vmem:[#allocation46 + $0x58] sm:$0xff]
        %v4269 = vld [vmem:[#allocation46 + $0x60] sm:$0xff]
        %v4270 = vld [vmem:[#allocation46 + $0x68] sm:$0xff]
        %v4271 = vld [vmem:[#allocation46 + $0x70] sm:$0xff]
        %v4272 = vld [vmem:[#allocation46 + $0x78] sm:$0xff]
        %v4274 = vsel %vm1651, %v4256, 0
        %4276 = vmatprep.subr.mxu0 0.0
        %4277 = vmatpush1.msra.mxu0 %v4254
        %4278 = vmatprep.subr.mxu0 0.0
        %4279 = vmatpush1.msra.mxu0 0.0
        %4280 = vmatprep.subr.mxu0 0.0
        %4281 = vmatpush1.msra.mxu0 0.0
        %4282 = vmatprep.subr.mxu0 0.0
        %4283 = vmatpush1.msra.mxu0 0.0
        %4284 = vmatprep.subr.mxu0 0.0
        %4285 = vmatpush1.msra.mxu0 0.0
        %4286 = vmatprep.subr.mxu0 0.0
        %4287 = vmatpush1.msra.mxu0 0.0
        %4288 = vmatprep.subr.mxu0 0.0
        %4289 = vmatpush1.msra.mxu0 0.0
        %4290 = vmatprep.subr.mxu0 0.0
        %4291 = vmatpush1.msra.mxu0 0.0
        %4292 = vmatprep.subr.mxu0 0.0
        %4293 = vmatpush1.msra.mxu0 0.0
        %4294 = vmatprep.subr.mxu0 0.0
        %4295 = vmatpush1.msra.mxu0 0.0
        %4296 = vmatprep.subr.mxu0 0.0
        %4297 = vmatpush1.msra.mxu0 0.0
        %4298 = vmatprep.subr.mxu0 0.0
        %4299 = vmatpush1.msra.mxu0 0.0
        %4300 = vmatprep.subr.mxu0 0.0
        %4301 = vmatpush1.msra.mxu0 0.0
        %4302 = vmatprep.subr.mxu0 0.0
        %4303 = vmatpush1.msra.mxu0 0.0
        %4304 = vmatprep.subr.mxu0 0.0
        %4305 = vmatpush1.msra.mxu0 0.0
        %4306 = vmatprep.subr.mxu0 0.0
        %4307 = vmatpush1.msra.mxu0 0.0
        %4308 = vmatprep.subr.mxu0 0.0
        %4309 = vmatpush1.msra.mxu0 0.0
        %4310 = vmatprep.subr.mxu0 0.0
        %4311 = vmatpush1.msra.mxu0 0.0
        %4312 = vmatprep.subr.mxu0 0.0
        %4313 = vmatpush1.msra.mxu0 0.0
        %4314 = vmatprep.subr.mxu0 0.0
        %4315 = vmatpush1.msra.mxu0 0.0
        %4316 = vmatprep.subr.mxu0 0.0
        %4317 = vmatpush1.msra.mxu0 0.0
        %4318 = vmatprep.subr.mxu0 0.0
        %4319 = vmatpush1.msra.mxu0 0.0
        %4320 = vmatprep.subr.mxu0 0.0
        %4321 = vmatpush1.msra.mxu0 0.0
        %4322 = vmatprep.subr.mxu0 0.0
        %4323 = vmatpush1.msra.mxu0 0.0
        %4324 = vmatprep.subr.mxu0 0.0
        %4325 = vmatpush1.msra.mxu0 0.0
        %4326 = vmatprep.subr.mxu0 0.0
        %4327 = vmatpush1.msra.mxu0 0.0
        %4328 = vmatprep.subr.mxu0 0.0
        %4329 = vmatpush1.msra.mxu0 0.0
        %4330 = vmatprep.subr.mxu0 0.0
        %4331 = vmatpush1.msra.mxu0 0.0
        %4332 = vmatprep.subr.mxu0 0.0
        %4333 = vmatpush1.msra.mxu0 0.0
        %4334 = vmatprep.subr.mxu0 0.0
        %4335 = vmatpush1.msra.mxu0 0.0
        %4336 = vmatprep.subr.mxu0 0.0
        %4337 = vmatpush1.msra.mxu0 0.0
        %4338 = vmatprep.subr.mxu0 0.0
        %4339 = vmatpush1.msra.mxu0 0.0
        %4340 = vmatprep.mubr.f32.mxu0 0.0
        %4341 = vmatmul.mubr.f32.gmra.mrb[0].mxu0 %v4274
        %v4342 = vpop.f32.mrb[0].mxu0
        %v4343 = vadd.f32 0.0, %v4342
        %v4344 = vpop.f32.mrb[0].mxu0
        %4345 = vdwg.mxu0
        %v4347 = vrot.slane %v4343, 4
        %v4349 = vmax.f32 %v4343, %v4347
        %4350 = vmatprep.subr.mxu0 0.0
        %4351 = vmatpush1.msra.mxu0 %v4257
        %4352 = vmatprep.subr.mxu0 0.0
        %4353 = vmatpush1.msra.mxu0 %v4258
        %4354 = vmatprep.subr.mxu0 0.0
        %4355 = vmatpush1.msra.mxu0 %v4259
        %4356 = vmatprep.subr.mxu0 0.0
        %4357 = vmatpush1.msra.mxu0 %v4260
        %4358 = vmatprep.subr.mxu0 0.0
        %4359 = vmatpush1.msra.mxu0 %v4261
        %4360 = vmatprep.subr.mxu0 0.0
        %4361 = vmatpush1.msra.mxu0 %v4262
        %4362 = vmatprep.subr.mxu0 0.0
        %4363 = vmatpush1.msra.mxu0 %v4263
        %4364 = vmatprep.subr.mxu0 0.0
        %4365 = vmatpush1.msra.mxu0 %v4264
        %4366 = vmatprep.subr.mxu0 0.0
        %4367 = vmatpush1.msra.mxu0 %v4265
        %4368 = vmatprep.subr.mxu0 0.0
        %4369 = vmatpush1.msra.mxu0 %v4266
        %4370 = vmatprep.subr.mxu0 0.0
        %4371 = vmatpush1.msra.mxu0 %v4267
        %4372 = vmatprep.subr.mxu0 0.0
        %4373 = vmatpush1.msra.mxu0 %v4268
        %4374 = vmatprep.subr.mxu0 0.0
        %4375 = vmatpush1.msra.mxu0 %v4269
        %4376 = vmatprep.subr.mxu0 0.0
        %4377 = vmatpush1.msra.mxu0 %v4270
        %4378 = vmatprep.subr.mxu0 0.0
        %4379 = vmatpush1.msra.mxu0 %v4271
        %4380 = vmatprep.subr.mxu0 0.0
        %4381 = vmatpush1.msra.mxu0 %v4272
        %4382 = vmatprep.subr.mxu0 0.0
        %4383 = vmatpush1.msra.mxu0 0.0
        %4384 = vmatprep.subr.mxu0 0.0
        %4385 = vmatpush1.msra.mxu0 0.0
        %4386 = vmatprep.subr.mxu0 0.0
        %4387 = vmatpush1.msra.mxu0 0.0
        %4388 = vmatprep.subr.mxu0 0.0
        %4389 = vmatpush1.msra.mxu0 0.0
        %4390 = vmatprep.subr.mxu0 0.0
        %4391 = vmatpush1.msra.mxu0 0.0
        %4392 = vmatprep.subr.mxu0 0.0
        %4393 = vmatpush1.msra.mxu0 0.0
        %4394 = vmatprep.subr.mxu0 0.0
        %4395 = vmatpush1.msra.mxu0 0.0
        %4396 = vmatprep.subr.mxu0 0.0
        %4397 = vmatpush1.msra.mxu0 0.0
        %4398 = vmatprep.subr.mxu0 0.0
        %4399 = vmatpush1.msra.mxu0 0.0
        %4400 = vmatprep.subr.mxu0 0.0
        %4401 = vmatpush1.msra.mxu0 0.0
        %4402 = vmatprep.subr.mxu0 0.0
        %4403 = vmatpush1.msra.mxu0 0.0
        %4404 = vmatprep.subr.mxu0 0.0
        %4405 = vmatpush1.msra.mxu0 0.0
        %4406 = vmatprep.subr.mxu0 0.0
        %4407 = vmatpush1.msra.mxu0 0.0
        %4408 = vmatprep.subr.mxu0 0.0
        %4409 = vmatpush1.msra.mxu0 0.0
        %4410 = vmatprep.subr.mxu0 0.0
        %4411 = vmatpush1.msra.mxu0 0.0
        %4412 = vmatprep.subr.mxu0 0.0
        %4413 = vmatpush1.msra.mxu0 0.0
        %4414 = vmatprep.mubr.f32.mxu0 0.0
        %4415 = vmatmul.mubr.f32.gmra.mrb[0].mxu0 %v4349
        %v4416 = vpop.f32.mrb[0].mxu0
        %v4417 = vadd.f32 0.0, %v4416
        %v4418 = vpop.f32.mrb[0].mxu0
        %4419 = vdwg.mxu0
        %4421 = vrot.lane.b32.xlu0 %v4417, 64
        %v4422 = vpop.permute.xlu0 %4421
        %v4424 = vmax.f32 %v4417, %v4422
        %4426 = vrot.lane.b32.xlu0 %v4424, 16
        %v4427 = vpop.permute.xlu0 %4426
        %vm4429 = vcmask 650368
        %4430 = vst.msk [vmem:[#allocation8 + $0x1] sm:$0xf] %vm4429, %v4427
        %v4431 = vld [vmem:[#allocation8] sm:$0xf]
        %v4432 = vld [vmem:[#allocation25] sm:$0xff]
        %v4433 = vld [vmem:[#allocation25 + $0x8] sm:$0xff]
        %v4434 = vld [vmem:[#allocation25 + $0x10] sm:$0xff]
        %v4435 = vld [vmem:[#allocation25 + $0x18] sm:$0xff]
        %v4436 = vld [vmem:[#allocation25 + $0x20] sm:$0xff]
        %v4437 = vld [vmem:[#allocation25 + $0x28] sm:$0xff]
        %v4438 = vld [vmem:[#allocation25 + $0x30] sm:$0xff]
        %v4439 = vld [vmem:[#allocation25 + $0x38] sm:$0xff]
        %v4440 = vld [vmem:[#allocation25 + $0x40] sm:$0xff]
        %v4441 = vld [vmem:[#allocation25 + $0x48] sm:$0xff]
        %v4442 = vld [vmem:[#allocation25 + $0x50] sm:$0xff]
        %v4443 = vld [vmem:[#allocation25 + $0x58] sm:$0xff]
        %v4444 = vld [vmem:[#allocation8 + $0x1] sm:$0xf]
        %s4445 = scalar_lea.vmem [#allocation25], 96
        %v4446 = vld [vmem:[%s4445] sm:$0xff]
        %v4447 = vld [vmem:[%s4445 + $0x8] sm:$0xff]
        %v4448 = vld [vmem:[%s4445 + $0x10] sm:$0xff]
        %v4449 = vld [vmem:[%s4445 + $0x18] sm:$0xff]
        %v4450 = vld [vmem:[%s4445 + $0x20] sm:$0xff]
        %v4451 = vld [vmem:[%s4445 + $0x28] sm:$0xff]
        %v4452 = vld [vmem:[%s4445 + $0x30] sm:$0xff]
        %v4453 = vld [vmem:[%s4445 + $0x38] sm:$0xff]
        %v4454 = vld [vmem:[%s4445 + $0x40] sm:$0xff]
        %v4455 = vld [vmem:[%s4445 + $0x48] sm:$0xff]
        %v4456 = vld [vmem:[%s4445 + $0x50] sm:$0xff]
        %v4457 = vld [vmem:[%s4445 + $0x58] sm:$0xff]
        %vm4458 = vcmask 785408
        %v4460 = vsel %vm4458, %v4444, 0
        %4462 = vmatprep.subr.mxu0 0.0
        %4463 = vmatpush1.msra.mxu0 %v4446
        %4464 = vmatprep.subr.mxu0 0.0
        %4465 = vmatpush1.msra.mxu0 %v4447
        %4466 = vmatprep.subr.mxu0 0.0
        %4467 = vmatpush1.msra.mxu0 %v4448
        %4468 = vmatprep.subr.mxu0 0.0
        %4469 = vmatpush1.msra.mxu0 %v4449
        %4470 = vmatprep.subr.mxu0 0.0
        %4471 = vmatpush1.msra.mxu0 %v4450
        %4472 = vmatprep.subr.mxu0 0.0
        %4473 = vmatpush1.msra.mxu0 %v4451
        %4474 = vmatprep.subr.mxu0 0.0
        %4475 = vmatpush1.msra.mxu0 %v4452
        %4476 = vmatprep.subr.mxu0 0.0
        %4477 = vmatpush1.msra.mxu0 %v4453
        %4478 = vmatprep.subr.mxu0 0.0
        %4479 = vmatpush1.msra.mxu0 %v4454
        %4480 = vmatprep.subr.mxu0 0.0
        %4481 = vmatpush1.msra.mxu0 %v4455
        %4482 = vmatprep.subr.mxu0 0.0
        %4483 = vmatpush1.msra.mxu0 %v4456
        %4484 = vmatprep.subr.mxu0 0.0
        %4485 = vmatpush1.msra.mxu0 %v4457
        %4486 = vmatprep.subr.mxu0 0.0
        %4487 = vmatpush1.msra.mxu0 0.0
        %4488 = vmatprep.subr.mxu0 0.0
        %4489 = vmatpush1.msra.mxu0 0.0
        %4490 = vmatprep.subr.mxu0 0.0
        %4491 = vmatpush1.msra.mxu0 0.0
        %4492 = vmatprep.subr.mxu0 0.0
        %4493 = vmatpush1.msra.mxu0 0.0
        %4494 = vmatprep.subr.mxu0 0.0
        %4495 = vmatpush1.msra.mxu0 0.0
        %4496 = vmatprep.subr.mxu0 0.0
        %4497 = vmatpush1.msra.mxu0 0.0
        %4498 = vmatprep.subr.mxu0 0.0
        %4499 = vmatpush1.msra.mxu0 0.0
        %4500 = vmatprep.subr.mxu0 0.0
        %4501 = vmatpush1.msra.mxu0 0.0
        %4502 = vmatprep.subr.mxu0 0.0
        %4503 = vmatpush1.msra.mxu0 0.0
        %4504 = vmatprep.subr.mxu0 0.0
        %4505 = vmatpush1.msra.mxu0 0.0
        %4506 = vmatprep.subr.mxu0 0.0
        %4507 = vmatpush1.msra.mxu0 0.0
        %4508 = vmatprep.subr.mxu0 0.0
        %4509 = vmatpush1.msra.mxu0 0.0
        %4510 = vmatprep.subr.mxu0 0.0
        %4511 = vmatpush1.msra.mxu0 0.0
        %4512 = vmatprep.subr.mxu0 0.0
        %4513 = vmatpush1.msra.mxu0 0.0
        %4514 = vmatprep.subr.mxu0 0.0
        %4515 = vmatpush1.msra.mxu0 0.0
        %4516 = vmatprep.subr.mxu0 0.0
        %4517 = vmatpush1.msra.mxu0 0.0
        %4518 = vmatprep.subr.mxu0 0.0
        %4519 = vmatpush1.msra.mxu0 0.0
        %4520 = vmatprep.subr.mxu0 0.0
        %4521 = vmatpush1.msra.mxu0 0.0
        %4522 = vmatprep.subr.mxu0 0.0
        %4523 = vmatpush1.msra.mxu0 0.0
        %4524 = vmatprep.subr.mxu0 0.0
        %4525 = vmatpush1.msra.mxu0 0.0
        %4526 = vmatprep.mubr.f32.mxu0 0.0
        %4527 = vmatmul.mubr.f32.gmra.mrb[0].mxu0 %v4460
        %v4528 = vpop.f32.mrb[0].mxu0
        %v4529 = vadd.f32 0.0, %v4528
        %v4530 = vpop.f32.mrb[0].mxu0
        %4531 = vdwg.mxu0
        %v4533 = vsel %vm4458, %v4431, 0
        %4535 = vmatprep.subr.mxu0 0.0
        %4536 = vmatpush1.msra.mxu0 %v4432
        %4537 = vmatprep.subr.mxu0 0.0
        %4538 = vmatpush1.msra.mxu0 %v4433
        %4539 = vmatprep.subr.mxu0 0.0
        %4540 = vmatpush1.msra.mxu0 %v4434
        %4541 = vmatprep.subr.mxu0 0.0
        %4542 = vmatpush1.msra.mxu0 %v4435
        %4543 = vmatprep.subr.mxu0 0.0
        %4544 = vmatpush1.msra.mxu0 %v4436
        %4545 = vmatprep.subr.mxu0 0.0
        %4546 = vmatpush1.msra.mxu0 %v4437
        %4547 = vmatprep.subr.mxu0 0.0
        %4548 = vmatpush1.msra.mxu0 %v4438
        %4549 = vmatprep.subr.mxu0 0.0
        %4550 = vmatpush1.msra.mxu0 %v4439
        %4551 = vmatprep.subr.mxu0 0.0
        %4552 = vmatpush1.msra.mxu0 %v4440
        %4553 = vmatprep.subr.mxu0 0.0
        %4554 = vmatpush1.msra.mxu0 %v4441
        %4555 = vmatprep.subr.mxu0 0.0
        %4556 = vmatpush1.msra.mxu0 %v4442
        %4557 = vmatprep.subr.mxu0 0.0
        %4558 = vmatpush1.msra.mxu0 %v4443
        %4559 = vmatprep.subr.mxu0 0.0
        %4560 = vmatpush1.msra.mxu0 0.0
        %4561 = vmatprep.subr.mxu0 0.0
        %4562 = vmatpush1.msra.mxu0 0.0
        %4563 = vmatprep.subr.mxu0 0.0
        %4564 = vmatpush1.msra.mxu0 0.0
        %4565 = vmatprep.subr.mxu0 0.0
        %4566 = vmatpush1.msra.mxu0 0.0
        %4567 = vmatprep.subr.mxu0 0.0
        %4568 = vmatpush1.msra.mxu0 0.0
        %4569 = vmatprep.subr.mxu0 0.0
        %4570 = vmatpush1.msra.mxu0 0.0
        %4571 = vmatprep.subr.mxu0 0.0
        %4572 = vmatpush1.msra.mxu0 0.0
        %4573 = vmatprep.subr.mxu0 0.0
        %4574 = vmatpush1.msra.mxu0 0.0
        %4575 = vmatprep.subr.mxu0 0.0
        %4576 = vmatpush1.msra.mxu0 0.0
        %4577 = vmatprep.subr.mxu0 0.0
        %4578 = vmatpush1.msra.mxu0 0.0
        %4579 = vmatprep.subr.mxu0 0.0
        %4580 = vmatpush1.msra.mxu0 0.0
        %4581 = vmatprep.subr.mxu0 0.0
        %4582 = vmatpush1.msra.mxu0 0.0
        %4583 = vmatprep.subr.mxu0 0.0
        %4584 = vmatpush1.msra.mxu0 0.0
        %4585 = vmatprep.subr.mxu0 0.0
        %4586 = vmatpush1.msra.mxu0 0.0
        %4587 = vmatprep.subr.mxu0 0.0
        %4588 = vmatpush1.msra.mxu0 0.0
        %4589 = vmatprep.subr.mxu0 0.0
        %4590 = vmatpush1.msra.mxu0 0.0
        %4591 = vmatprep.subr.mxu0 0.0
        %4592 = vmatpush1.msra.mxu0 0.0
        %4593 = vmatprep.subr.mxu0 0.0
        %4594 = vmatpush1.msra.mxu0 0.0
        %4595 = vmatprep.subr.mxu0 0.0
        %4596 = vmatpush1.msra.mxu0 0.0
        %4597 = vmatprep.subr.mxu0 0.0
        %4598 = vmatpush1.msra.mxu0 0.0
        %4599 = vmatprep.mubr.f32.mxu0 0.0
        %4600 = vmatmul.mubr.f32.gmra.mrb[0].mxu0 %v4533
        %v4601 = vpop.f32.mrb[0].mxu0
        %v4602 = vadd.f32 %v4529, %v4601
        %v4603 = vpop.f32.mrb[0].mxu0
        %4604 = vdwg.mxu0
        %v4605 = vld [vmem:[#allocation8 + $0x2] sm:$0xf]
        %s4606 = scalar_lea.vmem [#allocation25], 192
        %v4607 = vld [vmem:[%s4606] sm:$0xff]
        %v4608 = vld [vmem:[%s4606 + $0x8] sm:$0xff]
        %v4609 = vld [vmem:[%s4606 + $0x10] sm:$0xff]
        %v4610 = vld [vmem:[%s4606 + $0x18] sm:$0xff]
        %v4611 = vld [vmem:[%s4606 + $0x20] sm:$0xff]
        %v4612 = vld [vmem:[%s4606 + $0x28] sm:$0xff]
        %v4613 = vld [vmem:[%s4606 + $0x30] sm:$0xff]
        %v4614 = vld [vmem:[%s4606 + $0x38] sm:$0xff]
        %v4615 = vld [vmem:[%s4606 + $0x40] sm:$0xff]
        %v4616 = vld [vmem:[%s4606 + $0x48] sm:$0xff]
        %v4617 = vld [vmem:[%s4606 + $0x50] sm:$0xff]
        %v4618 = vld [vmem:[%s4606 + $0x58] sm:$0xff]
        %v4620 = vsel %vm4458, %v4605, 0
        %4622 = vmatprep.subr.mxu0 0.0
        %4623 = vmatpush1.msra.mxu0 %v4607
        %4624 = vmatprep.subr.mxu0 0.0
        %4625 = vmatpush1.msra.mxu0 %v4608
        %4626 = vmatprep.subr.mxu0 0.0
        %4627 = vmatpush1.msra.mxu0 %v4609
        %4628 = vmatprep.subr.mxu0 0.0
        %4629 = vmatpush1.msra.mxu0 %v4610
        %4630 = vmatprep.subr.mxu0 0.0
        %4631 = vmatpush1.msra.mxu0 %v4611
        %4632 = vmatprep.subr.mxu0 0.0
        %4633 = vmatpush1.msra.mxu0 %v4612
        %4634 = vmatprep.subr.mxu0 0.0
        %4635 = vmatpush1.msra.mxu0 %v4613
        %4636 = vmatprep.subr.mxu0 0.0
        %4637 = vmatpush1.msra.mxu0 %v4614
        %4638 = vmatprep.subr.mxu0 0.0
        %4639 = vmatpush1.msra.mxu0 %v4615
        %4640 = vmatprep.subr.mxu0 0.0
        %4641 = vmatpush1.msra.mxu0 %v4616
        %4642 = vmatprep.subr.mxu0 0.0
        %4643 = vmatpush1.msra.mxu0 %v4617
        %4644 = vmatprep.subr.mxu0 0.0
        %4645 = vmatpush1.msra.mxu0 %v4618
        %4646 = vmatprep.subr.mxu0 0.0
        %4647 = vmatpush1.msra.mxu0 0.0
        %4648 = vmatprep.subr.mxu0 0.0
        %4649 = vmatpush1.msra.mxu0 0.0
        %4650 = vmatprep.subr.mxu0 0.0
        %4651 = vmatpush1.msra.mxu0 0.0
        %4652 = vmatprep.subr.mxu0 0.0
        %4653 = vmatpush1.msra.mxu0 0.0
        %4654 = vmatprep.subr.mxu0 0.0
        %4655 = vmatpush1.msra.mxu0 0.0
        %4656 = vmatprep.subr.mxu0 0.0
        %4657 = vmatpush1.msra.mxu0 0.0
        %4658 = vmatprep.subr.mxu0 0.0
        %4659 = vmatpush1.msra.mxu0 0.0
        %4660 = vmatprep.subr.mxu0 0.0
        %4661 = vmatpush1.msra.mxu0 0.0
        %4662 = vmatprep.subr.mxu0 0.0
        %4663 = vmatpush1.msra.mxu0 0.0
        %4664 = vmatprep.subr.mxu0 0.0
        %4665 = vmatpush1.msra.mxu0 0.0
        %4666 = vmatprep.subr.mxu0 0.0
        %4667 = vmatpush1.msra.mxu0 0.0
        %4668 = vmatprep.subr.mxu0 0.0
        %4669 = vmatpush1.msra.mxu0 0.0
        %4670 = vmatprep.subr.mxu0 0.0
        %4671 = vmatpush1.msra.mxu0 0.0
        %4672 = vmatprep.subr.mxu0 0.0
        %4673 = vmatpush1.msra.mxu0 0.0
        %4674 = vmatprep.subr.mxu0 0.0
        %4675 = vmatpush1.msra.mxu0 0.0
        %4676 = vmatprep.subr.mxu0 0.0
        %4677 = vmatpush1.msra.mxu0 0.0
        %4678 = vmatprep.subr.mxu0 0.0
        %4679 = vmatpush1.msra.mxu0 0.0
        %4680 = vmatprep.subr.mxu0 0.0
        %4681 = vmatpush1.msra.mxu0 0.0
        %4682 = vmatprep.subr.mxu0 0.0
        %4683 = vmatpush1.msra.mxu0 0.0
        %4684 = vmatprep.subr.mxu0 0.0
        %4685 = vmatpush1.msra.mxu0 0.0
        %4686 = vmatprep.mubr.f32.mxu0 0.0
        %4687 = vmatmul.mubr.f32.gmra.mrb[0].mxu0 %v4620
        %v4688 = vpop.f32.mrb[0].mxu0
        %v4689 = vadd.f32 0.0, %v4688
        %v4690 = vpop.f32.mrb[0].mxu0
        %4691 = vdwg.mxu0
        %v4692 = vadd.f32 %v4602, %v4689
        %v4693 = vld [vmem:[#allocation26] sm:$0x1]
        %v4695 = vlaneseq
        %v4696 = vshrl.u32 %v4695, 7
        %v4697 = vsub.s32 0, %v4696
        %v4698 = vrot.slane %v4693, %v4697
        %v4700 = vadd.f32 %v4692, %v4698
        %v4701 = vmax.f32 %v4700, 0.0
        %v4703 = vrot.slane %v4701, 7
        %4704 = vrot.lane.b32.xlu0 %v4703, 32
        %v4705 = vpop.permute.xlu0 %4704
        %vm4707 = vcmask 1044737
        %4708 = vst.msk [vmem:[#allocation9] sm:$0x1e] %vm4707, %v4705
        %4709 = vst.msk [vmem:[#allocation9 + $0x8] sm:$0x1e] %vm1696, %v4705
        %v4710 = vld [vmem:[#allocation9] sm:$0xf]
        %v4711 = vld [vmem:[#allocation9 + $0x8] sm:$0xf]
        %v4712 = vld [vmem:[%s31] sm:$0xff]
        %v4713 = vld [vmem:[%s31 + $0x8] sm:$0xff]
        %v4714 = vld [vmem:[%s31 + $0x10] sm:$0xff]
        %v4715 = vld [vmem:[%s31 + $0x18] sm:$0xff]
        %v4716 = vld [vmem:[%s31 + $0x20] sm:$0xff]
        %v4717 = vld [vmem:[%s31 + $0x28] sm:$0xff]
        %v4718 = vld [vmem:[%s31 + $0x30] sm:$0xff]
        %v4719 = vld [vmem:[%s31 + $0x38] sm:$0xff]
        %v4720 = vld [vmem:[%s31 + $0x40] sm:$0xff]
        %v4721 = vld [vmem:[%s31 + $0x48] sm:$0xff]
        %v4722 = vld [vmem:[%s31 + $0x50] sm:$0xff]
        %v4723 = vld [vmem:[%s31 + $0x58] sm:$0xff]
        %v4724 = vld [vmem:[%s31 + $0x60] sm:$0xff]
        %v4725 = vld [vmem:[%s31 + $0x68] sm:$0xff]
        %v4726 = vld [vmem:[%s31 + $0x70] sm:$0xff]
        %v4727 = vld [vmem:[%s31 + $0x78] sm:$0xff]
        %v4728 = vld [vmem:[%s31 + $0x80] sm:$0xff]
        %v4729 = vld [vmem:[%s31 + $0x88] sm:$0xff]
        %v4730 = vld [vmem:[%s31 + $0x90] sm:$0xff]
        %v4731 = vld [vmem:[%s31 + $0x98] sm:$0xff]
        %v4732 = vld [vmem:[%s31 + $0xa0] sm:$0xff]
        %v4733 = vld [vmem:[%s31 + $0xa8] sm:$0xff]
        %v4734 = vld [vmem:[%s31 + $0xb0] sm:$0xff]
        %v4735 = vld [vmem:[%s31 + $0xb8] sm:$0xff]
        %v4736 = vld [vmem:[#allocation9] sm:$0x1e]
        %v4737 = vld [vmem:[#allocation9 + $0x8] sm:$0x1e]
        %s4738 = scalar_lea.vmem %s31, 192
        %v4739 = vld [vmem:[%s4738] sm:$0xff]
        %v4740 = vld [vmem:[%s4738 + $0x8] sm:$0xff]
        %v4741 = vld [vmem:[%s4738 + $0x10] sm:$0xff]
        %v4742 = vld [vmem:[%s4738 + $0x18] sm:$0xff]
        %v4743 = vld [vmem:[%s4738 + $0x20] sm:$0xff]
        %v4744 = vld [vmem:[%s4738 + $0x28] sm:$0xff]
        %v4745 = vld [vmem:[%s4738 + $0x30] sm:$0xff]
        %v4746 = vld [vmem:[%s4738 + $0x38] sm:$0xff]
        %v4747 = vld [vmem:[%s4738 + $0x40] sm:$0xff]
        %v4748 = vld [vmem:[%s4738 + $0x48] sm:$0xff]
        %v4749 = vld [vmem:[%s4738 + $0x50] sm:$0xff]
        %v4750 = vld [vmem:[%s4738 + $0x58] sm:$0xff]
        %v4751 = vld [vmem:[%s4738 + $0x60] sm:$0xff]
        %v4752 = vld [vmem:[%s4738 + $0x68] sm:$0xff]
        %v4753 = vld [vmem:[%s4738 + $0x70] sm:$0xff]
        %v4754 = vld [vmem:[%s4738 + $0x78] sm:$0xff]
        %v4755 = vld [vmem:[%s4738 + $0x80] sm:$0xff]
        %v4756 = vld [vmem:[%s4738 + $0x88] sm:$0xff]
        %v4757 = vld [vmem:[%s4738 + $0x90] sm:$0xff]
        %v4758 = vld [vmem:[%s4738 + $0x98] sm:$0xff]
        %v4759 = vld [vmem:[%s4738 + $0xa0] sm:$0xff]
        %v4760 = vld [vmem:[%s4738 + $0xa8] sm:$0xff]
        %v4761 = vld [vmem:[%s4738 + $0xb0] sm:$0xff]
        %v4762 = vld [vmem:[%s4738 + $0xb8] sm:$0xff]
        %v4765 = vrot.slane %v4736, 1
        %v4766 = vrot.slane %v4737, 1
        %vm4768 = vcmask 523264
        %v4769 = vsel %vm4768, %v4766, 0
        %4771 = vmatprep.subr.mxu0 0.0
        %4772 = vmatpush1.msra.mxu0 %v4739
        %4773 = vmatprep.subr.mxu0 0.0
        %4774 = vmatpush1.msra.mxu0 %v4740
        %4775 = vmatprep.subr.mxu0 0.0
        %4776 = vmatpush1.msra.mxu0 %v4741
        %4777 = vmatprep.subr.mxu0 0.0
        %4778 = vmatpush1.msra.mxu0 %v4742
        %4779 = vmatprep.subr.mxu0 0.0
        %4780 = vmatpush1.msra.mxu0 %v4743
        %4781 = vmatprep.subr.mxu0 0.0
        %4782 = vmatpush1.msra.mxu0 %v4744
        %4783 = vmatprep.subr.mxu0 0.0
        %4784 = vmatpush1.msra.mxu0 %v4745
        %4785 = vmatprep.subr.mxu0 0.0
        %4786 = vmatpush1.msra.mxu0 %v4746
        %4787 = vmatprep.subr.mxu0 0.0
        %4788 = vmatpush1.msra.mxu0 %v4747
        %4789 = vmatprep.subr.mxu0 0.0
        %4790 = vmatpush1.msra.mxu0 %v4748
        %4791 = vmatprep.subr.mxu0 0.0
        %4792 = vmatpush1.msra.mxu0 %v4749
        %4793 = vmatprep.subr.mxu0 0.0
        %4794 = vmatpush1.msra.mxu0 %v4750
        %4795 = vmatprep.subr.mxu0 0.0
        %4796 = vmatpush1.msra.mxu0 %v4751
        %4797 = vmatprep.subr.mxu0 0.0
        %4798 = vmatpush1.msra.mxu0 %v4752
        %4799 = vmatprep.subr.mxu0 0.0
        %4800 = vmatpush1.msra.mxu0 %v4753
        %4801 = vmatprep.subr.mxu0 0.0
        %4802 = vmatpush1.msra.mxu0 %v4754
        %4803 = vmatprep.subr.mxu0 0.0
        %4804 = vmatpush1.msra.mxu0 %v4755
        %4805 = vmatprep.subr.mxu0 0.0
        %4806 = vmatpush1.msra.mxu0 %v4756
        %4807 = vmatprep.subr.mxu0 0.0
        %4808 = vmatpush1.msra.mxu0 %v4757
        %4809 = vmatprep.subr.mxu0 0.0
        %4810 = vmatpush1.msra.mxu0 %v4758
        %4811 = vmatprep.subr.mxu0 0.0
        %4812 = vmatpush1.msra.mxu0 %v4759
        %4813 = vmatprep.subr.mxu0 0.0
        %4814 = vmatpush1.msra.mxu0 %v4760
        %4815 = vmatprep.subr.mxu0 0.0
        %4816 = vmatpush1.msra.mxu0 %v4761
        %4817 = vmatprep.subr.mxu0 0.0
        %4818 = vmatpush1.msra.mxu0 %v4762
        %4819 = vmatprep.subr.mxu0 0.0
        %4820 = vmatpush1.msra.mxu0 0.0
        %4821 = vmatprep.subr.mxu0 0.0
        %4822 = vmatpush1.msra.mxu0 0.0
        %4823 = vmatprep.subr.mxu0 0.0
        %4824 = vmatpush1.msra.mxu0 0.0
        %4825 = vmatprep.subr.mxu0 0.0
        %4826 = vmatpush1.msra.mxu0 0.0
        %4827 = vmatprep.subr.mxu0 0.0
        %4828 = vmatpush1.msra.mxu0 0.0
        %4829 = vmatprep.subr.mxu0 0.0
        %4830 = vmatpush1.msra.mxu0 0.0
        %4831 = vmatprep.subr.mxu0 0.0
        %4832 = vmatpush1.msra.mxu0 0.0
        %4833 = vmatprep.subr.mxu0 0.0
        %4834 = vmatpush1.msra.mxu0 0.0
        %4835 = vmatprep.mubr.f32.mxu0 %v4769
        %4836 = vmatmul.mubr.f32.gmra.mrb[0].mxu0 %v4765
        %v4837 = vpop.f32.mrb[0].mxu0
        %v4838 = vadd.f32 0.0, %v4837
        %v4839 = vpop.f32.mrb[0].mxu0
        %4840 = vdwg.mxu0
        %v4842 = vsel %vm4768, %v4711, 0
        %4844 = vmatprep.subr.mxu0 0.0
        %4845 = vmatpush1.msra.mxu0 %v4712
        %4846 = vmatprep.subr.mxu0 0.0
        %4847 = vmatpush1.msra.mxu0 %v4713
        %4848 = vmatprep.subr.mxu0 0.0
        %4849 = vmatpush1.msra.mxu0 %v4714
        %4850 = vmatprep.subr.mxu0 0.0
        %4851 = vmatpush1.msra.mxu0 %v4715
        %4852 = vmatprep.subr.mxu0 0.0
        %4853 = vmatpush1.msra.mxu0 %v4716
        %4854 = vmatprep.subr.mxu0 0.0
        %4855 = vmatpush1.msra.mxu0 %v4717
        %4856 = vmatprep.subr.mxu0 0.0
        %4857 = vmatpush1.msra.mxu0 %v4718
        %4858 = vmatprep.subr.mxu0 0.0
        %4859 = vmatpush1.msra.mxu0 %v4719
        %4860 = vmatprep.subr.mxu0 0.0
        %4861 = vmatpush1.msra.mxu0 %v4720
        %4862 = vmatprep.subr.mxu0 0.0
        %4863 = vmatpush1.msra.mxu0 %v4721
        %4864 = vmatprep.subr.mxu0 0.0
        %4865 = vmatpush1.msra.mxu0 %v4722
        %4866 = vmatprep.subr.mxu0 0.0
        %4867 = vmatpush1.msra.mxu0 %v4723
        %4868 = vmatprep.subr.mxu0 0.0
        %4869 = vmatpush1.msra.mxu0 %v4724
        %4870 = vmatprep.subr.mxu0 0.0
        %4871 = vmatpush1.msra.mxu0 %v4725
        %4872 = vmatprep.subr.mxu0 0.0
        %4873 = vmatpush1.msra.mxu0 %v4726
        %4874 = vmatprep.subr.mxu0 0.0
        %4875 = vmatpush1.msra.mxu0 %v4727
        %4876 = vmatprep.subr.mxu0 0.0
        %4877 = vmatpush1.msra.mxu0 %v4728
        %4878 = vmatprep.subr.mxu0 0.0
        %4879 = vmatpush1.msra.mxu0 %v4729
        %4880 = vmatprep.subr.mxu0 0.0
        %4881 = vmatpush1.msra.mxu0 %v4730
        %4882 = vmatprep.subr.mxu0 0.0
        %4883 = vmatpush1.msra.mxu0 %v4731
        %4884 = vmatprep.subr.mxu0 0.0
        %4885 = vmatpush1.msra.mxu0 %v4732
        %4886 = vmatprep.subr.mxu0 0.0
        %4887 = vmatpush1.msra.mxu0 %v4733
        %4888 = vmatprep.subr.mxu0 0.0
        %4889 = vmatpush1.msra.mxu0 %v4734
        %4890 = vmatprep.subr.mxu0 0.0
        %4891 = vmatpush1.msra.mxu0 %v4735
        %4892 = vmatprep.subr.mxu0 0.0
        %4893 = vmatpush1.msra.mxu0 0.0
        %4894 = vmatprep.subr.mxu0 0.0
        %4895 = vmatpush1.msra.mxu0 0.0
        %4896 = vmatprep.subr.mxu0 0.0
        %4897 = vmatpush1.msra.mxu0 0.0
        %4898 = vmatprep.subr.mxu0 0.0
        %4899 = vmatpush1.msra.mxu0 0.0
        %4900 = vmatprep.subr.mxu0 0.0
        %4901 = vmatpush1.msra.mxu0 0.0
        %4902 = vmatprep.subr.mxu0 0.0
        %4903 = vmatpush1.msra.mxu0 0.0
        %4904 = vmatprep.subr.mxu0 0.0
        %4905 = vmatpush1.msra.mxu0 0.0
        %4906 = vmatprep.subr.mxu0 0.0
        %4907 = vmatpush1.msra.mxu0 0.0
        %4908 = vmatprep.mubr.f32.mxu0 %v4842
        %4909 = vmatmul.mubr.f32.gmra.mrb[0].mxu0 %v4710
        %v4910 = vpop.f32.mrb[0].mxu0
        %v4911 = vadd.f32 %v4838, %v4910
        %v4912 = vpop.f32.mrb[0].mxu0
        %4913 = vdwg.mxu0
        %v4914 = vld [vmem:[#allocation9] sm:$0x3c]
        %v4915 = vld [vmem:[#allocation9 + $0x8] sm:$0x3c]
        %s4916 = scalar_lea.vmem %s31, 384
        %v4917 = vld [vmem:[%s4916] sm:$0xff]
        %v4918 = vld [vmem:[%s4916 + $0x8] sm:$0xff]
        %v4919 = vld [vmem:[%s4916 + $0x10] sm:$0xff]
        %v4920 = vld [vmem:[%s4916 + $0x18] sm:$0xff]
        %v4921 = vld [vmem:[%s4916 + $0x20] sm:$0xff]
        %v4922 = vld [vmem:[%s4916 + $0x28] sm:$0xff]
        %v4923 = vld [vmem:[%s4916 + $0x30] sm:$0xff]
        %v4924 = vld [vmem:[%s4916 + $0x38] sm:$0xff]
        %v4925 = vld [vmem:[%s4916 + $0x40] sm:$0xff]
        %v4926 = vld [vmem:[%s4916 + $0x48] sm:$0xff]
        %v4927 = vld [vmem:[%s4916 + $0x50] sm:$0xff]
        %v4928 = vld [vmem:[%s4916 + $0x58] sm:$0xff]
        %v4929 = vld [vmem:[%s4916 + $0x60] sm:$0xff]
        %v4930 = vld [vmem:[%s4916 + $0x68] sm:$0xff]
        %v4931 = vld [vmem:[%s4916 + $0x70] sm:$0xff]
        %v4932 = vld [vmem:[%s4916 + $0x78] sm:$0xff]
        %v4933 = vld [vmem:[%s4916 + $0x80] sm:$0xff]
        %v4934 = vld [vmem:[%s4916 + $0x88] sm:$0xff]
        %v4935 = vld [vmem:[%s4916 + $0x90] sm:$0xff]
        %v4936 = vld [vmem:[%s4916 + $0x98] sm:$0xff]
        %v4937 = vld [vmem:[%s4916 + $0xa0] sm:$0xff]
        %v4938 = vld [vmem:[%s4916 + $0xa8] sm:$0xff]
        %v4939 = vld [vmem:[%s4916 + $0xb0] sm:$0xff]
        %v4940 = vld [vmem:[%s4916 + $0xb8] sm:$0xff]
        %v4943 = vrot.slane %v4914, 2
        %v4944 = vrot.slane %v4915, 2
        %v4946 = vsel %vm4768, %v4944, 0
        %4948 = vmatprep.subr.mxu0 0.0
        %4949 = vmatpush1.msra.mxu0 %v4917
        %4950 = vmatprep.subr.mxu0 0.0
        %4951 = vmatpush1.msra.mxu0 %v4918
        %4952 = vmatprep.subr.mxu0 0.0
        %4953 = vmatpush1.msra.mxu0 %v4919
        %4954 = vmatprep.subr.mxu0 0.0
        %4955 = vmatpush1.msra.mxu0 %v4920
        %4956 = vmatprep.subr.mxu0 0.0
        %4957 = vmatpush1.msra.mxu0 %v4921
        %4958 = vmatprep.subr.mxu0 0.0
        %4959 = vmatpush1.msra.mxu0 %v4922
        %4960 = vmatprep.subr.mxu0 0.0
        %4961 = vmatpush1.msra.mxu0 %v4923
        %4962 = vmatprep.subr.mxu0 0.0
        %4963 = vmatpush1.msra.mxu0 %v4924
        %4964 = vmatprep.subr.mxu0 0.0
        %4965 = vmatpush1.msra.mxu0 %v4925
        %4966 = vmatprep.subr.mxu0 0.0
        %4967 = vmatpush1.msra.mxu0 %v4926
        %4968 = vmatprep.subr.mxu0 0.0
        %4969 = vmatpush1.msra.mxu0 %v4927
        %4970 = vmatprep.subr.mxu0 0.0
        %4971 = vmatpush1.msra.mxu0 %v4928
        %4972 = vmatprep.subr.mxu0 0.0
        %4973 = vmatpush1.msra.mxu0 %v4929
        %4974 = vmatprep.subr.mxu0 0.0
        %4975 = vmatpush1.msra.mxu0 %v4930
        %4976 = vmatprep.subr.mxu0 0.0
        %4977 = vmatpush1.msra.mxu0 %v4931
        %4978 = vmatprep.subr.mxu0 0.0
        %4979 = vmatpush1.msra.mxu0 %v4932
        %4980 = vmatprep.subr.mxu0 0.0
        %4981 = vmatpush1.msra.mxu0 %v4933
        %4982 = vmatprep.subr.mxu0 0.0
        %4983 = vmatpush1.msra.mxu0 %v4934
        %4984 = vmatprep.subr.mxu0 0.0
        %4985 = vmatpush1.msra.mxu0 %v4935
        %4986 = vmatprep.subr.mxu0 0.0
        %4987 = vmatpush1.msra.mxu0 %v4936
        %4988 = vmatprep.subr.mxu0 0.0
        %4989 = vmatpush1.msra.mxu0 %v4937
        %4990 = vmatprep.subr.mxu0 0.0
        %4991 = vmatpush1.msra.mxu0 %v4938
        %4992 = vmatprep.subr.mxu0 0.0
        %4993 = vmatpush1.msra.mxu0 %v4939
        %4994 = vmatprep.subr.mxu0 0.0
        %4995 = vmatpush1.msra.mxu0 %v4940
        %4996 = vmatprep.subr.mxu0 0.0
        %4997 = vmatpush1.msra.mxu0 0.0
        %4998 = vmatprep.subr.mxu0 0.0
        %4999 = vmatpush1.msra.mxu0 0.0
        %5000 = vmatprep.subr.mxu0 0.0
        %5001 = vmatpush1.msra.mxu0 0.0
        %5002 = vmatprep.subr.mxu0 0.0
        %5003 = vmatpush1.msra.mxu0 0.0
        %5004 = vmatprep.subr.mxu0 0.0
        %5005 = vmatpush1.msra.mxu0 0.0
        %5006 = vmatprep.subr.mxu0 0.0
        %5007 = vmatpush1.msra.mxu0 0.0
        %5008 = vmatprep.subr.mxu0 0.0
        %5009 = vmatpush1.msra.mxu0 0.0
        %5010 = vmatprep.subr.mxu0 0.0
        %5011 = vmatpush1.msra.mxu0 0.0
        %5012 = vmatprep.mubr.f32.mxu0 %v4946
        %5013 = vmatmul.mubr.f32.gmra.mrb[0].mxu0 %v4943
        %v5014 = vpop.f32.mrb[0].mxu0
        %v5015 = vadd.f32 0.0, %v5014
        %v5016 = vpop.f32.mrb[0].mxu0
        %5017 = vdwg.mxu0
        %v5018 = vadd.f32 %v4911, %v5015
        %v5019 = vld [vmem:[#allocation28] sm:$0x1]
        %v5021 = vlaneseq
        %v5022 = vshrl.u32 %v5021, 7
        %v5023 = vsub.s32 0, %v5022
        %v5024 = vrot.slane %v5019, %v5023
        %v5026 = vadd.f32 %v5018, %v5024
        %v5027 = vmax.f32 %v5026, 0.0
        %5028 = vst [vmem:[%s1591] sm:$0xf] %v5027
        %v5029 = vld [vmem:[#allocation47] sm:$0xf]
        %v5030 = vld [vmem:[#allocation49] sm:$0xff]
        %v5031 = vld [vmem:[#allocation49 + $0x8] sm:$0xff]
        %v5032 = vld [vmem:[#allocation49 + $0x10] sm:$0xff]
        %v5033 = vld [vmem:[#allocation49 + $0x18] sm:$0xff]
        %v5034 = vld [vmem:[#allocation49 + $0x20] sm:$0xff]
        %v5035 = vld [vmem:[#allocation49 + $0x28] sm:$0xff]
        %v5036 = vld [vmem:[#allocation49 + $0x30] sm:$0xff]
        %v5037 = vld [vmem:[#allocation49 + $0x38] sm:$0xff]
        %v5038 = vld [vmem:[#allocation49 + $0x40] sm:$0xff]
        %v5039 = vld [vmem:[#allocation49 + $0x48] sm:$0xff]
        %v5040 = vld [vmem:[#allocation49 + $0x50] sm:$0xff]
        %v5041 = vld [vmem:[#allocation49 + $0x58] sm:$0xff]
        %v5042 = vld [vmem:[#allocation49 + $0x60] sm:$0xff]
        %v5043 = vld [vmem:[#allocation49 + $0x68] sm:$0xff]
        %v5044 = vld [vmem:[#allocation49 + $0x70] sm:$0xff]
        %v5045 = vld [vmem:[#allocation49 + $0x78] sm:$0xff]
        %v5047 = vsel %vm1620, %v5029, 0
        %vm5049 = vcmask 1043456
        %v5051 = vsel %vm5049, %v5027, 0
        %5053 = vmatprep.subr.mxu0 0.0
        %5054 = vmatpush1.msra.mxu0 %v5051
        %5055 = vmatprep.subr.mxu0 0.0
        %5056 = vmatpush1.msra.mxu0 0.0
        %5057 = vmatprep.subr.mxu0 0.0
        %5058 = vmatpush1.msra.mxu0 0.0
        %5059 = vmatprep.subr.mxu0 0.0
        %5060 = vmatpush1.msra.mxu0 0.0
        %5061 = vmatprep.subr.mxu0 0.0
        %5062 = vmatpush1.msra.mxu0 0.0
        %5063 = vmatprep.subr.mxu0 0.0
        %5064 = vmatpush1.msra.mxu0 0.0
        %5065 = vmatprep.subr.mxu0 0.0
        %5066 = vmatpush1.msra.mxu0 0.0
        %5067 = vmatprep.subr.mxu0 0.0
        %5068 = vmatpush1.msra.mxu0 0.0
        %5069 = vmatprep.subr.mxu0 0.0
        %5070 = vmatpush1.msra.mxu0 0.0
        %5071 = vmatprep.subr.mxu0 0.0
        %5072 = vmatpush1.msra.mxu0 0.0
        %5073 = vmatprep.subr.mxu0 0.0
        %5074 = vmatpush1.msra.mxu0 0.0
        %5075 = vmatprep.subr.mxu0 0.0
        %5076 = vmatpush1.msra.mxu0 0.0
        %5077 = vmatprep.subr.mxu0 0.0
        %5078 = vmatpush1.msra.mxu0 0.0
        %5079 = vmatprep.subr.mxu0 0.0
        %5080 = vmatpush1.msra.mxu0 0.0
        %5081 = vmatprep.subr.mxu0 0.0
        %5082 = vmatpush1.msra.mxu0 0.0
        %5083 = vmatprep.subr.mxu0 0.0
        %5084 = vmatpush1.msra.mxu0 0.0
        %5085 = vmatprep.subr.mxu0 0.0
        %5086 = vmatpush1.msra.mxu0 0.0
        %5087 = vmatprep.subr.mxu0 0.0
        %5088 = vmatpush1.msra.mxu0 0.0
        %5089 = vmatprep.subr.mxu0 0.0
        %5090 = vmatpush1.msra.mxu0 0.0
        %5091 = vmatprep.subr.mxu0 0.0
        %5092 = vmatpush1.msra.mxu0 0.0
        %5093 = vmatprep.subr.mxu0 0.0
        %5094 = vmatpush1.msra.mxu0 0.0
        %5095 = vmatprep.subr.mxu0 0.0
        %5096 = vmatpush1.msra.mxu0 0.0
        %5097 = vmatprep.subr.mxu0 0.0
        %5098 = vmatpush1.msra.mxu0 0.0
        %5099 = vmatprep.subr.mxu0 0.0
        %5100 = vmatpush1.msra.mxu0 0.0
        %5101 = vmatprep.subr.mxu0 0.0
        %5102 = vmatpush1.msra.mxu0 0.0
        %5103 = vmatprep.subr.mxu0 0.0
        %5104 = vmatpush1.msra.mxu0 0.0
        %5105 = vmatprep.subr.mxu0 0.0
        %5106 = vmatpush1.msra.mxu0 0.0
        %5107 = vmatprep.subr.mxu0 0.0
        %5108 = vmatpush1.msra.mxu0 0.0
        %5109 = vmatprep.subr.mxu0 0.0
        %5110 = vmatpush1.msra.mxu0 0.0
        %5111 = vmatprep.subr.mxu0 0.0
        %5112 = vmatpush1.msra.mxu0 0.0
        %5113 = vmatprep.subr.mxu0 0.0
        %5114 = vmatpush1.msra.mxu0 0.0
        %5115 = vmatprep.subr.mxu0 0.0
        %5116 = vmatpush1.msra.mxu0 0.0
        %5117 = vmatprep.mubr.f32.mxu0 0.0
        %5118 = vmatmul.mubr.f32.gmra.mrb[0].mxu0 %v5047
        %v5119 = vpop.f32.mrb[0].mxu0
        %v5120 = vadd.f32 0.0, %v5119
        %v5121 = vpop.f32.mrb[0].mxu0
        %5122 = vdwg.mxu0
        %v5124 = vrot.slane %v5120, 2
        %v5126 = vmax.f32 %v5120, %v5124
        %5127 = vmatprep.subr.mxu0 0.0
        %5128 = vmatpush1.msra.mxu0 %v5030
        %5129 = vmatprep.subr.mxu0 0.0
        %5130 = vmatpush1.msra.mxu0 %v5031
        %5131 = vmatprep.subr.mxu0 0.0
        %5132 = vmatpush1.msra.mxu0 %v5032
        %5133 = vmatprep.subr.mxu0 0.0
        %5134 = vmatpush1.msra.mxu0 %v5033
        %5135 = vmatprep.subr.mxu0 0.0
        %5136 = vmatpush1.msra.mxu0 %v5034
        %5137 = vmatprep.subr.mxu0 0.0
        %5138 = vmatpush1.msra.mxu0 %v5035
        %5139 = vmatprep.subr.mxu0 0.0
        %5140 = vmatpush1.msra.mxu0 %v5036
        %5141 = vmatprep.subr.mxu0 0.0
        %5142 = vmatpush1.msra.mxu0 %v5037
        %5143 = vmatprep.subr.mxu0 0.0
        %5144 = vmatpush1.msra.mxu0 %v5038
        %5145 = vmatprep.subr.mxu0 0.0
        %5146 = vmatpush1.msra.mxu0 %v5039
        %5147 = vmatprep.subr.mxu0 0.0
        %5148 = vmatpush1.msra.mxu0 %v5040
        %5149 = vmatprep.subr.mxu0 0.0
        %5150 = vmatpush1.msra.mxu0 %v5041
        %5151 = vmatprep.subr.mxu0 0.0
        %5152 = vmatpush1.msra.mxu0 %v5042
        %5153 = vmatprep.subr.mxu0 0.0
        %5154 = vmatpush1.msra.mxu0 %v5043
        %5155 = vmatprep.subr.mxu0 0.0
        %5156 = vmatpush1.msra.mxu0 %v5044
        %5157 = vmatprep.subr.mxu0 0.0
        %5158 = vmatpush1.msra.mxu0 %v5045
        %5159 = vmatprep.subr.mxu0 0.0
        %5160 = vmatpush1.msra.mxu0 0.0
        %5161 = vmatprep.subr.mxu0 0.0
        %5162 = vmatpush1.msra.mxu0 0.0
        %5163 = vmatprep.subr.mxu0 0.0
        %5164 = vmatpush1.msra.mxu0 0.0
        %5165 = vmatprep.subr.mxu0 0.0
        %5166 = vmatpush1.msra.mxu0 0.0
        %5167 = vmatprep.subr.mxu0 0.0
        %5168 = vmatpush1.msra.mxu0 0.0
        %5169 = vmatprep.subr.mxu0 0.0
        %5170 = vmatpush1.msra.mxu0 0.0
        %5171 = vmatprep.subr.mxu0 0.0
        %5172 = vmatpush1.msra.mxu0 0.0
        %5173 = vmatprep.subr.mxu0 0.0
        %5174 = vmatpush1.msra.mxu0 0.0
        %5175 = vmatprep.subr.mxu0 0.0
        %5176 = vmatpush1.msra.mxu0 0.0
        %5177 = vmatprep.subr.mxu0 0.0
        %5178 = vmatpush1.msra.mxu0 0.0
        %5179 = vmatprep.subr.mxu0 0.0
        %5180 = vmatpush1.msra.mxu0 0.0
        %5181 = vmatprep.subr.mxu0 0.0
        %5182 = vmatpush1.msra.mxu0 0.0
        %5183 = vmatprep.subr.mxu0 0.0
        %5184 = vmatpush1.msra.mxu0 0.0
        %5185 = vmatprep.subr.mxu0 0.0
        %5186 = vmatpush1.msra.mxu0 0.0
        %5187 = vmatprep.subr.mxu0 0.0
        %5188 = vmatpush1.msra.mxu0 0.0
        %5189 = vmatprep.subr.mxu0 0.0
        %5190 = vmatpush1.msra.mxu0 0.0
        %5191 = vmatprep.mubr.f32.mxu0 0.0
        %5192 = vmatmul.mubr.f32.gmra.mrb[0].mxu0 %v5126
        %v5193 = vpop.f32.mrb[0].mxu0
        %v5194 = vadd.f32 0.0, %v5193
        %v5195 = vpop.f32.mrb[0].mxu0
        %5196 = vdwg.mxu0
        %5198 = vrot.lane.b32.xlu0 %v5194, 64
        %v5199 = vpop.permute.xlu0 %5198
        %v5201 = vmax.f32 %v5194, %v5199
        %5203 = vrot.lane.b32.xlu0 %v5201, 32
        %v5204 = vpop.permute.xlu0 %5203
        %vm5206 = vcmask 779520
        %5207 = vst.msk [vmem:[#allocation10 + $0x1] sm:$0x3] %vm5206, %v5204
        %v5208 = vld [vmem:[#allocation10] sm:$0x3]
        %v5209 = vld [vmem:[#allocation29] sm:$0xff]
        %v5210 = vld [vmem:[#allocation29 + $0x8] sm:$0xff]
        %v5211 = vld [vmem:[#allocation29 + $0x10] sm:$0xff]
        %v5212 = vld [vmem:[#allocation29 + $0x18] sm:$0xff]
        %v5213 = vld [vmem:[#allocation29 + $0x20] sm:$0xff]
        %v5214 = vld [vmem:[#allocation29 + $0x28] sm:$0xff]
        %v5215 = vld [vmem:[#allocation29 + $0x30] sm:$0xff]
        %v5216 = vld [vmem:[#allocation29 + $0x38] sm:$0xff]
        %v5217 = vld [vmem:[#allocation29 + $0x40] sm:$0xff]
        %v5218 = vld [vmem:[#allocation29 + $0x48] sm:$0xff]
        %v5219 = vld [vmem:[#allocation29 + $0x50] sm:$0xff]
        %v5220 = vld [vmem:[#allocation29 + $0x58] sm:$0xff]
        %v5221 = vld [vmem:[#allocation29 + $0x60] sm:$0xff]
        %v5222 = vld [vmem:[#allocation29 + $0x68] sm:$0xff]
        %v5223 = vld [vmem:[#allocation29 + $0x70] sm:$0xff]
        %v5224 = vld [vmem:[#allocation29 + $0x78] sm:$0xff]
        %v5225 = vld [vmem:[#allocation10 + $0x1] sm:$0x3]
        %s5226 = scalar_lea.vmem [#allocation29], 128
        %v5227 = vld [vmem:[%s5226] sm:$0xff]
        %v5228 = vld [vmem:[%s5226 + $0x8] sm:$0xff]
        %v5229 = vld [vmem:[%s5226 + $0x10] sm:$0xff]
        %v5230 = vld [vmem:[%s5226 + $0x18] sm:$0xff]
        %v5231 = vld [vmem:[%s5226 + $0x20] sm:$0xff]
        %v5232 = vld [vmem:[%s5226 + $0x28] sm:$0xff]
        %v5233 = vld [vmem:[%s5226 + $0x30] sm:$0xff]
        %v5234 = vld [vmem:[%s5226 + $0x38] sm:$0xff]
        %v5235 = vld [vmem:[%s5226 + $0x40] sm:$0xff]
        %v5236 = vld [vmem:[%s5226 + $0x48] sm:$0xff]
        %v5237 = vld [vmem:[%s5226 + $0x50] sm:$0xff]
        %v5238 = vld [vmem:[%s5226 + $0x58] sm:$0xff]
        %v5239 = vld [vmem:[%s5226 + $0x60] sm:$0xff]
        %v5240 = vld [vmem:[%s5226 + $0x68] sm:$0xff]
        %v5241 = vld [vmem:[%s5226 + $0x70] sm:$0xff]
        %v5242 = vld [vmem:[%s5226 + $0x78] sm:$0xff]
        %5243 = vmatprep.subr.mxu0 0.0
        %5244 = vmatpush1.msra.mxu0 %v5227
        %5245 = vmatprep.subr.mxu0 0.0
        %5246 = vmatpush1.msra.mxu0 %v5228
        %5247 = vmatprep.subr.mxu0 0.0
        %5248 = vmatpush1.msra.mxu0 %v5229
        %5249 = vmatprep.subr.mxu0 0.0
        %5250 = vmatpush1.msra.mxu0 %v5230
        %5251 = vmatprep.subr.mxu0 0.0
        %5252 = vmatpush1.msra.mxu0 %v5231
        %5253 = vmatprep.subr.mxu0 0.0
        %5254 = vmatpush1.msra.mxu0 %v5232
        %5255 = vmatprep.subr.mxu0 0.0
        %5256 = vmatpush1.msra.mxu0 %v5233
        %5257 = vmatprep.subr.mxu0 0.0
        %5258 = vmatpush1.msra.mxu0 %v5234
        %5259 = vmatprep.subr.mxu0 0.0
        %5260 = vmatpush1.msra.mxu0 %v5235
        %5261 = vmatprep.subr.mxu0 0.0
        %5262 = vmatpush1.msra.mxu0 %v5236
        %5263 = vmatprep.subr.mxu0 0.0
        %5264 = vmatpush1.msra.mxu0 %v5237
        %5265 = vmatprep.subr.mxu0 0.0
        %5266 = vmatpush1.msra.mxu0 %v5238
        %5267 = vmatprep.subr.mxu0 0.0
        %5268 = vmatpush1.msra.mxu0 %v5239
        %5269 = vmatprep.subr.mxu0 0.0
        %5270 = vmatpush1.msra.mxu0 %v5240
        %5271 = vmatprep.subr.mxu0 0.0
        %5272 = vmatpush1.msra.mxu0 %v5241
        %5273 = vmatprep.subr.mxu0 0.0
        %5274 = vmatpush1.msra.mxu0 %v5242
        %5275 = vmatprep.subr.mxu0 0.0
        %5276 = vmatpush1.msra.mxu0 0.0
        %5277 = vmatprep.subr.mxu0 0.0
        %5278 = vmatpush1.msra.mxu0 0.0
        %5279 = vmatprep.subr.mxu0 0.0
        %5280 = vmatpush1.msra.mxu0 0.0
        %5281 = vmatprep.subr.mxu0 0.0
        %5282 = vmatpush1.msra.mxu0 0.0
        %5283 = vmatprep.subr.mxu0 0.0
        %5284 = vmatpush1.msra.mxu0 0.0
        %5285 = vmatprep.subr.mxu0 0.0
        %5286 = vmatpush1.msra.mxu0 0.0
        %5287 = vmatprep.subr.mxu0 0.0
        %5288 = vmatpush1.msra.mxu0 0.0
        %5289 = vmatprep.subr.mxu0 0.0
        %5290 = vmatpush1.msra.mxu0 0.0
        %5291 = vmatprep.subr.mxu0 0.0
        %5292 = vmatpush1.msra.mxu0 0.0
        %5293 = vmatprep.subr.mxu0 0.0
        %5294 = vmatpush1.msra.mxu0 0.0
        %5295 = vmatprep.subr.mxu0 0.0
        %5296 = vmatpush1.msra.mxu0 0.0
        %5297 = vmatprep.subr.mxu0 0.0
        %5298 = vmatpush1.msra.mxu0 0.0
        %5299 = vmatprep.subr.mxu0 0.0
        %5300 = vmatpush1.msra.mxu0 0.0
        %5301 = vmatprep.subr.mxu0 0.0
        %5302 = vmatpush1.msra.mxu0 0.0
        %5303 = vmatprep.subr.mxu0 0.0
        %5304 = vmatpush1.msra.mxu0 0.0
        %5305 = vmatprep.subr.mxu0 0.0
        %5306 = vmatpush1.msra.mxu0 0.0
        %5307 = vmatprep.mubr.f32.mxu0 0.0
        %5308 = vmatmul.mubr.f32.gmra.mrb[0].mxu0 %v5225
        %v5309 = vpop.f32.mrb[0].mxu0
        %v5310 = vadd.f32 0.0, %v5309
        %v5311 = vpop.f32.mrb[0].mxu0
        %5312 = vdwg.mxu0
        %5313 = vmatprep.subr.mxu0 0.0
        %5314 = vmatpush1.msra.mxu0 %v5209
        %5315 = vmatprep.subr.mxu0 0.0
        %5316 = vmatpush1.msra.mxu0 %v5210
        %5317 = vmatprep.subr.mxu0 0.0
        %5318 = vmatpush1.msra.mxu0 %v5211
        %5319 = vmatprep.subr.mxu0 0.0
        %5320 = vmatpush1.msra.mxu0 %v5212
        %5321 = vmatprep.subr.mxu0 0.0
        %5322 = vmatpush1.msra.mxu0 %v5213
        %5323 = vmatprep.subr.mxu0 0.0
        %5324 = vmatpush1.msra.mxu0 %v5214
        %5325 = vmatprep.subr.mxu0 0.0
        %5326 = vmatpush1.msra.mxu0 %v5215
        %5327 = vmatprep.subr.mxu0 0.0
        %5328 = vmatpush1.msra.mxu0 %v5216
        %5329 = vmatprep.subr.mxu0 0.0
        %5330 = vmatpush1.msra.mxu0 %v5217
        %5331 = vmatprep.subr.mxu0 0.0
        %5332 = vmatpush1.msra.mxu0 %v5218
        %5333 = vmatprep.subr.mxu0 0.0
        %5334 = vmatpush1.msra.mxu0 %v5219
        %5335 = vmatprep.subr.mxu0 0.0
        %5336 = vmatpush1.msra.mxu0 %v5220
        %5337 = vmatprep.subr.mxu0 0.0
        %5338 = vmatpush1.msra.mxu0 %v5221
        %5339 = vmatprep.subr.mxu0 0.0
        %5340 = vmatpush1.msra.mxu0 %v5222
        %5341 = vmatprep.subr.mxu0 0.0
        %5342 = vmatpush1.msra.mxu0 %v5223
        %5343 = vmatprep.subr.mxu0 0.0
        %5344 = vmatpush1.msra.mxu0 %v5224
        %5345 = vmatprep.subr.mxu0 0.0
        %5346 = vmatpush1.msra.mxu0 0.0
        %5347 = vmatprep.subr.mxu0 0.0
        %5348 = vmatpush1.msra.mxu0 0.0
        %5349 = vmatprep.subr.mxu0 0.0
        %5350 = vmatpush1.msra.mxu0 0.0
        %5351 = vmatprep.subr.mxu0 0.0
        %5352 = vmatpush1.msra.mxu0 0.0
        %5353 = vmatprep.subr.mxu0 0.0
        %5354 = vmatpush1.msra.mxu0 0.0
        %5355 = vmatprep.subr.mxu0 0.0
        %5356 = vmatpush1.msra.mxu0 0.0
        %5357 = vmatprep.subr.mxu0 0.0
        %5358 = vmatpush1.msra.mxu0 0.0
        %5359 = vmatprep.subr.mxu0 0.0
        %5360 = vmatpush1.msra.mxu0 0.0
        %5361 = vmatprep.subr.mxu0 0.0
        %5362 = vmatpush1.msra.mxu0 0.0
        %5363 = vmatprep.subr.mxu0 0.0
        %5364 = vmatpush1.msra.mxu0 0.0
        %5365 = vmatprep.subr.mxu0 0.0
        %5366 = vmatpush1.msra.mxu0 0.0
        %5367 = vmatprep.subr.mxu0 0.0
        %5368 = vmatpush1.msra.mxu0 0.0
        %5369 = vmatprep.subr.mxu0 0.0
        %5370 = vmatpush1.msra.mxu0 0.0
        %5371 = vmatprep.subr.mxu0 0.0
        %5372 = vmatpush1.msra.mxu0 0.0
        %5373 = vmatprep.subr.mxu0 0.0
        %5374 = vmatpush1.msra.mxu0 0.0
        %5375 = vmatprep.subr.mxu0 0.0
        %5376 = vmatpush1.msra.mxu0 0.0
        %5377 = vmatprep.mubr.f32.mxu0 0.0
        %5378 = vmatmul.mubr.f32.gmra.mrb[0].mxu0 %v5208
        %v5379 = vpop.f32.mrb[0].mxu0
        %v5380 = vadd.f32 %v5310, %v5379
        %v5381 = vpop.f32.mrb[0].mxu0
        %5382 = vdwg.mxu0
        %v5383 = vld [vmem:[#allocation10 + $0x2] sm:$0x3]
        %s5384 = scalar_lea.vmem [#allocation29], 256
        %v5385 = vld [vmem:[%s5384] sm:$0xff]
        %v5386 = vld [vmem:[%s5384 + $0x8] sm:$0xff]
        %v5387 = vld [vmem:[%s5384 + $0x10] sm:$0xff]
        %v5388 = vld [vmem:[%s5384 + $0x18] sm:$0xff]
        %v5389 = vld [vmem:[%s5384 + $0x20] sm:$0xff]
        %v5390 = vld [vmem:[%s5384 + $0x28] sm:$0xff]
        %v5391 = vld [vmem:[%s5384 + $0x30] sm:$0xff]
        %v5392 = vld [vmem:[%s5384 + $0x38] sm:$0xff]
        %v5393 = vld [vmem:[%s5384 + $0x40] sm:$0xff]
        %v5394 = vld [vmem:[%s5384 + $0x48] sm:$0xff]
        %v5395 = vld [vmem:[%s5384 + $0x50] sm:$0xff]
        %v5396 = vld [vmem:[%s5384 + $0x58] sm:$0xff]
        %v5397 = vld [vmem:[%s5384 + $0x60] sm:$0xff]
        %v5398 = vld [vmem:[%s5384 + $0x68] sm:$0xff]
        %v5399 = vld [vmem:[%s5384 + $0x70] sm:$0xff]
        %v5400 = vld [vmem:[%s5384 + $0x78] sm:$0xff]
        %5401 = vmatprep.subr.mxu0 0.0
        %5402 = vmatpush1.msra.mxu0 %v5385
        %5403 = vmatprep.subr.mxu0 0.0
        %5404 = vmatpush1.msra.mxu0 %v5386
        %5405 = vmatprep.subr.mxu0 0.0
        %5406 = vmatpush1.msra.mxu0 %v5387
        %5407 = vmatprep.subr.mxu0 0.0
        %5408 = vmatpush1.msra.mxu0 %v5388
        %5409 = vmatprep.subr.mxu0 0.0
        %5410 = vmatpush1.msra.mxu0 %v5389
        %5411 = vmatprep.subr.mxu0 0.0
        %5412 = vmatpush1.msra.mxu0 %v5390
        %5413 = vmatprep.subr.mxu0 0.0
        %5414 = vmatpush1.msra.mxu0 %v5391
        %5415 = vmatprep.subr.mxu0 0.0
        %5416 = vmatpush1.msra.mxu0 %v5392
        %5417 = vmatprep.subr.mxu0 0.0
        %5418 = vmatpush1.msra.mxu0 %v5393
        %5419 = vmatprep.subr.mxu0 0.0
        %5420 = vmatpush1.msra.mxu0 %v5394
        %5421 = vmatprep.subr.mxu0 0.0
        %5422 = vmatpush1.msra.mxu0 %v5395
        %5423 = vmatprep.subr.mxu0 0.0
        %5424 = vmatpush1.msra.mxu0 %v5396
        %5425 = vmatprep.subr.mxu0 0.0
        %5426 = vmatpush1.msra.mxu0 %v5397
        %5427 = vmatprep.subr.mxu0 0.0
        %5428 = vmatpush1.msra.mxu0 %v5398
        %5429 = vmatprep.subr.mxu0 0.0
        %5430 = vmatpush1.msra.mxu0 %v5399
        %5431 = vmatprep.subr.mxu0 0.0
        %5432 = vmatpush1.msra.mxu0 %v5400
        %5433 = vmatprep.subr.mxu0 0.0
        %5434 = vmatpush1.msra.mxu0 0.0
        %5435 = vmatprep.subr.mxu0 0.0
        %5436 = vmatpush1.msra.mxu0 0.0
        %5437 = vmatprep.subr.mxu0 0.0
        %5438 = vmatpush1.msra.mxu0 0.0
        %5439 = vmatprep.subr.mxu0 0.0
        %5440 = vmatpush1.msra.mxu0 0.0
        %5441 = vmatprep.subr.mxu0 0.0
        %5442 = vmatpush1.msra.mxu0 0.0
        %5443 = vmatprep.subr.mxu0 0.0
        %5444 = vmatpush1.msra.mxu0 0.0
        %5445 = vmatprep.subr.mxu0 0.0
        %5446 = vmatpush1.msra.mxu0 0.0
        %5447 = vmatprep.subr.mxu0 0.0
        %5448 = vmatpush1.msra.mxu0 0.0
        %5449 = vmatprep.subr.mxu0 0.0
        %5450 = vmatpush1.msra.mxu0 0.0
        %5451 = vmatprep.subr.mxu0 0.0
        %5452 = vmatpush1.msra.mxu0 0.0
        %5453 = vmatprep.subr.mxu0 0.0
        %5454 = vmatpush1.msra.mxu0 0.0
        %5455 = vmatprep.subr.mxu0 0.0
        %5456 = vmatpush1.msra.mxu0 0.0
        %5457 = vmatprep.subr.mxu0 0.0
        %5458 = vmatpush1.msra.mxu0 0.0
        %5459 = vmatprep.subr.mxu0 0.0
        %5460 = vmatpush1.msra.mxu0 0.0
        %5461 = vmatprep.subr.mxu0 0.0
        %5462 = vmatpush1.msra.mxu0 0.0
        %5463 = vmatprep.subr.mxu0 0.0
        %5464 = vmatpush1.msra.mxu0 0.0
        %5465 = vmatprep.mubr.f32.mxu0 0.0
        %5466 = vmatmul.mubr.f32.gmra.mrb[0].mxu0 %v5383
        %v5467 = vpop.f32.mrb[0].mxu0
        %v5468 = vadd.f32 0.0, %v5467
        %v5469 = vpop.f32.mrb[0].mxu0
        %5470 = vdwg.mxu0
        %v5471 = vadd.f32 %v5380, %v5468
        %v5472 = vld [vmem:[#allocation31] sm:$0x1]
        %v5474 = vlaneseq
        %v5475 = vshrl.u32 %v5474, 7
        %v5476 = vsub.s32 0, %v5475
        %v5477 = vrot.slane %v5472, %v5476
        %v5479 = vadd.f32 %v5471, %v5477
        %v5480 = vmax.f32 %v5479, 0.0
        %5482 = vrot.lane.b32.xlu0 %v5480, 32
        %v5483 = vpop.permute.xlu0 %5482
        %5485 = vst.msk [vmem:[#allocation11 + $0x1] sm:$0x3] %vm5206, %v5483
        %v5486 = vld [vmem:[#allocation11] sm:$0x3]
        %v5487 = vld [vmem:[#allocation32] sm:$0xff]
        %v5488 = vld [vmem:[#allocation32 + $0x8] sm:$0xff]
        %v5489 = vld [vmem:[#allocation32 + $0x10] sm:$0xff]
        %v5490 = vld [vmem:[#allocation32 + $0x18] sm:$0xff]
        %v5491 = vld [vmem:[#allocation32 + $0x20] sm:$0xff]
        %v5492 = vld [vmem:[#allocation32 + $0x28] sm:$0xff]
        %v5493 = vld [vmem:[#allocation32 + $0x30] sm:$0xff]
        %v5494 = vld [vmem:[#allocation32 + $0x38] sm:$0xff]
        %v5495 = vld [vmem:[#allocation32 + $0x40] sm:$0xff]
        %v5496 = vld [vmem:[#allocation32 + $0x48] sm:$0xff]
        %v5497 = vld [vmem:[#allocation32 + $0x50] sm:$0xff]
        %v5498 = vld [vmem:[#allocation32 + $0x58] sm:$0xff]
        %v5499 = vld [vmem:[#allocation32 + $0x60] sm:$0xff]
        %v5500 = vld [vmem:[#allocation32 + $0x68] sm:$0xff]
        %v5501 = vld [vmem:[#allocation32 + $0x70] sm:$0xff]
        %v5502 = vld [vmem:[#allocation32 + $0x78] sm:$0xff]
        %v5503 = vld [vmem:[#allocation11 + $0x1] sm:$0x3]
        %s5504 = scalar_lea.vmem [#allocation32], 128
        %v5505 = vld [vmem:[%s5504] sm:$0xff]
        %v5506 = vld [vmem:[%s5504 + $0x8] sm:$0xff]
        %v5507 = vld [vmem:[%s5504 + $0x10] sm:$0xff]
        %v5508 = vld [vmem:[%s5504 + $0x18] sm:$0xff]
        %v5509 = vld [vmem:[%s5504 + $0x20] sm:$0xff]
        %v5510 = vld [vmem:[%s5504 + $0x28] sm:$0xff]
        %v5511 = vld [vmem:[%s5504 + $0x30] sm:$0xff]
        %v5512 = vld [vmem:[%s5504 + $0x38] sm:$0xff]
        %v5513 = vld [vmem:[%s5504 + $0x40] sm:$0xff]
        %v5514 = vld [vmem:[%s5504 + $0x48] sm:$0xff]
        %v5515 = vld [vmem:[%s5504 + $0x50] sm:$0xff]
        %v5516 = vld [vmem:[%s5504 + $0x58] sm:$0xff]
        %v5517 = vld [vmem:[%s5504 + $0x60] sm:$0xff]
        %v5518 = vld [vmem:[%s5504 + $0x68] sm:$0xff]
        %v5519 = vld [vmem:[%s5504 + $0x70] sm:$0xff]
        %v5520 = vld [vmem:[%s5504 + $0x78] sm:$0xff]
        %5521 = vmatprep.subr.mxu0 0.0
        %5522 = vmatpush1.msra.mxu0 %v5505
        %5523 = vmatprep.subr.mxu0 0.0
        %5524 = vmatpush1.msra.mxu0 %v5506
        %5525 = vmatprep.subr.mxu0 0.0
        %5526 = vmatpush1.msra.mxu0 %v5507
        %5527 = vmatprep.subr.mxu0 0.0
        %5528 = vmatpush1.msra.mxu0 %v5508
        %5529 = vmatprep.subr.mxu0 0.0
        %5530 = vmatpush1.msra.mxu0 %v5509
        %5531 = vmatprep.subr.mxu0 0.0
        %5532 = vmatpush1.msra.mxu0 %v5510
        %5533 = vmatprep.subr.mxu0 0.0
        %5534 = vmatpush1.msra.mxu0 %v5511
        %5535 = vmatprep.subr.mxu0 0.0
        %5536 = vmatpush1.msra.mxu0 %v5512
        %5537 = vmatprep.subr.mxu0 0.0
        %5538 = vmatpush1.msra.mxu0 %v5513
        %5539 = vmatprep.subr.mxu0 0.0
        %5540 = vmatpush1.msra.mxu0 %v5514
        %5541 = vmatprep.subr.mxu0 0.0
        %5542 = vmatpush1.msra.mxu0 %v5515
        %5543 = vmatprep.subr.mxu0 0.0
        %5544 = vmatpush1.msra.mxu0 %v5516
        %5545 = vmatprep.subr.mxu0 0.0
        %5546 = vmatpush1.msra.mxu0 %v5517
        %5547 = vmatprep.subr.mxu0 0.0
        %5548 = vmatpush1.msra.mxu0 %v5518
        %5549 = vmatprep.subr.mxu0 0.0
        %5550 = vmatpush1.msra.mxu0 %v5519
        %5551 = vmatprep.subr.mxu0 0.0
        %5552 = vmatpush1.msra.mxu0 %v5520
        %5553 = vmatprep.subr.mxu0 0.0
        %5554 = vmatpush1.msra.mxu0 0.0
        %5555 = vmatprep.subr.mxu0 0.0
        %5556 = vmatpush1.msra.mxu0 0.0
        %5557 = vmatprep.subr.mxu0 0.0
        %5558 = vmatpush1.msra.mxu0 0.0
        %5559 = vmatprep.subr.mxu0 0.0
        %5560 = vmatpush1.msra.mxu0 0.0
        %5561 = vmatprep.subr.mxu0 0.0
        %5562 = vmatpush1.msra.mxu0 0.0
        %5563 = vmatprep.subr.mxu0 0.0
        %5564 = vmatpush1.msra.mxu0 0.0
        %5565 = vmatprep.subr.mxu0 0.0
        %5566 = vmatpush1.msra.mxu0 0.0
        %5567 = vmatprep.subr.mxu0 0.0
        %5568 = vmatpush1.msra.mxu0 0.0
        %5569 = vmatprep.subr.mxu0 0.0
        %5570 = vmatpush1.msra.mxu0 0.0
        %5571 = vmatprep.subr.mxu0 0.0
        %5572 = vmatpush1.msra.mxu0 0.0
        %5573 = vmatprep.subr.mxu0 0.0
        %5574 = vmatpush1.msra.mxu0 0.0
        %5575 = vmatprep.subr.mxu0 0.0
        %5576 = vmatpush1.msra.mxu0 0.0
        %5577 = vmatprep.subr.mxu0 0.0
        %5578 = vmatpush1.msra.mxu0 0.0
        %5579 = vmatprep.subr.mxu0 0.0
        %5580 = vmatpush1.msra.mxu0 0.0
        %5581 = vmatprep.subr.mxu0 0.0
        %5582 = vmatpush1.msra.mxu0 0.0
        %5583 = vmatprep.subr.mxu0 0.0
        %5584 = vmatpush1.msra.mxu0 0.0
        %5585 = vmatprep.mubr.f32.mxu0 0.0
        %5586 = vmatmul.mubr.f32.gmra.mrb[0].mxu0 %v5503
        %v5587 = vpop.f32.mrb[0].mxu0
        %v5588 = vadd.f32 0.0, %v5587
        %v5589 = vpop.f32.mrb[0].mxu0
        %5590 = vdwg.mxu0
        %5591 = vmatprep.subr.mxu0 0.0
        %5592 = vmatpush1.msra.mxu0 %v5487
        %5593 = vmatprep.subr.mxu0 0.0
        %5594 = vmatpush1.msra.mxu0 %v5488
        %5595 = vmatprep.subr.mxu0 0.0
        %5596 = vmatpush1.msra.mxu0 %v5489
        %5597 = vmatprep.subr.mxu0 0.0
        %5598 = vmatpush1.msra.mxu0 %v5490
        %5599 = vmatprep.subr.mxu0 0.0
        %5600 = vmatpush1.msra.mxu0 %v5491
        %5601 = vmatprep.subr.mxu0 0.0
        %5602 = vmatpush1.msra.mxu0 %v5492
        %5603 = vmatprep.subr.mxu0 0.0
        %5604 = vmatpush1.msra.mxu0 %v5493
        %5605 = vmatprep.subr.mxu0 0.0
        %5606 = vmatpush1.msra.mxu0 %v5494
        %5607 = vmatprep.subr.mxu0 0.0
        %5608 = vmatpush1.msra.mxu0 %v5495
        %5609 = vmatprep.subr.mxu0 0.0
        %5610 = vmatpush1.msra.mxu0 %v5496
        %5611 = vmatprep.subr.mxu0 0.0
        %5612 = vmatpush1.msra.mxu0 %v5497
        %5613 = vmatprep.subr.mxu0 0.0
        %5614 = vmatpush1.msra.mxu0 %v5498
        %5615 = vmatprep.subr.mxu0 0.0
        %5616 = vmatpush1.msra.mxu0 %v5499
        %5617 = vmatprep.subr.mxu0 0.0
        %5618 = vmatpush1.msra.mxu0 %v5500
        %5619 = vmatprep.subr.mxu0 0.0
        %5620 = vmatpush1.msra.mxu0 %v5501
        %5621 = vmatprep.subr.mxu0 0.0
        %5622 = vmatpush1.msra.mxu0 %v5502
        %5623 = vmatprep.subr.mxu0 0.0
        %5624 = vmatpush1.msra.mxu0 0.0
        %5625 = vmatprep.subr.mxu0 0.0
        %5626 = vmatpush1.msra.mxu0 0.0
        %5627 = vmatprep.subr.mxu0 0.0
        %5628 = vmatpush1.msra.mxu0 0.0
        %5629 = vmatprep.subr.mxu0 0.0
        %5630 = vmatpush1.msra.mxu0 0.0
        %5631 = vmatprep.subr.mxu0 0.0
        %5632 = vmatpush1.msra.mxu0 0.0
        %5633 = vmatprep.subr.mxu0 0.0
        %5634 = vmatpush1.msra.mxu0 0.0
        %5635 = vmatprep.subr.mxu0 0.0
        %5636 = vmatpush1.msra.mxu0 0.0
        %5637 = vmatprep.subr.mxu0 0.0
        %5638 = vmatpush1.msra.mxu0 0.0
        %5639 = vmatprep.subr.mxu0 0.0
        %5640 = vmatpush1.msra.mxu0 0.0
        %5641 = vmatprep.subr.mxu0 0.0
        %5642 = vmatpush1.msra.mxu0 0.0
        %5643 = vmatprep.subr.mxu0 0.0
        %5644 = vmatpush1.msra.mxu0 0.0
        %5645 = vmatprep.subr.mxu0 0.0
        %5646 = vmatpush1.msra.mxu0 0.0
        %5647 = vmatprep.subr.mxu0 0.0
        %5648 = vmatpush1.msra.mxu0 0.0
        %5649 = vmatprep.subr.mxu0 0.0
        %5650 = vmatpush1.msra.mxu0 0.0
        %5651 = vmatprep.subr.mxu0 0.0
        %5652 = vmatpush1.msra.mxu0 0.0
        %5653 = vmatprep.subr.mxu0 0.0
        %5654 = vmatpush1.msra.mxu0 0.0
        %5655 = vmatprep.mubr.f32.mxu0 0.0
        %5656 = vmatmul.mubr.f32.gmra.mrb[0].mxu0 %v5486
        %v5657 = vpop.f32.mrb[0].mxu0
        %v5658 = vadd.f32 %v5588, %v5657
        %v5659 = vpop.f32.mrb[0].mxu0
        %5660 = vdwg.mxu0
        %v5661 = vld [vmem:[#allocation11 + $0x2] sm:$0x3]
        %s5662 = scalar_lea.vmem [#allocation32], 256
        %v5663 = vld [vmem:[%s5662] sm:$0xff]
        %v5664 = vld [vmem:[%s5662 + $0x8] sm:$0xff]
        %v5665 = vld [vmem:[%s5662 + $0x10] sm:$0xff]
        %v5666 = vld [vmem:[%s5662 + $0x18] sm:$0xff]
        %v5667 = vld [vmem:[%s5662 + $0x20] sm:$0xff]
        %v5668 = vld [vmem:[%s5662 + $0x28] sm:$0xff]
        %v5669 = vld [vmem:[%s5662 + $0x30] sm:$0xff]
        %v5670 = vld [vmem:[%s5662 + $0x38] sm:$0xff]
        %v5671 = vld [vmem:[%s5662 + $0x40] sm:$0xff]
        %v5672 = vld [vmem:[%s5662 + $0x48] sm:$0xff]
        %v5673 = vld [vmem:[%s5662 + $0x50] sm:$0xff]
        %v5674 = vld [vmem:[%s5662 + $0x58] sm:$0xff]
        %v5675 = vld [vmem:[%s5662 + $0x60] sm:$0xff]
        %v5676 = vld [vmem:[%s5662 + $0x68] sm:$0xff]
        %v5677 = vld [vmem:[%s5662 + $0x70] sm:$0xff]
        %v5678 = vld [vmem:[%s5662 + $0x78] sm:$0xff]
        %5679 = vmatprep.subr.mxu0 0.0
        %5680 = vmatpush1.msra.mxu0 %v5663
        %5681 = vmatprep.subr.mxu0 0.0
        %5682 = vmatpush1.msra.mxu0 %v5664
        %5683 = vmatprep.subr.mxu0 0.0
        %5684 = vmatpush1.msra.mxu0 %v5665
        %5685 = vmatprep.subr.mxu0 0.0
        %5686 = vmatpush1.msra.mxu0 %v5666
        %5687 = vmatprep.subr.mxu0 0.0
        %5688 = vmatpush1.msra.mxu0 %v5667
        %5689 = vmatprep.subr.mxu0 0.0
        %5690 = vmatpush1.msra.mxu0 %v5668
        %5691 = vmatprep.subr.mxu0 0.0
        %5692 = vmatpush1.msra.mxu0 %v5669
        %5693 = vmatprep.subr.mxu0 0.0
        %5694 = vmatpush1.msra.mxu0 %v5670
        %5695 = vmatprep.subr.mxu0 0.0
        %5696 = vmatpush1.msra.mxu0 %v5671
        %5697 = vmatprep.subr.mxu0 0.0
        %5698 = vmatpush1.msra.mxu0 %v5672
        %5699 = vmatprep.subr.mxu0 0.0
        %5700 = vmatpush1.msra.mxu0 %v5673
        %5701 = vmatprep.subr.mxu0 0.0
        %5702 = vmatpush1.msra.mxu0 %v5674
        %5703 = vmatprep.subr.mxu0 0.0
        %5704 = vmatpush1.msra.mxu0 %v5675
        %5705 = vmatprep.subr.mxu0 0.0
        %5706 = vmatpush1.msra.mxu0 %v5676
        %5707 = vmatprep.subr.mxu0 0.0
        %5708 = vmatpush1.msra.mxu0 %v5677
        %5709 = vmatprep.subr.mxu0 0.0
        %5710 = vmatpush1.msra.mxu0 %v5678
        %5711 = vmatprep.subr.mxu0 0.0
        %5712 = vmatpush1.msra.mxu0 0.0
        %5713 = vmatprep.subr.mxu0 0.0
        %5714 = vmatpush1.msra.mxu0 0.0
        %5715 = vmatprep.subr.mxu0 0.0
        %5716 = vmatpush1.msra.mxu0 0.0
        %5717 = vmatprep.subr.mxu0 0.0
        %5718 = vmatpush1.msra.mxu0 0.0
        %5719 = vmatprep.subr.mxu0 0.0
        %5720 = vmatpush1.msra.mxu0 0.0
        %5721 = vmatprep.subr.mxu0 0.0
        %5722 = vmatpush1.msra.mxu0 0.0
        %5723 = vmatprep.subr.mxu0 0.0
        %5724 = vmatpush1.msra.mxu0 0.0
        %5725 = vmatprep.subr.mxu0 0.0
        %5726 = vmatpush1.msra.mxu0 0.0
        %5727 = vmatprep.subr.mxu0 0.0
        %5728 = vmatpush1.msra.mxu0 0.0
        %5729 = vmatprep.subr.mxu0 0.0
        %5730 = vmatpush1.msra.mxu0 0.0
        %5731 = vmatprep.subr.mxu0 0.0
        %5732 = vmatpush1.msra.mxu0 0.0
        %5733 = vmatprep.subr.mxu0 0.0
        %5734 = vmatpush1.msra.mxu0 0.0
        %5735 = vmatprep.subr.mxu0 0.0
        %5736 = vmatpush1.msra.mxu0 0.0
        %5737 = vmatprep.subr.mxu0 0.0
        %5738 = vmatpush1.msra.mxu0 0.0
        %5739 = vmatprep.subr.mxu0 0.0
        %5740 = vmatpush1.msra.mxu0 0.0
        %5741 = vmatprep.subr.mxu0 0.0
        %5742 = vmatpush1.msra.mxu0 0.0
        %5743 = vmatprep.mubr.f32.mxu0 0.0
        %5744 = vmatmul.mubr.f32.gmra.mrb[0].mxu0 %v5661
        %v5745 = vpop.f32.mrb[0].mxu0
        %v5746 = vadd.f32 0.0, %v5745
        %v5747 = vpop.f32.mrb[0].mxu0
        %5748 = vdwg.mxu0
        %v5749 = vadd.f32 %v5658, %v5746
        %v5750 = vld [vmem:[#allocation34] sm:$0x1]
        %v5752 = vlaneseq
        %v5753 = vshrl.u32 %v5752, 7
        %v5754 = vsub.s32 0, %v5753
        %v5755 = vrot.slane %v5750, %v5754
        %v5757 = vadd.f32 %v5749, %v5755
        %v5758 = vmax.f32 %v5757, 0.0
        %vm5759 = vcmask 517120
        %5760 = vst.msk [vmem:[%s1595] sm:$0x3] %vm5759, %v5758
        %v5761 = vld [vmem:[%s67] sm:$0x3]
        %v5762 = vld [vmem:[#allocation50] sm:$0xff]
        %v5763 = vld [vmem:[#allocation50 + $0x8] sm:$0xff]
        %v5764 = vld [vmem:[#allocation50 + $0x10] sm:$0xff]
        %v5765 = vld [vmem:[#allocation50 + $0x18] sm:$0xff]
        %v5766 = vld [vmem:[#allocation50 + $0x20] sm:$0xff]
        %v5767 = vld [vmem:[#allocation50 + $0x28] sm:$0xff]
        %v5768 = vld [vmem:[#allocation50 + $0x30] sm:$0xff]
        %v5769 = vld [vmem:[#allocation50 + $0x38] sm:$0xff]
        %vm5770 = vcmask 15360
        %v5772 = vsel %vm5770, %v5761, 0
        %vm5774 = vcmask 1041408
        %v5776 = vsel %vm5774, %v5758, 0
        %5778 = vmatprep.subr.mxu0 0.0
        %5779 = vmatpush1.msra.mxu0 %v5776
        %5780 = vmatprep.subr.mxu0 0.0
        %5781 = vmatpush1.msra.mxu0 0.0
        %5782 = vmatprep.subr.mxu0 0.0
        %5783 = vmatpush1.msra.mxu0 0.0
        %5784 = vmatprep.subr.mxu0 0.0
        %5785 = vmatpush1.msra.mxu0 0.0
        %5786 = vmatprep.subr.mxu0 0.0
        %5787 = vmatpush1.msra.mxu0 0.0
        %5788 = vmatprep.subr.mxu0 0.0
        %5789 = vmatpush1.msra.mxu0 0.0
        %5790 = vmatprep.subr.mxu0 0.0
        %5791 = vmatpush1.msra.mxu0 0.0
        %5792 = vmatprep.subr.mxu0 0.0
        %5793 = vmatpush1.msra.mxu0 0.0
        %5794 = vmatprep.subr.mxu0 0.0
        %5795 = vmatpush1.msra.mxu0 0.0
        %5796 = vmatprep.subr.mxu0 0.0
        %5797 = vmatpush1.msra.mxu0 0.0
        %5798 = vmatprep.subr.mxu0 0.0
        %5799 = vmatpush1.msra.mxu0 0.0
        %5800 = vmatprep.subr.mxu0 0.0
        %5801 = vmatpush1.msra.mxu0 0.0
        %5802 = vmatprep.subr.mxu0 0.0
        %5803 = vmatpush1.msra.mxu0 0.0
        %5804 = vmatprep.subr.mxu0 0.0
        %5805 = vmatpush1.msra.mxu0 0.0
        %5806 = vmatprep.subr.mxu0 0.0
        %5807 = vmatpush1.msra.mxu0 0.0
        %5808 = vmatprep.subr.mxu0 0.0
        %5809 = vmatpush1.msra.mxu0 0.0
        %5810 = vmatprep.subr.mxu0 0.0
        %5811 = vmatpush1.msra.mxu0 0.0
        %5812 = vmatprep.subr.mxu0 0.0
        %5813 = vmatpush1.msra.mxu0 0.0
        %5814 = vmatprep.subr.mxu0 0.0
        %5815 = vmatpush1.msra.mxu0 0.0
        %5816 = vmatprep.subr.mxu0 0.0
        %5817 = vmatpush1.msra.mxu0 0.0
        %5818 = vmatprep.subr.mxu0 0.0
        %5819 = vmatpush1.msra.mxu0 0.0
        %5820 = vmatprep.subr.mxu0 0.0
        %5821 = vmatpush1.msra.mxu0 0.0
        %5822 = vmatprep.subr.mxu0 0.0
        %5823 = vmatpush1.msra.mxu0 0.0
        %5824 = vmatprep.subr.mxu0 0.0
        %5825 = vmatpush1.msra.mxu0 0.0
        %5826 = vmatprep.subr.mxu0 0.0
        %5827 = vmatpush1.msra.mxu0 0.0
        %5828 = vmatprep.subr.mxu0 0.0
        %5829 = vmatpush1.msra.mxu0 0.0
        %5830 = vmatprep.subr.mxu0 0.0
        %5831 = vmatpush1.msra.mxu0 0.0
        %5832 = vmatprep.subr.mxu0 0.0
        %5833 = vmatpush1.msra.mxu0 0.0
        %5834 = vmatprep.subr.mxu0 0.0
        %5835 = vmatpush1.msra.mxu0 0.0
        %5836 = vmatprep.subr.mxu0 0.0
        %5837 = vmatpush1.msra.mxu0 0.0
        %5838 = vmatprep.subr.mxu0 0.0
        %5839 = vmatpush1.msra.mxu0 0.0
        %5840 = vmatprep.subr.mxu0 0.0
        %5841 = vmatpush1.msra.mxu0 0.0
        %5842 = vmatprep.mubr.f32.mxu0 0.0
        %5843 = vmatmul.mubr.f32.gmra.mrb[0].mxu0 %v5772
        %v5844 = vpop.f32.mrb[0].mxu0
        %v5845 = vadd.f32 0.0, %v5844
        %v5846 = vpop.f32.mrb[0].mxu0
        %5847 = vdwg.mxu0
        %v5849 = vrot.slane %v5845, 1
        %v5851 = vmax.f32 %v5845, %v5849
        %v5853 = vsel %vm4768, %v5851, 0
        %5855 = vmatprep.subr.mxu0 0.0
        %5856 = vmatpush1.msra.mxu0 %v5762
        %5857 = vmatprep.subr.mxu0 0.0
        %5858 = vmatpush1.msra.mxu0 %v5763
        %5859 = vmatprep.subr.mxu0 0.0
        %5860 = vmatpush1.msra.mxu0 %v5764
        %5861 = vmatprep.subr.mxu0 0.0
        %5862 = vmatpush1.msra.mxu0 %v5765
        %5863 = vmatprep.subr.mxu0 0.0
        %5864 = vmatpush1.msra.mxu0 %v5766
        %5865 = vmatprep.subr.mxu0 0.0
        %5866 = vmatpush1.msra.mxu0 %v5767
        %5867 = vmatprep.subr.mxu0 0.0
        %5868 = vmatpush1.msra.mxu0 %v5768
        %5869 = vmatprep.subr.mxu0 0.0
        %5870 = vmatpush1.msra.mxu0 %v5769
        %5871 = vmatprep.subr.mxu0 0.0
        %5872 = vmatpush1.msra.mxu0 0.0
        %5873 = vmatprep.subr.mxu0 0.0
        %5874 = vmatpush1.msra.mxu0 0.0
        %5875 = vmatprep.subr.mxu0 0.0
        %5876 = vmatpush1.msra.mxu0 0.0
        %5877 = vmatprep.subr.mxu0 0.0
        %5878 = vmatpush1.msra.mxu0 0.0
        %5879 = vmatprep.subr.mxu0 0.0
        %5880 = vmatpush1.msra.mxu0 0.0
        %5881 = vmatprep.subr.mxu0 0.0
        %5882 = vmatpush1.msra.mxu0 0.0
        %5883 = vmatprep.subr.mxu0 0.0
        %5884 = vmatpush1.msra.mxu0 0.0
        %5885 = vmatprep.subr.mxu0 0.0
        %5886 = vmatpush1.msra.mxu0 0.0
        %5887 = vmatprep.subr.mxu0 0.0
        %5888 = vmatpush1.msra.mxu0 0.0
        %5889 = vmatprep.subr.mxu0 0.0
        %5890 = vmatpush1.msra.mxu0 0.0
        %5891 = vmatprep.subr.mxu0 0.0
        %5892 = vmatpush1.msra.mxu0 0.0
        %5893 = vmatprep.subr.mxu0 0.0
        %5894 = vmatpush1.msra.mxu0 0.0
        %5895 = vmatprep.subr.mxu0 0.0
        %5896 = vmatpush1.msra.mxu0 0.0
        %5897 = vmatprep.subr.mxu0 0.0
        %5898 = vmatpush1.msra.mxu0 0.0
        %5899 = vmatprep.subr.mxu0 0.0
        %5900 = vmatpush1.msra.mxu0 0.0
        %5901 = vmatprep.subr.mxu0 0.0
        %5902 = vmatpush1.msra.mxu0 0.0
        %5903 = vmatprep.subr.mxu0 0.0
        %5904 = vmatpush1.msra.mxu0 0.0
        %5905 = vmatprep.subr.mxu0 0.0
        %5906 = vmatpush1.msra.mxu0 0.0
        %5907 = vmatprep.subr.mxu0 0.0
        %5908 = vmatpush1.msra.mxu0 0.0
        %5909 = vmatprep.subr.mxu0 0.0
        %5910 = vmatpush1.msra.mxu0 0.0
        %5911 = vmatprep.subr.mxu0 0.0
        %5912 = vmatpush1.msra.mxu0 0.0
        %5913 = vmatprep.subr.mxu0 0.0
        %5914 = vmatpush1.msra.mxu0 0.0
        %5915 = vmatprep.subr.mxu0 0.0
        %5916 = vmatpush1.msra.mxu0 0.0
        %5917 = vmatprep.subr.mxu0 0.0
        %5918 = vmatpush1.msra.mxu0 0.0
        %5919 = vmatprep.mubr.f32.mxu0 0.0
        %5920 = vmatmul.mubr.f32.gmra.mrb[0].mxu0 %v5853
        %v5921 = vpop.f32.mrb[0].mxu0
        %v5922 = vadd.f32 0.0, %v5921
        %v5923 = vpop.f32.mrb[0].mxu0
        %5924 = vdwg.mxu0
        %5926 = vrot.lane.b32.xlu0 %v5922, 96
        %v5927 = vpop.permute.xlu0 %5926
        %v5929 = vmax.f32 %v5922, %v5927
        %5931 = vrot.lane.b32.xlu0 %v5929, 32
        %v5932 = vpop.permute.xlu0 %5931
        %vm5934 = vcmask 516352
        %5935 = vst.msk [vmem:[#allocation12 + $0x1] sm:$0x1] %vm5934, %v5932
        %v5936 = vld [vmem:[#allocation12] sm:$0x1]
        %v5937 = vld [vmem:[#allocation35] sm:$0xff]
        %v5938 = vld [vmem:[#allocation35 + $0x8] sm:$0xff]
        %v5939 = vld [vmem:[#allocation35 + $0x10] sm:$0xff]
        %v5940 = vld [vmem:[#allocation35 + $0x18] sm:$0xff]
        %v5941 = vld [vmem:[#allocation35 + $0x20] sm:$0xff]
        %v5942 = vld [vmem:[#allocation35 + $0x28] sm:$0xff]
        %v5943 = vld [vmem:[#allocation35 + $0x30] sm:$0xff]
        %v5944 = vld [vmem:[#allocation35 + $0x38] sm:$0xff]
        %v5945 = vld [vmem:[#allocation35 + $0x40] sm:$0xff]
        %v5946 = vld [vmem:[#allocation35 + $0x48] sm:$0xff]
        %v5947 = vld [vmem:[#allocation35 + $0x50] sm:$0xff]
        %v5948 = vld [vmem:[#allocation35 + $0x58] sm:$0xff]
        %v5949 = vld [vmem:[#allocation12 + $0x1] sm:$0x1]
        %s5950 = scalar_lea.vmem [#allocation35], 96
        %v5951 = vld [vmem:[%s5950] sm:$0xff]
        %v5952 = vld [vmem:[%s5950 + $0x8] sm:$0xff]
        %v5953 = vld [vmem:[%s5950 + $0x10] sm:$0xff]
        %v5954 = vld [vmem:[%s5950 + $0x18] sm:$0xff]
        %v5955 = vld [vmem:[%s5950 + $0x20] sm:$0xff]
        %v5956 = vld [vmem:[%s5950 + $0x28] sm:$0xff]
        %v5957 = vld [vmem:[%s5950 + $0x30] sm:$0xff]
        %v5958 = vld [vmem:[%s5950 + $0x38] sm:$0xff]
        %v5959 = vld [vmem:[%s5950 + $0x40] sm:$0xff]
        %v5960 = vld [vmem:[%s5950 + $0x48] sm:$0xff]
        %v5961 = vld [vmem:[%s5950 + $0x50] sm:$0xff]
        %v5962 = vld [vmem:[%s5950 + $0x58] sm:$0xff]
        %v5964 = vsel %vm4458, %v5949, 0
        %5966 = vmatprep.subr.mxu0 0.0
        %5967 = vmatpush1.msra.mxu0 %v5951
        %5968 = vmatprep.subr.mxu0 0.0
        %5969 = vmatpush1.msra.mxu0 %v5952
        %5970 = vmatprep.subr.mxu0 0.0
        %5971 = vmatpush1.msra.mxu0 %v5953
        %5972 = vmatprep.subr.mxu0 0.0
        %5973 = vmatpush1.msra.mxu0 %v5954
        %5974 = vmatprep.subr.mxu0 0.0
        %5975 = vmatpush1.msra.mxu0 %v5955
        %5976 = vmatprep.subr.mxu0 0.0
        %5977 = vmatpush1.msra.mxu0 %v5956
        %5978 = vmatprep.subr.mxu0 0.0
        %5979 = vmatpush1.msra.mxu0 %v5957
        %5980 = vmatprep.subr.mxu0 0.0
        %5981 = vmatpush1.msra.mxu0 %v5958
        %5982 = vmatprep.subr.mxu0 0.0
        %5983 = vmatpush1.msra.mxu0 %v5959
        %5984 = vmatprep.subr.mxu0 0.0
        %5985 = vmatpush1.msra.mxu0 %v5960
        %5986 = vmatprep.subr.mxu0 0.0
        %5987 = vmatpush1.msra.mxu0 %v5961
        %5988 = vmatprep.subr.mxu0 0.0
        %5989 = vmatpush1.msra.mxu0 %v5962
        %5990 = vmatprep.subr.mxu0 0.0
        %5991 = vmatpush1.msra.mxu0 0.0
        %5992 = vmatprep.subr.mxu0 0.0
        %5993 = vmatpush1.msra.mxu0 0.0
        %5994 = vmatprep.subr.mxu0 0.0
        %5995 = vmatpush1.msra.mxu0 0.0
        %5996 = vmatprep.subr.mxu0 0.0
        %5997 = vmatpush1.msra.mxu0 0.0
        %5998 = vmatprep.subr.mxu0 0.0
        %5999 = vmatpush1.msra.mxu0 0.0
        %6000 = vmatprep.subr.mxu0 0.0
        %6001 = vmatpush1.msra.mxu0 0.0
        %6002 = vmatprep.subr.mxu0 0.0
        %6003 = vmatpush1.msra.mxu0 0.0
        %6004 = vmatprep.subr.mxu0 0.0
        %6005 = vmatpush1.msra.mxu0 0.0
        %6006 = vmatprep.subr.mxu0 0.0
        %6007 = vmatpush1.msra.mxu0 0.0
        %6008 = vmatprep.subr.mxu0 0.0
        %6009 = vmatpush1.msra.mxu0 0.0
        %6010 = vmatprep.subr.mxu0 0.0
        %6011 = vmatpush1.msra.mxu0 0.0
        %6012 = vmatprep.subr.mxu0 0.0
        %6013 = vmatpush1.msra.mxu0 0.0
        %6014 = vmatprep.subr.mxu0 0.0
        %6015 = vmatpush1.msra.mxu0 0.0
        %6016 = vmatprep.subr.mxu0 0.0
        %6017 = vmatpush1.msra.mxu0 0.0
        %6018 = vmatprep.subr.mxu0 0.0
        %6019 = vmatpush1.msra.mxu0 0.0
        %6020 = vmatprep.subr.mxu0 0.0
        %6021 = vmatpush1.msra.mxu0 0.0
        %6022 = vmatprep.subr.mxu0 0.0
        %6023 = vmatpush1.msra.mxu0 0.0
        %6024 = vmatprep.subr.mxu0 0.0
        %6025 = vmatpush1.msra.mxu0 0.0
        %6026 = vmatprep.subr.mxu0 0.0
        %6027 = vmatpush1.msra.mxu0 0.0
        %6028 = vmatprep.subr.mxu0 0.0
        %6029 = vmatpush1.msra.mxu0 0.0
        %6030 = vmatprep.mubr.f32.mxu0 0.0
        %6031 = vmatmul.mubr.f32.gmra.mrb[0].mxu0 %v5964
        %v6032 = vpop.f32.mrb[0].mxu0
        %v6033 = vadd.f32 0.0, %v6032
        %v6034 = vpop.f32.mrb[0].mxu0
        %6035 = vdwg.mxu0
        %v6037 = vsel %vm4458, %v5936, 0
        %6039 = vmatprep.subr.mxu0 0.0
        %6040 = vmatpush1.msra.mxu0 %v5937
        %6041 = vmatprep.subr.mxu0 0.0
        %6042 = vmatpush1.msra.mxu0 %v5938
        %6043 = vmatprep.subr.mxu0 0.0
        %6044 = vmatpush1.msra.mxu0 %v5939
        %6045 = vmatprep.subr.mxu0 0.0
        %6046 = vmatpush1.msra.mxu0 %v5940
        %6047 = vmatprep.subr.mxu0 0.0
        %6048 = vmatpush1.msra.mxu0 %v5941
        %6049 = vmatprep.subr.mxu0 0.0
        %6050 = vmatpush1.msra.mxu0 %v5942
        %6051 = vmatprep.subr.mxu0 0.0
        %6052 = vmatpush1.msra.mxu0 %v5943
        %6053 = vmatprep.subr.mxu0 0.0
        %6054 = vmatpush1.msra.mxu0 %v5944
        %6055 = vmatprep.subr.mxu0 0.0
        %6056 = vmatpush1.msra.mxu0 %v5945
        %6057 = vmatprep.subr.mxu0 0.0
        %6058 = vmatpush1.msra.mxu0 %v5946
        %6059 = vmatprep.subr.mxu0 0.0
        %6060 = vmatpush1.msra.mxu0 %v5947
        %6061 = vmatprep.subr.mxu0 0.0
        %6062 = vmatpush1.msra.mxu0 %v5948
        %6063 = vmatprep.subr.mxu0 0.0
        %6064 = vmatpush1.msra.mxu0 0.0
        %6065 = vmatprep.subr.mxu0 0.0
        %6066 = vmatpush1.msra.mxu0 0.0
        %6067 = vmatprep.subr.mxu0 0.0
        %6068 = vmatpush1.msra.mxu0 0.0
        %6069 = vmatprep.subr.mxu0 0.0
        %6070 = vmatpush1.msra.mxu0 0.0
        %6071 = vmatprep.subr.mxu0 0.0
        %6072 = vmatpush1.msra.mxu0 0.0
        %6073 = vmatprep.subr.mxu0 0.0
        %6074 = vmatpush1.msra.mxu0 0.0
        %6075 = vmatprep.subr.mxu0 0.0
        %6076 = vmatpush1.msra.mxu0 0.0
        %6077 = vmatprep.subr.mxu0 0.0
        %6078 = vmatpush1.msra.mxu0 0.0
        %6079 = vmatprep.subr.mxu0 0.0
        %6080 = vmatpush1.msra.mxu0 0.0
        %6081 = vmatprep.subr.mxu0 0.0
        %6082 = vmatpush1.msra.mxu0 0.0
        %6083 = vmatprep.subr.mxu0 0.0
        %6084 = vmatpush1.msra.mxu0 0.0
        %6085 = vmatprep.subr.mxu0 0.0
        %6086 = vmatpush1.msra.mxu0 0.0
        %6087 = vmatprep.subr.mxu0 0.0
        %6088 = vmatpush1.msra.mxu0 0.0
        %6089 = vmatprep.subr.mxu0 0.0
        %6090 = vmatpush1.msra.mxu0 0.0
        %6091 = vmatprep.subr.mxu0 0.0
        %6092 = vmatpush1.msra.mxu0 0.0
        %6093 = vmatprep.subr.mxu0 0.0
        %6094 = vmatpush1.msra.mxu0 0.0
        %6095 = vmatprep.subr.mxu0 0.0
        %6096 = vmatpush1.msra.mxu0 0.0
        %6097 = vmatprep.subr.mxu0 0.0
        %6098 = vmatpush1.msra.mxu0 0.0
        %6099 = vmatprep.subr.mxu0 0.0
        %6100 = vmatpush1.msra.mxu0 0.0
        %6101 = vmatprep.subr.mxu0 0.0
        %6102 = vmatpush1.msra.mxu0 0.0
        %6103 = vmatprep.mubr.f32.mxu0 0.0
        %6104 = vmatmul.mubr.f32.gmra.mrb[0].mxu0 %v6037
        %v6105 = vpop.f32.mrb[0].mxu0
        %v6106 = vadd.f32 %v6033, %v6105
        %v6107 = vpop.f32.mrb[0].mxu0
        %6108 = vdwg.mxu0
        %v6109 = vld [vmem:[#allocation12 + $0x2] sm:$0x1]
        %s6110 = scalar_lea.vmem [#allocation35], 192
        %v6111 = vld [vmem:[%s6110] sm:$0xff]
        %v6112 = vld [vmem:[%s6110 + $0x8] sm:$0xff]
        %v6113 = vld [vmem:[%s6110 + $0x10] sm:$0xff]
        %v6114 = vld [vmem:[%s6110 + $0x18] sm:$0xff]
        %v6115 = vld [vmem:[%s6110 + $0x20] sm:$0xff]
        %v6116 = vld [vmem:[%s6110 + $0x28] sm:$0xff]
        %v6117 = vld [vmem:[%s6110 + $0x30] sm:$0xff]
        %v6118 = vld [vmem:[%s6110 + $0x38] sm:$0xff]
        %v6119 = vld [vmem:[%s6110 + $0x40] sm:$0xff]
        %v6120 = vld [vmem:[%s6110 + $0x48] sm:$0xff]
        %v6121 = vld [vmem:[%s6110 + $0x50] sm:$0xff]
        %v6122 = vld [vmem:[%s6110 + $0x58] sm:$0xff]
        %v6124 = vsel %vm4458, %v6109, 0
        %6126 = vmatprep.subr.mxu0 0.0
        %6127 = vmatpush1.msra.mxu0 %v6111
        %6128 = vmatprep.subr.mxu0 0.0
        %6129 = vmatpush1.msra.mxu0 %v6112
        %6130 = vmatprep.subr.mxu0 0.0
        %6131 = vmatpush1.msra.mxu0 %v6113
        %6132 = vmatprep.subr.mxu0 0.0
        %6133 = vmatpush1.msra.mxu0 %v6114
        %6134 = vmatprep.subr.mxu0 0.0
        %6135 = vmatpush1.msra.mxu0 %v6115
        %6136 = vmatprep.subr.mxu0 0.0
        %6137 = vmatpush1.msra.mxu0 %v6116
        %6138 = vmatprep.subr.mxu0 0.0
        %6139 = vmatpush1.msra.mxu0 %v6117
        %6140 = vmatprep.subr.mxu0 0.0
        %6141 = vmatpush1.msra.mxu0 %v6118
        %6142 = vmatprep.subr.mxu0 0.0
        %6143 = vmatpush1.msra.mxu0 %v6119
        %6144 = vmatprep.subr.mxu0 0.0
        %6145 = vmatpush1.msra.mxu0 %v6120
        %6146 = vmatprep.subr.mxu0 0.0
        %6147 = vmatpush1.msra.mxu0 %v6121
        %6148 = vmatprep.subr.mxu0 0.0
        %6149 = vmatpush1.msra.mxu0 %v6122
        %6150 = vmatprep.subr.mxu0 0.0
        %6151 = vmatpush1.msra.mxu0 0.0
        %6152 = vmatprep.subr.mxu0 0.0
        %6153 = vmatpush1.msra.mxu0 0.0
        %6154 = vmatprep.subr.mxu0 0.0
        %6155 = vmatpush1.msra.mxu0 0.0
        %6156 = vmatprep.subr.mxu0 0.0
        %6157 = vmatpush1.msra.mxu0 0.0
        %6158 = vmatprep.subr.mxu0 0.0
        %6159 = vmatpush1.msra.mxu0 0.0
        %6160 = vmatprep.subr.mxu0 0.0
        %6161 = vmatpush1.msra.mxu0 0.0
        %6162 = vmatprep.subr.mxu0 0.0
        %6163 = vmatpush1.msra.mxu0 0.0
        %6164 = vmatprep.subr.mxu0 0.0
        %6165 = vmatpush1.msra.mxu0 0.0
        %6166 = vmatprep.subr.mxu0 0.0
        %6167 = vmatpush1.msra.mxu0 0.0
        %6168 = vmatprep.subr.mxu0 0.0
        %6169 = vmatpush1.msra.mxu0 0.0
        %6170 = vmatprep.subr.mxu0 0.0
        %6171 = vmatpush1.msra.mxu0 0.0
        %6172 = vmatprep.subr.mxu0 0.0
        %6173 = vmatpush1.msra.mxu0 0.0
        %6174 = vmatprep.subr.mxu0 0.0
        %6175 = vmatpush1.msra.mxu0 0.0
        %6176 = vmatprep.subr.mxu0 0.0
        %6177 = vmatpush1.msra.mxu0 0.0
        %6178 = vmatprep.subr.mxu0 0.0
        %6179 = vmatpush1.msra.mxu0 0.0
        %6180 = vmatprep.subr.mxu0 0.0
        %6181 = vmatpush1.msra.mxu0 0.0
        %6182 = vmatprep.subr.mxu0 0.0
        %6183 = vmatpush1.msra.mxu0 0.0
        %6184 = vmatprep.subr.mxu0 0.0
        %6185 = vmatpush1.msra.mxu0 0.0
        %6186 = vmatprep.subr.mxu0 0.0
        %6187 = vmatpush1.msra.mxu0 0.0
        %6188 = vmatprep.subr.mxu0 0.0
        %6189 = vmatpush1.msra.mxu0 0.0
        %6190 = vmatprep.mubr.f32.mxu0 0.0
        %6191 = vmatmul.mubr.f32.gmra.mrb[0].mxu0 %v6124
        %v6192 = vpop.f32.mrb[0].mxu0
        %v6193 = vadd.f32 0.0, %v6192
        %v6194 = vpop.f32.mrb[0].mxu0
        %6195 = vdwg.mxu0
        %v6196 = vadd.f32 %v6106, %v6193
        %v6197 = vld [vmem:[#allocation37] sm:$0x1]
        %v6198 = vadd.f32 %v6196, %v6197
        %v6199 = vmax.f32 %v6198, 0.0
        %6201 = vrot.lane.b32.xlu0 %v6199, 32
        %v6202 = vpop.permute.xlu0 %6201
        %6204 = vst.msk [vmem:[#allocation13 + $0x1] sm:$0x1] %vm5934, %v6202
        %v6205 = vld [vmem:[#allocation13] sm:$0x1]
        %v6206 = vld [vmem:[#allocation38] sm:$0xff]
        %v6207 = vld [vmem:[#allocation38 + $0x8] sm:$0xff]
        %v6208 = vld [vmem:[#allocation38 + $0x10] sm:$0xff]
        %v6209 = vld [vmem:[#allocation38 + $0x18] sm:$0xff]
        %v6210 = vld [vmem:[#allocation38 + $0x20] sm:$0xff]
        %v6211 = vld [vmem:[#allocation38 + $0x28] sm:$0xff]
        %v6212 = vld [vmem:[#allocation38 + $0x30] sm:$0xff]
        %v6213 = vld [vmem:[#allocation38 + $0x38] sm:$0xff]
        %v6214 = vld [vmem:[#allocation38 + $0x40] sm:$0xff]
        %v6215 = vld [vmem:[#allocation38 + $0x48] sm:$0xff]
        %v6216 = vld [vmem:[#allocation38 + $0x50] sm:$0xff]
        %v6217 = vld [vmem:[#allocation38 + $0x58] sm:$0xff]
        %v6218 = vld [vmem:[#allocation13 + $0x1] sm:$0x1]
        %s6219 = scalar_lea.vmem [#allocation38], 96
        %v6220 = vld [vmem:[%s6219] sm:$0xff]
        %v6221 = vld [vmem:[%s6219 + $0x8] sm:$0xff]
        %v6222 = vld [vmem:[%s6219 + $0x10] sm:$0xff]
        %v6223 = vld [vmem:[%s6219 + $0x18] sm:$0xff]
        %v6224 = vld [vmem:[%s6219 + $0x20] sm:$0xff]
        %v6225 = vld [vmem:[%s6219 + $0x28] sm:$0xff]
        %v6226 = vld [vmem:[%s6219 + $0x30] sm:$0xff]
        %v6227 = vld [vmem:[%s6219 + $0x38] sm:$0xff]
        %v6228 = vld [vmem:[%s6219 + $0x40] sm:$0xff]
        %v6229 = vld [vmem:[%s6219 + $0x48] sm:$0xff]
        %v6230 = vld [vmem:[%s6219 + $0x50] sm:$0xff]
        %v6231 = vld [vmem:[%s6219 + $0x58] sm:$0xff]
        %v6233 = vsel %vm4458, %v6218, 0
        %6235 = vmatprep.subr.mxu0 0.0
        %6236 = vmatpush1.msra.mxu0 %v6220
        %6237 = vmatprep.subr.mxu0 0.0
        %6238 = vmatpush1.msra.mxu0 %v6221
        %6239 = vmatprep.subr.mxu0 0.0
        %6240 = vmatpush1.msra.mxu0 %v6222
        %6241 = vmatprep.subr.mxu0 0.0
        %6242 = vmatpush1.msra.mxu0 %v6223
        %6243 = vmatprep.subr.mxu0 0.0
        %6244 = vmatpush1.msra.mxu0 %v6224
        %6245 = vmatprep.subr.mxu0 0.0
        %6246 = vmatpush1.msra.mxu0 %v6225
        %6247 = vmatprep.subr.mxu0 0.0
        %6248 = vmatpush1.msra.mxu0 %v6226
        %6249 = vmatprep.subr.mxu0 0.0
        %6250 = vmatpush1.msra.mxu0 %v6227
        %6251 = vmatprep.subr.mxu0 0.0
        %6252 = vmatpush1.msra.mxu0 %v6228
        %6253 = vmatprep.subr.mxu0 0.0
        %6254 = vmatpush1.msra.mxu0 %v6229
        %6255 = vmatprep.subr.mxu0 0.0
        %6256 = vmatpush1.msra.mxu0 %v6230
        %6257 = vmatprep.subr.mxu0 0.0
        %6258 = vmatpush1.msra.mxu0 %v6231
        %6259 = vmatprep.subr.mxu0 0.0
        %6260 = vmatpush1.msra.mxu0 0.0
        %6261 = vmatprep.subr.mxu0 0.0
        %6262 = vmatpush1.msra.mxu0 0.0
        %6263 = vmatprep.subr.mxu0 0.0
        %6264 = vmatpush1.msra.mxu0 0.0
        %6265 = vmatprep.subr.mxu0 0.0
        %6266 = vmatpush1.msra.mxu0 0.0
        %6267 = vmatprep.subr.mxu0 0.0
        %6268 = vmatpush1.msra.mxu0 0.0
        %6269 = vmatprep.subr.mxu0 0.0
        %6270 = vmatpush1.msra.mxu0 0.0
        %6271 = vmatprep.subr.mxu0 0.0
        %6272 = vmatpush1.msra.mxu0 0.0
        %6273 = vmatprep.subr.mxu0 0.0
        %6274 = vmatpush1.msra.mxu0 0.0
        %6275 = vmatprep.subr.mxu0 0.0
        %6276 = vmatpush1.msra.mxu0 0.0
        %6277 = vmatprep.subr.mxu0 0.0
        %6278 = vmatpush1.msra.mxu0 0.0
        %6279 = vmatprep.subr.mxu0 0.0
        %6280 = vmatpush1.msra.mxu0 0.0
        %6281 = vmatprep.subr.mxu0 0.0
        %6282 = vmatpush1.msra.mxu0 0.0
        %6283 = vmatprep.subr.mxu0 0.0
        %6284 = vmatpush1.msra.mxu0 0.0
        %6285 = vmatprep.subr.mxu0 0.0
        %6286 = vmatpush1.msra.mxu0 0.0
        %6287 = vmatprep.subr.mxu0 0.0
        %6288 = vmatpush1.msra.mxu0 0.0
        %6289 = vmatprep.subr.mxu0 0.0
        %6290 = vmatpush1.msra.mxu0 0.0
        %6291 = vmatprep.subr.mxu0 0.0
        %6292 = vmatpush1.msra.mxu0 0.0
        %6293 = vmatprep.subr.mxu0 0.0
        %6294 = vmatpush1.msra.mxu0 0.0
        %6295 = vmatprep.subr.mxu0 0.0
        %6296 = vmatpush1.msra.mxu0 0.0
        %6297 = vmatprep.subr.mxu0 0.0
        %6298 = vmatpush1.msra.mxu0 0.0
        %6299 = vmatprep.mubr.f32.mxu0 0.0
        %6300 = vmatmul.mubr.f32.gmra.mrb[0].mxu0 %v6233
        %v6301 = vpop.f32.mrb[0].mxu0
        %v6302 = vadd.f32 0.0, %v6301
        %v6303 = vpop.f32.mrb[0].mxu0
        %6304 = vdwg.mxu0
        %v6306 = vsel %vm4458, %v6205, 0
        %6308 = vmatprep.subr.mxu0 0.0
        %6309 = vmatpush1.msra.mxu0 %v6206
        %6310 = vmatprep.subr.mxu0 0.0
        %6311 = vmatpush1.msra.mxu0 %v6207
        %6312 = vmatprep.subr.mxu0 0.0
        %6313 = vmatpush1.msra.mxu0 %v6208
        %6314 = vmatprep.subr.mxu0 0.0
        %6315 = vmatpush1.msra.mxu0 %v6209
        %6316 = vmatprep.subr.mxu0 0.0
        %6317 = vmatpush1.msra.mxu0 %v6210
        %6318 = vmatprep.subr.mxu0 0.0
        %6319 = vmatpush1.msra.mxu0 %v6211
        %6320 = vmatprep.subr.mxu0 0.0
        %6321 = vmatpush1.msra.mxu0 %v6212
        %6322 = vmatprep.subr.mxu0 0.0
        %6323 = vmatpush1.msra.mxu0 %v6213
        %6324 = vmatprep.subr.mxu0 0.0
        %6325 = vmatpush1.msra.mxu0 %v6214
        %6326 = vmatprep.subr.mxu0 0.0
        %6327 = vmatpush1.msra.mxu0 %v6215
        %6328 = vmatprep.subr.mxu0 0.0
        %6329 = vmatpush1.msra.mxu0 %v6216
        %6330 = vmatprep.subr.mxu0 0.0
        %6331 = vmatpush1.msra.mxu0 %v6217
        %6332 = vmatprep.subr.mxu0 0.0
        %6333 = vmatpush1.msra.mxu0 0.0
        %6334 = vmatprep.subr.mxu0 0.0
        %6335 = vmatpush1.msra.mxu0 0.0
        %6336 = vmatprep.subr.mxu0 0.0
        %6337 = vmatpush1.msra.mxu0 0.0
        %6338 = vmatprep.subr.mxu0 0.0
        %6339 = vmatpush1.msra.mxu0 0.0
        %6340 = vmatprep.subr.mxu0 0.0
        %6341 = vmatpush1.msra.mxu0 0.0
        %6342 = vmatprep.subr.mxu0 0.0
        %6343 = vmatpush1.msra.mxu0 0.0
        %6344 = vmatprep.subr.mxu0 0.0
        %6345 = vmatpush1.msra.mxu0 0.0
        %6346 = vmatprep.subr.mxu0 0.0
        %6347 = vmatpush1.msra.mxu0 0.0
        %6348 = vmatprep.subr.mxu0 0.0
        %6349 = vmatpush1.msra.mxu0 0.0
        %6350 = vmatprep.subr.mxu0 0.0
        %6351 = vmatpush1.msra.mxu0 0.0
        %6352 = vmatprep.subr.mxu0 0.0
        %6353 = vmatpush1.msra.mxu0 0.0
        %6354 = vmatprep.subr.mxu0 0.0
        %6355 = vmatpush1.msra.mxu0 0.0
        %6356 = vmatprep.subr.mxu0 0.0
        %6357 = vmatpush1.msra.mxu0 0.0
        %6358 = vmatprep.subr.mxu0 0.0
        %6359 = vmatpush1.msra.mxu0 0.0
        %6360 = vmatprep.subr.mxu0 0.0
        %6361 = vmatpush1.msra.mxu0 0.0
        %6362 = vmatprep.subr.mxu0 0.0
        %6363 = vmatpush1.msra.mxu0 0.0
        %6364 = vmatprep.subr.mxu0 0.0
        %6365 = vmatpush1.msra.mxu0 0.0
        %6366 = vmatprep.subr.mxu0 0.0
        %6367 = vmatpush1.msra.mxu0 0.0
        %6368 = vmatprep.subr.mxu0 0.0
        %6369 = vmatpush1.msra.mxu0 0.0
        %6370 = vmatprep.subr.mxu0 0.0
        %6371 = vmatpush1.msra.mxu0 0.0
        %6372 = vmatprep.mubr.f32.mxu0 0.0
        %6373 = vmatmul.mubr.f32.gmra.mrb[0].mxu0 %v6306
        %v6374 = vpop.f32.mrb[0].mxu0
        %v6375 = vadd.f32 %v6302, %v6374
        %v6376 = vpop.f32.mrb[0].mxu0
        %6377 = vdwg.mxu0
        %v6378 = vld [vmem:[#allocation13 + $0x2] sm:$0x1]
        %s6379 = scalar_lea.vmem [#allocation38], 192
        %v6380 = vld [vmem:[%s6379] sm:$0xff]
        %v6381 = vld [vmem:[%s6379 + $0x8] sm:$0xff]
        %v6382 = vld [vmem:[%s6379 + $0x10] sm:$0xff]
        %v6383 = vld [vmem:[%s6379 + $0x18] sm:$0xff]
        %v6384 = vld [vmem:[%s6379 + $0x20] sm:$0xff]
        %v6385 = vld [vmem:[%s6379 + $0x28] sm:$0xff]
        %v6386 = vld [vmem:[%s6379 + $0x30] sm:$0xff]
        %v6387 = vld [vmem:[%s6379 + $0x38] sm:$0xff]
        %v6388 = vld [vmem:[%s6379 + $0x40] sm:$0xff]
        %v6389 = vld [vmem:[%s6379 + $0x48] sm:$0xff]
        %v6390 = vld [vmem:[%s6379 + $0x50] sm:$0xff]
        %v6391 = vld [vmem:[%s6379 + $0x58] sm:$0xff]
        %v6393 = vsel %vm4458, %v6378, 0
        %6395 = vmatprep.subr.mxu0 0.0
        %6396 = vmatpush1.msra.mxu0 %v6380
        %6397 = vmatprep.subr.mxu0 0.0
        %6398 = vmatpush1.msra.mxu0 %v6381
        %6399 = vmatprep.subr.mxu0 0.0
        %6400 = vmatpush1.msra.mxu0 %v6382
        %6401 = vmatprep.subr.mxu0 0.0
        %6402 = vmatpush1.msra.mxu0 %v6383
        %6403 = vmatprep.subr.mxu0 0.0
        %6404 = vmatpush1.msra.mxu0 %v6384
        %6405 = vmatprep.subr.mxu0 0.0
        %6406 = vmatpush1.msra.mxu0 %v6385
        %6407 = vmatprep.subr.mxu0 0.0
        %6408 = vmatpush1.msra.mxu0 %v6386
        %6409 = vmatprep.subr.mxu0 0.0
        %6410 = vmatpush1.msra.mxu0 %v6387
        %6411 = vmatprep.subr.mxu0 0.0
        %6412 = vmatpush1.msra.mxu0 %v6388
        %6413 = vmatprep.subr.mxu0 0.0
        %6414 = vmatpush1.msra.mxu0 %v6389
        %6415 = vmatprep.subr.mxu0 0.0
        %6416 = vmatpush1.msra.mxu0 %v6390
        %6417 = vmatprep.subr.mxu0 0.0
        %6418 = vmatpush1.msra.mxu0 %v6391
        %6419 = vmatprep.subr.mxu0 0.0
        %6420 = vmatpush1.msra.mxu0 0.0
        %6421 = vmatprep.subr.mxu0 0.0
        %6422 = vmatpush1.msra.mxu0 0.0
        %6423 = vmatprep.subr.mxu0 0.0
        %6424 = vmatpush1.msra.mxu0 0.0
        %6425 = vmatprep.subr.mxu0 0.0
        %6426 = vmatpush1.msra.mxu0 0.0
        %6427 = vmatprep.subr.mxu0 0.0
        %6428 = vmatpush1.msra.mxu0 0.0
        %6429 = vmatprep.subr.mxu0 0.0
        %6430 = vmatpush1.msra.mxu0 0.0
        %6431 = vmatprep.subr.mxu0 0.0
        %6432 = vmatpush1.msra.mxu0 0.0
        %6433 = vmatprep.subr.mxu0 0.0
        %6434 = vmatpush1.msra.mxu0 0.0
        %6435 = vmatprep.subr.mxu0 0.0
        %6436 = vmatpush1.msra.mxu0 0.0
        %6437 = vmatprep.subr.mxu0 0.0
        %6438 = vmatpush1.msra.mxu0 0.0
        %6439 = vmatprep.subr.mxu0 0.0
        %6440 = vmatpush1.msra.mxu0 0.0
        %6441 = vmatprep.subr.mxu0 0.0
        %6442 = vmatpush1.msra.mxu0 0.0
        %6443 = vmatprep.subr.mxu0 0.0
        %6444 = vmatpush1.msra.mxu0 0.0
        %6445 = vmatprep.subr.mxu0 0.0
        %6446 = vmatpush1.msra.mxu0 0.0
        %6447 = vmatprep.subr.mxu0 0.0
        %6448 = vmatpush1.msra.mxu0 0.0
        %6449 = vmatprep.subr.mxu0 0.0
        %6450 = vmatpush1.msra.mxu0 0.0
        %6451 = vmatprep.subr.mxu0 0.0
        %6452 = vmatpush1.msra.mxu0 0.0
        %6453 = vmatprep.subr.mxu0 0.0
        %6454 = vmatpush1.msra.mxu0 0.0
        %6455 = vmatprep.subr.mxu0 0.0
        %6456 = vmatpush1.msra.mxu0 0.0
        %6457 = vmatprep.subr.mxu0 0.0
        %6458 = vmatpush1.msra.mxu0 0.0
        %6459 = vmatprep.mubr.f32.mxu0 0.0
        %6460 = vmatmul.mubr.f32.gmra.mrb[0].mxu0 %v6393
        %v6461 = vpop.f32.mrb[0].mxu0
        %v6462 = vadd.f32 0.0, %v6461
        %v6463 = vpop.f32.mrb[0].mxu0
        %6464 = vdwg.mxu0
        %v6465 = vadd.f32 %v6375, %v6462
        %v6466 = vld [vmem:[#allocation40] sm:$0x1]
        %v6467 = vadd.f32 %v6465, %v6466
        %v6468 = vmax.f32 %v6467, 0.0
        %6469 = vst.msk [vmem:[%s1568] sm:$0x1] %vm1712, %v6468
        %p6470 = scmp.lt.s32.totalorder %s109, 1
        %s6471 = scalar_select %p6470, %s109, 1
        %s6472 = smul.addr %s6471, 4
        %s6473 = smul.addr %s6472, 8
        %s6474 = scalar_lea.vmem %s71, %s6473
        %p6475 = scmp.lt.s32.totalorder %s109, 1
        %s6476 = scalar_select %p6475, %s109, 1
        %s6477 = smul.addr %s6476, 2
        %s6478 = smul.addr %s6477, 8
        %s6479 = scalar_lea.vmem %s73, %s6478
        %p6480 = scmp.lt.s32.totalorder %s109, 1
        %s6481 = scalar_select %p6480, %s109, 1
        %s6482 = smul.addr %s6481, 8
        %s6483 = scalar_lea.vmem %s75, %s6482
        %p6484 = scmp.lt.s32.totalorder %s109, 1
        %s6485 = scalar_select %p6484, %s109, 1
        %s6486 = smul.addr %s6485, 4
        %s6487 = scalar_lea.vmem %s77, %s6486
        %p6488 = scmp.lt.s32.totalorder %s109, 1
        %s6489 = scalar_select %p6488, %s109, 1
        %s6490 = smul.addr %s6489, 2
        %s6491 = scalar_lea.vmem %s79, %s6490
        %s6492 = sand.u32 %s987, 1
        %s6493 = scalar_lea.sflag [#allocation16], %s6492
        %s6494 = sand.u32 %s987, 1
        %s6495 = scalar_lea.vmem [#allocation52], %s6494
        // Predicated region
        $region257: #{forward.1} parent=159 // pred_check
          %p6496 = pneg %p867
        $region258: #{forward.1} parent=159 // pred_check_branch
          %6498 = sbr.rel (%p6496) target = $region260
        $region259: #{forward.1} parent=159 // pred_region
          _
        $region260: #{forward.1} parent=159 // pred_fallthru
          _
        // Predicated region
        $region261: #{forward.1} parent=159 // pred_check
          %p6499 = pneg %p893
        $region262: #{forward.1} parent=159 // pred_check_branch
          %6501 = sbr.rel (%p6499) target = $region264
        $region263: #{forward.1} parent=159 // pred_region
          _
        $region264: #{forward.1} parent=159 // pred_fallthru
          _
        // Predicated region
        $region265: #{forward.1} parent=159 // pred_check
          %p6502 = pneg %p919
        $region266: #{forward.1} parent=159 // pred_check_branch
          %6504 = sbr.rel (%p6502) target = $region268
        $region267: #{forward.1} parent=159 // pred_region
          _
        $region268: #{forward.1} parent=159 // pred_fallthru
          _
        // Predicated region
        $region269: #{forward.1} parent=159 // pred_check
          %p6505 = pneg %p945
        $region270: #{forward.1} parent=159 // pred_check_branch
          %6507 = sbr.rel (%p6505) target = $region272
        $region271: #{forward.1} parent=159 // pred_region
          _
        $region272: #{forward.1} parent=159 // pred_fallthru
          _
        // Predicated region
        $region273: #{forward.1} parent=159 // pred_check
          %p6508 = pneg %p971
        $region274: #{forward.1} parent=159 // pred_check_branch
          %6510 = sbr.rel (%p6508) target = $region276
        $region275: #{forward.1} parent=159 // pred_region
          _
        $region276: #{forward.1} parent=159 // pred_fallthru
          _
        // Predicated region
        $region277: #{forward.1} parent=159 // pred_check
          %p6511 = pneg %p997
        $region278: #{forward.1} parent=159 // pred_check_branch
          %6513 = sbr.rel (%p6511) target = $region280
        $region279: #{forward.1} parent=159 // pred_region
          %s6515 = ssub.s32 16, 16
          %6516 = vsyncadd %s6493, %s6515
          %s6517 = smul.addr %s109, 16
          %s6518 = scalar_lea.hbm %s81, %s6517
          %s6520 = sshll.u32 %s6495, 4
          %s6521 = int_to_ptr.vmem [resolvable:$true] %s6520
          %6523 = dma.vmem_to_hbm [thread:$0]  %s6521, 16, %s6518, %s6493
        $region280: #{forward.1} parent=159 // pred_fallthru
          _
      $region160: #{forward.1} parent=5 // pred_fallthru
        _
      %p6524 = scmp.le.s32.totalorder 2, %s104
      // Predicated region
      $region281: #{forward.1} parent=5 // pred_check
        %p6525 = pneg %p6524
      $region282: #{forward.1} parent=5 // pred_check_branch
        %6527 = sbr.rel (%p6525) target = $region284
      $region283: #{forward.1} parent=5 // pred_region
        %s6528 = ssub.s32 %s104, 2
        // Predicated region
        $region285: #{forward.1} parent=283 // pred_check
          %p6529 = pneg %p873
        $region286: #{forward.1} parent=283 // pred_check_branch
          %6531 = sbr.rel (%p6529) target = $region288
        $region287: #{forward.1} parent=283 // pred_region
          %p6532 = scmp.lt.s32.totalorder %s110, 1
          %s6533 = scalar_select %p6532, %s110, 1
          %s6534 = smul.addr %s6533, 4
          %s6535 = smul.addr %s6534, 8
          %s6536 = scalar_lea.vmem %s71, %s6535
        $region288: #{forward.1} parent=283 // pred_fallthru
          _
        // Predicated region
        $region289: #{forward.1} parent=283 // pred_check
          %p6537 = pneg %p899
        $region290: #{forward.1} parent=283 // pred_check_branch
          %6539 = sbr.rel (%p6537) target = $region292
        $region291: #{forward.1} parent=283 // pred_region
          %p6540 = scmp.lt.s32.totalorder %s110, 1
          %s6541 = scalar_select %p6540, %s110, 1
          %s6542 = smul.addr %s6541, 2
          %s6543 = smul.addr %s6542, 8
          %s6544 = scalar_lea.vmem %s73, %s6543
        $region292: #{forward.1} parent=283 // pred_fallthru
          _
        // Predicated region
        $region293: #{forward.1} parent=283 // pred_check
          %p6545 = pneg %p925
        $region294: #{forward.1} parent=283 // pred_check_branch
          %6547 = sbr.rel (%p6545) target = $region296
        $region295: #{forward.1} parent=283 // pred_region
          %p6548 = scmp.lt.s32.totalorder %s110, 1
          %s6549 = scalar_select %p6548, %s110, 1
          %s6550 = smul.addr %s6549, 8
          %s6551 = scalar_lea.vmem %s75, %s6550
        $region296: #{forward.1} parent=283 // pred_fallthru
          _
        // Predicated region
        $region297: #{forward.1} parent=283 // pred_check
          %p6552 = pneg %p951
        $region298: #{forward.1} parent=283 // pred_check_branch
          %6554 = sbr.rel (%p6552) target = $region300
        $region299: #{forward.1} parent=283 // pred_region
          %p6555 = scmp.lt.s32.totalorder %s110, 1
          %s6556 = scalar_select %p6555, %s110, 1
          %s6557 = smul.addr %s6556, 4
          %s6558 = scalar_lea.vmem %s77, %s6557
        $region300: #{forward.1} parent=283 // pred_fallthru
          _
        // Predicated region
        $region301: #{forward.1} parent=283 // pred_check
          %p6559 = pneg %p977
        $region302: #{forward.1} parent=283 // pred_check_branch
          %6561 = sbr.rel (%p6559) target = $region304
        $region303: #{forward.1} parent=283 // pred_region
          %p6562 = scmp.lt.s32.totalorder %s110, 1
          %s6563 = scalar_select %p6562, %s110, 1
          %s6564 = smul.addr %s6563, 2
          %s6565 = scalar_lea.vmem %s79, %s6564
        $region304: #{forward.1} parent=283 // pred_fallthru
          _
        // Predicated region
        $region305: #{forward.1} parent=283 // pred_check
          %p6566 = pneg %p1003
        $region306: #{forward.1} parent=283 // pred_check_branch
          %6568 = sbr.rel (%p6566) target = $region308
        $region307: #{forward.1} parent=283 // pred_region
          %s6569 = sand.u32 %s988, 1
          %s6570 = scalar_lea.sflag [#allocation16], %s6569
          %s6571 = sand.u32 %s988, 1
          %s6572 = scalar_lea.vmem [#allocation52], %s6571
          %6573 = dma.done %s6570, 16
        $region308: #{forward.1} parent=283 // pred_fallthru
          _
      $region284: #{forward.1} parent=5 // pred_fallthru
        _
    $region6: #{forward.1} parent=1 // loop_footer
      %s108 = sadd.s32 1, %s104
    $region7: #{forward.1} parent=1 // loop_footer_branch
      %103 = sbr.rel target = $region3
    $region8: #{forward.1} parent=1 // loop_exit
      _
    %6574 = vsyncpa [#allocation15], 1
    %s6575 = scalar_lea.sflag [#allocation15], 1
    %6576 = vsyncpa %s6575, 1
    %6577 = vsyncpa [#allocation18], 1
    %6578 = vsyncpa [#allocation21], 1
    %6579 = vsyncpa [#allocation24], 1
    %6580 = vsyncpa [#allocation27], 1
    %6581 = vsyncpa [#allocation30], 1
    %6582 = vsyncpa [#allocation33], 1
    %6583 = vsyncpa [#allocation36], 1
    %6584 = vsyncpa [#allocation39], 1
    %6585 = vsyncpa [#allocation42], 1
    %6586 = vsyncpa [#allocation45], 1
    %6587 = vsyncpa [#allocation48], 1
    %6588 = vsyncpa [#allocation51], 1
    %6589 = vsyncpa [#allocation16], 1
    %s6590 = scalar_lea.sflag [#allocation16], 1
    %6591 = vsyncpa %s6590, 1

</llo_original>
